<compile_context>
chip_gen: v5e
topology: v5e:2x2
jax: 0.10.0
libtpu: 0.0.40
codegen_flags: <defaults>
</compile_context>

<pallas_src>
import numpy as np
import jax
import jax.numpy as jnp
from jax.experimental import pallas as pl
from jax.experimental.pallas import tpu as pltpu

CPAD = 128  # lane-padded channel width


# ---------------- constant 0/1 structure matrices (host side, built once) -----------

def _pool_select(in_hw, out_hw, di, dj):
    """Selects corner (di,dj) of every 2x2 window of a flattened in_hw x in_hw grid."""
    m = np.zeros((out_hw * out_hw, in_hw * in_hw), np.float32)
    for a in range(out_hw):
        for b in range(out_hw):
            m[a * out_hw + b, (2 * a + di) * in_hw + (2 * b + dj)] = 1.0
    return m


def _shift_select(hw, dy, dx):
    """Selects the (dy-1, dx-1)-shifted neighbour on a flattened hw x hw grid
    (zero rows implement the conv zero padding)."""
    m = np.zeros((hw * hw, hw * hw), np.float32)
    for h in range(hw):
        for w in range(hw):
            a, b = h + dy - 1, w + dx - 1
            if 0 <= a < hw and 0 <= b < hw:
                m[h * hw + w, a * hw + b] = 1.0
    return m


_S1 = jnp.asarray(np.stack([_pool_select(28, 14, di, dj)
                            for di in (0, 1) for dj in (0, 1)]))          # (4, 196, 784)
_S2 = jnp.asarray(np.stack([_pool_select(14, 7, di, dj)
                            for di in (0, 1) for dj in (0, 1)]))          # (4, 49, 196)
_TSH = jnp.asarray(np.stack([_shift_select(14, dy, dx)
                             for dy in range(3) for dx in range(3)]))     # (9, 196, 196)


# ------------------------------- the fused Pallas kernel ----------------------------

def _cnn_kernel(p0_ref, w1_ref, b1_ref, s1_ref, w2_ref, b2_ref,
                tsh_ref, s2_ref, wfc_ref, bfc_ref, out_ref):
    f32 = jnp.float32

    # conv1 (3x3, pad 1) + bias + ReLU : (784, 9) @ (9, 128) -> (784, 128)
    h1 = jnp.dot(p0_ref[0], w1_ref[...], preferred_element_type=f32)
    h1 = jnp.maximum(h1 + b1_ref[...], 0.0)

    # maxpool 2x2 / stride 2: elementwise max of 4 corner selections -> (196, 128)
    p1 = jnp.dot(s1_ref[0], h1, preferred_element_type=f32)
    for c in range(1, 4):
        p1 = jnp.maximum(p1, jnp.dot(s1_ref[c], h1, preferred_element_type=f32))

    # conv2 (3x3, pad 1): sum over 9 taps of (shift-select @ p1) @ W2_tap -> (196, 128)
    acc2 = jnp.dot(jnp.dot(tsh_ref[0], p1, preferred_element_type=f32),
                   w2_ref[0], preferred_element_type=f32)
    for t in range(1, 9):
        xt = jnp.dot(tsh_ref[t], p1, preferred_element_type=f32)
        acc2 = acc2 + jnp.dot(xt, w2_ref[t], preferred_element_type=f32)
    h2 = jnp.maximum(acc2 + b2_ref[...], 0.0)

    # maxpool 2x2 / stride 2 -> (49, 128)
    p2 = jnp.dot(s2_ref[0], h2, preferred_element_type=f32)
    for c in range(1, 4):
        p2 = jnp.maximum(p2, jnp.dot(s2_ref[c], h2, preferred_element_type=f32))

    # fc: out[n] = sum_{u,c} p2[u, c] * Wfc[n, u, c] + bfc[n]   (10 VPU reductions)
    lane = jax.lax.broadcasted_iota(jnp.int32, (1, CPAD), 1)
    out_row = bfc_ref[...]
    for n in range(10):
        prod = p2 * wfc_ref[n]
        sn = jnp.sum(jnp.sum(prod, axis=1, keepdims=True), axis=0, keepdims=True)  # (1, 1)
        out_row = out_row + jnp.where(lane == n, sn, 0.0)

    out_ref[0] = jnp.broadcast_to(out_row, (8, CPAD))


# ------------------------------ one-time parameter prep -----------------------------

def prepare_params(params):
    """Hoisted out of the forward: tap-major conv weights, channels padded to 128
    lanes, fc weight rearranged to the kernel's (spatial, channel) layout."""
    w1, b1, w2, b2, wfc, bfc = params
    w1m = jnp.zeros((9, CPAD), jnp.float32).at[:, :16].set(
        jnp.transpose(w1.reshape(16, 9), (1, 0)))
    b1v = jnp.zeros((1, CPAD), jnp.float32).at[0, :16].set(b1)
    w2m = jnp.zeros((9, CPAD, CPAD), jnp.float32).at[:, :16, :32].set(
        jnp.transpose(w2, (2, 3, 1, 0)).reshape(9, 16, 32))
    b2v = jnp.zeros((1, CPAD), jnp.float32).at[0, :32].set(b2)
    # PyTorch flatten order of (B, 32, 7, 7) is c*49 + h*7 + w  ->  (n, u=7h+w, c)
    wfc3 = jnp.zeros((10, 49, CPAD), jnp.float32).at[:, :, :32].set(
        jnp.transpose(wfc.reshape(10, 32, 49), (0, 2, 1)))
    bfcv = jnp.zeros((1, CPAD), jnp.float32).at[0, :10].set(bfc)
    return w1m, b1v, w2m, b2v, wfc3, bfcv


# ------------------------------------ forward ---------------------------------------

def _conv1_patches(x_nchw):
    """Tiny im2col of the *network input* only: (B,1,28,28) -> (B, 784, 9)."""
    xq = jnp.pad(x_nchw[:, 0].astype(jnp.float32), ((0, 0), (1, 1), (1, 1)))  # (B,30,30)
    cols = [xq[:, dy:dy + 28, dx:dx + 28] for dy in range(3) for dx in range(3)]
    return jnp.stack(cols, axis=-1).reshape(x_nchw.shape[0], 784, 9)


@jax.jit
def cnn_forward(x_nchw, prepped):
    w1m, b1v, w2m, b2v, wfc3, bfcv = prepped
    B = x_nchw.shape[0]
    p0 = _conv1_patches(x_nchw)

    out = pl.pallas_call(
        _cnn_kernel,
        out_shape=jax.ShapeDtypeStruct((B, 8, CPAD), jnp.float32),
        grid_spec=pltpu.PrefetchScalarGridSpec(
            num_scalar_prefetch=0,
            grid=(B,),
            in_specs=[
                pl.BlockSpec((1, 784, 9), lambda b: (b, 0, 0)),      # conv1 patches (per image)
                pl.BlockSpec((9, CPAD), lambda b: (0, 0)),           # conv1 weight
                pl.BlockSpec((1, CPAD), lambda b: (0, 0)),           # conv1 bias
                pl.BlockSpec((4, 196, 784), lambda b: (0, 0, 0)),    # pool1 corner selectors
                pl.BlockSpec((9, CPAD, CPAD), lambda b: (0, 0, 0)),  # conv2 weight (tap-major)
                pl.BlockSpec((1, CPAD), lambda b: (0, 0)),           # conv2 bias
                pl.BlockSpec((9, 196, 196), lambda b: (0, 0, 0)),    # conv2 tap shift selectors
                pl.BlockSpec((4, 49, 196), lambda b: (0, 0, 0)),     # pool2 corner selectors
                pl.BlockSpec((10, 49, CPAD), lambda b: (0, 0, 0)),   # fc weight
                pl.BlockSpec((1, CPAD), lambda b: (0, 0)),           # fc bias
            ],
            out_specs=pl.BlockSpec((1, 8, CPAD), lambda b: (b, 0, 0)),
        ),
        compiler_params=pltpu.CompilerParams(
            dimension_semantics=("parallel",),      # images shard across v7x's 2 TCs
            vmem_limit_bytes=32 * 1024 * 1024,      # fits v5e/v6e/v7x
        ),
    )(p0, w1m, b1v, _S1, w2m, b2v, _TSH, _S2, wfc3, bfcv)

    return out[:, 0, :10]


# ---------------------------- reference (plain JAX / XLA) ----------------------------

def reference_forward(x_nchw, params):
    w1, b1, w2, b2, wfc, bfc = params
    dn = ('NCHW', 'OIHW', 'NCHW')

    def conv(x, w, b):
        y = jax.lax.conv_general_dilated(x, w, (1, 1), ((1, 1), (1, 1)),
                                         dimension_numbers=dn)
        return y + b.reshape(1, -1, 1, 1)

    def pool(x):
        return jax.lax.reduce_window(x, -jnp.inf, jax.lax.max,
                                     (1, 1, 2, 2), (1, 1, 2, 2), 'VALID')

    h = pool(jnp.maximum(conv(x_nchw, w1, b1), 0.0))
    h = pool(jnp.maximum(conv(h, w2, b2), 0.0))
    h = h.reshape(h.shape[0], -1)
    return h @ wfc.T + bfc


# -------------------------------------- main ----------------------------------------

if __name__ == "__main__":
    key = jax.random.PRNGKey(0)
    kx, k1, k2, k3, k4, k5, k6 = jax.random.split(key, 7)

    # deterministic synthetic parameters (same shapes as the PyTorch module)
    w1 = jax.random.normal(k1, (16, 1, 3, 3), jnp.float32) * 0.1
    b1 = jax.random.normal(k2, (16,), jnp.float32) * 0.1
    w2 = jax.random.normal(k3, (32, 16, 3, 3), jnp.float32) * 0.05
    b2 = jax.random.normal(k4, (32,), jnp.float32) * 0.1
    wfc = jax.random.normal(k5, (10, 32 * 7 * 7), jnp.float32) * 0.02
    bfc = jax.random.normal(k6, (10,), jnp.float32) * 0.1
    params = (w1, b1, w2, b2, wfc, bfc)

    # the fc layer (32*7*7) fixes the spatial size: input must be (B, 1, 28, 28)
    x = jax.random.normal(kx, (2, 1, 28, 28), jnp.float32)

    prepped = prepare_params(params)          # hoisted one-time weight preprocessing
    out = jax.block_until_ready(cnn_forward(x, prepped))

    ref = jax.block_until_ready(reference_forward(x, params))
    assert out.shape == (2, 10), out.shape
    max_err = float(jnp.max(jnp.abs(out - ref)))
    assert jnp.allclose(out, ref, atol=1e-3, rtol=1e-3), max_err

    print("KERNEL_OK")
</pallas_src>

<mosaic_0001>
module attributes {stable_mosaic.version = 11 : i64} {
  func.func @_cnn_kernel(%arg0: i32, %arg1: memref<1x784x9xf32, #tpu.memory_space<vmem>>, %arg2: memref<9x128xf32, #tpu.memory_space<vmem>>, %arg3: memref<1x128xf32, #tpu.memory_space<vmem>>, %arg4: memref<4x196x784xf32, #tpu.memory_space<vmem>>, %arg5: memref<9x128x128xf32, #tpu.memory_space<vmem>>, %arg6: memref<1x128xf32, #tpu.memory_space<vmem>>, %arg7: memref<9x196x196xf32, #tpu.memory_space<vmem>>, %arg8: memref<4x49x196xf32, #tpu.memory_space<vmem>>, %arg9: memref<10x49x128xf32, #tpu.memory_space<vmem>>, %arg10: memref<1x128xf32, #tpu.memory_space<vmem>>, %arg11: memref<1x8x128xf32, #tpu.memory_space<vmem>>) attributes {dimension_semantics = [#tpu.dimension_semantics<parallel>], iteration_bounds = array<i64: 2>, scalar_prefetch = 0 : i64, scratch_operands = 0 : i64, tpu.core_type = #tpu.core_type<tc>, window_params = [{transform_indices = @transform_0, window_bounds = array<i64: 1, 784, 9>}, {pipeline_mode = #tpu.pipeline_mode<synchronous>, transform_indices = @transform_1, window_bounds = array<i64: 9, 128>}, {pipeline_mode = #tpu.pipeline_mode<synchronous>, transform_indices = @transform_2, window_bounds = array<i64: 1, 128>}, {pipeline_mode = #tpu.pipeline_mode<synchronous>, transform_indices = @transform_3, window_bounds = array<i64: 4, 196, 784>}, {pipeline_mode = #tpu.pipeline_mode<synchronous>, transform_indices = @transform_4, window_bounds = array<i64: 9, 128, 128>}, {pipeline_mode = #tpu.pipeline_mode<synchronous>, transform_indices = @transform_5, window_bounds = array<i64: 1, 128>}, {pipeline_mode = #tpu.pipeline_mode<synchronous>, transform_indices = @transform_6, window_bounds = array<i64: 9, 196, 196>}, {pipeline_mode = #tpu.pipeline_mode<synchronous>, transform_indices = @transform_7, window_bounds = array<i64: 4, 49, 196>}, {pipeline_mode = #tpu.pipeline_mode<synchronous>, transform_indices = @transform_8, window_bounds = array<i64: 10, 49, 128>}, {pipeline_mode = #tpu.pipeline_mode<synchronous>, transform_indices = @transform_9, window_bounds = array<i64: 1, 128>}, {transform_indices = @transform_10, window_bounds = array<i64: 1, 8, 128>}]} {
    %c0 = arith.constant 0 : index
    %c0_0 = arith.constant 0 : index
    %c0_1 = arith.constant 0 : index
    %0 = vector.load %arg1[%c0, %c0_0, %c0_1] : memref<1x784x9xf32, #tpu.memory_space<vmem>>, vector<1x784x9xf32>
    %1 = vector.shape_cast %0 : vector<1x784x9xf32> to vector<784x9xf32>
    %c0_2 = arith.constant 0 : index
    %c0_3 = arith.constant 0 : index
    %2 = vector.load %arg2[%c0_2, %c0_3] : memref<9x128xf32, #tpu.memory_space<vmem>>, vector<9x128xf32>
    %cst = arith.constant dense<0.000000e+00> : vector<784x128xf32>
    %3 = tpu.matmul %1, %2, %cst {dimension_numbers = #tpu.dot_dimension_numbers<[1], [0], [0], [1], [0, 0, 1, 1], [], []>} : vector<784x9xf32>, vector<9x128xf32>, vector<784x128xf32> -> vector<784x128xf32>
    %c0_4 = arith.constant 0 : index
    %c0_5 = arith.constant 0 : index
    %4 = vector.load %arg3[%c0_4, %c0_5] : memref<1x128xf32, #tpu.memory_space<vmem>>, vector<1x128xf32>
    %5 = vector.broadcast %4 : vector<1x128xf32> to vector<784x128xf32>
    %6 = arith.addf %3, %5 : vector<784x128xf32>
    %cst_6 = arith.constant 0.000000e+00 : f32
    %7 = vector.broadcast %cst_6 : f32 to vector<784x128xf32>
    %8 = arith.maximumf %6, %7 : vector<784x128xf32>
    %c0_7 = arith.constant 0 : index
    %c0_8 = arith.constant 0 : index
    %c0_9 = arith.constant 0 : index
    %9 = vector.load %arg4[%c0_7, %c0_8, %c0_9] : memref<4x196x784xf32, #tpu.memory_space<vmem>>, vector<1x196x784xf32>
    %10 = vector.shape_cast %9 : vector<1x196x784xf32> to vector<196x784xf32>
    %cst_10 = arith.constant dense<0.000000e+00> : vector<196x128xf32>
    %11 = tpu.matmul %10, %8, %cst_10 {dimension_numbers = #tpu.dot_dimension_numbers<[1], [0], [0], [1], [0, 0, 1, 1], [], []>} : vector<196x784xf32>, vector<784x128xf32>, vector<196x128xf32> -> vector<196x128xf32>
    %c1 = arith.constant 1 : index
    %c0_11 = arith.constant 0 : index
    %c0_12 = arith.constant 0 : index
    %12 = vector.load %arg4[%c1, %c0_11, %c0_12] : memref<4x196x784xf32, #tpu.memory_space<vmem>>, vector<1x196x784xf32>
    %13 = vector.shape_cast %12 : vector<1x196x784xf32> to vector<196x784xf32>
    %cst_13 = arith.constant dense<0.000000e+00> : vector<196x128xf32>
    %14 = tpu.matmul %13, %8, %cst_13 {dimension_numbers = #tpu.dot_dimension_numbers<[1], [0], [0], [1], [0, 0, 1, 1], [], []>} : vector<196x784xf32>, vector<784x128xf32>, vector<196x128xf32> -> vector<196x128xf32>
    %15 = arith.maximumf %11, %14 : vector<196x128xf32>
    %c2 = arith.constant 2 : index
    %c0_14 = arith.constant 0 : index
    %c0_15 = arith.constant 0 : index
    %16 = vector.load %arg4[%c2, %c0_14, %c0_15] : memref<4x196x784xf32, #tpu.memory_space<vmem>>, vector<1x196x784xf32>
    %17 = vector.shape_cast %16 : vector<1x196x784xf32> to vector<196x784xf32>
    %cst_16 = arith.constant dense<0.000000e+00> : vector<196x128xf32>
    %18 = tpu.matmul %17, %8, %cst_16 {dimension_numbers = #tpu.dot_dimension_numbers<[1], [0], [0], [1], [0, 0, 1, 1], [], []>} : vector<196x784xf32>, vector<784x128xf32>, vector<196x128xf32> -> vector<196x128xf32>
    %19 = arith.maximumf %15, %18 : vector<196x128xf32>
    %c3 = arith.constant 3 : index
    %c0_17 = arith.constant 0 : index
    %c0_18 = arith.constant 0 : index
    %20 = vector.load %arg4[%c3, %c0_17, %c0_18] : memref<4x196x784xf32, #tpu.memory_space<vmem>>, vector<1x196x784xf32>
    %21 = vector.shape_cast %20 : vector<1x196x784xf32> to vector<196x784xf32>
    %cst_19 = arith.constant dense<0.000000e+00> : vector<196x128xf32>
    %22 = tpu.matmul %21, %8, %cst_19 {dimension_numbers = #tpu.dot_dimension_numbers<[1], [0], [0], [1], [0, 0, 1, 1], [], []>} : vector<196x784xf32>, vector<784x128xf32>, vector<196x128xf32> -> vector<196x128xf32>
    %23 = arith.maximumf %19, %22 : vector<196x128xf32>
    %c0_20 = arith.constant 0 : index
    %c0_21 = arith.constant 0 : index
    %c0_22 = arith.constant 0 : index
    %24 = vector.load %arg7[%c0_20, %c0_21, %c0_22] : memref<9x196x196xf32, #tpu.memory_space<vmem>>, vector<1x196x196xf32>
    %25 = vector.shape_cast %24 : vector<1x196x196xf32> to vector<196x196xf32>
    %cst_23 = arith.constant dense<0.000000e+00> : vector<196x128xf32>
    %26 = tpu.matmul %25, %23, %cst_23 {dimension_numbers = #tpu.dot_dimension_numbers<[1], [0], [0], [1], [0, 0, 1, 1], [], []>} : vector<196x196xf32>, vector<196x128xf32>, vector<196x128xf32> -> vector<196x128xf32>
    %c0_24 = arith.constant 0 : index
    %c0_25 = arith.constant 0 : index
    %c0_26 = arith.constant 0 : index
    %27 = vector.load %arg5[%c0_24, %c0_25, %c0_26] : memref<9x128x128xf32, #tpu.memory_space<vmem>>, vector<1x128x128xf32>
    %28 = vector.shape_cast %27 : vector<1x128x128xf32> to vector<128x128xf32>
    %cst_27 = arith.constant dense<0.000000e+00> : vector<196x128xf32>
    %29 = tpu.matmul %26, %28, %cst_27 {dimension_numbers = #tpu.dot_dimension_numbers<[1], [0], [0], [1], [0, 0, 1, 1], [], []>} : vector<196x128xf32>, vector<128x128xf32>, vector<196x128xf32> -> vector<196x128xf32>
    %c1_28 = arith.constant 1 : index
    %c0_29 = arith.constant 0 : index
    %c0_30 = arith.constant 0 : index
    %30 = vector.load %arg7[%c1_28, %c0_29, %c0_30] : memref<9x196x196xf32, #tpu.memory_space<vmem>>, vector<1x196x196xf32>
    %31 = vector.shape_cast %30 : vector<1x196x196xf32> to vector<196x196xf32>
    %cst_31 = arith.constant dense<0.000000e+00> : vector<196x128xf32>
    %32 = tpu.matmul %31, %23, %cst_31 {dimension_numbers = #tpu.dot_dimension_numbers<[1], [0], [0], [1], [0, 0, 1, 1], [], []>} : vector<196x196xf32>, vector<196x128xf32>, vector<196x128xf32> -> vector<196x128xf32>
    %c1_32 = arith.constant 1 : index
    %c0_33 = arith.constant 0 : index
    %c0_34 = arith.constant 0 : index
    %33 = vector.load %arg5[%c1_32, %c0_33, %c0_34] : memref<9x128x128xf32, #tpu.memory_space<vmem>>, vector<1x128x128xf32>
    %34 = vector.shape_cast %33 : vector<1x128x128xf32> to vector<128x128xf32>
    %cst_35 = arith.constant dense<0.000000e+00> : vector<196x128xf32>
    %35 = tpu.matmul %32, %34, %cst_35 {dimension_numbers = #tpu.dot_dimension_numbers<[1], [0], [0], [1], [0, 0, 1, 1], [], []>} : vector<196x128xf32>, vector<128x128xf32>, vector<196x128xf32> -> vector<196x128xf32>
    %36 = arith.addf %29, %35 : vector<196x128xf32>
    %c2_36 = arith.constant 2 : index
    %c0_37 = arith.constant 0 : index
    %c0_38 = arith.constant 0 : index
    %37 = vector.load %arg7[%c2_36, %c0_37, %c0_38] : memref<9x196x196xf32, #tpu.memory_space<vmem>>, vector<1x196x196xf32>
    %38 = vector.shape_cast %37 : vector<1x196x196xf32> to vector<196x196xf32>
    %cst_39 = arith.constant dense<0.000000e+00> : vector<196x128xf32>
    %39 = tpu.matmul %38, %23, %cst_39 {dimension_numbers = #tpu.dot_dimension_numbers<[1], [0], [0], [1], [0, 0, 1, 1], [], []>} : vector<196x196xf32>, vector<196x128xf32>, vector<196x128xf32> -> vector<196x128xf32>
    %c2_40 = arith.constant 2 : index
    %c0_41 = arith.constant 0 : index
    %c0_42 = arith.constant 0 : index
    %40 = vector.load %arg5[%c2_40, %c0_41, %c0_42] : memref<9x128x128xf32, #tpu.memory_space<vmem>>, vector<1x128x128xf32>
    %41 = vector.shape_cast %40 : vector<1x128x128xf32> to vector<128x128xf32>
    %cst_43 = arith.constant dense<0.000000e+00> : vector<196x128xf32>
    %42 = tpu.matmul %39, %41, %cst_43 {dimension_numbers = #tpu.dot_dimension_numbers<[1], [0], [0], [1], [0, 0, 1, 1], [], []>} : vector<196x128xf32>, vector<128x128xf32>, vector<196x128xf32> -> vector<196x128xf32>
    %43 = arith.addf %36, %42 : vector<196x128xf32>
    %c3_44 = arith.constant 3 : index
    %c0_45 = arith.constant 0 : index
    %c0_46 = arith.constant 0 : index
    %44 = vector.load %arg7[%c3_44, %c0_45, %c0_46] : memref<9x196x196xf32, #tpu.memory_space<vmem>>, vector<1x196x196xf32>
    %45 = vector.shape_cast %44 : vector<1x196x196xf32> to vector<196x196xf32>
    %cst_47 = arith.constant dense<0.000000e+00> : vector<196x128xf32>
    %46 = tpu.matmul %45, %23, %cst_47 {dimension_numbers = #tpu.dot_dimension_numbers<[1], [0], [0], [1], [0, 0, 1, 1], [], []>} : vector<196x196xf32>, vector<196x128xf32>, vector<196x128xf32> -> vector<196x128xf32>
    %c3_48 = arith.constant 3 : index
    %c0_49 = arith.constant 0 : index
    %c0_50 = arith.constant 0 : index
    %47 = vector.load %arg5[%c3_48, %c0_49, %c0_50] : memref<9x128x128xf32, #tpu.memory_space<vmem>>, vector<1x128x128xf32>
    %48 = vector.shape_cast %47 : vector<1x128x128xf32> to vector<128x128xf32>
    %cst_51 = arith.constant dense<0.000000e+00> : vector<196x128xf32>
    %49 = tpu.matmul %46, %48, %cst_51 {dimension_numbers = #tpu.dot_dimension_numbers<[1], [0], [0], [1], [0, 0, 1, 1], [], []>} : vector<196x128xf32>, vector<128x128xf32>, vector<196x128xf32> -> vector<196x128xf32>
    %50 = arith.addf %43, %49 : vector<196x128xf32>
    %c4 = arith.constant 4 : index
    %c0_52 = arith.constant 0 : index
    %c0_53 = arith.constant 0 : index
    %51 = vector.load %arg7[%c4, %c0_52, %c0_53] : memref<9x196x196xf32, #tpu.memory_space<vmem>>, vector<1x196x196xf32>
    %52 = vector.shape_cast %51 : vector<1x196x196xf32> to vector<196x196xf32>
    %cst_54 = arith.constant dense<0.000000e+00> : vector<196x128xf32>
    %53 = tpu.matmul %52, %23, %cst_54 {dimension_numbers = #tpu.dot_dimension_numbers<[1], [0], [0], [1], [0, 0, 1, 1], [], []>} : vector<196x196xf32>, vector<196x128xf32>, vector<196x128xf32> -> vector<196x128xf32>
    %c4_55 = arith.constant 4 : index
    %c0_56 = arith.constant 0 : index
    %c0_57 = arith.constant 0 : index
    %54 = vector.load %arg5[%c4_55, %c0_56, %c0_57] : memref<9x128x128xf32, #tpu.memory_space<vmem>>, vector<1x128x128xf32>
    %55 = vector.shape_cast %54 : vector<1x128x128xf32> to vector<128x128xf32>
    %cst_58 = arith.constant dense<0.000000e+00> : vector<196x128xf32>
    %56 = tpu.matmul %53, %55, %cst_58 {dimension_numbers = #tpu.dot_dimension_numbers<[1], [0], [0], [1], [0, 0, 1, 1], [], []>} : vector<196x128xf32>, vector<128x128xf32>, vector<196x128xf32> -> vector<196x128xf32>
    %57 = arith.addf %50, %56 : vector<196x128xf32>
    %c5 = arith.constant 5 : index
    %c0_59 = arith.constant 0 : index
    %c0_60 = arith.constant 0 : index
    %58 = vector.load %arg7[%c5, %c0_59, %c0_60] : memref<9x196x196xf32, #tpu.memory_space<vmem>>, vector<1x196x196xf32>
    %59 = vector.shape_cast %58 : vector<1x196x196xf32> to vector<196x196xf32>
    %cst_61 = arith.constant dense<0.000000e+00> : vector<196x128xf32>
    %60 = tpu.matmul %59, %23, %cst_61 {dimension_numbers = #tpu.dot_dimension_numbers<[1], [0], [0], [1], [0, 0, 1, 1], [], []>} : vector<196x196xf32>, vector<196x128xf32>, vector<196x128xf32> -> vector<196x128xf32>
    %c5_62 = arith.constant 5 : index
    %c0_63 = arith.constant 0 : index
    %c0_64 = arith.constant 0 : index
    %61 = vector.load %arg5[%c5_62, %c0_63, %c0_64] : memref<9x128x128xf32, #tpu.memory_space<vmem>>, vector<1x128x128xf32>
    %62 = vector.shape_cast %61 : vector<1x128x128xf32> to vector<128x128xf32>
    %cst_65 = arith.constant dense<0.000000e+00> : vector<196x128xf32>
    %63 = tpu.matmul %60, %62, %cst_65 {dimension_numbers = #tpu.dot_dimension_numbers<[1], [0], [0], [1], [0, 0, 1, 1], [], []>} : vector<196x128xf32>, vector<128x128xf32>, vector<196x128xf32> -> vector<196x128xf32>
    %64 = arith.addf %57, %63 : vector<196x128xf32>
    %c6 = arith.constant 6 : index
    %c0_66 = arith.constant 0 : index
    %c0_67 = arith.constant 0 : index
    %65 = vector.load %arg7[%c6, %c0_66, %c0_67] : memref<9x196x196xf32, #tpu.memory_space<vmem>>, vector<1x196x196xf32>
    %66 = vector.shape_cast %65 : vector<1x196x196xf32> to vector<196x196xf32>
    %cst_68 = arith.constant dense<0.000000e+00> : vector<196x128xf32>
    %67 = tpu.matmul %66, %23, %cst_68 {dimension_numbers = #tpu.dot_dimension_numbers<[1], [0], [0], [1], [0, 0, 1, 1], [], []>} : vector<196x196xf32>, vector<196x128xf32>, vector<196x128xf32> -> vector<196x128xf32>
    %c6_69 = arith.constant 6 : index
    %c0_70 = arith.constant 0 : index
    %c0_71 = arith.constant 0 : index
    %68 = vector.load %arg5[%c6_69, %c0_70, %c0_71] : memref<9x128x128xf32, #tpu.memory_space<vmem>>, vector<1x128x128xf32>
    %69 = vector.shape_cast %68 : vector<1x128x128xf32> to vector<128x128xf32>
    %cst_72 = arith.constant dense<0.000000e+00> : vector<196x128xf32>
    %70 = tpu.matmul %67, %69, %cst_72 {dimension_numbers = #tpu.dot_dimension_numbers<[1], [0], [0], [1], [0, 0, 1, 1], [], []>} : vector<196x128xf32>, vector<128x128xf32>, vector<196x128xf32> -> vector<196x128xf32>
    %71 = arith.addf %64, %70 : vector<196x128xf32>
    %c7 = arith.constant 7 : index
    %c0_73 = arith.constant 0 : index
    %c0_74 = arith.constant 0 : index
    %72 = vector.load %arg7[%c7, %c0_73, %c0_74] : memref<9x196x196xf32, #tpu.memory_space<vmem>>, vector<1x196x196xf32>
    %73 = vector.shape_cast %72 : vector<1x196x196xf32> to vector<196x196xf32>
    %cst_75 = arith.constant dense<0.000000e+00> : vector<196x128xf32>
    %74 = tpu.matmul %73, %23, %cst_75 {dimension_numbers = #tpu.dot_dimension_numbers<[1], [0], [0], [1], [0, 0, 1, 1], [], []>} : vector<196x196xf32>, vector<196x128xf32>, vector<196x128xf32> -> vector<196x128xf32>
    %c7_76 = arith.constant 7 : index
    %c0_77 = arith.constant 0 : index
    %c0_78 = arith.constant 0 : index
    %75 = vector.load %arg5[%c7_76, %c0_77, %c0_78] : memref<9x128x128xf32, #tpu.memory_space<vmem>>, vector<1x128x128xf32>
    %76 = vector.shape_cast %75 : vector<1x128x128xf32> to vector<128x128xf32>
    %cst_79 = arith.constant dense<0.000000e+00> : vector<196x128xf32>
    %77 = tpu.matmul %74, %76, %cst_79 {dimension_numbers = #tpu.dot_dimension_numbers<[1], [0], [0], [1], [0, 0, 1, 1], [], []>} : vector<196x128xf32>, vector<128x128xf32>, vector<196x128xf32> -> vector<196x128xf32>
    %78 = arith.addf %71, %77 : vector<196x128xf32>
    %c8 = arith.constant 8 : index
    %c0_80 = arith.constant 0 : index
    %c0_81 = arith.constant 0 : index
    %79 = vector.load %arg7[%c8, %c0_80, %c0_81] : memref<9x196x196xf32, #tpu.memory_space<vmem>>, vector<1x196x196xf32>
    %80 = vector.shape_cast %79 : vector<1x196x196xf32> to vector<196x196xf32>
    %cst_82 = arith.constant dense<0.000000e+00> : vector<196x128xf32>
    %81 = tpu.matmul %80, %23, %cst_82 {dimension_numbers = #tpu.dot_dimension_numbers<[1], [0], [0], [1], [0, 0, 1, 1], [], []>} : vector<196x196xf32>, vector<196x128xf32>, vector<196x128xf32> -> vector<196x128xf32>
    %c8_83 = arith.constant 8 : index
    %c0_84 = arith.constant 0 : index
    %c0_85 = arith.constant 0 : index
    %82 = vector.load %arg5[%c8_83, %c0_84, %c0_85] : memref<9x128x128xf32, #tpu.memory_space<vmem>>, vector<1x128x128xf32>
    %83 = vector.shape_cast %82 : vector<1x128x128xf32> to vector<128x128xf32>
    %cst_86 = arith.constant dense<0.000000e+00> : vector<196x128xf32>
    %84 = tpu.matmul %81, %83, %cst_86 {dimension_numbers = #tpu.dot_dimension_numbers<[1], [0], [0], [1], [0, 0, 1, 1], [], []>} : vector<196x128xf32>, vector<128x128xf32>, vector<196x128xf32> -> vector<196x128xf32>
    %85 = arith.addf %78, %84 : vector<196x128xf32>
    %c0_87 = arith.constant 0 : index
    %c0_88 = arith.constant 0 : index
    %86 = vector.load %arg6[%c0_87, %c0_88] : memref<1x128xf32, #tpu.memory_space<vmem>>, vector<1x128xf32>
    %87 = vector.broadcast %86 : vector<1x128xf32> to vector<196x128xf32>
    %88 = arith.addf %85, %87 : vector<196x128xf32>
    %cst_89 = arith.constant 0.000000e+00 : f32
    %89 = vector.broadcast %cst_89 : f32 to vector<196x128xf32>
    %90 = arith.maximumf %88, %89 : vector<196x128xf32>
    %c0_90 = arith.constant 0 : index
    %c0_91 = arith.constant 0 : index
    %c0_92 = arith.constant 0 : index
    %91 = vector.load %arg8[%c0_90, %c0_91, %c0_92] : memref<4x49x196xf32, #tpu.memory_space<vmem>>, vector<1x49x196xf32>
    %92 = vector.shape_cast %91 : vector<1x49x196xf32> to vector<49x196xf32>
    %cst_93 = arith.constant dense<0.000000e+00> : vector<49x128xf32>
    %93 = tpu.matmul %92, %90, %cst_93 {dimension_numbers = #tpu.dot_dimension_numbers<[1], [0], [0], [1], [0, 0, 1, 1], [], []>} : vector<49x196xf32>, vector<196x128xf32>, vector<49x128xf32> -> vector<49x128xf32>
    %c1_94 = arith.constant 1 : index
    %c0_95 = arith.constant 0 : index
    %c0_96 = arith.constant 0 : index
    %94 = vector.load %arg8[%c1_94, %c0_95, %c0_96] : memref<4x49x196xf32, #tpu.memory_space<vmem>>, vector<1x49x196xf32>
    %95 = vector.shape_cast %94 : vector<1x49x196xf32> to vector<49x196xf32>
    %cst_97 = arith.constant dense<0.000000e+00> : vector<49x128xf32>
    %96 = tpu.matmul %95, %90, %cst_97 {dimension_numbers = #tpu.dot_dimension_numbers<[1], [0], [0], [1], [0, 0, 1, 1], [], []>} : vector<49x196xf32>, vector<196x128xf32>, vector<49x128xf32> -> vector<49x128xf32>
    %97 = arith.maximumf %93, %96 : vector<49x128xf32>
    %c2_98 = arith.constant 2 : index
    %c0_99 = arith.constant 0 : index
    %c0_100 = arith.constant 0 : index
    %98 = vector.load %arg8[%c2_98, %c0_99, %c0_100] : memref<4x49x196xf32, #tpu.memory_space<vmem>>, vector<1x49x196xf32>
    %99 = vector.shape_cast %98 : vector<1x49x196xf32> to vector<49x196xf32>
    %cst_101 = arith.constant dense<0.000000e+00> : vector<49x128xf32>
    %100 = tpu.matmul %99, %90, %cst_101 {dimension_numbers = #tpu.dot_dimension_numbers<[1], [0], [0], [1], [0, 0, 1, 1], [], []>} : vector<49x196xf32>, vector<196x128xf32>, vector<49x128xf32> -> vector<49x128xf32>
    %101 = arith.maximumf %97, %100 : vector<49x128xf32>
    %c3_102 = arith.constant 3 : index
    %c0_103 = arith.constant 0 : index
    %c0_104 = arith.constant 0 : index
    %102 = vector.load %arg8[%c3_102, %c0_103, %c0_104] : memref<4x49x196xf32, #tpu.memory_space<vmem>>, vector<1x49x196xf32>
    %103 = vector.shape_cast %102 : vector<1x49x196xf32> to vector<49x196xf32>
    %cst_105 = arith.constant dense<0.000000e+00> : vector<49x128xf32>
    %104 = tpu.matmul %103, %90, %cst_105 {dimension_numbers = #tpu.dot_dimension_numbers<[1], [0], [0], [1], [0, 0, 1, 1], [], []>} : vector<49x196xf32>, vector<196x128xf32>, vector<49x128xf32> -> vector<49x128xf32>
    %105 = arith.maximumf %101, %104 : vector<49x128xf32>
    %106 = tpu.iota {dimensions = array<i32: 1>} : vector<1x128xi32>
    %c0_106 = arith.constant 0 : index
    %c0_107 = arith.constant 0 : index
    %107 = vector.load %arg10[%c0_106, %c0_107] : memref<1x128xf32, #tpu.memory_space<vmem>>, vector<1x128xf32>
    %c0_108 = arith.constant 0 : index
    %c0_109 = arith.constant 0 : index
    %c0_110 = arith.constant 0 : index
    %108 = vector.load %arg9[%c0_108, %c0_109, %c0_110] : memref<10x49x128xf32, #tpu.memory_space<vmem>>, vector<1x49x128xf32>
    %109 = vector.shape_cast %108 : vector<1x49x128xf32> to vector<49x128xf32>
    %110 = arith.mulf %105, %109 : vector<49x128xf32>
    %cst_111 = arith.constant dense<0.000000e+00> : vector<49xf32>
    %111 = vector.multi_reduction <add>, %110, %cst_111 [1] : vector<49x128xf32> to vector<49xf32>
    %112 = vector.shape_cast %111 : vector<49xf32> to vector<49x1xf32>
    %cst_112 = arith.constant dense<0.000000e+00> : vector<1xf32>
    %113 = vector.multi_reduction <add>, %112, %cst_112 [0] : vector<49x1xf32> to vector<1xf32>
    %114 = vector.shape_cast %113 : vector<1xf32> to vector<1x1xf32>
    %c0_i32 = arith.constant 0 : i32
    %115 = vector.broadcast %c0_i32 : i32 to vector<1x128xi32>
    %116 = arith.cmpi eq, %106, %115 : vector<1x128xi32>
    %cst_113 = arith.constant 0.000000e+00 : f32
    %117 = vector.shape_cast %114 : vector<1x1xf32> to vector<1x1xf32>
    %118 = vector.broadcast %117 : vector<1x1xf32> to vector<1x128xf32>
    %119 = vector.broadcast %cst_113 : f32 to vector<1x128xf32>
    %120 = arith.select %116, %118, %119 : vector<1x128xi1>, vector<1x128xf32>
    %121 = arith.addf %107, %120 : vector<1x128xf32>
    %c1_114 = arith.constant 1 : index
    %c0_115 = arith.constant 0 : index
    %c0_116 = arith.constant 0 : index
    %122 = vector.load %arg9[%c1_114, %c0_115, %c0_116] : memref<10x49x128xf32, #tpu.memory_space<vmem>>, vector<1x49x128xf32>
    %123 = vector.shape_cast %122 : vector<1x49x128xf32> to vector<49x128xf32>
    %124 = arith.mulf %105, %123 : vector<49x128xf32>
    %cst_117 = arith.constant dense<0.000000e+00> : vector<49xf32>
    %125 = vector.multi_reduction <add>, %124, %cst_117 [1] : vector<49x128xf32> to vector<49xf32>
    %126 = vector.shape_cast %125 : vector<49xf32> to vector<49x1xf32>
    %cst_118 = arith.constant dense<0.000000e+00> : vector<1xf32>
    %127 = vector.multi_reduction <add>, %126, %cst_118 [0] : vector<49x1xf32> to vector<1xf32>
    %128 = vector.shape_cast %127 : vector<1xf32> to vector<1x1xf32>
    %c1_i32 = arith.constant 1 : i32
    %129 = vector.broadcast %c1_i32 : i32 to vector<1x128xi32>
    %130 = arith.cmpi eq, %106, %129 : vector<1x128xi32>
    %cst_119 = arith.constant 0.000000e+00 : f32
    %131 = vector.shape_cast %128 : vector<1x1xf32> to vector<1x1xf32>
    %132 = vector.broadcast %131 : vector<1x1xf32> to vector<1x128xf32>
    %133 = vector.broadcast %cst_119 : f32 to vector<1x128xf32>
    %134 = arith.select %130, %132, %133 : vector<1x128xi1>, vector<1x128xf32>
    %135 = arith.addf %121, %134 : vector<1x128xf32>
    %c2_120 = arith.constant 2 : index
    %c0_121 = arith.constant 0 : index
    %c0_122 = arith.constant 0 : index
    %136 = vector.load %arg9[%c2_120, %c0_121, %c0_122] : memref<10x49x128xf32, #tpu.memory_space<vmem>>, vector<1x49x128xf32>
    %137 = vector.shape_cast %136 : vector<1x49x128xf32> to vector<49x128xf32>
    %138 = arith.mulf %105, %137 : vector<49x128xf32>
    %cst_123 = arith.constant dense<0.000000e+00> : vector<49xf32>
    %139 = vector.multi_reduction <add>, %138, %cst_123 [1] : vector<49x128xf32> to vector<49xf32>
    %140 = vector.shape_cast %139 : vector<49xf32> to vector<49x1xf32>
    %cst_124 = arith.constant dense<0.000000e+00> : vector<1xf32>
    %141 = vector.multi_reduction <add>, %140, %cst_124 [0] : vector<49x1xf32> to vector<1xf32>
    %142 = vector.shape_cast %141 : vector<1xf32> to vector<1x1xf32>
    %c2_i32 = arith.constant 2 : i32
    %143 = vector.broadcast %c2_i32 : i32 to vector<1x128xi32>
    %144 = arith.cmpi eq, %106, %143 : vector<1x128xi32>
    %cst_125 = arith.constant 0.000000e+00 : f32
    %145 = vector.shape_cast %142 : vector<1x1xf32> to vector<1x1xf32>
    %146 = vector.broadcast %145 : vector<1x1xf32> to vector<1x128xf32>
    %147 = vector.broadcast %cst_125 : f32 to vector<1x128xf32>
    %148 = arith.select %144, %146, %147 : vector<1x128xi1>, vector<1x128xf32>
    %149 = arith.addf %135, %148 : vector<1x128xf32>
    %c3_126 = arith.constant 3 : index
    %c0_127 = arith.constant 0 : index
    %c0_128 = arith.constant 0 : index
    %150 = vector.load %arg9[%c3_126, %c0_127, %c0_128] : memref<10x49x128xf32, #tpu.memory_space<vmem>>, vector<1x49x128xf32>
    %151 = vector.shape_cast %150 : vector<1x49x128xf32> to vector<49x128xf32>
    %152 = arith.mulf %105, %151 : vector<49x128xf32>
    %cst_129 = arith.constant dense<0.000000e+00> : vector<49xf32>
    %153 = vector.multi_reduction <add>, %152, %cst_129 [1] : vector<49x128xf32> to vector<49xf32>
    %154 = vector.shape_cast %153 : vector<49xf32> to vector<49x1xf32>
    %cst_130 = arith.constant dense<0.000000e+00> : vector<1xf32>
    %155 = vector.multi_reduction <add>, %154, %cst_130 [0] : vector<49x1xf32> to vector<1xf32>
    %156 = vector.shape_cast %155 : vector<1xf32> to vector<1x1xf32>
    %c3_i32 = arith.constant 3 : i32
    %157 = vector.broadcast %c3_i32 : i32 to vector<1x128xi32>
    %158 = arith.cmpi eq, %106, %157 : vector<1x128xi32>
    %cst_131 = arith.constant 0.000000e+00 : f32
    %159 = vector.shape_cast %156 : vector<1x1xf32> to vector<1x1xf32>
    %160 = vector.broadcast %159 : vector<1x1xf32> to vector<1x128xf32>
    %161 = vector.broadcast %cst_131 : f32 to vector<1x128xf32>
    %162 = arith.select %158, %160, %161 : vector<1x128xi1>, vector<1x128xf32>
    %163 = arith.addf %149, %162 : vector<1x128xf32>
    %c4_132 = arith.constant 4 : index
    %c0_133 = arith.constant 0 : index
    %c0_134 = arith.constant 0 : index
    %164 = vector.load %arg9[%c4_132, %c0_133, %c0_134] : memref<10x49x128xf32, #tpu.memory_space<vmem>>, vector<1x49x128xf32>
    %165 = vector.shape_cast %164 : vector<1x49x128xf32> to vector<49x128xf32>
    %166 = arith.mulf %105, %165 : vector<49x128xf32>
    %cst_135 = arith.constant dense<0.000000e+00> : vector<49xf32>
    %167 = vector.multi_reduction <add>, %166, %cst_135 [1] : vector<49x128xf32> to vector<49xf32>
    %168 = vector.shape_cast %167 : vector<49xf32> to vector<49x1xf32>
    %cst_136 = arith.constant dense<0.000000e+00> : vector<1xf32>
    %169 = vector.multi_reduction <add>, %168, %cst_136 [0] : vector<49x1xf32> to vector<1xf32>
    %170 = vector.shape_cast %169 : vector<1xf32> to vector<1x1xf32>
    %c4_i32 = arith.constant 4 : i32
    %171 = vector.broadcast %c4_i32 : i32 to vector<1x128xi32>
    %172 = arith.cmpi eq, %106, %171 : vector<1x128xi32>
    %cst_137 = arith.constant 0.000000e+00 : f32
    %173 = vector.shape_cast %170 : vector<1x1xf32> to vector<1x1xf32>
    %174 = vector.broadcast %173 : vector<1x1xf32> to vector<1x128xf32>
    %175 = vector.broadcast %cst_137 : f32 to vector<1x128xf32>
    %176 = arith.select %172, %174, %175 : vector<1x128xi1>, vector<1x128xf32>
    %177 = arith.addf %163, %176 : vector<1x128xf32>
    %c5_138 = arith.constant 5 : index
    %c0_139 = arith.constant 0 : index
    %c0_140 = arith.constant 0 : index
    %178 = vector.load %arg9[%c5_138, %c0_139, %c0_140] : memref<10x49x128xf32, #tpu.memory_space<vmem>>, vector<1x49x128xf32>
    %179 = vector.shape_cast %178 : vector<1x49x128xf32> to vector<49x128xf32>
    %180 = arith.mulf %105, %179 : vector<49x128xf32>
    %cst_141 = arith.constant dense<0.000000e+00> : vector<49xf32>
    %181 = vector.multi_reduction <add>, %180, %cst_141 [1] : vector<49x128xf32> to vector<49xf32>
    %182 = vector.shape_cast %181 : vector<49xf32> to vector<49x1xf32>
    %cst_142 = arith.constant dense<0.000000e+00> : vector<1xf32>
    %183 = vector.multi_reduction <add>, %182, %cst_142 [0] : vector<49x1xf32> to vector<1xf32>
    %184 = vector.shape_cast %183 : vector<1xf32> to vector<1x1xf32>
    %c5_i32 = arith.constant 5 : i32
    %185 = vector.broadcast %c5_i32 : i32 to vector<1x128xi32>
    %186 = arith.cmpi eq, %106, %185 : vector<1x128xi32>
    %cst_143 = arith.constant 0.000000e+00 : f32
    %187 = vector.shape_cast %184 : vector<1x1xf32> to vector<1x1xf32>
    %188 = vector.broadcast %187 : vector<1x1xf32> to vector<1x128xf32>
    %189 = vector.broadcast %cst_143 : f32 to vector<1x128xf32>
    %190 = arith.select %186, %188, %189 : vector<1x128xi1>, vector<1x128xf32>
    %191 = arith.addf %177, %190 : vector<1x128xf32>
    %c6_144 = arith.constant 6 : index
    %c0_145 = arith.constant 0 : index
    %c0_146 = arith.constant 0 : index
    %192 = vector.load %arg9[%c6_144, %c0_145, %c0_146] : memref<10x49x128xf32, #tpu.memory_space<vmem>>, vector<1x49x128xf32>
    %193 = vector.shape_cast %192 : vector<1x49x128xf32> to vector<49x128xf32>
    %194 = arith.mulf %105, %193 : vector<49x128xf32>
    %cst_147 = arith.constant dense<0.000000e+00> : vector<49xf32>
    %195 = vector.multi_reduction <add>, %194, %cst_147 [1] : vector<49x128xf32> to vector<49xf32>
    %196 = vector.shape_cast %195 : vector<49xf32> to vector<49x1xf32>
    %cst_148 = arith.constant dense<0.000000e+00> : vector<1xf32>
    %197 = vector.multi_reduction <add>, %196, %cst_148 [0] : vector<49x1xf32> to vector<1xf32>
    %198 = vector.shape_cast %197 : vector<1xf32> to vector<1x1xf32>
    %c6_i32 = arith.constant 6 : i32
    %199 = vector.broadcast %c6_i32 : i32 to vector<1x128xi32>
    %200 = arith.cmpi eq, %106, %199 : vector<1x128xi32>
    %cst_149 = arith.constant 0.000000e+00 : f32
    %201 = vector.shape_cast %198 : vector<1x1xf32> to vector<1x1xf32>
    %202 = vector.broadcast %201 : vector<1x1xf32> to vector<1x128xf32>
    %203 = vector.broadcast %cst_149 : f32 to vector<1x128xf32>
    %204 = arith.select %200, %202, %203 : vector<1x128xi1>, vector<1x128xf32>
    %205 = arith.addf %191, %204 : vector<1x128xf32>
    %c7_150 = arith.constant 7 : index
    %c0_151 = arith.constant 0 : index
    %c0_152 = arith.constant 0 : index
    %206 = vector.load %arg9[%c7_150, %c0_151, %c0_152] : memref<10x49x128xf32, #tpu.memory_space<vmem>>, vector<1x49x128xf32>
    %207 = vector.shape_cast %206 : vector<1x49x128xf32> to vector<49x128xf32>
    %208 = arith.mulf %105, %207 : vector<49x128xf32>
    %cst_153 = arith.constant dense<0.000000e+00> : vector<49xf32>
    %209 = vector.multi_reduction <add>, %208, %cst_153 [1] : vector<49x128xf32> to vector<49xf32>
    %210 = vector.shape_cast %209 : vector<49xf32> to vector<49x1xf32>
    %cst_154 = arith.constant dense<0.000000e+00> : vector<1xf32>
    %211 = vector.multi_reduction <add>, %210, %cst_154 [0] : vector<49x1xf32> to vector<1xf32>
    %212 = vector.shape_cast %211 : vector<1xf32> to vector<1x1xf32>
    %c7_i32 = arith.constant 7 : i32
    %213 = vector.broadcast %c7_i32 : i32 to vector<1x128xi32>
    %214 = arith.cmpi eq, %106, %213 : vector<1x128xi32>
    %cst_155 = arith.constant 0.000000e+00 : f32
    %215 = vector.shape_cast %212 : vector<1x1xf32> to vector<1x1xf32>
    %216 = vector.broadcast %215 : vector<1x1xf32> to vector<1x128xf32>
    %217 = vector.broadcast %cst_155 : f32 to vector<1x128xf32>
    %218 = arith.select %214, %216, %217 : vector<1x128xi1>, vector<1x128xf32>
    %219 = arith.addf %205, %218 : vector<1x128xf32>
    %c8_156 = arith.constant 8 : index
    %c0_157 = arith.constant 0 : index
    %c0_158 = arith.constant 0 : index
    %220 = vector.load %arg9[%c8_156, %c0_157, %c0_158] : memref<10x49x128xf32, #tpu.memory_space<vmem>>, vector<1x49x128xf32>
    %221 = vector.shape_cast %220 : vector<1x49x128xf32> to vector<49x128xf32>
    %222 = arith.mulf %105, %221 : vector<49x128xf32>
    %cst_159 = arith.constant dense<0.000000e+00> : vector<49xf32>
    %223 = vector.multi_reduction <add>, %222, %cst_159 [1] : vector<49x128xf32> to vector<49xf32>
    %224 = vector.shape_cast %223 : vector<49xf32> to vector<49x1xf32>
    %cst_160 = arith.constant dense<0.000000e+00> : vector<1xf32>
    %225 = vector.multi_reduction <add>, %224, %cst_160 [0] : vector<49x1xf32> to vector<1xf32>
    %226 = vector.shape_cast %225 : vector<1xf32> to vector<1x1xf32>
    %c8_i32 = arith.constant 8 : i32
    %227 = vector.broadcast %c8_i32 : i32 to vector<1x128xi32>
    %228 = arith.cmpi eq, %106, %227 : vector<1x128xi32>
    %cst_161 = arith.constant 0.000000e+00 : f32
    %229 = vector.shape_cast %226 : vector<1x1xf32> to vector<1x1xf32>
    %230 = vector.broadcast %229 : vector<1x1xf32> to vector<1x128xf32>
    %231 = vector.broadcast %cst_161 : f32 to vector<1x128xf32>
    %232 = arith.select %228, %230, %231 : vector<1x128xi1>, vector<1x128xf32>
    %233 = arith.addf %219, %232 : vector<1x128xf32>
    %c9 = arith.constant 9 : index
    %c0_162 = arith.constant 0 : index
    %c0_163 = arith.constant 0 : index
    %234 = vector.load %arg9[%c9, %c0_162, %c0_163] : memref<10x49x128xf32, #tpu.memory_space<vmem>>, vector<1x49x128xf32>
    %235 = vector.shape_cast %234 : vector<1x49x128xf32> to vector<49x128xf32>
    %236 = arith.mulf %105, %235 : vector<49x128xf32>
    %cst_164 = arith.constant dense<0.000000e+00> : vector<49xf32>
    %237 = vector.multi_reduction <add>, %236, %cst_164 [1] : vector<49x128xf32> to vector<49xf32>
    %238 = vector.shape_cast %237 : vector<49xf32> to vector<49x1xf32>
    %cst_165 = arith.constant dense<0.000000e+00> : vector<1xf32>
    %239 = vector.multi_reduction <add>, %238, %cst_165 [0] : vector<49x1xf32> to vector<1xf32>
    %240 = vector.shape_cast %239 : vector<1xf32> to vector<1x1xf32>
    %c9_i32 = arith.constant 9 : i32
    %241 = vector.broadcast %c9_i32 : i32 to vector<1x128xi32>
    %242 = arith.cmpi eq, %106, %241 : vector<1x128xi32>
    %cst_166 = arith.constant 0.000000e+00 : f32
    %243 = vector.shape_cast %240 : vector<1x1xf32> to vector<1x1xf32>
    %244 = vector.broadcast %243 : vector<1x1xf32> to vector<1x128xf32>
    %245 = vector.broadcast %cst_166 : f32 to vector<1x128xf32>
    %246 = arith.select %242, %244, %245 : vector<1x128xi1>, vector<1x128xf32>
    %247 = arith.addf %233, %246 : vector<1x128xf32>
    %248 = vector.shape_cast %247 : vector<1x128xf32> to vector<1x128xf32>
    %249 = vector.broadcast %248 : vector<1x128xf32> to vector<8x128xf32>
    %c0_167 = arith.constant 0 : index
    %c0_168 = arith.constant 0 : index
    %c0_169 = arith.constant 0 : index
    %250 = vector.load %arg11[%c0_167, %c0_168, %c0_169] : memref<1x8x128xf32, #tpu.memory_space<vmem>>, vector<1x8x128xf32>
    %251 = vector.shape_cast %250 : vector<1x8x128xf32> to vector<8x128xf32>
    %252 = vector.shape_cast %249 : vector<8x128xf32> to vector<1x8x128xf32>
    tpu.vector_store %arg11[%c0_167, %c0_168, %c0_169], %252 {strides = array<i32>} : memref<1x8x128xf32, #tpu.memory_space<vmem>>, vector<1x8x128xf32>,
    return
  }
  func.func @transform_0(%arg0: i32) -> (i32, i32, i32) {
    %c0_i32 = arith.constant 0 : i32
    %c0_i32_0 = arith.constant 0 : i32
    %c0_i32_1 = arith.constant 0 : i32
    return %arg0, %c0_i32, %c0_i32_0 : i32, i32, i32
  }
  func.func @transform_1(%arg0: i32) -> (i32, i32) {
    %c0_i32 = arith.constant 0 : i32
    %c0_i32_0 = arith.constant 0 : i32
    %c0_i32_1 = arith.constant 0 : i32
    return %c0_i32, %c0_i32_0 : i32, i32
  }
  func.func @transform_2(%arg0: i32) -> (i32, i32) {
    %c0_i32 = arith.constant 0 : i32
    %c0_i32_0 = arith.constant 0 : i32
    %c0_i32_1 = arith.constant 0 : i32
    return %c0_i32, %c0_i32_0 : i32, i32
  }
  func.func @transform_3(%arg0: i32) -> (i32, i32, i32) {
    %c0_i32 = arith.constant 0 : i32
    %c0_i32_0 = arith.constant 0 : i32
    %c0_i32_1 = arith.constant 0 : i32
    %c0_i32_2 = arith.constant 0 : i32
    return %c0_i32, %c0_i32_0, %c0_i32_1 : i32, i32, i32
  }
  func.func @transform_4(%arg0: i32) -> (i32, i32, i32) {
    %c0_i32 = arith.constant 0 : i32
    %c0_i32_0 = arith.constant 0 : i32
    %c0_i32_1 = arith.constant 0 : i32
    %c0_i32_2 = arith.constant 0 : i32
    return %c0_i32, %c0_i32_0, %c0_i32_1 : i32, i32, i32
  }
  func.func @transform_5(%arg0: i32) -> (i32, i32) {
    %c0_i32 = arith.constant 0 : i32
    %c0_i32_0 = arith.constant 0 : i32
    %c0_i32_1 = arith.constant 0 : i32
    return %c0_i32, %c0_i32_0 : i32, i32
  }
  func.func @transform_6(%arg0: i32) -> (i32, i32, i32) {
    %c0_i32 = arith.constant 0 : i32
    %c0_i32_0 = arith.constant 0 : i32
    %c0_i32_1 = arith.constant 0 : i32
    %c0_i32_2 = arith.constant 0 : i32
    return %c0_i32, %c0_i32_0, %c0_i32_1 : i32, i32, i32
  }
  func.func @transform_7(%arg0: i32) -> (i32, i32, i32) {
    %c0_i32 = arith.constant 0 : i32
    %c0_i32_0 = arith.constant 0 : i32
    %c0_i32_1 = arith.constant 0 : i32
    %c0_i32_2 = arith.constant 0 : i32
    return %c0_i32, %c0_i32_0, %c0_i32_1 : i32, i32, i32
  }
  func.func @transform_8(%arg0: i32) -> (i32, i32, i32) {
    %c0_i32 = arith.constant 0 : i32
    %c0_i32_0 = arith.constant 0 : i32
    %c0_i32_1 = arith.constant 0 : i32
    %c0_i32_2 = arith.constant 0 : i32
    return %c0_i32, %c0_i32_0, %c0_i32_1 : i32, i32, i32
  }
  func.func @transform_9(%arg0: i32) -> (i32, i32) {
    %c0_i32 = arith.constant 0 : i32
    %c0_i32_0 = arith.constant 0 : i32
    %c0_i32_1 = arith.constant 0 : i32
    return %c0_i32, %c0_i32_0 : i32, i32
  }
  func.func @transform_10(%arg0: i32) -> (i32, i32, i32) {
    %c0_i32 = arith.constant 0 : i32
    %c0_i32_0 = arith.constant 0 : i32
    %c0_i32_1 = arith.constant 0 : i32
    return %arg0, %c0_i32, %c0_i32_0 : i32, i32, i32
  }
}

</mosaic_0001>

<llo_original>
// kernel: cnn_forward.1
$region0: #{cnn_forward.1}
  #allocation0 [shape = 'u32[]', space=smem, size = 0x4, offset = 0x4, fixed_abs, tag = 'smem constant byte address 0x4 - core index']
  #allocation1 [shape = 'u32[72,128]{1,0:T(1,128)}', space=vmem, size = 0x9000, scoped, tag = 'internal scratch']
  %s0 = inlined_call_operand.vmem [shape: f32[2,784,9], index: 0, kind: input, shape index: {}]
  %s1 = inlined_call_operand.hbm [shape: f32[9,128], index: 1, kind: input, shape index: {}]
  %s2 = inlined_call_operand.hbm [shape: f32[1,128], index: 2, kind: input, shape index: {}]
  %s3 = inlined_call_operand.hbm [shape: f32[4,196,784], index: 3, kind: input, shape index: {}]
  %s4 = inlined_call_operand.hbm [shape: f32[9,128,128], index: 4, kind: input, shape index: {}]
  %s5 = inlined_call_operand.hbm [shape: f32[1,128], index: 5, kind: input, shape index: {}]
  %s6 = inlined_call_operand.hbm [shape: f32[9,196,196], index: 6, kind: input, shape index: {}]
  %s7 = inlined_call_operand.hbm [shape: f32[4,49,196], index: 7, kind: input, shape index: {}]
  %s8 = inlined_call_operand.hbm [shape: f32[10,49,128], index: 8, kind: input, shape index: {}]
  %s9 = inlined_call_operand.hbm [shape: f32[1,128], index: 9, kind: input, shape index: {}]
  %s10 = inlined_call_operand.vmem [shape: f32[2,8,128], index: 10, kind: output, shape index: {}]
  %s11 = sld [smem:[#allocation0]]
  $region109: #{cnn_forward.1} parent=0
    _
  %s13 = ssub.s32 1, %s11
  %s14 = scalar_select 0, %s13, %s11
  $region1: #{cnn_forward.1} parent=0
    #allocation2 [shape = 'u8[8192]{0}', space=vmem, size = 0x2000, scoped, tag = 'input window, operand 1, single buffered']
    #allocation3 [shape = 's32[2]{0}', space=sflag, size = 0x8, scoped, tag = 'scoped memory for cnn_forward.1']
    #allocation4 [shape = 'u8[512]{0}', space=vmem, size = 0x400, scoped, tag = 'input window, operand 2, single buffered']
    #allocation5 [shape = 's32[1]{0}', space=sflag, size = 0x4, scoped, tag = 'scoped memory for cnn_forward.1']
    #allocation6 [shape = 'u8[2867200]{0}', space=vmem, size = 0x2bc000, scoped, tag = 'input window, operand 3, single buffered']
    #allocation7 [shape = 'u8[589824]{0}', space=vmem, size = 0x90000, scoped, tag = 'input window, operand 4, single buffered']
    #allocation8 [shape = 's32[1]{0}', space=sflag, size = 0x4, scoped, tag = 'scoped memory for cnn_forward.1']
    #allocation9 [shape = 'u8[512]{0}', space=vmem, size = 0x400, scoped, tag = 'input window, operand 5, single buffered']
    #allocation10 [shape = 'u8[1843200]{0}', space=vmem, size = 0x1c2000, scoped, tag = 'input window, operand 6, single buffered']
    #allocation11 [shape = 's32[1]{0}', space=sflag, size = 0x4, scoped, tag = 'scoped memory for cnn_forward.1']
    #allocation12 [shape = 'u8[229376]{0}', space=vmem, size = 0x38000, scoped, tag = 'input window, operand 7, single buffered']
    #allocation13 [shape = 'u8[286720]{0}', space=vmem, size = 0x46000, scoped, tag = 'input window, operand 8, single buffered']
    #allocation14 [shape = 's32[1]{0}', space=sflag, size = 0x4, scoped, tag = 'scoped memory for cnn_forward.1']
    #allocation15 [shape = 'u8[512]{0}', space=vmem, size = 0x400, scoped, tag = 'input window, operand 9, single buffered']
    %15 = vsyncpa [#allocation3], 0
    %16 = vsyncpa [#allocation5], 0
    %17 = vsyncpa [#allocation8], 0
    %18 = vsyncpa [#allocation11], 0
    %19 = vsyncpa [#allocation14], 0
    loop: start=0, step=1, limit=4
    $region2: #{cnn_forward.1} parent=1 // loop_pre_header
      _
    $region3: #{cnn_forward.1} parent=1 // loop_header
      %s21 = sphi 0, %s25
      %p22 = scmp.ge.s32.totalorder %s21, 4
      %s31 = sphi 0, %s33
      %s34 = sphi 0, %s31
      %s35 = sphi 0, %s34
      %s51 = sphi 0, %s35
      %s55 = sphi 0, %s55
      %s57 = sphi 0, %s55
      %s58 = sphi 0, %s57
      %s72 = sphi 0, %s58
      %s76 = sphi 0, %s76
      %s78 = sphi 0, %s76
      %s79 = sphi 0, %s78
      %s93 = sphi 0, %s79
      %s97 = sphi 0, %s97
      %s99 = sphi 0, %s97
      %s100 = sphi 0, %s99
      %s114 = sphi 0, %s100
      %s118 = sphi 0, %s118
      %s120 = sphi 0, %s118
      %s121 = sphi 0, %s120
      %s135 = sphi 0, %s121
      %s139 = sphi 0, %s139
      %s141 = sphi 0, %s139
      %s142 = sphi 0, %s141
      %s156 = sphi 0, %s142
      %s160 = sphi 0, %s160
      %s162 = sphi 0, %s160
      %s163 = sphi 0, %s162
      %s177 = sphi 0, %s163
      %s181 = sphi 0, %s181
      %s183 = sphi 0, %s181
      %s184 = sphi 0, %s183
      %s198 = sphi 0, %s184
      %s202 = sphi 0, %s202
      %s204 = sphi 0, %s202
      %s205 = sphi 0, %s204
      %s219 = sphi 0, %s205
      %s223 = sphi 0, %s223
      %s225 = sphi 0, %s223
      %s226 = sphi 0, %s225
      %s240 = sphi 0, %s226
      %s246 = sphi 0, %s248
      %s249 = sphi 0, %s246
      %s250 = sphi 0, %s249
      %s266 = sphi 0, %s250
    $region4: #{cnn_forward.1} parent=1 // loop_header_branch
      %24 = sbr.rel (%p22) target = $region8
    $region5: #{cnn_forward.1} parent=1 // loop_body
      %s26 = ssub.s32 %s21, 1
      %s27 = ssub.s32 %s21, 2
      %s28 = sadd.s32 %s21, 1
      %s29 = ssub.s32 %s21, %s28
      %p30 = scmp.eq.s32.totalorder %s29, 0
      %s32 = sadd.s32 %s31, 1
      %s33 = scalar_select %p30, %s31, %s32
      %p36 = pneg %p30
      %p37 = scmp.eq.s32.totalorder %s21, 1
      %p38 = por %p36, %p37
      %p39 = scmp.ne.s32.totalorder %s31, %s34
      %p40 = scmp.eq.s32.totalorder %s21, 0
      %p41 = por %p39, %p40
      %p42 = scmp.ne.s32.totalorder %s31, %s34
      %p43 = scmp.eq.s32.totalorder %s26, 1
      %p44 = por %p42, %p43
      %p45 = scmp.ne.s32.totalorder %s34, %s35
      %p46 = scmp.eq.s32.totalorder %s26, 0
      %p47 = por %p45, %p46
      %p48 = scmp.ne.s32.totalorder %s34, %s35
      %p49 = scmp.eq.s32.totalorder %s27, 1
      %p50 = por %p48, %p49
      %p52 = scmp.ne.s32.totalorder %s35, %s51
      %p53 = scmp.eq.s32.totalorder %s27, 0
      %p54 = por %p52, %p53
      %s56 = sadd.s32 %s55, 1
      %p59 = scmp.eq.s32.totalorder %s21, 1
      %p60 = scmp.ne.s32.totalorder %s55, %s57
      %p61 = scmp.eq.s32.totalorder %s21, 0
      %p62 = por %p60, %p61
      %p63 = scmp.ne.s32.totalorder %s55, %s57
      %p64 = scmp.eq.s32.totalorder %s26, 1
      %p65 = por %p63, %p64
      %p66 = scmp.ne.s32.totalorder %s57, %s58
      %p67 = scmp.eq.s32.totalorder %s26, 0
      %p68 = por %p66, %p67
      %p69 = scmp.ne.s32.totalorder %s57, %s58
      %p70 = scmp.eq.s32.totalorder %s27, 1
      %p71 = por %p69, %p70
      %p73 = scmp.ne.s32.totalorder %s58, %s72
      %p74 = scmp.eq.s32.totalorder %s27, 0
      %p75 = por %p73, %p74
      %s77 = sadd.s32 %s76, 1
      %p80 = scmp.eq.s32.totalorder %s21, 1
      %p81 = scmp.ne.s32.totalorder %s76, %s78
      %p82 = scmp.eq.s32.totalorder %s21, 0
      %p83 = por %p81, %p82
      %p84 = scmp.ne.s32.totalorder %s76, %s78
      %p85 = scmp.eq.s32.totalorder %s26, 1
      %p86 = por %p84, %p85
      %p87 = scmp.ne.s32.totalorder %s78, %s79
      %p88 = scmp.eq.s32.totalorder %s26, 0
      %p89 = por %p87, %p88
      %p90 = scmp.ne.s32.totalorder %s78, %s79
      %p91 = scmp.eq.s32.totalorder %s27, 1
      %p92 = por %p90, %p91
      %p94 = scmp.ne.s32.totalorder %s79, %s93
      %p95 = scmp.eq.s32.totalorder %s27, 0
      %p96 = por %p94, %p95
      %s98 = sadd.s32 %s97, 1
      %p101 = scmp.eq.s32.totalorder %s21, 1
      %p102 = scmp.ne.s32.totalorder %s97, %s99
      %p103 = scmp.eq.s32.totalorder %s21, 0
      %p104 = por %p102, %p103
      %p105 = scmp.ne.s32.totalorder %s97, %s99
      %p106 = scmp.eq.s32.totalorder %s26, 1
      %p107 = por %p105, %p106
      %p108 = scmp.ne.s32.totalorder %s99, %s100
      %p109 = scmp.eq.s32.totalorder %s26, 0
      %p110 = por %p108, %p109
      %p111 = scmp.ne.s32.totalorder %s99, %s100
      %p112 = scmp.eq.s32.totalorder %s27, 1
      %p113 = por %p111, %p112
      %p115 = scmp.ne.s32.totalorder %s100, %s114
      %p116 = scmp.eq.s32.totalorder %s27, 0
      %p117 = por %p115, %p116
      %s119 = sadd.s32 %s118, 1
      %p122 = scmp.eq.s32.totalorder %s21, 1
      %p123 = scmp.ne.s32.totalorder %s118, %s120
      %p124 = scmp.eq.s32.totalorder %s21, 0
      %p125 = por %p123, %p124
      %p126 = scmp.ne.s32.totalorder %s118, %s120
      %p127 = scmp.eq.s32.totalorder %s26, 1
      %p128 = por %p126, %p127
      %p129 = scmp.ne.s32.totalorder %s120, %s121
      %p130 = scmp.eq.s32.totalorder %s26, 0
      %p131 = por %p129, %p130
      %p132 = scmp.ne.s32.totalorder %s120, %s121
      %p133 = scmp.eq.s32.totalorder %s27, 1
      %p134 = por %p132, %p133
      %p136 = scmp.ne.s32.totalorder %s121, %s135
      %p137 = scmp.eq.s32.totalorder %s27, 0
      %p138 = por %p136, %p137
      %s140 = sadd.s32 %s139, 1
      %p143 = scmp.eq.s32.totalorder %s21, 1
      %p144 = scmp.ne.s32.totalorder %s139, %s141
      %p145 = scmp.eq.s32.totalorder %s21, 0
      %p146 = por %p144, %p145
      %p147 = scmp.ne.s32.totalorder %s139, %s141
      %p148 = scmp.eq.s32.totalorder %s26, 1
      %p149 = por %p147, %p148
      %p150 = scmp.ne.s32.totalorder %s141, %s142
      %p151 = scmp.eq.s32.totalorder %s26, 0
      %p152 = por %p150, %p151
      %p153 = scmp.ne.s32.totalorder %s141, %s142
      %p154 = scmp.eq.s32.totalorder %s27, 1
      %p155 = por %p153, %p154
      %p157 = scmp.ne.s32.totalorder %s142, %s156
      %p158 = scmp.eq.s32.totalorder %s27, 0
      %p159 = por %p157, %p158
      %s161 = sadd.s32 %s160, 1
      %p164 = scmp.eq.s32.totalorder %s21, 1
      %p165 = scmp.ne.s32.totalorder %s160, %s162
      %p166 = scmp.eq.s32.totalorder %s21, 0
      %p167 = por %p165, %p166
      %p168 = scmp.ne.s32.totalorder %s160, %s162
      %p169 = scmp.eq.s32.totalorder %s26, 1
      %p170 = por %p168, %p169
      %p171 = scmp.ne.s32.totalorder %s162, %s163
      %p172 = scmp.eq.s32.totalorder %s26, 0
      %p173 = por %p171, %p172
      %p174 = scmp.ne.s32.totalorder %s162, %s163
      %p175 = scmp.eq.s32.totalorder %s27, 1
      %p176 = por %p174, %p175
      %p178 = scmp.ne.s32.totalorder %s163, %s177
      %p179 = scmp.eq.s32.totalorder %s27, 0
      %p180 = por %p178, %p179
      %s182 = sadd.s32 %s181, 1
      %p185 = scmp.eq.s32.totalorder %s21, 1
      %p186 = scmp.ne.s32.totalorder %s181, %s183
      %p187 = scmp.eq.s32.totalorder %s21, 0
      %p188 = por %p186, %p187
      %p189 = scmp.ne.s32.totalorder %s181, %s183
      %p190 = scmp.eq.s32.totalorder %s26, 1
      %p191 = por %p189, %p190
      %p192 = scmp.ne.s32.totalorder %s183, %s184
      %p193 = scmp.eq.s32.totalorder %s26, 0
      %p194 = por %p192, %p193
      %p195 = scmp.ne.s32.totalorder %s183, %s184
      %p196 = scmp.eq.s32.totalorder %s27, 1
      %p197 = por %p195, %p196
      %p199 = scmp.ne.s32.totalorder %s184, %s198
      %p200 = scmp.eq.s32.totalorder %s27, 0
      %p201 = por %p199, %p200
      %s203 = sadd.s32 %s202, 1
      %p206 = scmp.eq.s32.totalorder %s21, 1
      %p207 = scmp.ne.s32.totalorder %s202, %s204
      %p208 = scmp.eq.s32.totalorder %s21, 0
      %p209 = por %p207, %p208
      %p210 = scmp.ne.s32.totalorder %s202, %s204
      %p211 = scmp.eq.s32.totalorder %s26, 1
      %p212 = por %p210, %p211
      %p213 = scmp.ne.s32.totalorder %s204, %s205
      %p214 = scmp.eq.s32.totalorder %s26, 0
      %p215 = por %p213, %p214
      %p216 = scmp.ne.s32.totalorder %s204, %s205
      %p217 = scmp.eq.s32.totalorder %s27, 1
      %p218 = por %p216, %p217
      %p220 = scmp.ne.s32.totalorder %s205, %s219
      %p221 = scmp.eq.s32.totalorder %s27, 0
      %p222 = por %p220, %p221
      %s224 = sadd.s32 %s223, 1
      %p227 = scmp.eq.s32.totalorder %s21, 1
      %p228 = scmp.ne.s32.totalorder %s223, %s225
      %p229 = scmp.eq.s32.totalorder %s21, 0
      %p230 = por %p228, %p229
      %p231 = scmp.ne.s32.totalorder %s223, %s225
      %p232 = scmp.eq.s32.totalorder %s26, 1
      %p233 = por %p231, %p232
      %p234 = scmp.ne.s32.totalorder %s225, %s226
      %p235 = scmp.eq.s32.totalorder %s26, 0
      %p236 = por %p234, %p235
      %p237 = scmp.ne.s32.totalorder %s225, %s226
      %p238 = scmp.eq.s32.totalorder %s27, 1
      %p239 = por %p237, %p238
      %p241 = scmp.ne.s32.totalorder %s226, %s240
      %p242 = scmp.eq.s32.totalorder %s27, 0
      %p243 = por %p241, %p242
      %s244 = ssub.s32 %s21, %s28
      %p245 = scmp.eq.s32.totalorder %s244, 0
      %s247 = sadd.s32 %s246, 1
      %s248 = scalar_select %p245, %s246, %s247
      %p251 = pneg %p245
      %p252 = scmp.eq.s32.totalorder %s21, 1
      %p253 = por %p251, %p252
      %p254 = scmp.ne.s32.totalorder %s246, %s249
      %p255 = scmp.eq.s32.totalorder %s21, 0
      %p256 = por %p254, %p255
      %p257 = scmp.ne.s32.totalorder %s246, %s249
      %p258 = scmp.eq.s32.totalorder %s26, 1
      %p259 = por %p257, %p258
      %p260 = scmp.ne.s32.totalorder %s249, %s250
      %p261 = scmp.eq.s32.totalorder %s26, 0
      %p262 = por %p260, %p261
      %p263 = scmp.ne.s32.totalorder %s249, %s250
      %p264 = scmp.eq.s32.totalorder %s27, 1
      %p265 = por %p263, %p264
      %p267 = scmp.ne.s32.totalorder %s250, %s266
      %p268 = scmp.eq.s32.totalorder %s27, 0
      %p269 = por %p267, %p268
      %p270 = scmp.le.s32.totalorder 1, %s21
      %p271 = scmp.lt.s32.totalorder %s21, 3
      %p272 = pnand %p270, %p271
      %p273 = pneg %p272
      // Predicated region
      $region9: #{cnn_forward.1} parent=5 // pred_check
        _
      $region10: #{cnn_forward.1} parent=5 // pred_check_branch
        %275 = sbr.rel (%p272) target = $region12
      $region11: #{cnn_forward.1} parent=5 // pred_region
        %s276 = ssub.s32 %s21, 1
        // Predicated region
        $region13: #{cnn_forward.1} parent=11 // pred_check
          %p277 = pneg %p68
        $region14: #{cnn_forward.1} parent=11 // pred_check_branch
          %279 = sbr.rel (%p277) target = $region16
        $region15: #{cnn_forward.1} parent=11 // pred_region
          %281 = vsyncadd [#allocation3], 0
          %s282 = sshll.u32 %s1, 4
          %s283 = int_to_ptr.hbm [resolvable:$true] %s282
          %s284 = sshll.u32 [#allocation2], 4
          %s285 = int_to_ptr.vmem [resolvable:$true] %s284
          %290 = dma.hbm_to_vmem [thread:$0]  %s283, 256, %s285, [#allocation3], 128, 128, 8
        $region16: #{cnn_forward.1} parent=11 // pred_fallthru
          _
        // Predicated region
        $region17: #{cnn_forward.1} parent=11 // pred_check
          %p291 = pneg %p89
        $region18: #{cnn_forward.1} parent=11 // pred_check_branch
          %293 = sbr.rel (%p291) target = $region20
        $region19: #{cnn_forward.1} parent=11 // pred_region
          %295 = vsyncadd [#allocation5], 0
          %s297 = sshll.u32 %s2, 4
          %s298 = int_to_ptr.hbm [resolvable:$true] %s297
          %s299 = sshll.u32 [#allocation4], 4
          %s300 = int_to_ptr.vmem [resolvable:$true] %s299
          %302 = dma.hbm_to_vmem [thread:$0]  %s298, 16, %s300, [#allocation5]
        $region20: #{cnn_forward.1} parent=11 // pred_fallthru
          _
        // Predicated region
        $region21: #{cnn_forward.1} parent=11 // pred_check
          %p303 = pneg %p110
        $region22: #{cnn_forward.1} parent=11 // pred_check_branch
          %305 = sbr.rel (%p303) target = $region24
        $region23: #{cnn_forward.1} parent=11 // pred_region
          %307 = vsyncadd [#allocation5], 0
          %s308 = sshll.u32 %s3, 4
          %s309 = int_to_ptr.hbm [resolvable:$true] %s308
          %s310 = sshll.u32 [#allocation6], 4
          %s311 = int_to_ptr.vmem [resolvable:$true] %s310
          %316 = dma.hbm_to_vmem [thread:$0]  %s309, 89600, %s311, [#allocation5], 896, 896, 56
        $region24: #{cnn_forward.1} parent=11 // pred_fallthru
          _
        // Predicated region
        $region25: #{cnn_forward.1} parent=11 // pred_check
          %p317 = pneg %p131
        $region26: #{cnn_forward.1} parent=11 // pred_check_branch
          %319 = sbr.rel (%p317) target = $region28
        $region27: #{cnn_forward.1} parent=11 // pred_region
          %321 = vsyncadd [#allocation8], 0
          %s322 = sshll.u32 %s4, 4
          %s323 = int_to_ptr.hbm [resolvable:$true] %s322
          %s324 = sshll.u32 [#allocation7], 4
          %s325 = int_to_ptr.vmem [resolvable:$true] %s324
          %330 = dma.hbm_to_vmem [thread:$0]  %s323, 18432, %s325, [#allocation8], 128, 128, 8
        $region28: #{cnn_forward.1} parent=11 // pred_fallthru
          _
        // Predicated region
        $region29: #{cnn_forward.1} parent=11 // pred_check
          %p331 = pneg %p152
        $region30: #{cnn_forward.1} parent=11 // pred_check_branch
          %333 = sbr.rel (%p331) target = $region32
        $region31: #{cnn_forward.1} parent=11 // pred_region
          %335 = vsyncadd [#allocation8], 0
          %s337 = sshll.u32 %s5, 4
          %s338 = int_to_ptr.hbm [resolvable:$true] %s337
          %s339 = sshll.u32 [#allocation9], 4
          %s340 = int_to_ptr.vmem [resolvable:$true] %s339
          %342 = dma.hbm_to_vmem [thread:$0]  %s338, 16, %s340, [#allocation8]
        $region32: #{cnn_forward.1} parent=11 // pred_fallthru
          _
        // Predicated region
        $region33: #{cnn_forward.1} parent=11 // pred_check
          %p343 = pneg %p173
        $region34: #{cnn_forward.1} parent=11 // pred_check_branch
          %345 = sbr.rel (%p343) target = $region36
        $region35: #{cnn_forward.1} parent=11 // pred_region
          %347 = vsyncadd [#allocation11], 0
          %s348 = sshll.u32 %s6, 4
          %s349 = int_to_ptr.hbm [resolvable:$true] %s348
          %s350 = sshll.u32 [#allocation10], 4
          %s351 = int_to_ptr.vmem [resolvable:$true] %s350
          %356 = dma.hbm_to_vmem [thread:$0]  %s349, 57600, %s351, [#allocation11], 256, 256, 16
        $region36: #{cnn_forward.1} parent=11 // pred_fallthru
          _
        // Predicated region
        $region37: #{cnn_forward.1} parent=11 // pred_check
          %p357 = pneg %p194
        $region38: #{cnn_forward.1} parent=11 // pred_check_branch
          %359 = sbr.rel (%p357) target = $region40
        $region39: #{cnn_forward.1} parent=11 // pred_region
          %361 = vsyncadd [#allocation11], 0
          %s362 = sshll.u32 %s7, 4
          %s363 = int_to_ptr.hbm [resolvable:$true] %s362
          %s364 = sshll.u32 [#allocation12], 4
          %s365 = int_to_ptr.vmem [resolvable:$true] %s364
          %370 = dma.hbm_to_vmem [thread:$0]  %s363, 7168, %s365, [#allocation11], 256, 256, 16
        $region40: #{cnn_forward.1} parent=11 // pred_fallthru
          _
        // Predicated region
        $region41: #{cnn_forward.1} parent=11 // pred_check
          %p371 = pneg %p215
        $region42: #{cnn_forward.1} parent=11 // pred_check_branch
          %373 = sbr.rel (%p371) target = $region44
        $region43: #{cnn_forward.1} parent=11 // pred_region
          %375 = vsyncadd [#allocation14], 0
          %s376 = sshll.u32 %s8, 4
          %s377 = int_to_ptr.hbm [resolvable:$true] %s376
          %s378 = sshll.u32 [#allocation13], 4
          %s379 = int_to_ptr.vmem [resolvable:$true] %s378
          %384 = dma.hbm_to_vmem [thread:$0]  %s377, 8960, %s379, [#allocation14], 128, 128, 8
        $region44: #{cnn_forward.1} parent=11 // pred_fallthru
          _
        // Predicated region
        $region45: #{cnn_forward.1} parent=11 // pred_check
          %p385 = pneg %p236
        $region46: #{cnn_forward.1} parent=11 // pred_check_branch
          %387 = sbr.rel (%p385) target = $region48
        $region47: #{cnn_forward.1} parent=11 // pred_region
          %389 = vsyncadd [#allocation14], 0
          %s391 = sshll.u32 %s9, 4
          %s392 = int_to_ptr.hbm [resolvable:$true] %s391
          %s393 = sshll.u32 [#allocation15], 4
          %s394 = int_to_ptr.vmem [resolvable:$true] %s393
          %396 = dma.hbm_to_vmem [thread:$0]  %s392, 16, %s394, [#allocation14]
        $region48: #{cnn_forward.1} parent=11 // pred_fallthru
          _
      $region12: #{cnn_forward.1} parent=5 // pred_fallthru
        _
      %p397 = scmp.lt.s32.totalorder %s21, 2
      // Predicated region
      $region49: #{cnn_forward.1} parent=5 // pred_check
        %p398 = pneg %p397
      $region50: #{cnn_forward.1} parent=5 // pred_check_branch
        %400 = sbr.rel (%p398) target = $region52
      $region51: #{cnn_forward.1} parent=5 // pred_region
        // Predicated region
        $region53: #{cnn_forward.1} parent=51 // pred_check
          %p401 = pneg %p41
        $region54: #{cnn_forward.1} parent=51 // pred_check_branch
          %403 = sbr.rel (%p401) target = $region56
        $region55: #{cnn_forward.1} parent=51 // pred_region
          %p404 = scmp.lt.s32.totalorder %s21, 1
          %s405 = scalar_select %p404, %s21, 1
          %s406 = smul.addr %s405, 98
          %s407 = smul.addr %s406, 8
          %s408 = scalar_lea.vmem %s0, %s407
        $region56: #{cnn_forward.1} parent=51 // pred_fallthru
          _
      $region52: #{cnn_forward.1} parent=5 // pred_fallthru
        _
      %p409 = scmp.le.s32.totalorder 1, %s21
      %p410 = scmp.lt.s32.totalorder %s21, 3
      %p411 = pnand %p409, %p410
      %p412 = pneg %p411
      // Predicated region
      $region57: #{cnn_forward.1} parent=5 // pred_check
        _
      $region58: #{cnn_forward.1} parent=5 // pred_check_branch
        %414 = sbr.rel (%p411) target = $region60
      $region59: #{cnn_forward.1} parent=5 // pred_region
        %s415 = ssub.s32 %s21, 1
        // Predicated region
        $region61: #{cnn_forward.1} parent=59 // pred_check
          %p416 = pneg %p68
        $region62: #{cnn_forward.1} parent=59 // pred_check_branch
          %418 = sbr.rel (%p416) target = $region64
        $region63: #{cnn_forward.1} parent=59 // pred_region
          %420 = dma.done [#allocation3], 256
        $region64: #{cnn_forward.1} parent=59 // pred_fallthru
          _
        // Predicated region
        $region65: #{cnn_forward.1} parent=59 // pred_check
          %p421 = pneg %p89
        $region66: #{cnn_forward.1} parent=59 // pred_check_branch
          %423 = sbr.rel (%p421) target = $region68
        $region67: #{cnn_forward.1} parent=59 // pred_region
          %425 = dma.done [#allocation5], 16
        $region68: #{cnn_forward.1} parent=59 // pred_fallthru
          _
        // Predicated region
        $region69: #{cnn_forward.1} parent=59 // pred_check
          %p426 = pneg %p110
        $region70: #{cnn_forward.1} parent=59 // pred_check_branch
          %428 = sbr.rel (%p426) target = $region72
        $region71: #{cnn_forward.1} parent=59 // pred_region
          %430 = dma.done [#allocation5], 89600
        $region72: #{cnn_forward.1} parent=59 // pred_fallthru
          _
        // Predicated region
        $region73: #{cnn_forward.1} parent=59 // pred_check
          %p431 = pneg %p131
        $region74: #{cnn_forward.1} parent=59 // pred_check_branch
          %433 = sbr.rel (%p431) target = $region76
        $region75: #{cnn_forward.1} parent=59 // pred_region
          %435 = dma.done [#allocation8], 18432
        $region76: #{cnn_forward.1} parent=59 // pred_fallthru
          _
        // Predicated region
        $region77: #{cnn_forward.1} parent=59 // pred_check
          %p436 = pneg %p152
        $region78: #{cnn_forward.1} parent=59 // pred_check_branch
          %438 = sbr.rel (%p436) target = $region80
        $region79: #{cnn_forward.1} parent=59 // pred_region
          %440 = dma.done [#allocation8], 16
        $region80: #{cnn_forward.1} parent=59 // pred_fallthru
          _
        // Predicated region
        $region81: #{cnn_forward.1} parent=59 // pred_check
          %p441 = pneg %p173
        $region82: #{cnn_forward.1} parent=59 // pred_check_branch
          %443 = sbr.rel (%p441) target = $region84
        $region83: #{cnn_forward.1} parent=59 // pred_region
          %445 = dma.done [#allocation11], 57600
        $region84: #{cnn_forward.1} parent=59 // pred_fallthru
          _
        // Predicated region
        $region85: #{cnn_forward.1} parent=59 // pred_check
          %p446 = pneg %p194
        $region86: #{cnn_forward.1} parent=59 // pred_check_branch
          %448 = sbr.rel (%p446) target = $region88
        $region87: #{cnn_forward.1} parent=59 // pred_region
          %450 = dma.done [#allocation11], 7168
        $region88: #{cnn_forward.1} parent=59 // pred_fallthru
          _
        // Predicated region
        $region89: #{cnn_forward.1} parent=59 // pred_check
          %p451 = pneg %p215
        $region90: #{cnn_forward.1} parent=59 // pred_check_branch
          %453 = sbr.rel (%p451) target = $region92
        $region91: #{cnn_forward.1} parent=59 // pred_region
          %455 = dma.done [#allocation14], 8960
        $region92: #{cnn_forward.1} parent=59 // pred_fallthru
          _
        // Predicated region
        $region93: #{cnn_forward.1} parent=59 // pred_check
          %p456 = pneg %p236
        $region94: #{cnn_forward.1} parent=59 // pred_check_branch
          %458 = sbr.rel (%p456) target = $region96
        $region95: #{cnn_forward.1} parent=59 // pred_region
          %460 = dma.done [#allocation14], 16
        $region96: #{cnn_forward.1} parent=59 // pred_fallthru
          _
        %p461 = scmp.lt.s32.totalorder %s26, 1
        %s462 = scalar_select %p461, %s26, 1
        %s463 = smul.addr %s462, 98
        %s464 = smul.addr %s463, 8
        %s465 = scalar_lea.vmem %s0, %s464
        %p466 = pneg %p47
        %p467 = pneg %p44
        %p468 = pneg %p68
        %p469 = pneg %p65
        %p470 = pneg %p89
        %p471 = pneg %p86
        %p472 = pneg %p110
        %p473 = pneg %p107
        %p474 = pneg %p131
        %p475 = pneg %p128
        %p476 = pneg %p152
        %p477 = pneg %p149
        %p478 = pneg %p173
        %p479 = pneg %p170
        %p480 = pneg %p194
        %p481 = pneg %p191
        %p482 = pneg %p215
        %p483 = pneg %p212
        %p484 = pneg %p236
        %p485 = pneg %p233
        %p486 = pneg %p262
        %p487 = pneg %p259
        %p488 = scmp.lt.s32.totalorder %s26, 1
        %s489 = scalar_select %p488, %s26, 1
        %s490 = smul.addr %s489, 8
        %s491 = scalar_lea.vmem %s10, %s490
        %p492 = scmp.lt.s32.totalorder %s26, 1
        %s493 = scalar_select %p492, %s26, 1
        %s494 = smul.addr %s493, 98
        %s495 = smul.addr %s494, 8
        %s496 = scalar_lea.vmem %s0, %s495
        %p497 = scmp.lt.s32.totalorder %s26, 1
        %s498 = scalar_select %p497, %s26, 1
        %s499 = smul.addr %s498, 8
        %s500 = scalar_lea.vmem %s10, %s499
        %v501 = vld [vmem:[%s496] sm:$0xff]
        %v502 = vld [vmem:[%s496 + $0x8] sm:$0xff]
        %v503 = vld [vmem:[%s496 + $0x10] sm:$0xff]
        %v504 = vld [vmem:[%s496 + $0x18] sm:$0xff]
        %v505 = vld [vmem:[%s496 + $0x20] sm:$0xff]
        %v506 = vld [vmem:[%s496 + $0x28] sm:$0xff]
        %v507 = vld [vmem:[%s496 + $0x30] sm:$0xff]
        %v508 = vld [vmem:[%s496 + $0x38] sm:$0xff]
        %v509 = vld [vmem:[%s496 + $0x40] sm:$0xff]
        %v510 = vld [vmem:[%s496 + $0x48] sm:$0xff]
        %v511 = vld [vmem:[%s496 + $0x50] sm:$0xff]
        %v512 = vld [vmem:[%s496 + $0x58] sm:$0xff]
        %v513 = vld [vmem:[%s496 + $0x60] sm:$0xff]
        %v514 = vld [vmem:[%s496 + $0x68] sm:$0xff]
        %v515 = vld [vmem:[%s496 + $0x70] sm:$0xff]
        %v516 = vld [vmem:[%s496 + $0x78] sm:$0xff]
        %v517 = vld [vmem:[%s496 + $0x80] sm:$0xff]
        %v518 = vld [vmem:[%s496 + $0x88] sm:$0xff]
        %v519 = vld [vmem:[%s496 + $0x90] sm:$0xff]
        %v520 = vld [vmem:[%s496 + $0x98] sm:$0xff]
        %v521 = vld [vmem:[%s496 + $0xa0] sm:$0xff]
        %v522 = vld [vmem:[%s496 + $0xa8] sm:$0xff]
        %v523 = vld [vmem:[%s496 + $0xb0] sm:$0xff]
        %v524 = vld [vmem:[%s496 + $0xb8] sm:$0xff]
        %v525 = vld [vmem:[%s496 + $0xc0] sm:$0xff]
        %v526 = vld [vmem:[%s496 + $0xc8] sm:$0xff]
        %v527 = vld [vmem:[%s496 + $0xd0] sm:$0xff]
        %v528 = vld [vmem:[%s496 + $0xd8] sm:$0xff]
        %v529 = vld [vmem:[%s496 + $0xe0] sm:$0xff]
        %v530 = vld [vmem:[%s496 + $0xe8] sm:$0xff]
        %v531 = vld [vmem:[%s496 + $0xf0] sm:$0xff]
        %v532 = vld [vmem:[%s496 + $0xf8] sm:$0xff]
        %v533 = vld [vmem:[%s496 + $0x100] sm:$0xff]
        %v534 = vld [vmem:[%s496 + $0x108] sm:$0xff]
        %v535 = vld [vmem:[%s496 + $0x110] sm:$0xff]
        %v536 = vld [vmem:[%s496 + $0x118] sm:$0xff]
        %v537 = vld [vmem:[%s496 + $0x120] sm:$0xff]
        %v538 = vld [vmem:[%s496 + $0x128] sm:$0xff]
        %v539 = vld [vmem:[%s496 + $0x130] sm:$0xff]
        %v540 = vld [vmem:[%s496 + $0x138] sm:$0xff]
        %v541 = vld [vmem:[%s496 + $0x140] sm:$0xff]
        %v542 = vld [vmem:[%s496 + $0x148] sm:$0xff]
        %v543 = vld [vmem:[%s496 + $0x150] sm:$0xff]
        %v544 = vld [vmem:[%s496 + $0x158] sm:$0xff]
        %v545 = vld [vmem:[%s496 + $0x160] sm:$0xff]
        %v546 = vld [vmem:[%s496 + $0x168] sm:$0xff]
        %v547 = vld [vmem:[%s496 + $0x170] sm:$0xff]
        %v548 = vld [vmem:[%s496 + $0x178] sm:$0xff]
        %v549 = vld [vmem:[%s496 + $0x180] sm:$0xff]
        %v550 = vld [vmem:[%s496 + $0x188] sm:$0xff]
        %v551 = vld [vmem:[%s496 + $0x190] sm:$0xff]
        %v552 = vld [vmem:[%s496 + $0x198] sm:$0xff]
        %v553 = vld [vmem:[%s496 + $0x1a0] sm:$0xff]
        %v554 = vld [vmem:[%s496 + $0x1a8] sm:$0xff]
        %v555 = vld [vmem:[%s496 + $0x1b0] sm:$0xff]
        %v556 = vld [vmem:[%s496 + $0x1b8] sm:$0xff]
        %v557 = vld [vmem:[%s496 + $0x1c0] sm:$0xff]
        %v558 = vld [vmem:[%s496 + $0x1c8] sm:$0xff]
        %v559 = vld [vmem:[%s496 + $0x1d0] sm:$0xff]
        %v560 = vld [vmem:[%s496 + $0x1d8] sm:$0xff]
        %v561 = vld [vmem:[%s496 + $0x1e0] sm:$0xff]
        %v562 = vld [vmem:[%s496 + $0x1e8] sm:$0xff]
        %v563 = vld [vmem:[%s496 + $0x1f0] sm:$0xff]
        %v564 = vld [vmem:[%s496 + $0x1f8] sm:$0xff]
        %v565 = vld [vmem:[%s496 + $0x200] sm:$0xff]
        %v566 = vld [vmem:[%s496 + $0x208] sm:$0xff]
        %v567 = vld [vmem:[%s496 + $0x210] sm:$0xff]
        %v568 = vld [vmem:[%s496 + $0x218] sm:$0xff]
        %v569 = vld [vmem:[%s496 + $0x220] sm:$0xff]
        %v570 = vld [vmem:[%s496 + $0x228] sm:$0xff]
        %v571 = vld [vmem:[%s496 + $0x230] sm:$0xff]
        %v572 = vld [vmem:[%s496 + $0x238] sm:$0xff]
        %v573 = vld [vmem:[%s496 + $0x240] sm:$0xff]
        %v574 = vld [vmem:[%s496 + $0x248] sm:$0xff]
        %v575 = vld [vmem:[%s496 + $0x250] sm:$0xff]
        %v576 = vld [vmem:[%s496 + $0x258] sm:$0xff]
        %v577 = vld [vmem:[%s496 + $0x260] sm:$0xff]
        %v578 = vld [vmem:[%s496 + $0x268] sm:$0xff]
        %v579 = vld [vmem:[%s496 + $0x270] sm:$0xff]
        %v580 = vld [vmem:[%s496 + $0x278] sm:$0xff]
        %v581 = vld [vmem:[%s496 + $0x280] sm:$0xff]
        %v582 = vld [vmem:[%s496 + $0x288] sm:$0xff]
        %v583 = vld [vmem:[%s496 + $0x290] sm:$0xff]
        %v584 = vld [vmem:[%s496 + $0x298] sm:$0xff]
        %v585 = vld [vmem:[%s496 + $0x2a0] sm:$0xff]
        %v586 = vld [vmem:[%s496 + $0x2a8] sm:$0xff]
        %v587 = vld [vmem:[%s496 + $0x2b0] sm:$0xff]
        %v588 = vld [vmem:[%s496 + $0x2b8] sm:$0xff]
        %v589 = vld [vmem:[%s496 + $0x2c0] sm:$0xff]
        %v590 = vld [vmem:[%s496 + $0x2c8] sm:$0xff]
        %v591 = vld [vmem:[%s496 + $0x2d0] sm:$0xff]
        %v592 = vld [vmem:[%s496 + $0x2d8] sm:$0xff]
        %v593 = vld [vmem:[%s496 + $0x2e0] sm:$0xff]
        %v594 = vld [vmem:[%s496 + $0x2e8] sm:$0xff]
        %v595 = vld [vmem:[%s496 + $0x2f0] sm:$0xff]
        %v596 = vld [vmem:[%s496 + $0x2f8] sm:$0xff]
        %v597 = vld [vmem:[%s496 + $0x300] sm:$0xff]
        %v598 = vld [vmem:[%s496 + $0x308] sm:$0xff]
        %v599 = vld [vmem:[#allocation2] sm:$0xff]
        %v600 = vld [vmem:[#allocation2 + $0x8] sm:$0x1]
        %v601 = vld [vmem:[#allocation4] sm:$0x1]
        %v603 = vperm.slane %v601, 0
        %vm605 = vcmask 72704
        %v607 = vsel %vm605, %v501, 0
        %v610 = vsel %vm605, %v502, 0
        %v613 = vsel %vm605, %v503, 0
        %v616 = vsel %vm605, %v504, 0
        %v619 = vsel %vm605, %v505, 0
        %v622 = vsel %vm605, %v506, 0
        %v625 = vsel %vm605, %v507, 0
        %v628 = vsel %vm605, %v508, 0
        %v631 = vsel %vm605, %v509, 0
        %v634 = vsel %vm605, %v510, 0
        %v637 = vsel %vm605, %v511, 0
        %v640 = vsel %vm605, %v512, 0
        %v643 = vsel %vm605, %v513, 0
        %v646 = vsel %vm605, %v514, 0
        %v649 = vsel %vm605, %v515, 0
        %v652 = vsel %vm605, %v516, 0
        %v655 = vsel %vm605, %v517, 0
        %v658 = vsel %vm605, %v518, 0
        %v661 = vsel %vm605, %v519, 0
        %v664 = vsel %vm605, %v520, 0
        %v667 = vsel %vm605, %v521, 0
        %v670 = vsel %vm605, %v522, 0
        %v673 = vsel %vm605, %v523, 0
        %v676 = vsel %vm605, %v524, 0
        %v679 = vsel %vm605, %v525, 0
        %v682 = vsel %vm605, %v526, 0
        %v685 = vsel %vm605, %v527, 0
        %v688 = vsel %vm605, %v528, 0
        %v691 = vsel %vm605, %v529, 0
        %v694 = vsel %vm605, %v530, 0
        %v697 = vsel %vm605, %v531, 0
        %v700 = vsel %vm605, %v532, 0
        %v703 = vsel %vm605, %v533, 0
        %v706 = vsel %vm605, %v534, 0
        %v709 = vsel %vm605, %v535, 0
        %v712 = vsel %vm605, %v536, 0
        %v715 = vsel %vm605, %v537, 0
        %v718 = vsel %vm605, %v538, 0
        %v721 = vsel %vm605, %v539, 0
        %v724 = vsel %vm605, %v540, 0
        %v727 = vsel %vm605, %v541, 0
        %v730 = vsel %vm605, %v542, 0
        %v733 = vsel %vm605, %v543, 0
        %v736 = vsel %vm605, %v544, 0
        %v739 = vsel %vm605, %v545, 0
        %v742 = vsel %vm605, %v546, 0
        %v745 = vsel %vm605, %v547, 0
        %v748 = vsel %vm605, %v548, 0
        %v751 = vsel %vm605, %v549, 0
        %v754 = vsel %vm605, %v550, 0
        %v757 = vsel %vm605, %v551, 0
        %v760 = vsel %vm605, %v552, 0
        %v763 = vsel %vm605, %v553, 0
        %v766 = vsel %vm605, %v554, 0
        %v769 = vsel %vm605, %v555, 0
        %v772 = vsel %vm605, %v556, 0
        %v775 = vsel %vm605, %v557, 0
        %v778 = vsel %vm605, %v558, 0
        %v781 = vsel %vm605, %v559, 0
        %v784 = vsel %vm605, %v560, 0
        %v787 = vsel %vm605, %v561, 0
        %v790 = vsel %vm605, %v562, 0
        %v793 = vsel %vm605, %v563, 0
        %v796 = vsel %vm605, %v564, 0
        %v799 = vsel %vm605, %v565, 0
        %v802 = vsel %vm605, %v566, 0
        %v805 = vsel %vm605, %v567, 0
        %v808 = vsel %vm605, %v568, 0
        %v811 = vsel %vm605, %v569, 0
        %v814 = vsel %vm605, %v570, 0
        %v817 = vsel %vm605, %v571, 0
        %v820 = vsel %vm605, %v572, 0
        %v823 = vsel %vm605, %v573, 0
        %v826 = vsel %vm605, %v574, 0
        %v829 = vsel %vm605, %v575, 0
        %v832 = vsel %vm605, %v576, 0
        %v835 = vsel %vm605, %v577, 0
        %v838 = vsel %vm605, %v578, 0
        %v841 = vsel %vm605, %v579, 0
        %v844 = vsel %vm605, %v580, 0
        %v847 = vsel %vm605, %v581, 0
        %v850 = vsel %vm605, %v582, 0
        %v853 = vsel %vm605, %v583, 0
        %v856 = vsel %vm605, %v584, 0
        %v859 = vsel %vm605, %v585, 0
        %v862 = vsel %vm605, %v586, 0
        %v865 = vsel %vm605, %v587, 0
        %v868 = vsel %vm605, %v588, 0
        %v871 = vsel %vm605, %v589, 0
        %v874 = vsel %vm605, %v590, 0
        %v877 = vsel %vm605, %v591, 0
        %v880 = vsel %vm605, %v592, 0
        %v883 = vsel %vm605, %v593, 0
        %v886 = vsel %vm605, %v594, 0
        %v889 = vsel %vm605, %v595, 0
        %v892 = vsel %vm605, %v596, 0
        %v895 = vsel %vm605, %v597, 0
        %v898 = vsel %vm605, %v598, 0
        %vm900 = vcmask 1040384
        %v902 = vsel %vm900, %v600, 0
        %904 = vmatpush.msra.mxu0 0.0
        %905 = vmatpush.msra.mxu0 0.0
        %906 = vmatpush.msra.mxu0 0.0
        %907 = vmatpush.msra.mxu0 0.0
        %908 = vmatpush.msra.mxu0 0.0
        %909 = vmatpush.msra.mxu0 0.0
        %910 = vmatpush.msra.mxu0 0.0
        %911 = vmatpush.msra.mxu0 0.0
        %912 = vmatpush.msra.mxu0 0.0
        %913 = vmatpush.msra.mxu0 0.0
        %914 = vmatpush.msra.mxu0 0.0
        %915 = vmatpush.msra.mxu0 0.0
        %916 = vmatpush.msra.mxu0 0.0
        %917 = vmatpush.msra.mxu0 0.0
        %918 = vmatpush.msra.mxu0 %v902
        %919 = vmatpush.msra.mxu0 %v599
        %920 = vmatmul.f32.gmra.mxu0 %v607
        %v921 = vpop.f32.mrf.mxu0
        %v922 = vadd.f32 %v603, %v921
        %923 = vmatmul.f32.gmra.mxu0 %v610
        %v924 = vpop.f32.mrf.mxu0
        %v925 = vadd.f32 %v603, %v924
        %926 = vmatmul.f32.gmra.mxu0 %v613
        %v927 = vpop.f32.mrf.mxu0
        %v928 = vadd.f32 %v603, %v927
        %929 = vmatmul.f32.gmra.mxu0 %v616
        %v930 = vpop.f32.mrf.mxu0
        %v931 = vadd.f32 %v603, %v930
        %932 = vmatmul.f32.gmra.mxu0 %v619
        %v933 = vpop.f32.mrf.mxu0
        %v934 = vadd.f32 %v603, %v933
        %935 = vmatmul.f32.gmra.mxu0 %v622
        %v936 = vpop.f32.mrf.mxu0
        %v937 = vadd.f32 %v603, %v936
        %938 = vmatmul.f32.gmra.mxu0 %v625
        %v939 = vpop.f32.mrf.mxu0
        %v940 = vadd.f32 %v603, %v939
        %941 = vmatmul.f32.gmra.mxu0 %v628
        %v942 = vpop.f32.mrf.mxu0
        %v943 = vadd.f32 %v603, %v942
        %944 = vmatmul.f32.gmra.mxu0 %v631
        %v945 = vpop.f32.mrf.mxu0
        %v946 = vadd.f32 %v603, %v945
        %947 = vmatmul.f32.gmra.mxu0 %v634
        %v948 = vpop.f32.mrf.mxu0
        %v949 = vadd.f32 %v603, %v948
        %950 = vmatmul.f32.gmra.mxu0 %v637
        %v951 = vpop.f32.mrf.mxu0
        %v952 = vadd.f32 %v603, %v951
        %953 = vmatmul.f32.gmra.mxu0 %v640
        %v954 = vpop.f32.mrf.mxu0
        %v955 = vadd.f32 %v603, %v954
        %956 = vmatmul.f32.gmra.mxu0 %v643
        %v957 = vpop.f32.mrf.mxu0
        %v958 = vadd.f32 %v603, %v957
        %959 = vmatmul.f32.gmra.mxu0 %v646
        %v960 = vpop.f32.mrf.mxu0
        %v961 = vadd.f32 %v603, %v960
        %962 = vmatmul.f32.gmra.mxu0 %v649
        %v963 = vpop.f32.mrf.mxu0
        %v964 = vadd.f32 %v603, %v963
        %965 = vmatmul.f32.gmra.mxu0 %v652
        %v966 = vpop.f32.mrf.mxu0
        %v967 = vadd.f32 %v603, %v966
        %968 = vmatmul.f32.gmra.mxu0 %v655
        %v969 = vpop.f32.mrf.mxu0
        %v970 = vadd.f32 %v603, %v969
        %971 = vmatmul.f32.gmra.mxu0 %v658
        %v972 = vpop.f32.mrf.mxu0
        %v973 = vadd.f32 %v603, %v972
        %974 = vmatmul.f32.gmra.mxu0 %v661
        %v975 = vpop.f32.mrf.mxu0
        %v976 = vadd.f32 %v603, %v975
        %977 = vmatmul.f32.gmra.mxu0 %v664
        %v978 = vpop.f32.mrf.mxu0
        %v979 = vadd.f32 %v603, %v978
        %980 = vmatmul.f32.gmra.mxu0 %v667
        %v981 = vpop.f32.mrf.mxu0
        %v982 = vadd.f32 %v603, %v981
        %983 = vmatmul.f32.gmra.mxu0 %v670
        %v984 = vpop.f32.mrf.mxu0
        %v985 = vadd.f32 %v603, %v984
        %986 = vmatmul.f32.gmra.mxu0 %v673
        %v987 = vpop.f32.mrf.mxu0
        %v988 = vadd.f32 %v603, %v987
        %989 = vmatmul.f32.gmra.mxu0 %v676
        %v990 = vpop.f32.mrf.mxu0
        %v991 = vadd.f32 %v603, %v990
        %992 = vmatmul.f32.gmra.mxu0 %v679
        %v993 = vpop.f32.mrf.mxu0
        %v994 = vadd.f32 %v603, %v993
        %995 = vmatmul.f32.gmra.mxu0 %v682
        %v996 = vpop.f32.mrf.mxu0
        %v997 = vadd.f32 %v603, %v996
        %998 = vmatmul.f32.gmra.mxu0 %v685
        %v999 = vpop.f32.mrf.mxu0
        %v1000 = vadd.f32 %v603, %v999
        %1001 = vmatmul.f32.gmra.mxu0 %v688
        %v1002 = vpop.f32.mrf.mxu0
        %v1003 = vadd.f32 %v603, %v1002
        %1004 = vmatmul.f32.gmra.mxu0 %v691
        %v1005 = vpop.f32.mrf.mxu0
        %v1006 = vadd.f32 %v603, %v1005
        %1007 = vmatmul.f32.gmra.mxu0 %v694
        %v1008 = vpop.f32.mrf.mxu0
        %v1009 = vadd.f32 %v603, %v1008
        %1010 = vmatmul.f32.gmra.mxu0 %v697
        %v1011 = vpop.f32.mrf.mxu0
        %v1012 = vadd.f32 %v603, %v1011
        %1013 = vmatmul.f32.gmra.mxu0 %v700
        %v1014 = vpop.f32.mrf.mxu0
        %v1015 = vadd.f32 %v603, %v1014
        %1016 = vmatmul.f32.gmra.mxu0 %v703
        %v1017 = vpop.f32.mrf.mxu0
        %v1018 = vadd.f32 %v603, %v1017
        %1019 = vmatmul.f32.gmra.mxu0 %v706
        %v1020 = vpop.f32.mrf.mxu0
        %v1021 = vadd.f32 %v603, %v1020
        %1022 = vmatmul.f32.gmra.mxu0 %v709
        %v1023 = vpop.f32.mrf.mxu0
        %v1024 = vadd.f32 %v603, %v1023
        %1025 = vmatmul.f32.gmra.mxu0 %v712
        %v1026 = vpop.f32.mrf.mxu0
        %v1027 = vadd.f32 %v603, %v1026
        %1028 = vmatmul.f32.gmra.mxu0 %v715
        %v1029 = vpop.f32.mrf.mxu0
        %v1030 = vadd.f32 %v603, %v1029
        %1031 = vmatmul.f32.gmra.mxu0 %v718
        %v1032 = vpop.f32.mrf.mxu0
        %v1033 = vadd.f32 %v603, %v1032
        %1034 = vmatmul.f32.gmra.mxu0 %v721
        %v1035 = vpop.f32.mrf.mxu0
        %v1036 = vadd.f32 %v603, %v1035
        %1037 = vmatmul.f32.gmra.mxu0 %v724
        %v1038 = vpop.f32.mrf.mxu0
        %v1039 = vadd.f32 %v603, %v1038
        %1040 = vmatmul.f32.gmra.mxu0 %v727
        %v1041 = vpop.f32.mrf.mxu0
        %v1042 = vadd.f32 %v603, %v1041
        %1043 = vmatmul.f32.gmra.mxu0 %v730
        %v1044 = vpop.f32.mrf.mxu0
        %v1045 = vadd.f32 %v603, %v1044
        %1046 = vmatmul.f32.gmra.mxu0 %v733
        %v1047 = vpop.f32.mrf.mxu0
        %v1048 = vadd.f32 %v603, %v1047
        %1049 = vmatmul.f32.gmra.mxu0 %v736
        %v1050 = vpop.f32.mrf.mxu0
        %v1051 = vadd.f32 %v603, %v1050
        %1052 = vmatmul.f32.gmra.mxu0 %v739
        %v1053 = vpop.f32.mrf.mxu0
        %v1054 = vadd.f32 %v603, %v1053
        %1055 = vmatmul.f32.gmra.mxu0 %v742
        %v1056 = vpop.f32.mrf.mxu0
        %v1057 = vadd.f32 %v603, %v1056
        %1058 = vmatmul.f32.gmra.mxu0 %v745
        %v1059 = vpop.f32.mrf.mxu0
        %v1060 = vadd.f32 %v603, %v1059
        %1061 = vmatmul.f32.gmra.mxu0 %v748
        %v1062 = vpop.f32.mrf.mxu0
        %v1063 = vadd.f32 %v603, %v1062
        %1064 = vmatmul.f32.gmra.mxu0 %v751
        %v1065 = vpop.f32.mrf.mxu0
        %v1066 = vadd.f32 %v603, %v1065
        %1067 = vmatmul.f32.gmra.mxu0 %v754
        %v1068 = vpop.f32.mrf.mxu0
        %v1069 = vadd.f32 %v603, %v1068
        %1070 = vmatmul.f32.gmra.mxu0 %v757
        %v1071 = vpop.f32.mrf.mxu0
        %v1072 = vadd.f32 %v603, %v1071
        %1073 = vmatmul.f32.gmra.mxu0 %v760
        %v1074 = vpop.f32.mrf.mxu0
        %v1075 = vadd.f32 %v603, %v1074
        %1076 = vmatmul.f32.gmra.mxu0 %v763
        %v1077 = vpop.f32.mrf.mxu0
        %v1078 = vadd.f32 %v603, %v1077
        %1079 = vmatmul.f32.gmra.mxu0 %v766
        %v1080 = vpop.f32.mrf.mxu0
        %v1081 = vadd.f32 %v603, %v1080
        %1082 = vmatmul.f32.gmra.mxu0 %v769
        %v1083 = vpop.f32.mrf.mxu0
        %v1084 = vadd.f32 %v603, %v1083
        %1085 = vmatmul.f32.gmra.mxu0 %v772
        %v1086 = vpop.f32.mrf.mxu0
        %v1087 = vadd.f32 %v603, %v1086
        %1088 = vmatmul.f32.gmra.mxu0 %v775
        %v1089 = vpop.f32.mrf.mxu0
        %v1090 = vadd.f32 %v603, %v1089
        %1091 = vmatmul.f32.gmra.mxu0 %v778
        %v1092 = vpop.f32.mrf.mxu0
        %v1093 = vadd.f32 %v603, %v1092
        %1094 = vmatmul.f32.gmra.mxu0 %v781
        %v1095 = vpop.f32.mrf.mxu0
        %v1096 = vadd.f32 %v603, %v1095
        %1097 = vmatmul.f32.gmra.mxu0 %v784
        %v1098 = vpop.f32.mrf.mxu0
        %v1099 = vadd.f32 %v603, %v1098
        %1100 = vmatmul.f32.gmra.mxu0 %v787
        %v1101 = vpop.f32.mrf.mxu0
        %v1102 = vadd.f32 %v603, %v1101
        %1103 = vmatmul.f32.gmra.mxu0 %v790
        %v1104 = vpop.f32.mrf.mxu0
        %v1105 = vadd.f32 %v603, %v1104
        %1106 = vmatmul.f32.gmra.mxu0 %v793
        %v1107 = vpop.f32.mrf.mxu0
        %v1108 = vadd.f32 %v603, %v1107
        %1109 = vmatmul.f32.gmra.mxu0 %v796
        %v1110 = vpop.f32.mrf.mxu0
        %v1111 = vadd.f32 %v603, %v1110
        %1112 = vmatmul.f32.gmra.mxu0 %v799
        %v1113 = vpop.f32.mrf.mxu0
        %v1114 = vadd.f32 %v603, %v1113
        %1115 = vmatmul.f32.gmra.mxu0 %v802
        %v1116 = vpop.f32.mrf.mxu0
        %v1117 = vadd.f32 %v603, %v1116
        %1118 = vmatmul.f32.gmra.mxu0 %v805
        %v1119 = vpop.f32.mrf.mxu0
        %v1120 = vadd.f32 %v603, %v1119
        %1121 = vmatmul.f32.gmra.mxu0 %v808
        %v1122 = vpop.f32.mrf.mxu0
        %v1123 = vadd.f32 %v603, %v1122
        %1124 = vmatmul.f32.gmra.mxu0 %v811
        %v1125 = vpop.f32.mrf.mxu0
        %v1126 = vadd.f32 %v603, %v1125
        %1127 = vmatmul.f32.gmra.mxu0 %v814
        %v1128 = vpop.f32.mrf.mxu0
        %v1129 = vadd.f32 %v603, %v1128
        %1130 = vmatmul.f32.gmra.mxu0 %v817
        %v1131 = vpop.f32.mrf.mxu0
        %v1132 = vadd.f32 %v603, %v1131
        %1133 = vmatmul.f32.gmra.mxu0 %v820
        %v1134 = vpop.f32.mrf.mxu0
        %v1135 = vadd.f32 %v603, %v1134
        %1136 = vmatmul.f32.gmra.mxu0 %v823
        %v1137 = vpop.f32.mrf.mxu0
        %v1138 = vadd.f32 %v603, %v1137
        %1139 = vmatmul.f32.gmra.mxu0 %v826
        %v1140 = vpop.f32.mrf.mxu0
        %v1141 = vadd.f32 %v603, %v1140
        %1142 = vmatmul.f32.gmra.mxu0 %v829
        %v1143 = vpop.f32.mrf.mxu0
        %v1144 = vadd.f32 %v603, %v1143
        %1145 = vmatmul.f32.gmra.mxu0 %v832
        %v1146 = vpop.f32.mrf.mxu0
        %v1147 = vadd.f32 %v603, %v1146
        %1148 = vmatmul.f32.gmra.mxu0 %v835
        %v1149 = vpop.f32.mrf.mxu0
        %v1150 = vadd.f32 %v603, %v1149
        %1151 = vmatmul.f32.gmra.mxu0 %v838
        %v1152 = vpop.f32.mrf.mxu0
        %v1153 = vadd.f32 %v603, %v1152
        %1154 = vmatmul.f32.gmra.mxu0 %v841
        %v1155 = vpop.f32.mrf.mxu0
        %v1156 = vadd.f32 %v603, %v1155
        %1157 = vmatmul.f32.gmra.mxu0 %v844
        %v1158 = vpop.f32.mrf.mxu0
        %v1159 = vadd.f32 %v603, %v1158
        %1160 = vmatmul.f32.gmra.mxu0 %v847
        %v1161 = vpop.f32.mrf.mxu0
        %v1162 = vadd.f32 %v603, %v1161
        %1163 = vmatmul.f32.gmra.mxu0 %v850
        %v1164 = vpop.f32.mrf.mxu0
        %v1165 = vadd.f32 %v603, %v1164
        %1166 = vmatmul.f32.gmra.mxu0 %v853
        %v1167 = vpop.f32.mrf.mxu0
        %v1168 = vadd.f32 %v603, %v1167
        %1169 = vmatmul.f32.gmra.mxu0 %v856
        %v1170 = vpop.f32.mrf.mxu0
        %v1171 = vadd.f32 %v603, %v1170
        %1172 = vmatmul.f32.gmra.mxu0 %v859
        %v1173 = vpop.f32.mrf.mxu0
        %v1174 = vadd.f32 %v603, %v1173
        %1175 = vmatmul.f32.gmra.mxu0 %v862
        %v1176 = vpop.f32.mrf.mxu0
        %v1177 = vadd.f32 %v603, %v1176
        %1178 = vmatmul.f32.gmra.mxu0 %v865
        %v1179 = vpop.f32.mrf.mxu0
        %v1180 = vadd.f32 %v603, %v1179
        %1181 = vmatmul.f32.gmra.mxu0 %v868
        %v1182 = vpop.f32.mrf.mxu0
        %v1183 = vadd.f32 %v603, %v1182
        %1184 = vmatmul.f32.gmra.mxu0 %v871
        %v1185 = vpop.f32.mrf.mxu0
        %v1186 = vadd.f32 %v603, %v1185
        %1187 = vmatmul.f32.gmra.mxu0 %v874
        %v1188 = vpop.f32.mrf.mxu0
        %v1189 = vadd.f32 %v603, %v1188
        %1190 = vmatmul.f32.gmra.mxu0 %v877
        %v1191 = vpop.f32.mrf.mxu0
        %v1192 = vadd.f32 %v603, %v1191
        %1193 = vmatmul.f32.gmra.mxu0 %v880
        %v1194 = vpop.f32.mrf.mxu0
        %v1195 = vadd.f32 %v603, %v1194
        %1196 = vmatmul.f32.gmra.mxu0 %v883
        %v1197 = vpop.f32.mrf.mxu0
        %v1198 = vadd.f32 %v603, %v1197
        %1199 = vmatmul.f32.gmra.mxu0 %v886
        %v1200 = vpop.f32.mrf.mxu0
        %v1201 = vadd.f32 %v603, %v1200
        %1202 = vmatmul.f32.gmra.mxu0 %v889
        %v1203 = vpop.f32.mrf.mxu0
        %v1204 = vadd.f32 %v603, %v1203
        %1205 = vmatmul.f32.gmra.mxu0 %v892
        %v1206 = vpop.f32.mrf.mxu0
        %v1207 = vadd.f32 %v603, %v1206
        %1208 = vmatmul.f32.gmra.mxu0 %v895
        %v1209 = vpop.f32.mrf.mxu0
        %v1210 = vadd.f32 %v603, %v1209
        %1211 = vmatmul.f32.gmra.mxu0 %v898
        %v1212 = vpop.f32.mrf.mxu0
        %v1213 = vadd.f32 %v603, %v1212
        %1214 = vdwg.mxu0
        %v1215 = vmax.f32 %v922, 0.0
        %v1216 = vmax.f32 %v925, 0.0
        %v1217 = vmax.f32 %v928, 0.0
        %v1218 = vmax.f32 %v931, 0.0
        %v1219 = vmax.f32 %v934, 0.0
        %v1220 = vmax.f32 %v937, 0.0
        %v1221 = vmax.f32 %v940, 0.0
        %v1222 = vmax.f32 %v943, 0.0
        %v1223 = vmax.f32 %v946, 0.0
        %v1224 = vmax.f32 %v949, 0.0
        %v1225 = vmax.f32 %v952, 0.0
        %v1226 = vmax.f32 %v955, 0.0
        %v1227 = vmax.f32 %v958, 0.0
        %v1228 = vmax.f32 %v961, 0.0
        %v1229 = vmax.f32 %v964, 0.0
        %v1230 = vmax.f32 %v967, 0.0
        %v1231 = vmax.f32 %v970, 0.0
        %v1232 = vmax.f32 %v973, 0.0
        %v1233 = vmax.f32 %v976, 0.0
        %v1234 = vmax.f32 %v979, 0.0
        %v1235 = vmax.f32 %v982, 0.0
        %v1236 = vmax.f32 %v985, 0.0
        %v1237 = vmax.f32 %v988, 0.0
        %v1238 = vmax.f32 %v991, 0.0
        %v1239 = vmax.f32 %v994, 0.0
        %v1240 = vmax.f32 %v997, 0.0
        %v1241 = vmax.f32 %v1000, 0.0
        %v1242 = vmax.f32 %v1003, 0.0
        %v1243 = vmax.f32 %v1006, 0.0
        %v1244 = vmax.f32 %v1009, 0.0
        %v1245 = vmax.f32 %v1012, 0.0
        %v1246 = vmax.f32 %v1015, 0.0
        %v1247 = vmax.f32 %v1018, 0.0
        %v1248 = vmax.f32 %v1021, 0.0
        %v1249 = vmax.f32 %v1024, 0.0
        %v1250 = vmax.f32 %v1027, 0.0
        %v1251 = vmax.f32 %v1030, 0.0
        %v1252 = vmax.f32 %v1033, 0.0
        %v1253 = vmax.f32 %v1036, 0.0
        %v1254 = vmax.f32 %v1039, 0.0
        %v1255 = vmax.f32 %v1042, 0.0
        %v1256 = vmax.f32 %v1045, 0.0
        %v1257 = vmax.f32 %v1048, 0.0
        %v1258 = vmax.f32 %v1051, 0.0
        %v1259 = vmax.f32 %v1054, 0.0
        %v1260 = vmax.f32 %v1057, 0.0
        %v1261 = vmax.f32 %v1060, 0.0
        %v1262 = vmax.f32 %v1063, 0.0
        %v1263 = vmax.f32 %v1066, 0.0
        %v1264 = vmax.f32 %v1069, 0.0
        %v1265 = vmax.f32 %v1072, 0.0
        %v1266 = vmax.f32 %v1075, 0.0
        %v1267 = vmax.f32 %v1078, 0.0
        %v1268 = vmax.f32 %v1081, 0.0
        %v1269 = vmax.f32 %v1084, 0.0
        %v1270 = vmax.f32 %v1087, 0.0
        %v1271 = vmax.f32 %v1090, 0.0
        %v1272 = vmax.f32 %v1093, 0.0
        %v1273 = vmax.f32 %v1096, 0.0
        %v1274 = vmax.f32 %v1099, 0.0
        %v1275 = vmax.f32 %v1102, 0.0
        %v1276 = vmax.f32 %v1105, 0.0
        %v1277 = vmax.f32 %v1108, 0.0
        %v1278 = vmax.f32 %v1111, 0.0
        %v1279 = vmax.f32 %v1114, 0.0
        %v1280 = vmax.f32 %v1117, 0.0
        %v1281 = vmax.f32 %v1120, 0.0
        %v1282 = vmax.f32 %v1123, 0.0
        %v1283 = vmax.f32 %v1126, 0.0
        %v1284 = vmax.f32 %v1129, 0.0
        %v1285 = vmax.f32 %v1132, 0.0
        %v1286 = vmax.f32 %v1135, 0.0
        %v1287 = vmax.f32 %v1138, 0.0
        %v1288 = vmax.f32 %v1141, 0.0
        %v1289 = vmax.f32 %v1144, 0.0
        %v1290 = vmax.f32 %v1147, 0.0
        %v1291 = vmax.f32 %v1150, 0.0
        %v1292 = vmax.f32 %v1153, 0.0
        %v1293 = vmax.f32 %v1156, 0.0
        %v1294 = vmax.f32 %v1159, 0.0
        %v1295 = vmax.f32 %v1162, 0.0
        %v1296 = vmax.f32 %v1165, 0.0
        %v1297 = vmax.f32 %v1168, 0.0
        %v1298 = vmax.f32 %v1171, 0.0
        %v1299 = vmax.f32 %v1174, 0.0
        %v1300 = vmax.f32 %v1177, 0.0
        %v1301 = vmax.f32 %v1180, 0.0
        %v1302 = vmax.f32 %v1183, 0.0
        %v1303 = vmax.f32 %v1186, 0.0
        %v1304 = vmax.f32 %v1189, 0.0
        %v1305 = vmax.f32 %v1192, 0.0
        %v1306 = vmax.f32 %v1195, 0.0
        %v1307 = vmax.f32 %v1198, 0.0
        %v1308 = vmax.f32 %v1201, 0.0
        %v1309 = vmax.f32 %v1204, 0.0
        %v1310 = vmax.f32 %v1207, 0.0
        %v1311 = vmax.f32 %v1210, 0.0
        %v1312 = vmax.f32 %v1213, 0.0
        %v1313 = vld [vmem:[#allocation6] sm:$0xff]
        %v1314 = vld [vmem:[#allocation6 + $0x8] sm:$0xff]
        %v1315 = vld [vmem:[#allocation6 + $0x10] sm:$0xff]
        %v1316 = vld [vmem:[#allocation6 + $0x18] sm:$0xff]
        %v1317 = vld [vmem:[#allocation6 + $0x20] sm:$0xff]
        %v1318 = vld [vmem:[#allocation6 + $0x28] sm:$0xff]
        %v1319 = vld [vmem:[#allocation6 + $0x30] sm:$0xff]
        %v1320 = vld [vmem:[#allocation6 + $0x38] sm:$0xff]
        %v1321 = vld [vmem:[#allocation6 + $0x40] sm:$0xff]
        %v1322 = vld [vmem:[#allocation6 + $0x48] sm:$0xff]
        %v1323 = vld [vmem:[#allocation6 + $0x50] sm:$0xff]
        %v1324 = vld [vmem:[#allocation6 + $0x58] sm:$0xff]
        %v1325 = vld [vmem:[#allocation6 + $0x60] sm:$0xff]
        %v1326 = vld [vmem:[#allocation6 + $0x68] sm:$0xff]
        %v1327 = vld [vmem:[#allocation6 + $0x70] sm:$0xff]
        %v1328 = vld [vmem:[#allocation6 + $0x78] sm:$0xff]
        %v1329 = vld [vmem:[#allocation6 + $0x80] sm:$0xff]
        %v1330 = vld [vmem:[#allocation6 + $0x88] sm:$0xff]
        %v1331 = vld [vmem:[#allocation6 + $0x90] sm:$0xff]
        %v1332 = vld [vmem:[#allocation6 + $0x98] sm:$0xff]
        %v1333 = vld [vmem:[#allocation6 + $0xa0] sm:$0xff]
        %v1334 = vld [vmem:[#allocation6 + $0xa8] sm:$0xff]
        %v1335 = vld [vmem:[#allocation6 + $0xb0] sm:$0xff]
        %v1336 = vld [vmem:[#allocation6 + $0xb8] sm:$0xff]
        %v1337 = vld [vmem:[#allocation6 + $0xc0] sm:$0xff]
        %v1338 = vld [vmem:[#allocation6 + $0xc8] sm:$0xff]
        %v1339 = vld [vmem:[#allocation6 + $0xd0] sm:$0xff]
        %v1340 = vld [vmem:[#allocation6 + $0xd8] sm:$0xff]
        %v1341 = vld [vmem:[#allocation6 + $0xe0] sm:$0xff]
        %v1342 = vld [vmem:[#allocation6 + $0xe8] sm:$0xff]
        %v1343 = vld [vmem:[#allocation6 + $0xf0] sm:$0xff]
        %v1344 = vld [vmem:[#allocation6 + $0xf8] sm:$0xff]
        %v1345 = vld [vmem:[#allocation6 + $0x100] sm:$0xff]
        %v1346 = vld [vmem:[#allocation6 + $0x108] sm:$0xff]
        %v1347 = vld [vmem:[#allocation6 + $0x110] sm:$0xff]
        %v1348 = vld [vmem:[#allocation6 + $0x118] sm:$0xff]
        %v1349 = vld [vmem:[#allocation6 + $0x120] sm:$0xff]
        %v1350 = vld [vmem:[#allocation6 + $0x128] sm:$0xff]
        %v1351 = vld [vmem:[#allocation6 + $0x130] sm:$0xff]
        %v1352 = vld [vmem:[#allocation6 + $0x138] sm:$0xff]
        %v1353 = vld [vmem:[#allocation6 + $0x140] sm:$0xff]
        %v1354 = vld [vmem:[#allocation6 + $0x148] sm:$0xff]
        %v1355 = vld [vmem:[#allocation6 + $0x150] sm:$0xff]
        %v1356 = vld [vmem:[#allocation6 + $0x158] sm:$0xff]
        %v1357 = vld [vmem:[#allocation6 + $0x160] sm:$0xff]
        %v1358 = vld [vmem:[#allocation6 + $0x168] sm:$0xff]
        %v1359 = vld [vmem:[#allocation6 + $0x170] sm:$0xff]
        %v1360 = vld [vmem:[#allocation6 + $0x178] sm:$0xff]
        %v1361 = vld [vmem:[#allocation6 + $0x180] sm:$0xff]
        %v1362 = vld [vmem:[#allocation6 + $0x188] sm:$0xff]
        %v1363 = vld [vmem:[#allocation6 + $0x190] sm:$0xff]
        %v1364 = vld [vmem:[#allocation6 + $0x198] sm:$0xff]
        %v1365 = vld [vmem:[#allocation6 + $0x1a0] sm:$0xff]
        %v1366 = vld [vmem:[#allocation6 + $0x1a8] sm:$0xff]
        %v1367 = vld [vmem:[#allocation6 + $0x1b0] sm:$0xff]
        %v1368 = vld [vmem:[#allocation6 + $0x1b8] sm:$0xff]
        %v1369 = vld [vmem:[#allocation6 + $0x1c0] sm:$0xff]
        %v1370 = vld [vmem:[#allocation6 + $0x1c8] sm:$0xff]
        %v1371 = vld [vmem:[#allocation6 + $0x1d0] sm:$0xff]
        %v1372 = vld [vmem:[#allocation6 + $0x1d8] sm:$0xff]
        %v1373 = vld [vmem:[#allocation6 + $0x1e0] sm:$0xff]
        %v1374 = vld [vmem:[#allocation6 + $0x1e8] sm:$0xff]
        %v1375 = vld [vmem:[#allocation6 + $0x1f0] sm:$0xff]
        %v1376 = vld [vmem:[#allocation6 + $0x1f8] sm:$0xff]
        %v1377 = vld [vmem:[#allocation6 + $0x200] sm:$0xff]
        %v1378 = vld [vmem:[#allocation6 + $0x208] sm:$0xff]
        %v1379 = vld [vmem:[#allocation6 + $0x210] sm:$0xff]
        %v1380 = vld [vmem:[#allocation6 + $0x218] sm:$0xff]
        %v1381 = vld [vmem:[#allocation6 + $0x220] sm:$0xff]
        %v1382 = vld [vmem:[#allocation6 + $0x228] sm:$0xff]
        %v1383 = vld [vmem:[#allocation6 + $0x230] sm:$0xff]
        %v1384 = vld [vmem:[#allocation6 + $0x238] sm:$0xff]
        %v1385 = vld [vmem:[#allocation6 + $0x240] sm:$0xff]
        %v1386 = vld [vmem:[#allocation6 + $0x248] sm:$0xff]
        %v1387 = vld [vmem:[#allocation6 + $0x250] sm:$0xff]
        %v1388 = vld [vmem:[#allocation6 + $0x258] sm:$0xff]
        %v1389 = vld [vmem:[#allocation6 + $0x260] sm:$0xff]
        %v1390 = vld [vmem:[#allocation6 + $0x268] sm:$0xff]
        %v1391 = vld [vmem:[#allocation6 + $0x270] sm:$0xff]
        %v1392 = vld [vmem:[#allocation6 + $0x278] sm:$0xff]
        %v1393 = vld [vmem:[#allocation6 + $0x280] sm:$0xff]
        %v1394 = vld [vmem:[#allocation6 + $0x288] sm:$0xff]
        %v1395 = vld [vmem:[#allocation6 + $0x290] sm:$0xff]
        %v1396 = vld [vmem:[#allocation6 + $0x298] sm:$0xff]
        %v1397 = vld [vmem:[#allocation6 + $0x2a0] sm:$0xff]
        %v1398 = vld [vmem:[#allocation6 + $0x2a8] sm:$0xff]
        %v1399 = vld [vmem:[#allocation6 + $0x2b0] sm:$0xff]
        %v1400 = vld [vmem:[#allocation6 + $0x2b8] sm:$0xff]
        %v1401 = vld [vmem:[#allocation6 + $0x2c0] sm:$0xff]
        %v1402 = vld [vmem:[#allocation6 + $0x2c8] sm:$0xff]
        %v1403 = vld [vmem:[#allocation6 + $0x2d0] sm:$0xff]
        %v1404 = vld [vmem:[#allocation6 + $0x2d8] sm:$0xff]
        %v1405 = vld [vmem:[#allocation6 + $0x2e0] sm:$0xff]
        %v1406 = vld [vmem:[#allocation6 + $0x2e8] sm:$0xff]
        %v1407 = vld [vmem:[#allocation6 + $0x2f0] sm:$0xff]
        %v1408 = vld [vmem:[#allocation6 + $0x2f8] sm:$0xff]
        %v1409 = vld [vmem:[#allocation6 + $0x300] sm:$0xff]
        %v1410 = vld [vmem:[#allocation6 + $0x308] sm:$0xff]
        %v1411 = vld [vmem:[#allocation6 + $0x310] sm:$0xff]
        %v1412 = vld [vmem:[#allocation6 + $0x318] sm:$0xff]
        %v1413 = vld [vmem:[#allocation6 + $0x320] sm:$0xff]
        %v1414 = vld [vmem:[#allocation6 + $0x328] sm:$0xff]
        %v1415 = vld [vmem:[#allocation6 + $0x330] sm:$0xff]
        %v1416 = vld [vmem:[#allocation6 + $0x338] sm:$0xff]
        %v1417 = vld [vmem:[#allocation6 + $0x340] sm:$0xff]
        %v1418 = vld [vmem:[#allocation6 + $0x348] sm:$0xff]
        %v1419 = vld [vmem:[#allocation6 + $0x350] sm:$0xff]
        %v1420 = vld [vmem:[#allocation6 + $0x358] sm:$0xff]
        %v1421 = vld [vmem:[#allocation6 + $0x360] sm:$0xff]
        %v1422 = vld [vmem:[#allocation6 + $0x368] sm:$0xff]
        %v1423 = vld [vmem:[#allocation6 + $0x370] sm:$0xff]
        %v1424 = vld [vmem:[#allocation6 + $0x378] sm:$0xff]
        %v1425 = vld [vmem:[#allocation6 + $0x380] sm:$0xff]
        %v1426 = vld [vmem:[#allocation6 + $0x388] sm:$0xff]
        %v1427 = vld [vmem:[#allocation6 + $0x390] sm:$0xff]
        %v1428 = vld [vmem:[#allocation6 + $0x398] sm:$0xff]
        %v1429 = vld [vmem:[#allocation6 + $0x3a0] sm:$0xff]
        %v1430 = vld [vmem:[#allocation6 + $0x3a8] sm:$0xff]
        %v1431 = vld [vmem:[#allocation6 + $0x3b0] sm:$0xff]
        %v1432 = vld [vmem:[#allocation6 + $0x3b8] sm:$0xff]
        %v1433 = vld [vmem:[#allocation6 + $0x3c0] sm:$0xff]
        %v1434 = vld [vmem:[#allocation6 + $0x3c8] sm:$0xff]
        %v1435 = vld [vmem:[#allocation6 + $0x3d0] sm:$0xff]
        %v1436 = vld [vmem:[#allocation6 + $0x3d8] sm:$0xff]
        %v1437 = vld [vmem:[#allocation6 + $0x3e0] sm:$0xff]
        %v1438 = vld [vmem:[#allocation6 + $0x3e8] sm:$0xff]
        %v1439 = vld [vmem:[#allocation6 + $0x3f0] sm:$0xff]
        %v1440 = vld [vmem:[#allocation6 + $0x3f8] sm:$0xff]
        %v1441 = vld [vmem:[#allocation6 + $0x400] sm:$0xff]
        %v1442 = vld [vmem:[#allocation6 + $0x408] sm:$0xff]
        %v1443 = vld [vmem:[#allocation6 + $0x410] sm:$0xff]
        %v1444 = vld [vmem:[#allocation6 + $0x418] sm:$0xff]
        %v1445 = vld [vmem:[#allocation6 + $0x420] sm:$0xff]
        %v1446 = vld [vmem:[#allocation6 + $0x428] sm:$0xff]
        %v1447 = vld [vmem:[#allocation6 + $0x430] sm:$0xff]
        %v1448 = vld [vmem:[#allocation6 + $0x438] sm:$0xff]
        %v1449 = vld [vmem:[#allocation6 + $0x440] sm:$0xff]
        %v1450 = vld [vmem:[#allocation6 + $0x448] sm:$0xff]
        %v1451 = vld [vmem:[#allocation6 + $0x450] sm:$0xff]
        %v1452 = vld [vmem:[#allocation6 + $0x458] sm:$0xff]
        %v1453 = vld [vmem:[#allocation6 + $0x460] sm:$0xff]
        %v1454 = vld [vmem:[#allocation6 + $0x468] sm:$0xff]
        %v1455 = vld [vmem:[#allocation6 + $0x470] sm:$0xff]
        %v1456 = vld [vmem:[#allocation6 + $0x478] sm:$0xff]
        %v1457 = vld [vmem:[#allocation6 + $0x480] sm:$0xff]
        %v1458 = vld [vmem:[#allocation6 + $0x488] sm:$0xff]
        %v1459 = vld [vmem:[#allocation6 + $0x490] sm:$0xff]
        %v1460 = vld [vmem:[#allocation6 + $0x498] sm:$0xff]
        %v1461 = vld [vmem:[#allocation6 + $0x4a0] sm:$0xff]
        %v1462 = vld [vmem:[#allocation6 + $0x4a8] sm:$0xff]
        %v1463 = vld [vmem:[#allocation6 + $0x4b0] sm:$0xff]
        %v1464 = vld [vmem:[#allocation6 + $0x4b8] sm:$0xff]
        %v1465 = vld [vmem:[#allocation6 + $0x4c0] sm:$0xff]
        %v1466 = vld [vmem:[#allocation6 + $0x4c8] sm:$0xff]
        %v1467 = vld [vmem:[#allocation6 + $0x4d0] sm:$0xff]
        %v1468 = vld [vmem:[#allocation6 + $0x4d8] sm:$0xff]
        %v1469 = vld [vmem:[#allocation6 + $0x4e0] sm:$0xff]
        %v1470 = vld [vmem:[#allocation6 + $0x4e8] sm:$0xff]
        %v1471 = vld [vmem:[#allocation6 + $0x4f0] sm:$0xff]
        %v1472 = vld [vmem:[#allocation6 + $0x4f8] sm:$0xff]
        %v1473 = vld [vmem:[#allocation6 + $0x500] sm:$0xff]
        %v1474 = vld [vmem:[#allocation6 + $0x508] sm:$0xff]
        %v1475 = vld [vmem:[#allocation6 + $0x510] sm:$0xff]
        %v1476 = vld [vmem:[#allocation6 + $0x518] sm:$0xff]
        %v1477 = vld [vmem:[#allocation6 + $0x520] sm:$0xff]
        %v1478 = vld [vmem:[#allocation6 + $0x528] sm:$0xff]
        %v1479 = vld [vmem:[#allocation6 + $0x530] sm:$0xff]
        %v1480 = vld [vmem:[#allocation6 + $0x538] sm:$0xff]
        %v1481 = vld [vmem:[#allocation6 + $0x540] sm:$0xf]
        %v1482 = vld [vmem:[#allocation6 + $0x548] sm:$0xf]
        %v1483 = vld [vmem:[#allocation6 + $0x550] sm:$0xf]
        %v1484 = vld [vmem:[#allocation6 + $0x558] sm:$0xf]
        %v1485 = vld [vmem:[#allocation6 + $0x560] sm:$0xf]
        %v1486 = vld [vmem:[#allocation6 + $0x568] sm:$0xf]
        %v1487 = vld [vmem:[#allocation6 + $0x570] sm:$0xf]
        %vm1488 = vcmask 130048
        %v1490 = vsel %vm1488, %v1319, 0
        %v1493 = vsel %vm1488, %v1326, 0
        %v1496 = vsel %vm1488, %v1333, 0
        %v1499 = vsel %vm1488, %v1340, 0
        %v1502 = vsel %vm1488, %v1347, 0
        %v1505 = vsel %vm1488, %v1354, 0
        %v1508 = vsel %vm1488, %v1361, 0
        %v1511 = vsel %vm1488, %v1368, 0
        %v1514 = vsel %vm1488, %v1375, 0
        %v1517 = vsel %vm1488, %v1382, 0
        %v1520 = vsel %vm1488, %v1389, 0
        %v1523 = vsel %vm1488, %v1396, 0
        %v1526 = vsel %vm1488, %v1403, 0
        %v1529 = vsel %vm1488, %v1410, 0
        %v1532 = vsel %vm1488, %v1417, 0
        %v1535 = vsel %vm1488, %v1424, 0
        %v1538 = vsel %vm1488, %v1431, 0
        %v1541 = vsel %vm1488, %v1438, 0
        %v1544 = vsel %vm1488, %v1445, 0
        %v1547 = vsel %vm1488, %v1452, 0
        %v1550 = vsel %vm1488, %v1459, 0
        %v1553 = vsel %vm1488, %v1466, 0
        %v1556 = vsel %vm1488, %v1473, 0
        %v1559 = vsel %vm1488, %v1480, 0
        %v1562 = vsel %vm1488, %v1487, 0
        %1564 = vmatpush.msra.mxu0 %v1230
        %1565 = vmatpush.msra.mxu0 %v1229
        %1566 = vmatpush.msra.mxu0 %v1228
        %1567 = vmatpush.msra.mxu0 %v1227
        %1568 = vmatpush.msra.mxu0 %v1226
        %1569 = vmatpush.msra.mxu0 %v1225
        %1570 = vmatpush.msra.mxu0 %v1224
        %1571 = vmatpush.msra.mxu0 %v1223
        %1572 = vmatpush.msra.mxu0 %v1222
        %1573 = vmatpush.msra.mxu0 %v1221
        %1574 = vmatpush.msra.mxu0 %v1220
        %1575 = vmatpush.msra.mxu0 %v1219
        %1576 = vmatpush.msra.mxu0 %v1218
        %1577 = vmatpush.msra.mxu0 %v1217
        %1578 = vmatpush.msra.mxu0 %v1216
        %1579 = vmatpush.msra.mxu0 %v1215
        %1580 = vmatmul.f32.gmra.mxu0 %v1313
        %v1581 = vpop.f32.mrf.mxu0
        %v1582 = vadd.f32 0.0, %v1581
        %1583 = vmatmul.f32.gmra.mxu0 %v1320
        %v1584 = vpop.f32.mrf.mxu0
        %v1585 = vadd.f32 0.0, %v1584
        %1586 = vmatmul.f32.gmra.mxu0 %v1327
        %v1587 = vpop.f32.mrf.mxu0
        %v1588 = vadd.f32 0.0, %v1587
        %1589 = vmatmul.f32.gmra.mxu0 %v1334
        %v1590 = vpop.f32.mrf.mxu0
        %v1591 = vadd.f32 0.0, %v1590
        %1592 = vmatmul.f32.gmra.mxu0 %v1341
        %v1593 = vpop.f32.mrf.mxu0
        %v1594 = vadd.f32 0.0, %v1593
        %1595 = vmatmul.f32.gmra.mxu0 %v1348
        %v1596 = vpop.f32.mrf.mxu0
        %v1597 = vadd.f32 0.0, %v1596
        %1598 = vmatmul.f32.gmra.mxu0 %v1355
        %v1599 = vpop.f32.mrf.mxu0
        %v1600 = vadd.f32 0.0, %v1599
        %1601 = vmatmul.f32.gmra.mxu0 %v1362
        %v1602 = vpop.f32.mrf.mxu0
        %v1603 = vadd.f32 0.0, %v1602
        %1604 = vmatmul.f32.gmra.mxu0 %v1369
        %v1605 = vpop.f32.mrf.mxu0
        %v1606 = vadd.f32 0.0, %v1605
        %1607 = vmatmul.f32.gmra.mxu0 %v1376
        %v1608 = vpop.f32.mrf.mxu0
        %v1609 = vadd.f32 0.0, %v1608
        %1610 = vmatmul.f32.gmra.mxu0 %v1383
        %v1611 = vpop.f32.mrf.mxu0
        %v1612 = vadd.f32 0.0, %v1611
        %1613 = vmatmul.f32.gmra.mxu0 %v1390
        %v1614 = vpop.f32.mrf.mxu0
        %v1615 = vadd.f32 0.0, %v1614
        %1616 = vmatmul.f32.gmra.mxu0 %v1397
        %v1617 = vpop.f32.mrf.mxu0
        %v1618 = vadd.f32 0.0, %v1617
        %1619 = vmatmul.f32.gmra.mxu0 %v1404
        %v1620 = vpop.f32.mrf.mxu0
        %v1621 = vadd.f32 0.0, %v1620
        %1622 = vmatmul.f32.gmra.mxu0 %v1411
        %v1623 = vpop.f32.mrf.mxu0
        %v1624 = vadd.f32 0.0, %v1623
        %1625 = vmatmul.f32.gmra.mxu0 %v1418
        %v1626 = vpop.f32.mrf.mxu0
        %v1627 = vadd.f32 0.0, %v1626
        %1628 = vmatmul.f32.gmra.mxu0 %v1425
        %v1629 = vpop.f32.mrf.mxu0
        %v1630 = vadd.f32 0.0, %v1629
        %1631 = vmatmul.f32.gmra.mxu0 %v1432
        %v1632 = vpop.f32.mrf.mxu0
        %v1633 = vadd.f32 0.0, %v1632
        %1634 = vmatmul.f32.gmra.mxu0 %v1439
        %v1635 = vpop.f32.mrf.mxu0
        %v1636 = vadd.f32 0.0, %v1635
        %1637 = vmatmul.f32.gmra.mxu0 %v1446
        %v1638 = vpop.f32.mrf.mxu0
        %v1639 = vadd.f32 0.0, %v1638
        %1640 = vmatmul.f32.gmra.mxu0 %v1453
        %v1641 = vpop.f32.mrf.mxu0
        %v1642 = vadd.f32 0.0, %v1641
        %1643 = vmatmul.f32.gmra.mxu0 %v1460
        %v1644 = vpop.f32.mrf.mxu0
        %v1645 = vadd.f32 0.0, %v1644
        %1646 = vmatmul.f32.gmra.mxu0 %v1467
        %v1647 = vpop.f32.mrf.mxu0
        %v1648 = vadd.f32 0.0, %v1647
        %1649 = vmatmul.f32.gmra.mxu0 %v1474
        %v1650 = vpop.f32.mrf.mxu0
        %v1651 = vadd.f32 0.0, %v1650
        %1652 = vmatmul.f32.gmra.mxu0 %v1481
        %v1653 = vpop.f32.mrf.mxu0
        %v1654 = vadd.f32 0.0, %v1653
        %1655 = vdwg.mxu0
        %1656 = vmatpush.msra.mxu0 %v1246
        %1657 = vmatpush.msra.mxu0 %v1245
        %1658 = vmatpush.msra.mxu0 %v1244
        %1659 = vmatpush.msra.mxu0 %v1243
        %1660 = vmatpush.msra.mxu0 %v1242
        %1661 = vmatpush.msra.mxu0 %v1241
        %1662 = vmatpush.msra.mxu0 %v1240
        %1663 = vmatpush.msra.mxu0 %v1239
        %1664 = vmatpush.msra.mxu0 %v1238
        %1665 = vmatpush.msra.mxu0 %v1237
        %1666 = vmatpush.msra.mxu0 %v1236
        %1667 = vmatpush.msra.mxu0 %v1235
        %1668 = vmatpush.msra.mxu0 %v1234
        %1669 = vmatpush.msra.mxu0 %v1233
        %1670 = vmatpush.msra.mxu0 %v1232
        %1671 = vmatpush.msra.mxu0 %v1231
        %1672 = vmatmul.f32.gmra.mxu0 %v1314
        %v1673 = vpop.f32.mrf.mxu0
        %v1674 = vadd.f32 %v1582, %v1673
        %1675 = vmatmul.f32.gmra.mxu0 %v1321
        %v1676 = vpop.f32.mrf.mxu0
        %v1677 = vadd.f32 %v1585, %v1676
        %1678 = vmatmul.f32.gmra.mxu0 %v1328
        %v1679 = vpop.f32.mrf.mxu0
        %v1680 = vadd.f32 %v1588, %v1679
        %1681 = vmatmul.f32.gmra.mxu0 %v1335
        %v1682 = vpop.f32.mrf.mxu0
        %v1683 = vadd.f32 %v1591, %v1682
        %1684 = vmatmul.f32.gmra.mxu0 %v1342
        %v1685 = vpop.f32.mrf.mxu0
        %v1686 = vadd.f32 %v1594, %v1685
        %1687 = vmatmul.f32.gmra.mxu0 %v1349
        %v1688 = vpop.f32.mrf.mxu0
        %v1689 = vadd.f32 %v1597, %v1688
        %1690 = vmatmul.f32.gmra.mxu0 %v1356
        %v1691 = vpop.f32.mrf.mxu0
        %v1692 = vadd.f32 %v1600, %v1691
        %1693 = vmatmul.f32.gmra.mxu0 %v1363
        %v1694 = vpop.f32.mrf.mxu0
        %v1695 = vadd.f32 %v1603, %v1694
        %1696 = vmatmul.f32.gmra.mxu0 %v1370
        %v1697 = vpop.f32.mrf.mxu0
        %v1698 = vadd.f32 %v1606, %v1697
        %1699 = vmatmul.f32.gmra.mxu0 %v1377
        %v1700 = vpop.f32.mrf.mxu0
        %v1701 = vadd.f32 %v1609, %v1700
        %1702 = vmatmul.f32.gmra.mxu0 %v1384
        %v1703 = vpop.f32.mrf.mxu0
        %v1704 = vadd.f32 %v1612, %v1703
        %1705 = vmatmul.f32.gmra.mxu0 %v1391
        %v1706 = vpop.f32.mrf.mxu0
        %v1707 = vadd.f32 %v1615, %v1706
        %1708 = vmatmul.f32.gmra.mxu0 %v1398
        %v1709 = vpop.f32.mrf.mxu0
        %v1710 = vadd.f32 %v1618, %v1709
        %1711 = vmatmul.f32.gmra.mxu0 %v1405
        %v1712 = vpop.f32.mrf.mxu0
        %v1713 = vadd.f32 %v1621, %v1712
        %1714 = vmatmul.f32.gmra.mxu0 %v1412
        %v1715 = vpop.f32.mrf.mxu0
        %v1716 = vadd.f32 %v1624, %v1715
        %1717 = vmatmul.f32.gmra.mxu0 %v1419
        %v1718 = vpop.f32.mrf.mxu0
        %v1719 = vadd.f32 %v1627, %v1718
        %1720 = vmatmul.f32.gmra.mxu0 %v1426
        %v1721 = vpop.f32.mrf.mxu0
        %v1722 = vadd.f32 %v1630, %v1721
        %1723 = vmatmul.f32.gmra.mxu0 %v1433
        %v1724 = vpop.f32.mrf.mxu0
        %v1725 = vadd.f32 %v1633, %v1724
        %1726 = vmatmul.f32.gmra.mxu0 %v1440
        %v1727 = vpop.f32.mrf.mxu0
        %v1728 = vadd.f32 %v1636, %v1727
        %1729 = vmatmul.f32.gmra.mxu0 %v1447
        %v1730 = vpop.f32.mrf.mxu0
        %v1731 = vadd.f32 %v1639, %v1730
        %1732 = vmatmul.f32.gmra.mxu0 %v1454
        %v1733 = vpop.f32.mrf.mxu0
        %v1734 = vadd.f32 %v1642, %v1733
        %1735 = vmatmul.f32.gmra.mxu0 %v1461
        %v1736 = vpop.f32.mrf.mxu0
        %v1737 = vadd.f32 %v1645, %v1736
        %1738 = vmatmul.f32.gmra.mxu0 %v1468
        %v1739 = vpop.f32.mrf.mxu0
        %v1740 = vadd.f32 %v1648, %v1739
        %1741 = vmatmul.f32.gmra.mxu0 %v1475
        %v1742 = vpop.f32.mrf.mxu0
        %v1743 = vadd.f32 %v1651, %v1742
        %1744 = vmatmul.f32.gmra.mxu0 %v1482
        %v1745 = vpop.f32.mrf.mxu0
        %v1746 = vadd.f32 %v1654, %v1745
        %1747 = vdwg.mxu0
        %1748 = vmatpush.msra.mxu0 %v1262
        %1749 = vmatpush.msra.mxu0 %v1261
        %1750 = vmatpush.msra.mxu0 %v1260
        %1751 = vmatpush.msra.mxu0 %v1259
        %1752 = vmatpush.msra.mxu0 %v1258
        %1753 = vmatpush.msra.mxu0 %v1257
        %1754 = vmatpush.msra.mxu0 %v1256
        %1755 = vmatpush.msra.mxu0 %v1255
        %1756 = vmatpush.msra.mxu0 %v1254
        %1757 = vmatpush.msra.mxu0 %v1253
        %1758 = vmatpush.msra.mxu0 %v1252
        %1759 = vmatpush.msra.mxu0 %v1251
        %1760 = vmatpush.msra.mxu0 %v1250
        %1761 = vmatpush.msra.mxu0 %v1249
        %1762 = vmatpush.msra.mxu0 %v1248
        %1763 = vmatpush.msra.mxu0 %v1247
        %1764 = vmatmul.f32.gmra.mxu0 %v1315
        %v1765 = vpop.f32.mrf.mxu0
        %v1766 = vadd.f32 %v1674, %v1765
        %1767 = vmatmul.f32.gmra.mxu0 %v1322
        %v1768 = vpop.f32.mrf.mxu0
        %v1769 = vadd.f32 %v1677, %v1768
        %1770 = vmatmul.f32.gmra.mxu0 %v1329
        %v1771 = vpop.f32.mrf.mxu0
        %v1772 = vadd.f32 %v1680, %v1771
        %1773 = vmatmul.f32.gmra.mxu0 %v1336
        %v1774 = vpop.f32.mrf.mxu0
        %v1775 = vadd.f32 %v1683, %v1774
        %1776 = vmatmul.f32.gmra.mxu0 %v1343
        %v1777 = vpop.f32.mrf.mxu0
        %v1778 = vadd.f32 %v1686, %v1777
        %1779 = vmatmul.f32.gmra.mxu0 %v1350
        %v1780 = vpop.f32.mrf.mxu0
        %v1781 = vadd.f32 %v1689, %v1780
        %1782 = vmatmul.f32.gmra.mxu0 %v1357
        %v1783 = vpop.f32.mrf.mxu0
        %v1784 = vadd.f32 %v1692, %v1783
        %1785 = vmatmul.f32.gmra.mxu0 %v1364
        %v1786 = vpop.f32.mrf.mxu0
        %v1787 = vadd.f32 %v1695, %v1786
        %1788 = vmatmul.f32.gmra.mxu0 %v1371
        %v1789 = vpop.f32.mrf.mxu0
        %v1790 = vadd.f32 %v1698, %v1789
        %1791 = vmatmul.f32.gmra.mxu0 %v1378
        %v1792 = vpop.f32.mrf.mxu0
        %v1793 = vadd.f32 %v1701, %v1792
        %1794 = vmatmul.f32.gmra.mxu0 %v1385
        %v1795 = vpop.f32.mrf.mxu0
        %v1796 = vadd.f32 %v1704, %v1795
        %1797 = vmatmul.f32.gmra.mxu0 %v1392
        %v1798 = vpop.f32.mrf.mxu0
        %v1799 = vadd.f32 %v1707, %v1798
        %1800 = vmatmul.f32.gmra.mxu0 %v1399
        %v1801 = vpop.f32.mrf.mxu0
        %v1802 = vadd.f32 %v1710, %v1801
        %1803 = vmatmul.f32.gmra.mxu0 %v1406
        %v1804 = vpop.f32.mrf.mxu0
        %v1805 = vadd.f32 %v1713, %v1804
        %1806 = vmatmul.f32.gmra.mxu0 %v1413
        %v1807 = vpop.f32.mrf.mxu0
        %v1808 = vadd.f32 %v1716, %v1807
        %1809 = vmatmul.f32.gmra.mxu0 %v1420
        %v1810 = vpop.f32.mrf.mxu0
        %v1811 = vadd.f32 %v1719, %v1810
        %1812 = vmatmul.f32.gmra.mxu0 %v1427
        %v1813 = vpop.f32.mrf.mxu0
        %v1814 = vadd.f32 %v1722, %v1813
        %1815 = vmatmul.f32.gmra.mxu0 %v1434
        %v1816 = vpop.f32.mrf.mxu0
        %v1817 = vadd.f32 %v1725, %v1816
        %1818 = vmatmul.f32.gmra.mxu0 %v1441
        %v1819 = vpop.f32.mrf.mxu0
        %v1820 = vadd.f32 %v1728, %v1819
        %1821 = vmatmul.f32.gmra.mxu0 %v1448
        %v1822 = vpop.f32.mrf.mxu0
        %v1823 = vadd.f32 %v1731, %v1822
        %1824 = vmatmul.f32.gmra.mxu0 %v1455
        %v1825 = vpop.f32.mrf.mxu0
        %v1826 = vadd.f32 %v1734, %v1825
        %1827 = vmatmul.f32.gmra.mxu0 %v1462
        %v1828 = vpop.f32.mrf.mxu0
        %v1829 = vadd.f32 %v1737, %v1828
        %1830 = vmatmul.f32.gmra.mxu0 %v1469
        %v1831 = vpop.f32.mrf.mxu0
        %v1832 = vadd.f32 %v1740, %v1831
        %1833 = vmatmul.f32.gmra.mxu0 %v1476
        %v1834 = vpop.f32.mrf.mxu0
        %v1835 = vadd.f32 %v1743, %v1834
        %1836 = vmatmul.f32.gmra.mxu0 %v1483
        %v1837 = vpop.f32.mrf.mxu0
        %v1838 = vadd.f32 %v1746, %v1837
        %1839 = vdwg.mxu0
        %1840 = vmatpush.msra.mxu0 %v1278
        %1841 = vmatpush.msra.mxu0 %v1277
        %1842 = vmatpush.msra.mxu0 %v1276
        %1843 = vmatpush.msra.mxu0 %v1275
        %1844 = vmatpush.msra.mxu0 %v1274
        %1845 = vmatpush.msra.mxu0 %v1273
        %1846 = vmatpush.msra.mxu0 %v1272
        %1847 = vmatpush.msra.mxu0 %v1271
        %1848 = vmatpush.msra.mxu0 %v1270
        %1849 = vmatpush.msra.mxu0 %v1269
        %1850 = vmatpush.msra.mxu0 %v1268
        %1851 = vmatpush.msra.mxu0 %v1267
        %1852 = vmatpush.msra.mxu0 %v1266
        %1853 = vmatpush.msra.mxu0 %v1265
        %1854 = vmatpush.msra.mxu0 %v1264
        %1855 = vmatpush.msra.mxu0 %v1263
        %1856 = vmatmul.f32.gmra.mxu0 %v1316
        %v1857 = vpop.f32.mrf.mxu0
        %v1858 = vadd.f32 %v1766, %v1857
        %1859 = vmatmul.f32.gmra.mxu0 %v1323
        %v1860 = vpop.f32.mrf.mxu0
        %v1861 = vadd.f32 %v1769, %v1860
        %1862 = vmatmul.f32.gmra.mxu0 %v1330
        %v1863 = vpop.f32.mrf.mxu0
        %v1864 = vadd.f32 %v1772, %v1863
        %1865 = vmatmul.f32.gmra.mxu0 %v1337
        %v1866 = vpop.f32.mrf.mxu0
        %v1867 = vadd.f32 %v1775, %v1866
        %1868 = vmatmul.f32.gmra.mxu0 %v1344
        %v1869 = vpop.f32.mrf.mxu0
        %v1870 = vadd.f32 %v1778, %v1869
        %1871 = vmatmul.f32.gmra.mxu0 %v1351
        %v1872 = vpop.f32.mrf.mxu0
        %v1873 = vadd.f32 %v1781, %v1872
        %1874 = vmatmul.f32.gmra.mxu0 %v1358
        %v1875 = vpop.f32.mrf.mxu0
        %v1876 = vadd.f32 %v1784, %v1875
        %1877 = vmatmul.f32.gmra.mxu0 %v1365
        %v1878 = vpop.f32.mrf.mxu0
        %v1879 = vadd.f32 %v1787, %v1878
        %1880 = vmatmul.f32.gmra.mxu0 %v1372
        %v1881 = vpop.f32.mrf.mxu0
        %v1882 = vadd.f32 %v1790, %v1881
        %1883 = vmatmul.f32.gmra.mxu0 %v1379
        %v1884 = vpop.f32.mrf.mxu0
        %v1885 = vadd.f32 %v1793, %v1884
        %1886 = vmatmul.f32.gmra.mxu0 %v1386
        %v1887 = vpop.f32.mrf.mxu0
        %v1888 = vadd.f32 %v1796, %v1887
        %1889 = vmatmul.f32.gmra.mxu0 %v1393
        %v1890 = vpop.f32.mrf.mxu0
        %v1891 = vadd.f32 %v1799, %v1890
        %1892 = vmatmul.f32.gmra.mxu0 %v1400
        %v1893 = vpop.f32.mrf.mxu0
        %v1894 = vadd.f32 %v1802, %v1893
        %1895 = vmatmul.f32.gmra.mxu0 %v1407
        %v1896 = vpop.f32.mrf.mxu0
        %v1897 = vadd.f32 %v1805, %v1896
        %1898 = vmatmul.f32.gmra.mxu0 %v1414
        %v1899 = vpop.f32.mrf.mxu0
        %v1900 = vadd.f32 %v1808, %v1899
        %1901 = vmatmul.f32.gmra.mxu0 %v1421
        %v1902 = vpop.f32.mrf.mxu0
        %v1903 = vadd.f32 %v1811, %v1902
        %1904 = vmatmul.f32.gmra.mxu0 %v1428
        %v1905 = vpop.f32.mrf.mxu0
        %v1906 = vadd.f32 %v1814, %v1905
        %1907 = vmatmul.f32.gmra.mxu0 %v1435
        %v1908 = vpop.f32.mrf.mxu0
        %v1909 = vadd.f32 %v1817, %v1908
        %1910 = vmatmul.f32.gmra.mxu0 %v1442
        %v1911 = vpop.f32.mrf.mxu0
        %v1912 = vadd.f32 %v1820, %v1911
        %1913 = vmatmul.f32.gmra.mxu0 %v1449
        %v1914 = vpop.f32.mrf.mxu0
        %v1915 = vadd.f32 %v1823, %v1914
        %1916 = vmatmul.f32.gmra.mxu0 %v1456
        %v1917 = vpop.f32.mrf.mxu0
        %v1918 = vadd.f32 %v1826, %v1917
        %1919 = vmatmul.f32.gmra.mxu0 %v1463
        %v1920 = vpop.f32.mrf.mxu0
        %v1921 = vadd.f32 %v1829, %v1920
        %1922 = vmatmul.f32.gmra.mxu0 %v1470
        %v1923 = vpop.f32.mrf.mxu0
        %v1924 = vadd.f32 %v1832, %v1923
        %1925 = vmatmul.f32.gmra.mxu0 %v1477
        %v1926 = vpop.f32.mrf.mxu0
        %v1927 = vadd.f32 %v1835, %v1926
        %1928 = vmatmul.f32.gmra.mxu0 %v1484
        %v1929 = vpop.f32.mrf.mxu0
        %v1930 = vadd.f32 %v1838, %v1929
        %1931 = vdwg.mxu0
        %1932 = vmatpush.msra.mxu0 %v1294
        %1933 = vmatpush.msra.mxu0 %v1293
        %1934 = vmatpush.msra.mxu0 %v1292
        %1935 = vmatpush.msra.mxu0 %v1291
        %1936 = vmatpush.msra.mxu0 %v1290
        %1937 = vmatpush.msra.mxu0 %v1289
        %1938 = vmatpush.msra.mxu0 %v1288
        %1939 = vmatpush.msra.mxu0 %v1287
        %1940 = vmatpush.msra.mxu0 %v1286
        %1941 = vmatpush.msra.mxu0 %v1285
        %1942 = vmatpush.msra.mxu0 %v1284
        %1943 = vmatpush.msra.mxu0 %v1283
        %1944 = vmatpush.msra.mxu0 %v1282
        %1945 = vmatpush.msra.mxu0 %v1281
        %1946 = vmatpush.msra.mxu0 %v1280
        %1947 = vmatpush.msra.mxu0 %v1279
        %1948 = vmatmul.f32.gmra.mxu0 %v1317
        %v1949 = vpop.f32.mrf.mxu0
        %v1950 = vadd.f32 %v1858, %v1949
        %1951 = vmatmul.f32.gmra.mxu0 %v1324
        %v1952 = vpop.f32.mrf.mxu0
        %v1953 = vadd.f32 %v1861, %v1952
        %1954 = vmatmul.f32.gmra.mxu0 %v1331
        %v1955 = vpop.f32.mrf.mxu0
        %v1956 = vadd.f32 %v1864, %v1955
        %1957 = vmatmul.f32.gmra.mxu0 %v1338
        %v1958 = vpop.f32.mrf.mxu0
        %v1959 = vadd.f32 %v1867, %v1958
        %1960 = vmatmul.f32.gmra.mxu0 %v1345
        %v1961 = vpop.f32.mrf.mxu0
        %v1962 = vadd.f32 %v1870, %v1961
        %1963 = vmatmul.f32.gmra.mxu0 %v1352
        %v1964 = vpop.f32.mrf.mxu0
        %v1965 = vadd.f32 %v1873, %v1964
        %1966 = vmatmul.f32.gmra.mxu0 %v1359
        %v1967 = vpop.f32.mrf.mxu0
        %v1968 = vadd.f32 %v1876, %v1967
        %1969 = vmatmul.f32.gmra.mxu0 %v1366
        %v1970 = vpop.f32.mrf.mxu0
        %v1971 = vadd.f32 %v1879, %v1970
        %1972 = vmatmul.f32.gmra.mxu0 %v1373
        %v1973 = vpop.f32.mrf.mxu0
        %v1974 = vadd.f32 %v1882, %v1973
        %1975 = vmatmul.f32.gmra.mxu0 %v1380
        %v1976 = vpop.f32.mrf.mxu0
        %v1977 = vadd.f32 %v1885, %v1976
        %1978 = vmatmul.f32.gmra.mxu0 %v1387
        %v1979 = vpop.f32.mrf.mxu0
        %v1980 = vadd.f32 %v1888, %v1979
        %1981 = vmatmul.f32.gmra.mxu0 %v1394
        %v1982 = vpop.f32.mrf.mxu0
        %v1983 = vadd.f32 %v1891, %v1982
        %1984 = vmatmul.f32.gmra.mxu0 %v1401
        %v1985 = vpop.f32.mrf.mxu0
        %v1986 = vadd.f32 %v1894, %v1985
        %1987 = vmatmul.f32.gmra.mxu0 %v1408
        %v1988 = vpop.f32.mrf.mxu0
        %v1989 = vadd.f32 %v1897, %v1988
        %1990 = vmatmul.f32.gmra.mxu0 %v1415
        %v1991 = vpop.f32.mrf.mxu0
        %v1992 = vadd.f32 %v1900, %v1991
        %1993 = vmatmul.f32.gmra.mxu0 %v1422
        %v1994 = vpop.f32.mrf.mxu0
        %v1995 = vadd.f32 %v1903, %v1994
        %1996 = vmatmul.f32.gmra.mxu0 %v1429
        %v1997 = vpop.f32.mrf.mxu0
        %v1998 = vadd.f32 %v1906, %v1997
        %1999 = vmatmul.f32.gmra.mxu0 %v1436
        %v2000 = vpop.f32.mrf.mxu0
        %v2001 = vadd.f32 %v1909, %v2000
        %2002 = vmatmul.f32.gmra.mxu0 %v1443
        %v2003 = vpop.f32.mrf.mxu0
        %v2004 = vadd.f32 %v1912, %v2003
        %2005 = vmatmul.f32.gmra.mxu0 %v1450
        %v2006 = vpop.f32.mrf.mxu0
        %v2007 = vadd.f32 %v1915, %v2006
        %2008 = vmatmul.f32.gmra.mxu0 %v1457
        %v2009 = vpop.f32.mrf.mxu0
        %v2010 = vadd.f32 %v1918, %v2009
        %2011 = vmatmul.f32.gmra.mxu0 %v1464
        %v2012 = vpop.f32.mrf.mxu0
        %v2013 = vadd.f32 %v1921, %v2012
        %2014 = vmatmul.f32.gmra.mxu0 %v1471
        %v2015 = vpop.f32.mrf.mxu0
        %v2016 = vadd.f32 %v1924, %v2015
        %2017 = vmatmul.f32.gmra.mxu0 %v1478
        %v2018 = vpop.f32.mrf.mxu0
        %v2019 = vadd.f32 %v1927, %v2018
        %2020 = vmatmul.f32.gmra.mxu0 %v1485
        %v2021 = vpop.f32.mrf.mxu0
        %v2022 = vadd.f32 %v1930, %v2021
        %2023 = vdwg.mxu0
        %2024 = vmatpush.msra.mxu0 %v1310
        %2025 = vmatpush.msra.mxu0 %v1309
        %2026 = vmatpush.msra.mxu0 %v1308
        %2027 = vmatpush.msra.mxu0 %v1307
        %2028 = vmatpush.msra.mxu0 %v1306
        %2029 = vmatpush.msra.mxu0 %v1305
        %2030 = vmatpush.msra.mxu0 %v1304
        %2031 = vmatpush.msra.mxu0 %v1303
        %2032 = vmatpush.msra.mxu0 %v1302
        %2033 = vmatpush.msra.mxu0 %v1301
        %2034 = vmatpush.msra.mxu0 %v1300
        %2035 = vmatpush.msra.mxu0 %v1299
        %2036 = vmatpush.msra.mxu0 %v1298
        %2037 = vmatpush.msra.mxu0 %v1297
        %2038 = vmatpush.msra.mxu0 %v1296
        %2039 = vmatpush.msra.mxu0 %v1295
        %2040 = vmatmul.f32.gmra.mxu0 %v1318
        %v2041 = vpop.f32.mrf.mxu0
        %v2042 = vadd.f32 %v1950, %v2041
        %2043 = vmatmul.f32.gmra.mxu0 %v1325
        %v2044 = vpop.f32.mrf.mxu0
        %v2045 = vadd.f32 %v1953, %v2044
        %2046 = vmatmul.f32.gmra.mxu0 %v1332
        %v2047 = vpop.f32.mrf.mxu0
        %v2048 = vadd.f32 %v1956, %v2047
        %2049 = vmatmul.f32.gmra.mxu0 %v1339
        %v2050 = vpop.f32.mrf.mxu0
        %v2051 = vadd.f32 %v1959, %v2050
        %2052 = vmatmul.f32.gmra.mxu0 %v1346
        %v2053 = vpop.f32.mrf.mxu0
        %v2054 = vadd.f32 %v1962, %v2053
        %2055 = vmatmul.f32.gmra.mxu0 %v1353
        %v2056 = vpop.f32.mrf.mxu0
        %v2057 = vadd.f32 %v1965, %v2056
        %2058 = vmatmul.f32.gmra.mxu0 %v1360
        %v2059 = vpop.f32.mrf.mxu0
        %v2060 = vadd.f32 %v1968, %v2059
        %2061 = vmatmul.f32.gmra.mxu0 %v1367
        %v2062 = vpop.f32.mrf.mxu0
        %v2063 = vadd.f32 %v1971, %v2062
        %2064 = vmatmul.f32.gmra.mxu0 %v1374
        %v2065 = vpop.f32.mrf.mxu0
        %v2066 = vadd.f32 %v1974, %v2065
        %2067 = vmatmul.f32.gmra.mxu0 %v1381
        %v2068 = vpop.f32.mrf.mxu0
        %v2069 = vadd.f32 %v1977, %v2068
        %2070 = vmatmul.f32.gmra.mxu0 %v1388
        %v2071 = vpop.f32.mrf.mxu0
        %v2072 = vadd.f32 %v1980, %v2071
        %2073 = vmatmul.f32.gmra.mxu0 %v1395
        %v2074 = vpop.f32.mrf.mxu0
        %v2075 = vadd.f32 %v1983, %v2074
        %2076 = vmatmul.f32.gmra.mxu0 %v1402
        %v2077 = vpop.f32.mrf.mxu0
        %v2078 = vadd.f32 %v1986, %v2077
        %2079 = vmatmul.f32.gmra.mxu0 %v1409
        %v2080 = vpop.f32.mrf.mxu0
        %v2081 = vadd.f32 %v1989, %v2080
        %2082 = vmatmul.f32.gmra.mxu0 %v1416
        %v2083 = vpop.f32.mrf.mxu0
        %v2084 = vadd.f32 %v1992, %v2083
        %2085 = vmatmul.f32.gmra.mxu0 %v1423
        %v2086 = vpop.f32.mrf.mxu0
        %v2087 = vadd.f32 %v1995, %v2086
        %2088 = vmatmul.f32.gmra.mxu0 %v1430
        %v2089 = vpop.f32.mrf.mxu0
        %v2090 = vadd.f32 %v1998, %v2089
        %2091 = vmatmul.f32.gmra.mxu0 %v1437
        %v2092 = vpop.f32.mrf.mxu0
        %v2093 = vadd.f32 %v2001, %v2092
        %2094 = vmatmul.f32.gmra.mxu0 %v1444
        %v2095 = vpop.f32.mrf.mxu0
        %v2096 = vadd.f32 %v2004, %v2095
        %2097 = vmatmul.f32.gmra.mxu0 %v1451
        %v2098 = vpop.f32.mrf.mxu0
        %v2099 = vadd.f32 %v2007, %v2098
        %2100 = vmatmul.f32.gmra.mxu0 %v1458
        %v2101 = vpop.f32.mrf.mxu0
        %v2102 = vadd.f32 %v2010, %v2101
        %2103 = vmatmul.f32.gmra.mxu0 %v1465
        %v2104 = vpop.f32.mrf.mxu0
        %v2105 = vadd.f32 %v2013, %v2104
        %2106 = vmatmul.f32.gmra.mxu0 %v1472
        %v2107 = vpop.f32.mrf.mxu0
        %v2108 = vadd.f32 %v2016, %v2107
        %2109 = vmatmul.f32.gmra.mxu0 %v1479
        %v2110 = vpop.f32.mrf.mxu0
        %v2111 = vadd.f32 %v2019, %v2110
        %2112 = vmatmul.f32.gmra.mxu0 %v1486
        %v2113 = vpop.f32.mrf.mxu0
        %v2114 = vadd.f32 %v2022, %v2113
        %2115 = vdwg.mxu0
        %2116 = vmatpush.msra.mxu0 0.0
        %2117 = vmatpush.msra.mxu0 0.0
        %2118 = vmatpush.msra.mxu0 0.0
        %2119 = vmatpush.msra.mxu0 0.0
        %2120 = vmatpush.msra.mxu0 0.0
        %2121 = vmatpush.msra.mxu0 0.0
        %2122 = vmatpush.msra.mxu0 0.0
        %2123 = vmatpush.msra.mxu0 0.0
        %2124 = vmatpush.msra.mxu0 0.0
        %2125 = vmatpush.msra.mxu0 0.0
        %2126 = vmatpush.msra.mxu0 0.0
        %2127 = vmatpush.msra.mxu0 0.0
        %2128 = vmatpush.msra.mxu0 0.0
        %2129 = vmatpush.msra.mxu0 0.0
        %2130 = vmatpush.msra.mxu0 %v1312
        %2131 = vmatpush.msra.mxu0 %v1311
        %2132 = vmatmul.f32.gmra.mxu0 %v1490
        %v2133 = vpop.f32.mrf.mxu0
        %v2134 = vadd.f32 %v2042, %v2133
        %2135 = vmatmul.f32.gmra.mxu0 %v1493
        %v2136 = vpop.f32.mrf.mxu0
        %v2137 = vadd.f32 %v2045, %v2136
        %2138 = vmatmul.f32.gmra.mxu0 %v1496
        %v2139 = vpop.f32.mrf.mxu0
        %v2140 = vadd.f32 %v2048, %v2139
        %2141 = vmatmul.f32.gmra.mxu0 %v1499
        %v2142 = vpop.f32.mrf.mxu0
        %v2143 = vadd.f32 %v2051, %v2142
        %2144 = vmatmul.f32.gmra.mxu0 %v1502
        %v2145 = vpop.f32.mrf.mxu0
        %v2146 = vadd.f32 %v2054, %v2145
        %2147 = vmatmul.f32.gmra.mxu0 %v1505
        %v2148 = vpop.f32.mrf.mxu0
        %v2149 = vadd.f32 %v2057, %v2148
        %2150 = vmatmul.f32.gmra.mxu0 %v1508
        %v2151 = vpop.f32.mrf.mxu0
        %v2152 = vadd.f32 %v2060, %v2151
        %2153 = vmatmul.f32.gmra.mxu0 %v1511
        %v2154 = vpop.f32.mrf.mxu0
        %v2155 = vadd.f32 %v2063, %v2154
        %2156 = vmatmul.f32.gmra.mxu0 %v1514
        %v2157 = vpop.f32.mrf.mxu0
        %v2158 = vadd.f32 %v2066, %v2157
        %2159 = vmatmul.f32.gmra.mxu0 %v1517
        %v2160 = vpop.f32.mrf.mxu0
        %v2161 = vadd.f32 %v2069, %v2160
        %2162 = vmatmul.f32.gmra.mxu0 %v1520
        %v2163 = vpop.f32.mrf.mxu0
        %v2164 = vadd.f32 %v2072, %v2163
        %2165 = vmatmul.f32.gmra.mxu0 %v1523
        %v2166 = vpop.f32.mrf.mxu0
        %v2167 = vadd.f32 %v2075, %v2166
        %2168 = vmatmul.f32.gmra.mxu0 %v1526
        %v2169 = vpop.f32.mrf.mxu0
        %v2170 = vadd.f32 %v2078, %v2169
        %2171 = vmatmul.f32.gmra.mxu0 %v1529
        %v2172 = vpop.f32.mrf.mxu0
        %v2173 = vadd.f32 %v2081, %v2172
        %2174 = vmatmul.f32.gmra.mxu0 %v1532
        %v2175 = vpop.f32.mrf.mxu0
        %v2176 = vadd.f32 %v2084, %v2175
        %2177 = vmatmul.f32.gmra.mxu0 %v1535
        %v2178 = vpop.f32.mrf.mxu0
        %v2179 = vadd.f32 %v2087, %v2178
        %2180 = vmatmul.f32.gmra.mxu0 %v1538
        %v2181 = vpop.f32.mrf.mxu0
        %v2182 = vadd.f32 %v2090, %v2181
        %2183 = vmatmul.f32.gmra.mxu0 %v1541
        %v2184 = vpop.f32.mrf.mxu0
        %v2185 = vadd.f32 %v2093, %v2184
        %2186 = vmatmul.f32.gmra.mxu0 %v1544
        %v2187 = vpop.f32.mrf.mxu0
        %v2188 = vadd.f32 %v2096, %v2187
        %2189 = vmatmul.f32.gmra.mxu0 %v1547
        %v2190 = vpop.f32.mrf.mxu0
        %v2191 = vadd.f32 %v2099, %v2190
        %2192 = vmatmul.f32.gmra.mxu0 %v1550
        %v2193 = vpop.f32.mrf.mxu0
        %v2194 = vadd.f32 %v2102, %v2193
        %2195 = vmatmul.f32.gmra.mxu0 %v1553
        %v2196 = vpop.f32.mrf.mxu0
        %v2197 = vadd.f32 %v2105, %v2196
        %2198 = vmatmul.f32.gmra.mxu0 %v1556
        %v2199 = vpop.f32.mrf.mxu0
        %v2200 = vadd.f32 %v2108, %v2199
        %2201 = vmatmul.f32.gmra.mxu0 %v1559
        %v2202 = vpop.f32.mrf.mxu0
        %v2203 = vadd.f32 %v2111, %v2202
        %2204 = vmatmul.f32.gmra.mxu0 %v1562
        %v2205 = vpop.f32.mrf.mxu0
        %v2206 = vadd.f32 %v2114, %v2205
        %2207 = vdwg.mxu0
        %s2208 = scalar_lea.vmem [#allocation6], 1400
        %v2209 = vld [vmem:[%s2208] sm:$0xff]
        %v2210 = vld [vmem:[%s2208 + $0x8] sm:$0xff]
        %v2211 = vld [vmem:[%s2208 + $0x10] sm:$0xff]
        %v2212 = vld [vmem:[%s2208 + $0x18] sm:$0xff]
        %v2213 = vld [vmem:[%s2208 + $0x20] sm:$0xff]
        %v2214 = vld [vmem:[%s2208 + $0x28] sm:$0xff]
        %v2215 = vld [vmem:[%s2208 + $0x30] sm:$0xff]
        %v2216 = vld [vmem:[%s2208 + $0x38] sm:$0xff]
        %v2217 = vld [vmem:[%s2208 + $0x40] sm:$0xff]
        %v2218 = vld [vmem:[%s2208 + $0x48] sm:$0xff]
        %v2219 = vld [vmem:[%s2208 + $0x50] sm:$0xff]
        %v2220 = vld [vmem:[%s2208 + $0x58] sm:$0xff]
        %v2221 = vld [vmem:[%s2208 + $0x60] sm:$0xff]
        %v2222 = vld [vmem:[%s2208 + $0x68] sm:$0xff]
        %v2223 = vld [vmem:[%s2208 + $0x70] sm:$0xff]
        %v2224 = vld [vmem:[%s2208 + $0x78] sm:$0xff]
        %v2225 = vld [vmem:[%s2208 + $0x80] sm:$0xff]
        %v2226 = vld [vmem:[%s2208 + $0x88] sm:$0xff]
        %v2227 = vld [vmem:[%s2208 + $0x90] sm:$0xff]
        %v2228 = vld [vmem:[%s2208 + $0x98] sm:$0xff]
        %v2229 = vld [vmem:[%s2208 + $0xa0] sm:$0xff]
        %v2230 = vld [vmem:[%s2208 + $0xa8] sm:$0xff]
        %v2231 = vld [vmem:[%s2208 + $0xb0] sm:$0xff]
        %v2232 = vld [vmem:[%s2208 + $0xb8] sm:$0xff]
        %v2233 = vld [vmem:[%s2208 + $0xc0] sm:$0xff]
        %v2234 = vld [vmem:[%s2208 + $0xc8] sm:$0xff]
        %v2235 = vld [vmem:[%s2208 + $0xd0] sm:$0xff]
        %v2236 = vld [vmem:[%s2208 + $0xd8] sm:$0xff]
        %v2237 = vld [vmem:[%s2208 + $0xe0] sm:$0xff]
        %v2238 = vld [vmem:[%s2208 + $0xe8] sm:$0xff]
        %v2239 = vld [vmem:[%s2208 + $0xf0] sm:$0xff]
        %v2240 = vld [vmem:[%s2208 + $0xf8] sm:$0xff]
        %v2241 = vld [vmem:[%s2208 + $0x100] sm:$0xff]
        %v2242 = vld [vmem:[%s2208 + $0x108] sm:$0xff]
        %v2243 = vld [vmem:[%s2208 + $0x110] sm:$0xff]
        %v2244 = vld [vmem:[%s2208 + $0x118] sm:$0xff]
        %v2245 = vld [vmem:[%s2208 + $0x120] sm:$0xff]
        %v2246 = vld [vmem:[%s2208 + $0x128] sm:$0xff]
        %v2247 = vld [vmem:[%s2208 + $0x130] sm:$0xff]
        %v2248 = vld [vmem:[%s2208 + $0x138] sm:$0xff]
        %v2249 = vld [vmem:[%s2208 + $0x140] sm:$0xff]
        %v2250 = vld [vmem:[%s2208 + $0x148] sm:$0xff]
        %v2251 = vld [vmem:[%s2208 + $0x150] sm:$0xff]
        %v2252 = vld [vmem:[%s2208 + $0x158] sm:$0xff]
        %v2253 = vld [vmem:[%s2208 + $0x160] sm:$0xff]
        %v2254 = vld [vmem:[%s2208 + $0x168] sm:$0xff]
        %v2255 = vld [vmem:[%s2208 + $0x170] sm:$0xff]
        %v2256 = vld [vmem:[%s2208 + $0x178] sm:$0xff]
        %v2257 = vld [vmem:[%s2208 + $0x180] sm:$0xff]
        %v2258 = vld [vmem:[%s2208 + $0x188] sm:$0xff]
        %v2259 = vld [vmem:[%s2208 + $0x190] sm:$0xff]
        %v2260 = vld [vmem:[%s2208 + $0x198] sm:$0xff]
        %v2261 = vld [vmem:[%s2208 + $0x1a0] sm:$0xff]
        %v2262 = vld [vmem:[%s2208 + $0x1a8] sm:$0xff]
        %v2263 = vld [vmem:[%s2208 + $0x1b0] sm:$0xff]
        %v2264 = vld [vmem:[%s2208 + $0x1b8] sm:$0xff]
        %v2265 = vld [vmem:[%s2208 + $0x1c0] sm:$0xff]
        %v2266 = vld [vmem:[%s2208 + $0x1c8] sm:$0xff]
        %v2267 = vld [vmem:[%s2208 + $0x1d0] sm:$0xff]
        %v2268 = vld [vmem:[%s2208 + $0x1d8] sm:$0xff]
        %v2269 = vld [vmem:[%s2208 + $0x1e0] sm:$0xff]
        %v2270 = vld [vmem:[%s2208 + $0x1e8] sm:$0xff]
        %v2271 = vld [vmem:[%s2208 + $0x1f0] sm:$0xff]
        %v2272 = vld [vmem:[%s2208 + $0x1f8] sm:$0xff]
        %v2273 = vld [vmem:[%s2208 + $0x200] sm:$0xff]
        %v2274 = vld [vmem:[%s2208 + $0x208] sm:$0xff]
        %v2275 = vld [vmem:[%s2208 + $0x210] sm:$0xff]
        %v2276 = vld [vmem:[%s2208 + $0x218] sm:$0xff]
        %v2277 = vld [vmem:[%s2208 + $0x220] sm:$0xff]
        %v2278 = vld [vmem:[%s2208 + $0x228] sm:$0xff]
        %v2279 = vld [vmem:[%s2208 + $0x230] sm:$0xff]
        %v2280 = vld [vmem:[%s2208 + $0x238] sm:$0xff]
        %v2281 = vld [vmem:[%s2208 + $0x240] sm:$0xff]
        %v2282 = vld [vmem:[%s2208 + $0x248] sm:$0xff]
        %v2283 = vld [vmem:[%s2208 + $0x250] sm:$0xff]
        %v2284 = vld [vmem:[%s2208 + $0x258] sm:$0xff]
        %v2285 = vld [vmem:[%s2208 + $0x260] sm:$0xff]
        %v2286 = vld [vmem:[%s2208 + $0x268] sm:$0xff]
        %v2287 = vld [vmem:[%s2208 + $0x270] sm:$0xff]
        %v2288 = vld [vmem:[%s2208 + $0x278] sm:$0xff]
        %v2289 = vld [vmem:[%s2208 + $0x280] sm:$0xff]
        %v2290 = vld [vmem:[%s2208 + $0x288] sm:$0xff]
        %v2291 = vld [vmem:[%s2208 + $0x290] sm:$0xff]
        %v2292 = vld [vmem:[%s2208 + $0x298] sm:$0xff]
        %v2293 = vld [vmem:[%s2208 + $0x2a0] sm:$0xff]
        %v2294 = vld [vmem:[%s2208 + $0x2a8] sm:$0xff]
        %v2295 = vld [vmem:[%s2208 + $0x2b0] sm:$0xff]
        %v2296 = vld [vmem:[%s2208 + $0x2b8] sm:$0xff]
        %v2297 = vld [vmem:[%s2208 + $0x2c0] sm:$0xff]
        %v2298 = vld [vmem:[%s2208 + $0x2c8] sm:$0xff]
        %v2299 = vld [vmem:[%s2208 + $0x2d0] sm:$0xff]
        %v2300 = vld [vmem:[%s2208 + $0x2d8] sm:$0xff]
        %v2301 = vld [vmem:[%s2208 + $0x2e0] sm:$0xff]
        %v2302 = vld [vmem:[%s2208 + $0x2e8] sm:$0xff]
        %v2303 = vld [vmem:[%s2208 + $0x2f0] sm:$0xff]
        %v2304 = vld [vmem:[%s2208 + $0x2f8] sm:$0xff]
        %v2305 = vld [vmem:[%s2208 + $0x300] sm:$0xff]
        %v2306 = vld [vmem:[%s2208 + $0x308] sm:$0xff]
        %v2307 = vld [vmem:[%s2208 + $0x310] sm:$0xff]
        %v2308 = vld [vmem:[%s2208 + $0x318] sm:$0xff]
        %v2309 = vld [vmem:[%s2208 + $0x320] sm:$0xff]
        %v2310 = vld [vmem:[%s2208 + $0x328] sm:$0xff]
        %v2311 = vld [vmem:[%s2208 + $0x330] sm:$0xff]
        %v2312 = vld [vmem:[%s2208 + $0x338] sm:$0xff]
        %v2313 = vld [vmem:[%s2208 + $0x340] sm:$0xff]
        %v2314 = vld [vmem:[%s2208 + $0x348] sm:$0xff]
        %v2315 = vld [vmem:[%s2208 + $0x350] sm:$0xff]
        %v2316 = vld [vmem:[%s2208 + $0x358] sm:$0xff]
        %v2317 = vld [vmem:[%s2208 + $0x360] sm:$0xff]
        %v2318 = vld [vmem:[%s2208 + $0x368] sm:$0xff]
        %v2319 = vld [vmem:[%s2208 + $0x370] sm:$0xff]
        %v2320 = vld [vmem:[%s2208 + $0x378] sm:$0xff]
        %v2321 = vld [vmem:[%s2208 + $0x380] sm:$0xff]
        %v2322 = vld [vmem:[%s2208 + $0x388] sm:$0xff]
        %v2323 = vld [vmem:[%s2208 + $0x390] sm:$0xff]
        %v2324 = vld [vmem:[%s2208 + $0x398] sm:$0xff]
        %v2325 = vld [vmem:[%s2208 + $0x3a0] sm:$0xff]
        %v2326 = vld [vmem:[%s2208 + $0x3a8] sm:$0xff]
        %v2327 = vld [vmem:[%s2208 + $0x3b0] sm:$0xff]
        %v2328 = vld [vmem:[%s2208 + $0x3b8] sm:$0xff]
        %v2329 = vld [vmem:[%s2208 + $0x3c0] sm:$0xff]
        %v2330 = vld [vmem:[%s2208 + $0x3c8] sm:$0xff]
        %v2331 = vld [vmem:[%s2208 + $0x3d0] sm:$0xff]
        %v2332 = vld [vmem:[%s2208 + $0x3d8] sm:$0xff]
        %v2333 = vld [vmem:[%s2208 + $0x3e0] sm:$0xff]
        %v2334 = vld [vmem:[%s2208 + $0x3e8] sm:$0xff]
        %v2335 = vld [vmem:[%s2208 + $0x3f0] sm:$0xff]
        %v2336 = vld [vmem:[%s2208 + $0x3f8] sm:$0xff]
        %v2337 = vld [vmem:[%s2208 + $0x400] sm:$0xff]
        %v2338 = vld [vmem:[%s2208 + $0x408] sm:$0xff]
        %v2339 = vld [vmem:[%s2208 + $0x410] sm:$0xff]
        %v2340 = vld [vmem:[%s2208 + $0x418] sm:$0xff]
        %v2341 = vld [vmem:[%s2208 + $0x420] sm:$0xff]
        %v2342 = vld [vmem:[%s2208 + $0x428] sm:$0xff]
        %v2343 = vld [vmem:[%s2208 + $0x430] sm:$0xff]
        %v2344 = vld [vmem:[%s2208 + $0x438] sm:$0xff]
        %v2345 = vld [vmem:[%s2208 + $0x440] sm:$0xff]
        %v2346 = vld [vmem:[%s2208 + $0x448] sm:$0xff]
        %v2347 = vld [vmem:[%s2208 + $0x450] sm:$0xff]
        %v2348 = vld [vmem:[%s2208 + $0x458] sm:$0xff]
        %v2349 = vld [vmem:[%s2208 + $0x460] sm:$0xff]
        %v2350 = vld [vmem:[%s2208 + $0x468] sm:$0xff]
        %v2351 = vld [vmem:[%s2208 + $0x470] sm:$0xff]
        %v2352 = vld [vmem:[%s2208 + $0x478] sm:$0xff]
        %v2353 = vld [vmem:[%s2208 + $0x480] sm:$0xff]
        %v2354 = vld [vmem:[%s2208 + $0x488] sm:$0xff]
        %v2355 = vld [vmem:[%s2208 + $0x490] sm:$0xff]
        %v2356 = vld [vmem:[%s2208 + $0x498] sm:$0xff]
        %v2357 = vld [vmem:[%s2208 + $0x4a0] sm:$0xff]
        %v2358 = vld [vmem:[%s2208 + $0x4a8] sm:$0xff]
        %v2359 = vld [vmem:[%s2208 + $0x4b0] sm:$0xff]
        %v2360 = vld [vmem:[%s2208 + $0x4b8] sm:$0xff]
        %v2361 = vld [vmem:[%s2208 + $0x4c0] sm:$0xff]
        %v2362 = vld [vmem:[%s2208 + $0x4c8] sm:$0xff]
        %v2363 = vld [vmem:[%s2208 + $0x4d0] sm:$0xff]
        %v2364 = vld [vmem:[%s2208 + $0x4d8] sm:$0xff]
        %v2365 = vld [vmem:[%s2208 + $0x4e0] sm:$0xff]
        %v2366 = vld [vmem:[%s2208 + $0x4e8] sm:$0xff]
        %v2367 = vld [vmem:[%s2208 + $0x4f0] sm:$0xff]
        %v2368 = vld [vmem:[%s2208 + $0x4f8] sm:$0xff]
        %v2369 = vld [vmem:[%s2208 + $0x500] sm:$0xff]
        %v2370 = vld [vmem:[%s2208 + $0x508] sm:$0xff]
        %v2371 = vld [vmem:[%s2208 + $0x510] sm:$0xff]
        %v2372 = vld [vmem:[%s2208 + $0x518] sm:$0xff]
        %v2373 = vld [vmem:[%s2208 + $0x520] sm:$0xff]
        %v2374 = vld [vmem:[%s2208 + $0x528] sm:$0xff]
        %v2375 = vld [vmem:[%s2208 + $0x530] sm:$0xff]
        %v2376 = vld [vmem:[%s2208 + $0x538] sm:$0xff]
        %v2377 = vld [vmem:[%s2208 + $0x540] sm:$0xf]
        %v2378 = vld [vmem:[%s2208 + $0x548] sm:$0xf]
        %v2379 = vld [vmem:[%s2208 + $0x550] sm:$0xf]
        %v2380 = vld [vmem:[%s2208 + $0x558] sm:$0xf]
        %v2381 = vld [vmem:[%s2208 + $0x560] sm:$0xf]
        %v2382 = vld [vmem:[%s2208 + $0x568] sm:$0xf]
        %v2383 = vld [vmem:[%s2208 + $0x570] sm:$0xf]
        %v2385 = vsel %vm1488, %v2215, 0
        %v2388 = vsel %vm1488, %v2222, 0
        %v2391 = vsel %vm1488, %v2229, 0
        %v2394 = vsel %vm1488, %v2236, 0
        %v2397 = vsel %vm1488, %v2243, 0
        %v2400 = vsel %vm1488, %v2250, 0
        %v2403 = vsel %vm1488, %v2257, 0
        %v2406 = vsel %vm1488, %v2264, 0
        %v2409 = vsel %vm1488, %v2271, 0
        %v2412 = vsel %vm1488, %v2278, 0
        %v2415 = vsel %vm1488, %v2285, 0
        %v2418 = vsel %vm1488, %v2292, 0
        %v2421 = vsel %vm1488, %v2299, 0
        %v2424 = vsel %vm1488, %v2306, 0
        %v2427 = vsel %vm1488, %v2313, 0
        %v2430 = vsel %vm1488, %v2320, 0
        %v2433 = vsel %vm1488, %v2327, 0
        %v2436 = vsel %vm1488, %v2334, 0
        %v2439 = vsel %vm1488, %v2341, 0
        %v2442 = vsel %vm1488, %v2348, 0
        %v2445 = vsel %vm1488, %v2355, 0
        %v2448 = vsel %vm1488, %v2362, 0
        %v2451 = vsel %vm1488, %v2369, 0
        %v2454 = vsel %vm1488, %v2376, 0
        %v2457 = vsel %vm1488, %v2383, 0
        %2459 = vmatpush.msra.mxu0 %v1230
        %2460 = vmatpush.msra.mxu0 %v1229
        %2461 = vmatpush.msra.mxu0 %v1228
        %2462 = vmatpush.msra.mxu0 %v1227
        %2463 = vmatpush.msra.mxu0 %v1226
        %2464 = vmatpush.msra.mxu0 %v1225
        %2465 = vmatpush.msra.mxu0 %v1224
        %2466 = vmatpush.msra.mxu0 %v1223
        %2467 = vmatpush.msra.mxu0 %v1222
        %2468 = vmatpush.msra.mxu0 %v1221
        %2469 = vmatpush.msra.mxu0 %v1220
        %2470 = vmatpush.msra.mxu0 %v1219
        %2471 = vmatpush.msra.mxu0 %v1218
        %2472 = vmatpush.msra.mxu0 %v1217
        %2473 = vmatpush.msra.mxu0 %v1216
        %2474 = vmatpush.msra.mxu0 %v1215
        %2475 = vmatmul.f32.gmra.mxu0 %v2209
        %v2476 = vpop.f32.mrf.mxu0
        %v2477 = vadd.f32 0.0, %v2476
        %2478 = vmatmul.f32.gmra.mxu0 %v2216
        %v2479 = vpop.f32.mrf.mxu0
        %v2480 = vadd.f32 0.0, %v2479
        %2481 = vmatmul.f32.gmra.mxu0 %v2223
        %v2482 = vpop.f32.mrf.mxu0
        %v2483 = vadd.f32 0.0, %v2482
        %2484 = vmatmul.f32.gmra.mxu0 %v2230
        %v2485 = vpop.f32.mrf.mxu0
        %v2486 = vadd.f32 0.0, %v2485
        %2487 = vmatmul.f32.gmra.mxu0 %v2237
        %v2488 = vpop.f32.mrf.mxu0
        %v2489 = vadd.f32 0.0, %v2488
        %2490 = vmatmul.f32.gmra.mxu0 %v2244
        %v2491 = vpop.f32.mrf.mxu0
        %v2492 = vadd.f32 0.0, %v2491
        %2493 = vmatmul.f32.gmra.mxu0 %v2251
        %v2494 = vpop.f32.mrf.mxu0
        %v2495 = vadd.f32 0.0, %v2494
        %2496 = vmatmul.f32.gmra.mxu0 %v2258
        %v2497 = vpop.f32.mrf.mxu0
        %v2498 = vadd.f32 0.0, %v2497
        %2499 = vmatmul.f32.gmra.mxu0 %v2265
        %v2500 = vpop.f32.mrf.mxu0
        %v2501 = vadd.f32 0.0, %v2500
        %2502 = vmatmul.f32.gmra.mxu0 %v2272
        %v2503 = vpop.f32.mrf.mxu0
        %v2504 = vadd.f32 0.0, %v2503
        %2505 = vmatmul.f32.gmra.mxu0 %v2279
        %v2506 = vpop.f32.mrf.mxu0
        %v2507 = vadd.f32 0.0, %v2506
        %2508 = vmatmul.f32.gmra.mxu0 %v2286
        %v2509 = vpop.f32.mrf.mxu0
        %v2510 = vadd.f32 0.0, %v2509
        %2511 = vmatmul.f32.gmra.mxu0 %v2293
        %v2512 = vpop.f32.mrf.mxu0
        %v2513 = vadd.f32 0.0, %v2512
        %2514 = vmatmul.f32.gmra.mxu0 %v2300
        %v2515 = vpop.f32.mrf.mxu0
        %v2516 = vadd.f32 0.0, %v2515
        %2517 = vmatmul.f32.gmra.mxu0 %v2307
        %v2518 = vpop.f32.mrf.mxu0
        %v2519 = vadd.f32 0.0, %v2518
        %2520 = vmatmul.f32.gmra.mxu0 %v2314
        %v2521 = vpop.f32.mrf.mxu0
        %v2522 = vadd.f32 0.0, %v2521
        %2523 = vmatmul.f32.gmra.mxu0 %v2321
        %v2524 = vpop.f32.mrf.mxu0
        %v2525 = vadd.f32 0.0, %v2524
        %2526 = vmatmul.f32.gmra.mxu0 %v2328
        %v2527 = vpop.f32.mrf.mxu0
        %v2528 = vadd.f32 0.0, %v2527
        %2529 = vmatmul.f32.gmra.mxu0 %v2335
        %v2530 = vpop.f32.mrf.mxu0
        %v2531 = vadd.f32 0.0, %v2530
        %2532 = vmatmul.f32.gmra.mxu0 %v2342
        %v2533 = vpop.f32.mrf.mxu0
        %v2534 = vadd.f32 0.0, %v2533
        %2535 = vmatmul.f32.gmra.mxu0 %v2349
        %v2536 = vpop.f32.mrf.mxu0
        %v2537 = vadd.f32 0.0, %v2536
        %2538 = vmatmul.f32.gmra.mxu0 %v2356
        %v2539 = vpop.f32.mrf.mxu0
        %v2540 = vadd.f32 0.0, %v2539
        %2541 = vmatmul.f32.gmra.mxu0 %v2363
        %v2542 = vpop.f32.mrf.mxu0
        %v2543 = vadd.f32 0.0, %v2542
        %2544 = vmatmul.f32.gmra.mxu0 %v2370
        %v2545 = vpop.f32.mrf.mxu0
        %v2546 = vadd.f32 0.0, %v2545
        %2547 = vmatmul.f32.gmra.mxu0 %v2377
        %v2548 = vpop.f32.mrf.mxu0
        %v2549 = vadd.f32 0.0, %v2548
        %2550 = vdwg.mxu0
        %2551 = vmatpush.msra.mxu0 %v1246
        %2552 = vmatpush.msra.mxu0 %v1245
        %2553 = vmatpush.msra.mxu0 %v1244
        %2554 = vmatpush.msra.mxu0 %v1243
        %2555 = vmatpush.msra.mxu0 %v1242
        %2556 = vmatpush.msra.mxu0 %v1241
        %2557 = vmatpush.msra.mxu0 %v1240
        %2558 = vmatpush.msra.mxu0 %v1239
        %2559 = vmatpush.msra.mxu0 %v1238
        %2560 = vmatpush.msra.mxu0 %v1237
        %2561 = vmatpush.msra.mxu0 %v1236
        %2562 = vmatpush.msra.mxu0 %v1235
        %2563 = vmatpush.msra.mxu0 %v1234
        %2564 = vmatpush.msra.mxu0 %v1233
        %2565 = vmatpush.msra.mxu0 %v1232
        %2566 = vmatpush.msra.mxu0 %v1231
        %2567 = vmatmul.f32.gmra.mxu0 %v2210
        %v2568 = vpop.f32.mrf.mxu0
        %v2569 = vadd.f32 %v2477, %v2568
        %2570 = vmatmul.f32.gmra.mxu0 %v2217
        %v2571 = vpop.f32.mrf.mxu0
        %v2572 = vadd.f32 %v2480, %v2571
        %2573 = vmatmul.f32.gmra.mxu0 %v2224
        %v2574 = vpop.f32.mrf.mxu0
        %v2575 = vadd.f32 %v2483, %v2574
        %2576 = vmatmul.f32.gmra.mxu0 %v2231
        %v2577 = vpop.f32.mrf.mxu0
        %v2578 = vadd.f32 %v2486, %v2577
        %2579 = vmatmul.f32.gmra.mxu0 %v2238
        %v2580 = vpop.f32.mrf.mxu0
        %v2581 = vadd.f32 %v2489, %v2580
        %2582 = vmatmul.f32.gmra.mxu0 %v2245
        %v2583 = vpop.f32.mrf.mxu0
        %v2584 = vadd.f32 %v2492, %v2583
        %2585 = vmatmul.f32.gmra.mxu0 %v2252
        %v2586 = vpop.f32.mrf.mxu0
        %v2587 = vadd.f32 %v2495, %v2586
        %2588 = vmatmul.f32.gmra.mxu0 %v2259
        %v2589 = vpop.f32.mrf.mxu0
        %v2590 = vadd.f32 %v2498, %v2589
        %2591 = vmatmul.f32.gmra.mxu0 %v2266
        %v2592 = vpop.f32.mrf.mxu0
        %v2593 = vadd.f32 %v2501, %v2592
        %2594 = vmatmul.f32.gmra.mxu0 %v2273
        %v2595 = vpop.f32.mrf.mxu0
        %v2596 = vadd.f32 %v2504, %v2595
        %2597 = vmatmul.f32.gmra.mxu0 %v2280
        %v2598 = vpop.f32.mrf.mxu0
        %v2599 = vadd.f32 %v2507, %v2598
        %2600 = vmatmul.f32.gmra.mxu0 %v2287
        %v2601 = vpop.f32.mrf.mxu0
        %v2602 = vadd.f32 %v2510, %v2601
        %2603 = vmatmul.f32.gmra.mxu0 %v2294
        %v2604 = vpop.f32.mrf.mxu0
        %v2605 = vadd.f32 %v2513, %v2604
        %2606 = vmatmul.f32.gmra.mxu0 %v2301
        %v2607 = vpop.f32.mrf.mxu0
        %v2608 = vadd.f32 %v2516, %v2607
        %2609 = vmatmul.f32.gmra.mxu0 %v2308
        %v2610 = vpop.f32.mrf.mxu0
        %v2611 = vadd.f32 %v2519, %v2610
        %2612 = vmatmul.f32.gmra.mxu0 %v2315
        %v2613 = vpop.f32.mrf.mxu0
        %v2614 = vadd.f32 %v2522, %v2613
        %2615 = vmatmul.f32.gmra.mxu0 %v2322
        %v2616 = vpop.f32.mrf.mxu0
        %v2617 = vadd.f32 %v2525, %v2616
        %2618 = vmatmul.f32.gmra.mxu0 %v2329
        %v2619 = vpop.f32.mrf.mxu0
        %v2620 = vadd.f32 %v2528, %v2619
        %2621 = vmatmul.f32.gmra.mxu0 %v2336
        %v2622 = vpop.f32.mrf.mxu0
        %v2623 = vadd.f32 %v2531, %v2622
        %2624 = vmatmul.f32.gmra.mxu0 %v2343
        %v2625 = vpop.f32.mrf.mxu0
        %v2626 = vadd.f32 %v2534, %v2625
        %2627 = vmatmul.f32.gmra.mxu0 %v2350
        %v2628 = vpop.f32.mrf.mxu0
        %v2629 = vadd.f32 %v2537, %v2628
        %2630 = vmatmul.f32.gmra.mxu0 %v2357
        %v2631 = vpop.f32.mrf.mxu0
        %v2632 = vadd.f32 %v2540, %v2631
        %2633 = vmatmul.f32.gmra.mxu0 %v2364
        %v2634 = vpop.f32.mrf.mxu0
        %v2635 = vadd.f32 %v2543, %v2634
        %2636 = vmatmul.f32.gmra.mxu0 %v2371
        %v2637 = vpop.f32.mrf.mxu0
        %v2638 = vadd.f32 %v2546, %v2637
        %2639 = vmatmul.f32.gmra.mxu0 %v2378
        %v2640 = vpop.f32.mrf.mxu0
        %v2641 = vadd.f32 %v2549, %v2640
        %2642 = vdwg.mxu0
        %2643 = vmatpush.msra.mxu0 %v1262
        %2644 = vmatpush.msra.mxu0 %v1261
        %2645 = vmatpush.msra.mxu0 %v1260
        %2646 = vmatpush.msra.mxu0 %v1259
        %2647 = vmatpush.msra.mxu0 %v1258
        %2648 = vmatpush.msra.mxu0 %v1257
        %2649 = vmatpush.msra.mxu0 %v1256
        %2650 = vmatpush.msra.mxu0 %v1255
        %2651 = vmatpush.msra.mxu0 %v1254
        %2652 = vmatpush.msra.mxu0 %v1253
        %2653 = vmatpush.msra.mxu0 %v1252
        %2654 = vmatpush.msra.mxu0 %v1251
        %2655 = vmatpush.msra.mxu0 %v1250
        %2656 = vmatpush.msra.mxu0 %v1249
        %2657 = vmatpush.msra.mxu0 %v1248
        %2658 = vmatpush.msra.mxu0 %v1247
        %2659 = vmatmul.f32.gmra.mxu0 %v2211
        %v2660 = vpop.f32.mrf.mxu0
        %v2661 = vadd.f32 %v2569, %v2660
        %2662 = vmatmul.f32.gmra.mxu0 %v2218
        %v2663 = vpop.f32.mrf.mxu0
        %v2664 = vadd.f32 %v2572, %v2663
        %2665 = vmatmul.f32.gmra.mxu0 %v2225
        %v2666 = vpop.f32.mrf.mxu0
        %v2667 = vadd.f32 %v2575, %v2666
        %2668 = vmatmul.f32.gmra.mxu0 %v2232
        %v2669 = vpop.f32.mrf.mxu0
        %v2670 = vadd.f32 %v2578, %v2669
        %2671 = vmatmul.f32.gmra.mxu0 %v2239
        %v2672 = vpop.f32.mrf.mxu0
        %v2673 = vadd.f32 %v2581, %v2672
        %2674 = vmatmul.f32.gmra.mxu0 %v2246
        %v2675 = vpop.f32.mrf.mxu0
        %v2676 = vadd.f32 %v2584, %v2675
        %2677 = vmatmul.f32.gmra.mxu0 %v2253
        %v2678 = vpop.f32.mrf.mxu0
        %v2679 = vadd.f32 %v2587, %v2678
        %2680 = vmatmul.f32.gmra.mxu0 %v2260
        %v2681 = vpop.f32.mrf.mxu0
        %v2682 = vadd.f32 %v2590, %v2681
        %2683 = vmatmul.f32.gmra.mxu0 %v2267
        %v2684 = vpop.f32.mrf.mxu0
        %v2685 = vadd.f32 %v2593, %v2684
        %2686 = vmatmul.f32.gmra.mxu0 %v2274
        %v2687 = vpop.f32.mrf.mxu0
        %v2688 = vadd.f32 %v2596, %v2687
        %2689 = vmatmul.f32.gmra.mxu0 %v2281
        %v2690 = vpop.f32.mrf.mxu0
        %v2691 = vadd.f32 %v2599, %v2690
        %2692 = vmatmul.f32.gmra.mxu0 %v2288
        %v2693 = vpop.f32.mrf.mxu0
        %v2694 = vadd.f32 %v2602, %v2693
        %2695 = vmatmul.f32.gmra.mxu0 %v2295
        %v2696 = vpop.f32.mrf.mxu0
        %v2697 = vadd.f32 %v2605, %v2696
        %2698 = vmatmul.f32.gmra.mxu0 %v2302
        %v2699 = vpop.f32.mrf.mxu0
        %v2700 = vadd.f32 %v2608, %v2699
        %2701 = vmatmul.f32.gmra.mxu0 %v2309
        %v2702 = vpop.f32.mrf.mxu0
        %v2703 = vadd.f32 %v2611, %v2702
        %2704 = vmatmul.f32.gmra.mxu0 %v2316
        %v2705 = vpop.f32.mrf.mxu0
        %v2706 = vadd.f32 %v2614, %v2705
        %2707 = vmatmul.f32.gmra.mxu0 %v2323
        %v2708 = vpop.f32.mrf.mxu0
        %v2709 = vadd.f32 %v2617, %v2708
        %2710 = vmatmul.f32.gmra.mxu0 %v2330
        %v2711 = vpop.f32.mrf.mxu0
        %v2712 = vadd.f32 %v2620, %v2711
        %2713 = vmatmul.f32.gmra.mxu0 %v2337
        %v2714 = vpop.f32.mrf.mxu0
        %v2715 = vadd.f32 %v2623, %v2714
        %2716 = vmatmul.f32.gmra.mxu0 %v2344
        %v2717 = vpop.f32.mrf.mxu0
        %v2718 = vadd.f32 %v2626, %v2717
        %2719 = vmatmul.f32.gmra.mxu0 %v2351
        %v2720 = vpop.f32.mrf.mxu0
        %v2721 = vadd.f32 %v2629, %v2720
        %2722 = vmatmul.f32.gmra.mxu0 %v2358
        %v2723 = vpop.f32.mrf.mxu0
        %v2724 = vadd.f32 %v2632, %v2723
        %2725 = vmatmul.f32.gmra.mxu0 %v2365
        %v2726 = vpop.f32.mrf.mxu0
        %v2727 = vadd.f32 %v2635, %v2726
        %2728 = vmatmul.f32.gmra.mxu0 %v2372
        %v2729 = vpop.f32.mrf.mxu0
        %v2730 = vadd.f32 %v2638, %v2729
        %2731 = vmatmul.f32.gmra.mxu0 %v2379
        %v2732 = vpop.f32.mrf.mxu0
        %v2733 = vadd.f32 %v2641, %v2732
        %2734 = vdwg.mxu0
        %2735 = vmatpush.msra.mxu0 %v1278
        %2736 = vmatpush.msra.mxu0 %v1277
        %2737 = vmatpush.msra.mxu0 %v1276
        %2738 = vmatpush.msra.mxu0 %v1275
        %2739 = vmatpush.msra.mxu0 %v1274
        %2740 = vmatpush.msra.mxu0 %v1273
        %2741 = vmatpush.msra.mxu0 %v1272
        %2742 = vmatpush.msra.mxu0 %v1271
        %2743 = vmatpush.msra.mxu0 %v1270
        %2744 = vmatpush.msra.mxu0 %v1269
        %2745 = vmatpush.msra.mxu0 %v1268
        %2746 = vmatpush.msra.mxu0 %v1267
        %2747 = vmatpush.msra.mxu0 %v1266
        %2748 = vmatpush.msra.mxu0 %v1265
        %2749 = vmatpush.msra.mxu0 %v1264
        %2750 = vmatpush.msra.mxu0 %v1263
        %2751 = vmatmul.f32.gmra.mxu0 %v2212
        %v2752 = vpop.f32.mrf.mxu0
        %v2753 = vadd.f32 %v2661, %v2752
        %2754 = vmatmul.f32.gmra.mxu0 %v2219
        %v2755 = vpop.f32.mrf.mxu0
        %v2756 = vadd.f32 %v2664, %v2755
        %2757 = vmatmul.f32.gmra.mxu0 %v2226
        %v2758 = vpop.f32.mrf.mxu0
        %v2759 = vadd.f32 %v2667, %v2758
        %2760 = vmatmul.f32.gmra.mxu0 %v2233
        %v2761 = vpop.f32.mrf.mxu0
        %v2762 = vadd.f32 %v2670, %v2761
        %2763 = vmatmul.f32.gmra.mxu0 %v2240
        %v2764 = vpop.f32.mrf.mxu0
        %v2765 = vadd.f32 %v2673, %v2764
        %2766 = vmatmul.f32.gmra.mxu0 %v2247
        %v2767 = vpop.f32.mrf.mxu0
        %v2768 = vadd.f32 %v2676, %v2767
        %2769 = vmatmul.f32.gmra.mxu0 %v2254
        %v2770 = vpop.f32.mrf.mxu0
        %v2771 = vadd.f32 %v2679, %v2770
        %2772 = vmatmul.f32.gmra.mxu0 %v2261
        %v2773 = vpop.f32.mrf.mxu0
        %v2774 = vadd.f32 %v2682, %v2773
        %2775 = vmatmul.f32.gmra.mxu0 %v2268
        %v2776 = vpop.f32.mrf.mxu0
        %v2777 = vadd.f32 %v2685, %v2776
        %2778 = vmatmul.f32.gmra.mxu0 %v2275
        %v2779 = vpop.f32.mrf.mxu0
        %v2780 = vadd.f32 %v2688, %v2779
        %2781 = vmatmul.f32.gmra.mxu0 %v2282
        %v2782 = vpop.f32.mrf.mxu0
        %v2783 = vadd.f32 %v2691, %v2782
        %2784 = vmatmul.f32.gmra.mxu0 %v2289
        %v2785 = vpop.f32.mrf.mxu0
        %v2786 = vadd.f32 %v2694, %v2785
        %2787 = vmatmul.f32.gmra.mxu0 %v2296
        %v2788 = vpop.f32.mrf.mxu0
        %v2789 = vadd.f32 %v2697, %v2788
        %2790 = vmatmul.f32.gmra.mxu0 %v2303
        %v2791 = vpop.f32.mrf.mxu0
        %v2792 = vadd.f32 %v2700, %v2791
        %2793 = vmatmul.f32.gmra.mxu0 %v2310
        %v2794 = vpop.f32.mrf.mxu0
        %v2795 = vadd.f32 %v2703, %v2794
        %2796 = vmatmul.f32.gmra.mxu0 %v2317
        %v2797 = vpop.f32.mrf.mxu0
        %v2798 = vadd.f32 %v2706, %v2797
        %2799 = vmatmul.f32.gmra.mxu0 %v2324
        %v2800 = vpop.f32.mrf.mxu0
        %v2801 = vadd.f32 %v2709, %v2800
        %2802 = vmatmul.f32.gmra.mxu0 %v2331
        %v2803 = vpop.f32.mrf.mxu0
        %v2804 = vadd.f32 %v2712, %v2803
        %2805 = vmatmul.f32.gmra.mxu0 %v2338
        %v2806 = vpop.f32.mrf.mxu0
        %v2807 = vadd.f32 %v2715, %v2806
        %2808 = vmatmul.f32.gmra.mxu0 %v2345
        %v2809 = vpop.f32.mrf.mxu0
        %v2810 = vadd.f32 %v2718, %v2809
        %2811 = vmatmul.f32.gmra.mxu0 %v2352
        %v2812 = vpop.f32.mrf.mxu0
        %v2813 = vadd.f32 %v2721, %v2812
        %2814 = vmatmul.f32.gmra.mxu0 %v2359
        %v2815 = vpop.f32.mrf.mxu0
        %v2816 = vadd.f32 %v2724, %v2815
        %2817 = vmatmul.f32.gmra.mxu0 %v2366
        %v2818 = vpop.f32.mrf.mxu0
        %v2819 = vadd.f32 %v2727, %v2818
        %2820 = vmatmul.f32.gmra.mxu0 %v2373
        %v2821 = vpop.f32.mrf.mxu0
        %v2822 = vadd.f32 %v2730, %v2821
        %2823 = vmatmul.f32.gmra.mxu0 %v2380
        %v2824 = vpop.f32.mrf.mxu0
        %v2825 = vadd.f32 %v2733, %v2824
        %2826 = vdwg.mxu0
        %2827 = vmatpush.msra.mxu0 %v1294
        %2828 = vmatpush.msra.mxu0 %v1293
        %2829 = vmatpush.msra.mxu0 %v1292
        %2830 = vmatpush.msra.mxu0 %v1291
        %2831 = vmatpush.msra.mxu0 %v1290
        %2832 = vmatpush.msra.mxu0 %v1289
        %2833 = vmatpush.msra.mxu0 %v1288
        %2834 = vmatpush.msra.mxu0 %v1287
        %2835 = vmatpush.msra.mxu0 %v1286
        %2836 = vmatpush.msra.mxu0 %v1285
        %2837 = vmatpush.msra.mxu0 %v1284
        %2838 = vmatpush.msra.mxu0 %v1283
        %2839 = vmatpush.msra.mxu0 %v1282
        %2840 = vmatpush.msra.mxu0 %v1281
        %2841 = vmatpush.msra.mxu0 %v1280
        %2842 = vmatpush.msra.mxu0 %v1279
        %2843 = vmatmul.f32.gmra.mxu0 %v2213
        %v2844 = vpop.f32.mrf.mxu0
        %v2845 = vadd.f32 %v2753, %v2844
        %2846 = vmatmul.f32.gmra.mxu0 %v2220
        %v2847 = vpop.f32.mrf.mxu0
        %v2848 = vadd.f32 %v2756, %v2847
        %2849 = vmatmul.f32.gmra.mxu0 %v2227
        %v2850 = vpop.f32.mrf.mxu0
        %v2851 = vadd.f32 %v2759, %v2850
        %2852 = vmatmul.f32.gmra.mxu0 %v2234
        %v2853 = vpop.f32.mrf.mxu0
        %v2854 = vadd.f32 %v2762, %v2853
        %2855 = vmatmul.f32.gmra.mxu0 %v2241
        %v2856 = vpop.f32.mrf.mxu0
        %v2857 = vadd.f32 %v2765, %v2856
        %2858 = vmatmul.f32.gmra.mxu0 %v2248
        %v2859 = vpop.f32.mrf.mxu0
        %v2860 = vadd.f32 %v2768, %v2859
        %2861 = vmatmul.f32.gmra.mxu0 %v2255
        %v2862 = vpop.f32.mrf.mxu0
        %v2863 = vadd.f32 %v2771, %v2862
        %2864 = vmatmul.f32.gmra.mxu0 %v2262
        %v2865 = vpop.f32.mrf.mxu0
        %v2866 = vadd.f32 %v2774, %v2865
        %2867 = vmatmul.f32.gmra.mxu0 %v2269
        %v2868 = vpop.f32.mrf.mxu0
        %v2869 = vadd.f32 %v2777, %v2868
        %2870 = vmatmul.f32.gmra.mxu0 %v2276
        %v2871 = vpop.f32.mrf.mxu0
        %v2872 = vadd.f32 %v2780, %v2871
        %2873 = vmatmul.f32.gmra.mxu0 %v2283
        %v2874 = vpop.f32.mrf.mxu0
        %v2875 = vadd.f32 %v2783, %v2874
        %2876 = vmatmul.f32.gmra.mxu0 %v2290
        %v2877 = vpop.f32.mrf.mxu0
        %v2878 = vadd.f32 %v2786, %v2877
        %2879 = vmatmul.f32.gmra.mxu0 %v2297
        %v2880 = vpop.f32.mrf.mxu0
        %v2881 = vadd.f32 %v2789, %v2880
        %2882 = vmatmul.f32.gmra.mxu0 %v2304
        %v2883 = vpop.f32.mrf.mxu0
        %v2884 = vadd.f32 %v2792, %v2883
        %2885 = vmatmul.f32.gmra.mxu0 %v2311
        %v2886 = vpop.f32.mrf.mxu0
        %v2887 = vadd.f32 %v2795, %v2886
        %2888 = vmatmul.f32.gmra.mxu0 %v2318
        %v2889 = vpop.f32.mrf.mxu0
        %v2890 = vadd.f32 %v2798, %v2889
        %2891 = vmatmul.f32.gmra.mxu0 %v2325
        %v2892 = vpop.f32.mrf.mxu0
        %v2893 = vadd.f32 %v2801, %v2892
        %2894 = vmatmul.f32.gmra.mxu0 %v2332
        %v2895 = vpop.f32.mrf.mxu0
        %v2896 = vadd.f32 %v2804, %v2895
        %2897 = vmatmul.f32.gmra.mxu0 %v2339
        %v2898 = vpop.f32.mrf.mxu0
        %v2899 = vadd.f32 %v2807, %v2898
        %2900 = vmatmul.f32.gmra.mxu0 %v2346
        %v2901 = vpop.f32.mrf.mxu0
        %v2902 = vadd.f32 %v2810, %v2901
        %2903 = vmatmul.f32.gmra.mxu0 %v2353
        %v2904 = vpop.f32.mrf.mxu0
        %v2905 = vadd.f32 %v2813, %v2904
        %2906 = vmatmul.f32.gmra.mxu0 %v2360
        %v2907 = vpop.f32.mrf.mxu0
        %v2908 = vadd.f32 %v2816, %v2907
        %2909 = vmatmul.f32.gmra.mxu0 %v2367
        %v2910 = vpop.f32.mrf.mxu0
        %v2911 = vadd.f32 %v2819, %v2910
        %2912 = vmatmul.f32.gmra.mxu0 %v2374
        %v2913 = vpop.f32.mrf.mxu0
        %v2914 = vadd.f32 %v2822, %v2913
        %2915 = vmatmul.f32.gmra.mxu0 %v2381
        %v2916 = vpop.f32.mrf.mxu0
        %v2917 = vadd.f32 %v2825, %v2916
        %2918 = vdwg.mxu0
        %2919 = vmatpush.msra.mxu0 %v1310
        %2920 = vmatpush.msra.mxu0 %v1309
        %2921 = vmatpush.msra.mxu0 %v1308
        %2922 = vmatpush.msra.mxu0 %v1307
        %2923 = vmatpush.msra.mxu0 %v1306
        %2924 = vmatpush.msra.mxu0 %v1305
        %2925 = vmatpush.msra.mxu0 %v1304
        %2926 = vmatpush.msra.mxu0 %v1303
        %2927 = vmatpush.msra.mxu0 %v1302
        %2928 = vmatpush.msra.mxu0 %v1301
        %2929 = vmatpush.msra.mxu0 %v1300
        %2930 = vmatpush.msra.mxu0 %v1299
        %2931 = vmatpush.msra.mxu0 %v1298
        %2932 = vmatpush.msra.mxu0 %v1297
        %2933 = vmatpush.msra.mxu0 %v1296
        %2934 = vmatpush.msra.mxu0 %v1295
        %2935 = vmatmul.f32.gmra.mxu0 %v2214
        %v2936 = vpop.f32.mrf.mxu0
        %v2937 = vadd.f32 %v2845, %v2936
        %2938 = vmatmul.f32.gmra.mxu0 %v2221
        %v2939 = vpop.f32.mrf.mxu0
        %v2940 = vadd.f32 %v2848, %v2939
        %2941 = vmatmul.f32.gmra.mxu0 %v2228
        %v2942 = vpop.f32.mrf.mxu0
        %v2943 = vadd.f32 %v2851, %v2942
        %2944 = vmatmul.f32.gmra.mxu0 %v2235
        %v2945 = vpop.f32.mrf.mxu0
        %v2946 = vadd.f32 %v2854, %v2945
        %2947 = vmatmul.f32.gmra.mxu0 %v2242
        %v2948 = vpop.f32.mrf.mxu0
        %v2949 = vadd.f32 %v2857, %v2948
        %2950 = vmatmul.f32.gmra.mxu0 %v2249
        %v2951 = vpop.f32.mrf.mxu0
        %v2952 = vadd.f32 %v2860, %v2951
        %2953 = vmatmul.f32.gmra.mxu0 %v2256
        %v2954 = vpop.f32.mrf.mxu0
        %v2955 = vadd.f32 %v2863, %v2954
        %2956 = vmatmul.f32.gmra.mxu0 %v2263
        %v2957 = vpop.f32.mrf.mxu0
        %v2958 = vadd.f32 %v2866, %v2957
        %2959 = vmatmul.f32.gmra.mxu0 %v2270
        %v2960 = vpop.f32.mrf.mxu0
        %v2961 = vadd.f32 %v2869, %v2960
        %2962 = vmatmul.f32.gmra.mxu0 %v2277
        %v2963 = vpop.f32.mrf.mxu0
        %v2964 = vadd.f32 %v2872, %v2963
        %2965 = vmatmul.f32.gmra.mxu0 %v2284
        %v2966 = vpop.f32.mrf.mxu0
        %v2967 = vadd.f32 %v2875, %v2966
        %2968 = vmatmul.f32.gmra.mxu0 %v2291
        %v2969 = vpop.f32.mrf.mxu0
        %v2970 = vadd.f32 %v2878, %v2969
        %2971 = vmatmul.f32.gmra.mxu0 %v2298
        %v2972 = vpop.f32.mrf.mxu0
        %v2973 = vadd.f32 %v2881, %v2972
        %2974 = vmatmul.f32.gmra.mxu0 %v2305
        %v2975 = vpop.f32.mrf.mxu0
        %v2976 = vadd.f32 %v2884, %v2975
        %2977 = vmatmul.f32.gmra.mxu0 %v2312
        %v2978 = vpop.f32.mrf.mxu0
        %v2979 = vadd.f32 %v2887, %v2978
        %2980 = vmatmul.f32.gmra.mxu0 %v2319
        %v2981 = vpop.f32.mrf.mxu0
        %v2982 = vadd.f32 %v2890, %v2981
        %2983 = vmatmul.f32.gmra.mxu0 %v2326
        %v2984 = vpop.f32.mrf.mxu0
        %v2985 = vadd.f32 %v2893, %v2984
        %2986 = vmatmul.f32.gmra.mxu0 %v2333
        %v2987 = vpop.f32.mrf.mxu0
        %v2988 = vadd.f32 %v2896, %v2987
        %2989 = vmatmul.f32.gmra.mxu0 %v2340
        %v2990 = vpop.f32.mrf.mxu0
        %v2991 = vadd.f32 %v2899, %v2990
        %2992 = vmatmul.f32.gmra.mxu0 %v2347
        %v2993 = vpop.f32.mrf.mxu0
        %v2994 = vadd.f32 %v2902, %v2993
        %2995 = vmatmul.f32.gmra.mxu0 %v2354
        %v2996 = vpop.f32.mrf.mxu0
        %v2997 = vadd.f32 %v2905, %v2996
        %2998 = vmatmul.f32.gmra.mxu0 %v2361
        %v2999 = vpop.f32.mrf.mxu0
        %v3000 = vadd.f32 %v2908, %v2999
        %3001 = vmatmul.f32.gmra.mxu0 %v2368
        %v3002 = vpop.f32.mrf.mxu0
        %v3003 = vadd.f32 %v2911, %v3002
        %3004 = vmatmul.f32.gmra.mxu0 %v2375
        %v3005 = vpop.f32.mrf.mxu0
        %v3006 = vadd.f32 %v2914, %v3005
        %3007 = vmatmul.f32.gmra.mxu0 %v2382
        %v3008 = vpop.f32.mrf.mxu0
        %v3009 = vadd.f32 %v2917, %v3008
        %3010 = vdwg.mxu0
        %3011 = vmatpush.msra.mxu0 0.0
        %3012 = vmatpush.msra.mxu0 0.0
        %3013 = vmatpush.msra.mxu0 0.0
        %3014 = vmatpush.msra.mxu0 0.0
        %3015 = vmatpush.msra.mxu0 0.0
        %3016 = vmatpush.msra.mxu0 0.0
        %3017 = vmatpush.msra.mxu0 0.0
        %3018 = vmatpush.msra.mxu0 0.0
        %3019 = vmatpush.msra.mxu0 0.0
        %3020 = vmatpush.msra.mxu0 0.0
        %3021 = vmatpush.msra.mxu0 0.0
        %3022 = vmatpush.msra.mxu0 0.0
        %3023 = vmatpush.msra.mxu0 0.0
        %3024 = vmatpush.msra.mxu0 0.0
        %3025 = vmatpush.msra.mxu0 %v1312
        %3026 = vmatpush.msra.mxu0 %v1311
        %3027 = vmatmul.f32.gmra.mxu0 %v2385
        %v3028 = vpop.f32.mrf.mxu0
        %v3029 = vadd.f32 %v2937, %v3028
        %3030 = vmatmul.f32.gmra.mxu0 %v2388
        %v3031 = vpop.f32.mrf.mxu0
        %v3032 = vadd.f32 %v2940, %v3031
        %3033 = vmatmul.f32.gmra.mxu0 %v2391
        %v3034 = vpop.f32.mrf.mxu0
        %v3035 = vadd.f32 %v2943, %v3034
        %3036 = vmatmul.f32.gmra.mxu0 %v2394
        %v3037 = vpop.f32.mrf.mxu0
        %v3038 = vadd.f32 %v2946, %v3037
        %3039 = vmatmul.f32.gmra.mxu0 %v2397
        %v3040 = vpop.f32.mrf.mxu0
        %v3041 = vadd.f32 %v2949, %v3040
        %3042 = vmatmul.f32.gmra.mxu0 %v2400
        %v3043 = vpop.f32.mrf.mxu0
        %v3044 = vadd.f32 %v2952, %v3043
        %3045 = vmatmul.f32.gmra.mxu0 %v2403
        %v3046 = vpop.f32.mrf.mxu0
        %v3047 = vadd.f32 %v2955, %v3046
        %3048 = vmatmul.f32.gmra.mxu0 %v2406
        %v3049 = vpop.f32.mrf.mxu0
        %v3050 = vadd.f32 %v2958, %v3049
        %3051 = vmatmul.f32.gmra.mxu0 %v2409
        %v3052 = vpop.f32.mrf.mxu0
        %v3053 = vadd.f32 %v2961, %v3052
        %3054 = vmatmul.f32.gmra.mxu0 %v2412
        %v3055 = vpop.f32.mrf.mxu0
        %v3056 = vadd.f32 %v2964, %v3055
        %3057 = vmatmul.f32.gmra.mxu0 %v2415
        %v3058 = vpop.f32.mrf.mxu0
        %v3059 = vadd.f32 %v2967, %v3058
        %3060 = vmatmul.f32.gmra.mxu0 %v2418
        %v3061 = vpop.f32.mrf.mxu0
        %v3062 = vadd.f32 %v2970, %v3061
        %3063 = vmatmul.f32.gmra.mxu0 %v2421
        %v3064 = vpop.f32.mrf.mxu0
        %v3065 = vadd.f32 %v2973, %v3064
        %3066 = vmatmul.f32.gmra.mxu0 %v2424
        %v3067 = vpop.f32.mrf.mxu0
        %v3068 = vadd.f32 %v2976, %v3067
        %3069 = vmatmul.f32.gmra.mxu0 %v2427
        %v3070 = vpop.f32.mrf.mxu0
        %v3071 = vadd.f32 %v2979, %v3070
        %3072 = vmatmul.f32.gmra.mxu0 %v2430
        %v3073 = vpop.f32.mrf.mxu0
        %v3074 = vadd.f32 %v2982, %v3073
        %3075 = vmatmul.f32.gmra.mxu0 %v2433
        %v3076 = vpop.f32.mrf.mxu0
        %v3077 = vadd.f32 %v2985, %v3076
        %3078 = vmatmul.f32.gmra.mxu0 %v2436
        %v3079 = vpop.f32.mrf.mxu0
        %v3080 = vadd.f32 %v2988, %v3079
        %3081 = vmatmul.f32.gmra.mxu0 %v2439
        %v3082 = vpop.f32.mrf.mxu0
        %v3083 = vadd.f32 %v2991, %v3082
        %3084 = vmatmul.f32.gmra.mxu0 %v2442
        %v3085 = vpop.f32.mrf.mxu0
        %v3086 = vadd.f32 %v2994, %v3085
        %3087 = vmatmul.f32.gmra.mxu0 %v2445
        %v3088 = vpop.f32.mrf.mxu0
        %v3089 = vadd.f32 %v2997, %v3088
        %3090 = vmatmul.f32.gmra.mxu0 %v2448
        %v3091 = vpop.f32.mrf.mxu0
        %v3092 = vadd.f32 %v3000, %v3091
        %3093 = vmatmul.f32.gmra.mxu0 %v2451
        %v3094 = vpop.f32.mrf.mxu0
        %v3095 = vadd.f32 %v3003, %v3094
        %3096 = vmatmul.f32.gmra.mxu0 %v2454
        %v3097 = vpop.f32.mrf.mxu0
        %v3098 = vadd.f32 %v3006, %v3097
        %3099 = vmatmul.f32.gmra.mxu0 %v2457
        %v3100 = vpop.f32.mrf.mxu0
        %v3101 = vadd.f32 %v3009, %v3100
        %3102 = vdwg.mxu0
        %v3103 = vmax.f32 %v2134, %v3029
        %v3104 = vmax.f32 %v2137, %v3032
        %v3105 = vmax.f32 %v2140, %v3035
        %v3106 = vmax.f32 %v2143, %v3038
        %v3107 = vmax.f32 %v2146, %v3041
        %v3108 = vmax.f32 %v2149, %v3044
        %v3109 = vmax.f32 %v2152, %v3047
        %v3110 = vmax.f32 %v2155, %v3050
        %v3111 = vmax.f32 %v2158, %v3053
        %v3112 = vmax.f32 %v2161, %v3056
        %v3113 = vmax.f32 %v2164, %v3059
        %v3114 = vmax.f32 %v2167, %v3062
        %v3115 = vmax.f32 %v2170, %v3065
        %v3116 = vmax.f32 %v2173, %v3068
        %v3117 = vmax.f32 %v2176, %v3071
        %v3118 = vmax.f32 %v2179, %v3074
        %v3119 = vmax.f32 %v2182, %v3077
        %v3120 = vmax.f32 %v2185, %v3080
        %v3121 = vmax.f32 %v2188, %v3083
        %v3122 = vmax.f32 %v2191, %v3086
        %v3123 = vmax.f32 %v2194, %v3089
        %v3124 = vmax.f32 %v2197, %v3092
        %v3125 = vmax.f32 %v2200, %v3095
        %v3126 = vmax.f32 %v2203, %v3098
        %v3127 = vmax.f32 %v2206, %v3101
        %s3128 = scalar_lea.vmem [#allocation6], 2800
        %v3129 = vld [vmem:[%s3128] sm:$0xff]
        %v3130 = vld [vmem:[%s3128 + $0x8] sm:$0xff]
        %v3131 = vld [vmem:[%s3128 + $0x10] sm:$0xff]
        %v3132 = vld [vmem:[%s3128 + $0x18] sm:$0xff]
        %v3133 = vld [vmem:[%s3128 + $0x20] sm:$0xff]
        %v3134 = vld [vmem:[%s3128 + $0x28] sm:$0xff]
        %v3135 = vld [vmem:[%s3128 + $0x30] sm:$0xff]
        %v3136 = vld [vmem:[%s3128 + $0x38] sm:$0xff]
        %v3137 = vld [vmem:[%s3128 + $0x40] sm:$0xff]
        %v3138 = vld [vmem:[%s3128 + $0x48] sm:$0xff]
        %v3139 = vld [vmem:[%s3128 + $0x50] sm:$0xff]
        %v3140 = vld [vmem:[%s3128 + $0x58] sm:$0xff]
        %v3141 = vld [vmem:[%s3128 + $0x60] sm:$0xff]
        %v3142 = vld [vmem:[%s3128 + $0x68] sm:$0xff]
        %v3143 = vld [vmem:[%s3128 + $0x70] sm:$0xff]
        %v3144 = vld [vmem:[%s3128 + $0x78] sm:$0xff]
        %v3145 = vld [vmem:[%s3128 + $0x80] sm:$0xff]
        %v3146 = vld [vmem:[%s3128 + $0x88] sm:$0xff]
        %v3147 = vld [vmem:[%s3128 + $0x90] sm:$0xff]
        %v3148 = vld [vmem:[%s3128 + $0x98] sm:$0xff]
        %v3149 = vld [vmem:[%s3128 + $0xa0] sm:$0xff]
        %v3150 = vld [vmem:[%s3128 + $0xa8] sm:$0xff]
        %v3151 = vld [vmem:[%s3128 + $0xb0] sm:$0xff]
        %v3152 = vld [vmem:[%s3128 + $0xb8] sm:$0xff]
        %v3153 = vld [vmem:[%s3128 + $0xc0] sm:$0xff]
        %v3154 = vld [vmem:[%s3128 + $0xc8] sm:$0xff]
        %v3155 = vld [vmem:[%s3128 + $0xd0] sm:$0xff]
        %v3156 = vld [vmem:[%s3128 + $0xd8] sm:$0xff]
        %v3157 = vld [vmem:[%s3128 + $0xe0] sm:$0xff]
        %v3158 = vld [vmem:[%s3128 + $0xe8] sm:$0xff]
        %v3159 = vld [vmem:[%s3128 + $0xf0] sm:$0xff]
        %v3160 = vld [vmem:[%s3128 + $0xf8] sm:$0xff]
        %v3161 = vld [vmem:[%s3128 + $0x100] sm:$0xff]
        %v3162 = vld [vmem:[%s3128 + $0x108] sm:$0xff]
        %v3163 = vld [vmem:[%s3128 + $0x110] sm:$0xff]
        %v3164 = vld [vmem:[%s3128 + $0x118] sm:$0xff]
        %v3165 = vld [vmem:[%s3128 + $0x120] sm:$0xff]
        %v3166 = vld [vmem:[%s3128 + $0x128] sm:$0xff]
        %v3167 = vld [vmem:[%s3128 + $0x130] sm:$0xff]
        %v3168 = vld [vmem:[%s3128 + $0x138] sm:$0xff]
        %v3169 = vld [vmem:[%s3128 + $0x140] sm:$0xff]
        %v3170 = vld [vmem:[%s3128 + $0x148] sm:$0xff]
        %v3171 = vld [vmem:[%s3128 + $0x150] sm:$0xff]
        %v3172 = vld [vmem:[%s3128 + $0x158] sm:$0xff]
        %v3173 = vld [vmem:[%s3128 + $0x160] sm:$0xff]
        %v3174 = vld [vmem:[%s3128 + $0x168] sm:$0xff]
        %v3175 = vld [vmem:[%s3128 + $0x170] sm:$0xff]
        %v3176 = vld [vmem:[%s3128 + $0x178] sm:$0xff]
        %v3177 = vld [vmem:[%s3128 + $0x180] sm:$0xff]
        %v3178 = vld [vmem:[%s3128 + $0x188] sm:$0xff]
        %v3179 = vld [vmem:[%s3128 + $0x190] sm:$0xff]
        %v3180 = vld [vmem:[%s3128 + $0x198] sm:$0xff]
        %v3181 = vld [vmem:[%s3128 + $0x1a0] sm:$0xff]
        %v3182 = vld [vmem:[%s3128 + $0x1a8] sm:$0xff]
        %v3183 = vld [vmem:[%s3128 + $0x1b0] sm:$0xff]
        %v3184 = vld [vmem:[%s3128 + $0x1b8] sm:$0xff]
        %v3185 = vld [vmem:[%s3128 + $0x1c0] sm:$0xff]
        %v3186 = vld [vmem:[%s3128 + $0x1c8] sm:$0xff]
        %v3187 = vld [vmem:[%s3128 + $0x1d0] sm:$0xff]
        %v3188 = vld [vmem:[%s3128 + $0x1d8] sm:$0xff]
        %v3189 = vld [vmem:[%s3128 + $0x1e0] sm:$0xff]
        %v3190 = vld [vmem:[%s3128 + $0x1e8] sm:$0xff]
        %v3191 = vld [vmem:[%s3128 + $0x1f0] sm:$0xff]
        %v3192 = vld [vmem:[%s3128 + $0x1f8] sm:$0xff]
        %v3193 = vld [vmem:[%s3128 + $0x200] sm:$0xff]
        %v3194 = vld [vmem:[%s3128 + $0x208] sm:$0xff]
        %v3195 = vld [vmem:[%s3128 + $0x210] sm:$0xff]
        %v3196 = vld [vmem:[%s3128 + $0x218] sm:$0xff]
        %v3197 = vld [vmem:[%s3128 + $0x220] sm:$0xff]
        %v3198 = vld [vmem:[%s3128 + $0x228] sm:$0xff]
        %v3199 = vld [vmem:[%s3128 + $0x230] sm:$0xff]
        %v3200 = vld [vmem:[%s3128 + $0x238] sm:$0xff]
        %v3201 = vld [vmem:[%s3128 + $0x240] sm:$0xff]
        %v3202 = vld [vmem:[%s3128 + $0x248] sm:$0xff]
        %v3203 = vld [vmem:[%s3128 + $0x250] sm:$0xff]
        %v3204 = vld [vmem:[%s3128 + $0x258] sm:$0xff]
        %v3205 = vld [vmem:[%s3128 + $0x260] sm:$0xff]
        %v3206 = vld [vmem:[%s3128 + $0x268] sm:$0xff]
        %v3207 = vld [vmem:[%s3128 + $0x270] sm:$0xff]
        %v3208 = vld [vmem:[%s3128 + $0x278] sm:$0xff]
        %v3209 = vld [vmem:[%s3128 + $0x280] sm:$0xff]
        %v3210 = vld [vmem:[%s3128 + $0x288] sm:$0xff]
        %v3211 = vld [vmem:[%s3128 + $0x290] sm:$0xff]
        %v3212 = vld [vmem:[%s3128 + $0x298] sm:$0xff]
        %v3213 = vld [vmem:[%s3128 + $0x2a0] sm:$0xff]
        %v3214 = vld [vmem:[%s3128 + $0x2a8] sm:$0xff]
        %v3215 = vld [vmem:[%s3128 + $0x2b0] sm:$0xff]
        %v3216 = vld [vmem:[%s3128 + $0x2b8] sm:$0xff]
        %v3217 = vld [vmem:[%s3128 + $0x2c0] sm:$0xff]
        %v3218 = vld [vmem:[%s3128 + $0x2c8] sm:$0xff]
        %v3219 = vld [vmem:[%s3128 + $0x2d0] sm:$0xff]
        %v3220 = vld [vmem:[%s3128 + $0x2d8] sm:$0xff]
        %v3221 = vld [vmem:[%s3128 + $0x2e0] sm:$0xff]
        %v3222 = vld [vmem:[%s3128 + $0x2e8] sm:$0xff]
        %v3223 = vld [vmem:[%s3128 + $0x2f0] sm:$0xff]
        %v3224 = vld [vmem:[%s3128 + $0x2f8] sm:$0xff]
        %v3225 = vld [vmem:[%s3128 + $0x300] sm:$0xff]
        %v3226 = vld [vmem:[%s3128 + $0x308] sm:$0xff]
        %v3227 = vld [vmem:[%s3128 + $0x310] sm:$0xff]
        %v3228 = vld [vmem:[%s3128 + $0x318] sm:$0xff]
        %v3229 = vld [vmem:[%s3128 + $0x320] sm:$0xff]
        %v3230 = vld [vmem:[%s3128 + $0x328] sm:$0xff]
        %v3231 = vld [vmem:[%s3128 + $0x330] sm:$0xff]
        %v3232 = vld [vmem:[%s3128 + $0x338] sm:$0xff]
        %v3233 = vld [vmem:[%s3128 + $0x340] sm:$0xff]
        %v3234 = vld [vmem:[%s3128 + $0x348] sm:$0xff]
        %v3235 = vld [vmem:[%s3128 + $0x350] sm:$0xff]
        %v3236 = vld [vmem:[%s3128 + $0x358] sm:$0xff]
        %v3237 = vld [vmem:[%s3128 + $0x360] sm:$0xff]
        %v3238 = vld [vmem:[%s3128 + $0x368] sm:$0xff]
        %v3239 = vld [vmem:[%s3128 + $0x370] sm:$0xff]
        %v3240 = vld [vmem:[%s3128 + $0x378] sm:$0xff]
        %v3241 = vld [vmem:[%s3128 + $0x380] sm:$0xff]
        %v3242 = vld [vmem:[%s3128 + $0x388] sm:$0xff]
        %v3243 = vld [vmem:[%s3128 + $0x390] sm:$0xff]
        %v3244 = vld [vmem:[%s3128 + $0x398] sm:$0xff]
        %v3245 = vld [vmem:[%s3128 + $0x3a0] sm:$0xff]
        %v3246 = vld [vmem:[%s3128 + $0x3a8] sm:$0xff]
        %v3247 = vld [vmem:[%s3128 + $0x3b0] sm:$0xff]
        %v3248 = vld [vmem:[%s3128 + $0x3b8] sm:$0xff]
        %v3249 = vld [vmem:[%s3128 + $0x3c0] sm:$0xff]
        %v3250 = vld [vmem:[%s3128 + $0x3c8] sm:$0xff]
        %v3251 = vld [vmem:[%s3128 + $0x3d0] sm:$0xff]
        %v3252 = vld [vmem:[%s3128 + $0x3d8] sm:$0xff]
        %v3253 = vld [vmem:[%s3128 + $0x3e0] sm:$0xff]
        %v3254 = vld [vmem:[%s3128 + $0x3e8] sm:$0xff]
        %v3255 = vld [vmem:[%s3128 + $0x3f0] sm:$0xff]
        %v3256 = vld [vmem:[%s3128 + $0x3f8] sm:$0xff]
        %v3257 = vld [vmem:[%s3128 + $0x400] sm:$0xff]
        %v3258 = vld [vmem:[%s3128 + $0x408] sm:$0xff]
        %v3259 = vld [vmem:[%s3128 + $0x410] sm:$0xff]
        %v3260 = vld [vmem:[%s3128 + $0x418] sm:$0xff]
        %v3261 = vld [vmem:[%s3128 + $0x420] sm:$0xff]
        %v3262 = vld [vmem:[%s3128 + $0x428] sm:$0xff]
        %v3263 = vld [vmem:[%s3128 + $0x430] sm:$0xff]
        %v3264 = vld [vmem:[%s3128 + $0x438] sm:$0xff]
        %v3265 = vld [vmem:[%s3128 + $0x440] sm:$0xff]
        %v3266 = vld [vmem:[%s3128 + $0x448] sm:$0xff]
        %v3267 = vld [vmem:[%s3128 + $0x450] sm:$0xff]
        %v3268 = vld [vmem:[%s3128 + $0x458] sm:$0xff]
        %v3269 = vld [vmem:[%s3128 + $0x460] sm:$0xff]
        %v3270 = vld [vmem:[%s3128 + $0x468] sm:$0xff]
        %v3271 = vld [vmem:[%s3128 + $0x470] sm:$0xff]
        %v3272 = vld [vmem:[%s3128 + $0x478] sm:$0xff]
        %v3273 = vld [vmem:[%s3128 + $0x480] sm:$0xff]
        %v3274 = vld [vmem:[%s3128 + $0x488] sm:$0xff]
        %v3275 = vld [vmem:[%s3128 + $0x490] sm:$0xff]
        %v3276 = vld [vmem:[%s3128 + $0x498] sm:$0xff]
        %v3277 = vld [vmem:[%s3128 + $0x4a0] sm:$0xff]
        %v3278 = vld [vmem:[%s3128 + $0x4a8] sm:$0xff]
        %v3279 = vld [vmem:[%s3128 + $0x4b0] sm:$0xff]
        %v3280 = vld [vmem:[%s3128 + $0x4b8] sm:$0xff]
        %v3281 = vld [vmem:[%s3128 + $0x4c0] sm:$0xff]
        %v3282 = vld [vmem:[%s3128 + $0x4c8] sm:$0xff]
        %v3283 = vld [vmem:[%s3128 + $0x4d0] sm:$0xff]
        %v3284 = vld [vmem:[%s3128 + $0x4d8] sm:$0xff]
        %v3285 = vld [vmem:[%s3128 + $0x4e0] sm:$0xff]
        %v3286 = vld [vmem:[%s3128 + $0x4e8] sm:$0xff]
        %v3287 = vld [vmem:[%s3128 + $0x4f0] sm:$0xff]
        %v3288 = vld [vmem:[%s3128 + $0x4f8] sm:$0xff]
        %v3289 = vld [vmem:[%s3128 + $0x500] sm:$0xff]
        %v3290 = vld [vmem:[%s3128 + $0x508] sm:$0xff]
        %v3291 = vld [vmem:[%s3128 + $0x510] sm:$0xff]
        %v3292 = vld [vmem:[%s3128 + $0x518] sm:$0xff]
        %v3293 = vld [vmem:[%s3128 + $0x520] sm:$0xff]
        %v3294 = vld [vmem:[%s3128 + $0x528] sm:$0xff]
        %v3295 = vld [vmem:[%s3128 + $0x530] sm:$0xff]
        %v3296 = vld [vmem:[%s3128 + $0x538] sm:$0xff]
        %v3297 = vld [vmem:[%s3128 + $0x540] sm:$0xf]
        %v3298 = vld [vmem:[%s3128 + $0x548] sm:$0xf]
        %v3299 = vld [vmem:[%s3128 + $0x550] sm:$0xf]
        %v3300 = vld [vmem:[%s3128 + $0x558] sm:$0xf]
        %v3301 = vld [vmem:[%s3128 + $0x560] sm:$0xf]
        %v3302 = vld [vmem:[%s3128 + $0x568] sm:$0xf]
        %v3303 = vld [vmem:[%s3128 + $0x570] sm:$0xf]
        %v3305 = vsel %vm1488, %v3135, 0
        %v3308 = vsel %vm1488, %v3142, 0
        %v3311 = vsel %vm1488, %v3149, 0
        %v3314 = vsel %vm1488, %v3156, 0
        %v3317 = vsel %vm1488, %v3163, 0
        %v3320 = vsel %vm1488, %v3170, 0
        %v3323 = vsel %vm1488, %v3177, 0
        %v3326 = vsel %vm1488, %v3184, 0
        %v3329 = vsel %vm1488, %v3191, 0
        %v3332 = vsel %vm1488, %v3198, 0
        %v3335 = vsel %vm1488, %v3205, 0
        %v3338 = vsel %vm1488, %v3212, 0
        %v3341 = vsel %vm1488, %v3219, 0
        %v3344 = vsel %vm1488, %v3226, 0
        %v3347 = vsel %vm1488, %v3233, 0
        %v3350 = vsel %vm1488, %v3240, 0
        %v3353 = vsel %vm1488, %v3247, 0
        %v3356 = vsel %vm1488, %v3254, 0
        %v3359 = vsel %vm1488, %v3261, 0
        %v3362 = vsel %vm1488, %v3268, 0
        %v3365 = vsel %vm1488, %v3275, 0
        %v3368 = vsel %vm1488, %v3282, 0
        %v3371 = vsel %vm1488, %v3289, 0
        %v3374 = vsel %vm1488, %v3296, 0
        %v3377 = vsel %vm1488, %v3303, 0
        %3379 = vmatpush.msra.mxu0 %v1230
        %3380 = vmatpush.msra.mxu0 %v1229
        %3381 = vmatpush.msra.mxu0 %v1228
        %3382 = vmatpush.msra.mxu0 %v1227
        %3383 = vmatpush.msra.mxu0 %v1226
        %3384 = vmatpush.msra.mxu0 %v1225
        %3385 = vmatpush.msra.mxu0 %v1224
        %3386 = vmatpush.msra.mxu0 %v1223
        %3387 = vmatpush.msra.mxu0 %v1222
        %3388 = vmatpush.msra.mxu0 %v1221
        %3389 = vmatpush.msra.mxu0 %v1220
        %3390 = vmatpush.msra.mxu0 %v1219
        %3391 = vmatpush.msra.mxu0 %v1218
        %3392 = vmatpush.msra.mxu0 %v1217
        %3393 = vmatpush.msra.mxu0 %v1216
        %3394 = vmatpush.msra.mxu0 %v1215
        %3395 = vmatmul.f32.gmra.mxu0 %v3129
        %v3396 = vpop.f32.mrf.mxu0
        %v3397 = vadd.f32 0.0, %v3396
        %3398 = vmatmul.f32.gmra.mxu0 %v3136
        %v3399 = vpop.f32.mrf.mxu0
        %v3400 = vadd.f32 0.0, %v3399
        %3401 = vmatmul.f32.gmra.mxu0 %v3143
        %v3402 = vpop.f32.mrf.mxu0
        %v3403 = vadd.f32 0.0, %v3402
        %3404 = vmatmul.f32.gmra.mxu0 %v3150
        %v3405 = vpop.f32.mrf.mxu0
        %v3406 = vadd.f32 0.0, %v3405
        %3407 = vmatmul.f32.gmra.mxu0 %v3157
        %v3408 = vpop.f32.mrf.mxu0
        %v3409 = vadd.f32 0.0, %v3408
        %3410 = vmatmul.f32.gmra.mxu0 %v3164
        %v3411 = vpop.f32.mrf.mxu0
        %v3412 = vadd.f32 0.0, %v3411
        %3413 = vmatmul.f32.gmra.mxu0 %v3171
        %v3414 = vpop.f32.mrf.mxu0
        %v3415 = vadd.f32 0.0, %v3414
        %3416 = vmatmul.f32.gmra.mxu0 %v3178
        %v3417 = vpop.f32.mrf.mxu0
        %v3418 = vadd.f32 0.0, %v3417
        %3419 = vmatmul.f32.gmra.mxu0 %v3185
        %v3420 = vpop.f32.mrf.mxu0
        %v3421 = vadd.f32 0.0, %v3420
        %3422 = vmatmul.f32.gmra.mxu0 %v3192
        %v3423 = vpop.f32.mrf.mxu0
        %v3424 = vadd.f32 0.0, %v3423
        %3425 = vmatmul.f32.gmra.mxu0 %v3199
        %v3426 = vpop.f32.mrf.mxu0
        %v3427 = vadd.f32 0.0, %v3426
        %3428 = vmatmul.f32.gmra.mxu0 %v3206
        %v3429 = vpop.f32.mrf.mxu0
        %v3430 = vadd.f32 0.0, %v3429
        %3431 = vmatmul.f32.gmra.mxu0 %v3213
        %v3432 = vpop.f32.mrf.mxu0
        %v3433 = vadd.f32 0.0, %v3432
        %3434 = vmatmul.f32.gmra.mxu0 %v3220
        %v3435 = vpop.f32.mrf.mxu0
        %v3436 = vadd.f32 0.0, %v3435
        %3437 = vmatmul.f32.gmra.mxu0 %v3227
        %v3438 = vpop.f32.mrf.mxu0
        %v3439 = vadd.f32 0.0, %v3438
        %3440 = vmatmul.f32.gmra.mxu0 %v3234
        %v3441 = vpop.f32.mrf.mxu0
        %v3442 = vadd.f32 0.0, %v3441
        %3443 = vmatmul.f32.gmra.mxu0 %v3241
        %v3444 = vpop.f32.mrf.mxu0
        %v3445 = vadd.f32 0.0, %v3444
        %3446 = vmatmul.f32.gmra.mxu0 %v3248
        %v3447 = vpop.f32.mrf.mxu0
        %v3448 = vadd.f32 0.0, %v3447
        %3449 = vmatmul.f32.gmra.mxu0 %v3255
        %v3450 = vpop.f32.mrf.mxu0
        %v3451 = vadd.f32 0.0, %v3450
        %3452 = vmatmul.f32.gmra.mxu0 %v3262
        %v3453 = vpop.f32.mrf.mxu0
        %v3454 = vadd.f32 0.0, %v3453
        %3455 = vmatmul.f32.gmra.mxu0 %v3269
        %v3456 = vpop.f32.mrf.mxu0
        %v3457 = vadd.f32 0.0, %v3456
        %3458 = vmatmul.f32.gmra.mxu0 %v3276
        %v3459 = vpop.f32.mrf.mxu0
        %v3460 = vadd.f32 0.0, %v3459
        %3461 = vmatmul.f32.gmra.mxu0 %v3283
        %v3462 = vpop.f32.mrf.mxu0
        %v3463 = vadd.f32 0.0, %v3462
        %3464 = vmatmul.f32.gmra.mxu0 %v3290
        %v3465 = vpop.f32.mrf.mxu0
        %v3466 = vadd.f32 0.0, %v3465
        %3467 = vmatmul.f32.gmra.mxu0 %v3297
        %v3468 = vpop.f32.mrf.mxu0
        %v3469 = vadd.f32 0.0, %v3468
        %3470 = vdwg.mxu0
        %3471 = vmatpush.msra.mxu0 %v1246
        %3472 = vmatpush.msra.mxu0 %v1245
        %3473 = vmatpush.msra.mxu0 %v1244
        %3474 = vmatpush.msra.mxu0 %v1243
        %3475 = vmatpush.msra.mxu0 %v1242
        %3476 = vmatpush.msra.mxu0 %v1241
        %3477 = vmatpush.msra.mxu0 %v1240
        %3478 = vmatpush.msra.mxu0 %v1239
        %3479 = vmatpush.msra.mxu0 %v1238
        %3480 = vmatpush.msra.mxu0 %v1237
        %3481 = vmatpush.msra.mxu0 %v1236
        %3482 = vmatpush.msra.mxu0 %v1235
        %3483 = vmatpush.msra.mxu0 %v1234
        %3484 = vmatpush.msra.mxu0 %v1233
        %3485 = vmatpush.msra.mxu0 %v1232
        %3486 = vmatpush.msra.mxu0 %v1231
        %3487 = vmatmul.f32.gmra.mxu0 %v3130
        %v3488 = vpop.f32.mrf.mxu0
        %v3489 = vadd.f32 %v3397, %v3488
        %3490 = vmatmul.f32.gmra.mxu0 %v3137
        %v3491 = vpop.f32.mrf.mxu0
        %v3492 = vadd.f32 %v3400, %v3491
        %3493 = vmatmul.f32.gmra.mxu0 %v3144
        %v3494 = vpop.f32.mrf.mxu0
        %v3495 = vadd.f32 %v3403, %v3494
        %3496 = vmatmul.f32.gmra.mxu0 %v3151
        %v3497 = vpop.f32.mrf.mxu0
        %v3498 = vadd.f32 %v3406, %v3497
        %3499 = vmatmul.f32.gmra.mxu0 %v3158
        %v3500 = vpop.f32.mrf.mxu0
        %v3501 = vadd.f32 %v3409, %v3500
        %3502 = vmatmul.f32.gmra.mxu0 %v3165
        %v3503 = vpop.f32.mrf.mxu0
        %v3504 = vadd.f32 %v3412, %v3503
        %3505 = vmatmul.f32.gmra.mxu0 %v3172
        %v3506 = vpop.f32.mrf.mxu0
        %v3507 = vadd.f32 %v3415, %v3506
        %3508 = vmatmul.f32.gmra.mxu0 %v3179
        %v3509 = vpop.f32.mrf.mxu0
        %v3510 = vadd.f32 %v3418, %v3509
        %3511 = vmatmul.f32.gmra.mxu0 %v3186
        %v3512 = vpop.f32.mrf.mxu0
        %v3513 = vadd.f32 %v3421, %v3512
        %3514 = vmatmul.f32.gmra.mxu0 %v3193
        %v3515 = vpop.f32.mrf.mxu0
        %v3516 = vadd.f32 %v3424, %v3515
        %3517 = vmatmul.f32.gmra.mxu0 %v3200
        %v3518 = vpop.f32.mrf.mxu0
        %v3519 = vadd.f32 %v3427, %v3518
        %3520 = vmatmul.f32.gmra.mxu0 %v3207
        %v3521 = vpop.f32.mrf.mxu0
        %v3522 = vadd.f32 %v3430, %v3521
        %3523 = vmatmul.f32.gmra.mxu0 %v3214
        %v3524 = vpop.f32.mrf.mxu0
        %v3525 = vadd.f32 %v3433, %v3524
        %3526 = vmatmul.f32.gmra.mxu0 %v3221
        %v3527 = vpop.f32.mrf.mxu0
        %v3528 = vadd.f32 %v3436, %v3527
        %3529 = vmatmul.f32.gmra.mxu0 %v3228
        %v3530 = vpop.f32.mrf.mxu0
        %v3531 = vadd.f32 %v3439, %v3530
        %3532 = vmatmul.f32.gmra.mxu0 %v3235
        %v3533 = vpop.f32.mrf.mxu0
        %v3534 = vadd.f32 %v3442, %v3533
        %3535 = vmatmul.f32.gmra.mxu0 %v3242
        %v3536 = vpop.f32.mrf.mxu0
        %v3537 = vadd.f32 %v3445, %v3536
        %3538 = vmatmul.f32.gmra.mxu0 %v3249
        %v3539 = vpop.f32.mrf.mxu0
        %v3540 = vadd.f32 %v3448, %v3539
        %3541 = vmatmul.f32.gmra.mxu0 %v3256
        %v3542 = vpop.f32.mrf.mxu0
        %v3543 = vadd.f32 %v3451, %v3542
        %3544 = vmatmul.f32.gmra.mxu0 %v3263
        %v3545 = vpop.f32.mrf.mxu0
        %v3546 = vadd.f32 %v3454, %v3545
        %3547 = vmatmul.f32.gmra.mxu0 %v3270
        %v3548 = vpop.f32.mrf.mxu0
        %v3549 = vadd.f32 %v3457, %v3548
        %3550 = vmatmul.f32.gmra.mxu0 %v3277
        %v3551 = vpop.f32.mrf.mxu0
        %v3552 = vadd.f32 %v3460, %v3551
        %3553 = vmatmul.f32.gmra.mxu0 %v3284
        %v3554 = vpop.f32.mrf.mxu0
        %v3555 = vadd.f32 %v3463, %v3554
        %3556 = vmatmul.f32.gmra.mxu0 %v3291
        %v3557 = vpop.f32.mrf.mxu0
        %v3558 = vadd.f32 %v3466, %v3557
        %3559 = vmatmul.f32.gmra.mxu0 %v3298
        %v3560 = vpop.f32.mrf.mxu0
        %v3561 = vadd.f32 %v3469, %v3560
        %3562 = vdwg.mxu0
        %3563 = vmatpush.msra.mxu0 %v1262
        %3564 = vmatpush.msra.mxu0 %v1261
        %3565 = vmatpush.msra.mxu0 %v1260
        %3566 = vmatpush.msra.mxu0 %v1259
        %3567 = vmatpush.msra.mxu0 %v1258
        %3568 = vmatpush.msra.mxu0 %v1257
        %3569 = vmatpush.msra.mxu0 %v1256
        %3570 = vmatpush.msra.mxu0 %v1255
        %3571 = vmatpush.msra.mxu0 %v1254
        %3572 = vmatpush.msra.mxu0 %v1253
        %3573 = vmatpush.msra.mxu0 %v1252
        %3574 = vmatpush.msra.mxu0 %v1251
        %3575 = vmatpush.msra.mxu0 %v1250
        %3576 = vmatpush.msra.mxu0 %v1249
        %3577 = vmatpush.msra.mxu0 %v1248
        %3578 = vmatpush.msra.mxu0 %v1247
        %3579 = vmatmul.f32.gmra.mxu0 %v3131
        %v3580 = vpop.f32.mrf.mxu0
        %v3581 = vadd.f32 %v3489, %v3580
        %3582 = vmatmul.f32.gmra.mxu0 %v3138
        %v3583 = vpop.f32.mrf.mxu0
        %v3584 = vadd.f32 %v3492, %v3583
        %3585 = vmatmul.f32.gmra.mxu0 %v3145
        %v3586 = vpop.f32.mrf.mxu0
        %v3587 = vadd.f32 %v3495, %v3586
        %3588 = vmatmul.f32.gmra.mxu0 %v3152
        %v3589 = vpop.f32.mrf.mxu0
        %v3590 = vadd.f32 %v3498, %v3589
        %3591 = vmatmul.f32.gmra.mxu0 %v3159
        %v3592 = vpop.f32.mrf.mxu0
        %v3593 = vadd.f32 %v3501, %v3592
        %3594 = vmatmul.f32.gmra.mxu0 %v3166
        %v3595 = vpop.f32.mrf.mxu0
        %v3596 = vadd.f32 %v3504, %v3595
        %3597 = vmatmul.f32.gmra.mxu0 %v3173
        %v3598 = vpop.f32.mrf.mxu0
        %v3599 = vadd.f32 %v3507, %v3598
        %3600 = vmatmul.f32.gmra.mxu0 %v3180
        %v3601 = vpop.f32.mrf.mxu0
        %v3602 = vadd.f32 %v3510, %v3601
        %3603 = vmatmul.f32.gmra.mxu0 %v3187
        %v3604 = vpop.f32.mrf.mxu0
        %v3605 = vadd.f32 %v3513, %v3604
        %3606 = vmatmul.f32.gmra.mxu0 %v3194
        %v3607 = vpop.f32.mrf.mxu0
        %v3608 = vadd.f32 %v3516, %v3607
        %3609 = vmatmul.f32.gmra.mxu0 %v3201
        %v3610 = vpop.f32.mrf.mxu0
        %v3611 = vadd.f32 %v3519, %v3610
        %3612 = vmatmul.f32.gmra.mxu0 %v3208
        %v3613 = vpop.f32.mrf.mxu0
        %v3614 = vadd.f32 %v3522, %v3613
        %3615 = vmatmul.f32.gmra.mxu0 %v3215
        %v3616 = vpop.f32.mrf.mxu0
        %v3617 = vadd.f32 %v3525, %v3616
        %3618 = vmatmul.f32.gmra.mxu0 %v3222
        %v3619 = vpop.f32.mrf.mxu0
        %v3620 = vadd.f32 %v3528, %v3619
        %3621 = vmatmul.f32.gmra.mxu0 %v3229
        %v3622 = vpop.f32.mrf.mxu0
        %v3623 = vadd.f32 %v3531, %v3622
        %3624 = vmatmul.f32.gmra.mxu0 %v3236
        %v3625 = vpop.f32.mrf.mxu0
        %v3626 = vadd.f32 %v3534, %v3625
        %3627 = vmatmul.f32.gmra.mxu0 %v3243
        %v3628 = vpop.f32.mrf.mxu0
        %v3629 = vadd.f32 %v3537, %v3628
        %3630 = vmatmul.f32.gmra.mxu0 %v3250
        %v3631 = vpop.f32.mrf.mxu0
        %v3632 = vadd.f32 %v3540, %v3631
        %3633 = vmatmul.f32.gmra.mxu0 %v3257
        %v3634 = vpop.f32.mrf.mxu0
        %v3635 = vadd.f32 %v3543, %v3634
        %3636 = vmatmul.f32.gmra.mxu0 %v3264
        %v3637 = vpop.f32.mrf.mxu0
        %v3638 = vadd.f32 %v3546, %v3637
        %3639 = vmatmul.f32.gmra.mxu0 %v3271
        %v3640 = vpop.f32.mrf.mxu0
        %v3641 = vadd.f32 %v3549, %v3640
        %3642 = vmatmul.f32.gmra.mxu0 %v3278
        %v3643 = vpop.f32.mrf.mxu0
        %v3644 = vadd.f32 %v3552, %v3643
        %3645 = vmatmul.f32.gmra.mxu0 %v3285
        %v3646 = vpop.f32.mrf.mxu0
        %v3647 = vadd.f32 %v3555, %v3646
        %3648 = vmatmul.f32.gmra.mxu0 %v3292
        %v3649 = vpop.f32.mrf.mxu0
        %v3650 = vadd.f32 %v3558, %v3649
        %3651 = vmatmul.f32.gmra.mxu0 %v3299
        %v3652 = vpop.f32.mrf.mxu0
        %v3653 = vadd.f32 %v3561, %v3652
        %3654 = vdwg.mxu0
        %3655 = vmatpush.msra.mxu0 %v1278
        %3656 = vmatpush.msra.mxu0 %v1277
        %3657 = vmatpush.msra.mxu0 %v1276
        %3658 = vmatpush.msra.mxu0 %v1275
        %3659 = vmatpush.msra.mxu0 %v1274
        %3660 = vmatpush.msra.mxu0 %v1273
        %3661 = vmatpush.msra.mxu0 %v1272
        %3662 = vmatpush.msra.mxu0 %v1271
        %3663 = vmatpush.msra.mxu0 %v1270
        %3664 = vmatpush.msra.mxu0 %v1269
        %3665 = vmatpush.msra.mxu0 %v1268
        %3666 = vmatpush.msra.mxu0 %v1267
        %3667 = vmatpush.msra.mxu0 %v1266
        %3668 = vmatpush.msra.mxu0 %v1265
        %3669 = vmatpush.msra.mxu0 %v1264
        %3670 = vmatpush.msra.mxu0 %v1263
        %3671 = vmatmul.f32.gmra.mxu0 %v3132
        %v3672 = vpop.f32.mrf.mxu0
        %v3673 = vadd.f32 %v3581, %v3672
        %3674 = vmatmul.f32.gmra.mxu0 %v3139
        %v3675 = vpop.f32.mrf.mxu0
        %v3676 = vadd.f32 %v3584, %v3675
        %3677 = vmatmul.f32.gmra.mxu0 %v3146
        %v3678 = vpop.f32.mrf.mxu0
        %v3679 = vadd.f32 %v3587, %v3678
        %3680 = vmatmul.f32.gmra.mxu0 %v3153
        %v3681 = vpop.f32.mrf.mxu0
        %v3682 = vadd.f32 %v3590, %v3681
        %3683 = vmatmul.f32.gmra.mxu0 %v3160
        %v3684 = vpop.f32.mrf.mxu0
        %v3685 = vadd.f32 %v3593, %v3684
        %3686 = vmatmul.f32.gmra.mxu0 %v3167
        %v3687 = vpop.f32.mrf.mxu0
        %v3688 = vadd.f32 %v3596, %v3687
        %3689 = vmatmul.f32.gmra.mxu0 %v3174
        %v3690 = vpop.f32.mrf.mxu0
        %v3691 = vadd.f32 %v3599, %v3690
        %3692 = vmatmul.f32.gmra.mxu0 %v3181
        %v3693 = vpop.f32.mrf.mxu0
        %v3694 = vadd.f32 %v3602, %v3693
        %3695 = vmatmul.f32.gmra.mxu0 %v3188
        %v3696 = vpop.f32.mrf.mxu0
        %v3697 = vadd.f32 %v3605, %v3696
        %3698 = vmatmul.f32.gmra.mxu0 %v3195
        %v3699 = vpop.f32.mrf.mxu0
        %v3700 = vadd.f32 %v3608, %v3699
        %3701 = vmatmul.f32.gmra.mxu0 %v3202
        %v3702 = vpop.f32.mrf.mxu0
        %v3703 = vadd.f32 %v3611, %v3702
        %3704 = vmatmul.f32.gmra.mxu0 %v3209
        %v3705 = vpop.f32.mrf.mxu0
        %v3706 = vadd.f32 %v3614, %v3705
        %3707 = vmatmul.f32.gmra.mxu0 %v3216
        %v3708 = vpop.f32.mrf.mxu0
        %v3709 = vadd.f32 %v3617, %v3708
        %3710 = vmatmul.f32.gmra.mxu0 %v3223
        %v3711 = vpop.f32.mrf.mxu0
        %v3712 = vadd.f32 %v3620, %v3711
        %3713 = vmatmul.f32.gmra.mxu0 %v3230
        %v3714 = vpop.f32.mrf.mxu0
        %v3715 = vadd.f32 %v3623, %v3714
        %3716 = vmatmul.f32.gmra.mxu0 %v3237
        %v3717 = vpop.f32.mrf.mxu0
        %v3718 = vadd.f32 %v3626, %v3717
        %3719 = vmatmul.f32.gmra.mxu0 %v3244
        %v3720 = vpop.f32.mrf.mxu0
        %v3721 = vadd.f32 %v3629, %v3720
        %3722 = vmatmul.f32.gmra.mxu0 %v3251
        %v3723 = vpop.f32.mrf.mxu0
        %v3724 = vadd.f32 %v3632, %v3723
        %3725 = vmatmul.f32.gmra.mxu0 %v3258
        %v3726 = vpop.f32.mrf.mxu0
        %v3727 = vadd.f32 %v3635, %v3726
        %3728 = vmatmul.f32.gmra.mxu0 %v3265
        %v3729 = vpop.f32.mrf.mxu0
        %v3730 = vadd.f32 %v3638, %v3729
        %3731 = vmatmul.f32.gmra.mxu0 %v3272
        %v3732 = vpop.f32.mrf.mxu0
        %v3733 = vadd.f32 %v3641, %v3732
        %3734 = vmatmul.f32.gmra.mxu0 %v3279
        %v3735 = vpop.f32.mrf.mxu0
        %v3736 = vadd.f32 %v3644, %v3735
        %3737 = vmatmul.f32.gmra.mxu0 %v3286
        %v3738 = vpop.f32.mrf.mxu0
        %v3739 = vadd.f32 %v3647, %v3738
        %3740 = vmatmul.f32.gmra.mxu0 %v3293
        %v3741 = vpop.f32.mrf.mxu0
        %v3742 = vadd.f32 %v3650, %v3741
        %3743 = vmatmul.f32.gmra.mxu0 %v3300
        %v3744 = vpop.f32.mrf.mxu0
        %v3745 = vadd.f32 %v3653, %v3744
        %3746 = vdwg.mxu0
        %3747 = vmatpush.msra.mxu0 %v1294
        %3748 = vmatpush.msra.mxu0 %v1293
        %3749 = vmatpush.msra.mxu0 %v1292
        %3750 = vmatpush.msra.mxu0 %v1291
        %3751 = vmatpush.msra.mxu0 %v1290
        %3752 = vmatpush.msra.mxu0 %v1289
        %3753 = vmatpush.msra.mxu0 %v1288
        %3754 = vmatpush.msra.mxu0 %v1287
        %3755 = vmatpush.msra.mxu0 %v1286
        %3756 = vmatpush.msra.mxu0 %v1285
        %3757 = vmatpush.msra.mxu0 %v1284
        %3758 = vmatpush.msra.mxu0 %v1283
        %3759 = vmatpush.msra.mxu0 %v1282
        %3760 = vmatpush.msra.mxu0 %v1281
        %3761 = vmatpush.msra.mxu0 %v1280
        %3762 = vmatpush.msra.mxu0 %v1279
        %3763 = vmatmul.f32.gmra.mxu0 %v3133
        %v3764 = vpop.f32.mrf.mxu0
        %v3765 = vadd.f32 %v3673, %v3764
        %3766 = vmatmul.f32.gmra.mxu0 %v3140
        %v3767 = vpop.f32.mrf.mxu0
        %v3768 = vadd.f32 %v3676, %v3767
        %3769 = vmatmul.f32.gmra.mxu0 %v3147
        %v3770 = vpop.f32.mrf.mxu0
        %v3771 = vadd.f32 %v3679, %v3770
        %3772 = vmatmul.f32.gmra.mxu0 %v3154
        %v3773 = vpop.f32.mrf.mxu0
        %v3774 = vadd.f32 %v3682, %v3773
        %3775 = vmatmul.f32.gmra.mxu0 %v3161
        %v3776 = vpop.f32.mrf.mxu0
        %v3777 = vadd.f32 %v3685, %v3776
        %3778 = vmatmul.f32.gmra.mxu0 %v3168
        %v3779 = vpop.f32.mrf.mxu0
        %v3780 = vadd.f32 %v3688, %v3779
        %3781 = vmatmul.f32.gmra.mxu0 %v3175
        %v3782 = vpop.f32.mrf.mxu0
        %v3783 = vadd.f32 %v3691, %v3782
        %3784 = vmatmul.f32.gmra.mxu0 %v3182
        %v3785 = vpop.f32.mrf.mxu0
        %v3786 = vadd.f32 %v3694, %v3785
        %3787 = vmatmul.f32.gmra.mxu0 %v3189
        %v3788 = vpop.f32.mrf.mxu0
        %v3789 = vadd.f32 %v3697, %v3788
        %3790 = vmatmul.f32.gmra.mxu0 %v3196
        %v3791 = vpop.f32.mrf.mxu0
        %v3792 = vadd.f32 %v3700, %v3791
        %3793 = vmatmul.f32.gmra.mxu0 %v3203
        %v3794 = vpop.f32.mrf.mxu0
        %v3795 = vadd.f32 %v3703, %v3794
        %3796 = vmatmul.f32.gmra.mxu0 %v3210
        %v3797 = vpop.f32.mrf.mxu0
        %v3798 = vadd.f32 %v3706, %v3797
        %3799 = vmatmul.f32.gmra.mxu0 %v3217
        %v3800 = vpop.f32.mrf.mxu0
        %v3801 = vadd.f32 %v3709, %v3800
        %3802 = vmatmul.f32.gmra.mxu0 %v3224
        %v3803 = vpop.f32.mrf.mxu0
        %v3804 = vadd.f32 %v3712, %v3803
        %3805 = vmatmul.f32.gmra.mxu0 %v3231
        %v3806 = vpop.f32.mrf.mxu0
        %v3807 = vadd.f32 %v3715, %v3806
        %3808 = vmatmul.f32.gmra.mxu0 %v3238
        %v3809 = vpop.f32.mrf.mxu0
        %v3810 = vadd.f32 %v3718, %v3809
        %3811 = vmatmul.f32.gmra.mxu0 %v3245
        %v3812 = vpop.f32.mrf.mxu0
        %v3813 = vadd.f32 %v3721, %v3812
        %3814 = vmatmul.f32.gmra.mxu0 %v3252
        %v3815 = vpop.f32.mrf.mxu0
        %v3816 = vadd.f32 %v3724, %v3815
        %3817 = vmatmul.f32.gmra.mxu0 %v3259
        %v3818 = vpop.f32.mrf.mxu0
        %v3819 = vadd.f32 %v3727, %v3818
        %3820 = vmatmul.f32.gmra.mxu0 %v3266
        %v3821 = vpop.f32.mrf.mxu0
        %v3822 = vadd.f32 %v3730, %v3821
        %3823 = vmatmul.f32.gmra.mxu0 %v3273
        %v3824 = vpop.f32.mrf.mxu0
        %v3825 = vadd.f32 %v3733, %v3824
        %3826 = vmatmul.f32.gmra.mxu0 %v3280
        %v3827 = vpop.f32.mrf.mxu0
        %v3828 = vadd.f32 %v3736, %v3827
        %3829 = vmatmul.f32.gmra.mxu0 %v3287
        %v3830 = vpop.f32.mrf.mxu0
        %v3831 = vadd.f32 %v3739, %v3830
        %3832 = vmatmul.f32.gmra.mxu0 %v3294
        %v3833 = vpop.f32.mrf.mxu0
        %v3834 = vadd.f32 %v3742, %v3833
        %3835 = vmatmul.f32.gmra.mxu0 %v3301
        %v3836 = vpop.f32.mrf.mxu0
        %v3837 = vadd.f32 %v3745, %v3836
        %3838 = vdwg.mxu0
        %3839 = vmatpush.msra.mxu0 %v1310
        %3840 = vmatpush.msra.mxu0 %v1309
        %3841 = vmatpush.msra.mxu0 %v1308
        %3842 = vmatpush.msra.mxu0 %v1307
        %3843 = vmatpush.msra.mxu0 %v1306
        %3844 = vmatpush.msra.mxu0 %v1305
        %3845 = vmatpush.msra.mxu0 %v1304
        %3846 = vmatpush.msra.mxu0 %v1303
        %3847 = vmatpush.msra.mxu0 %v1302
        %3848 = vmatpush.msra.mxu0 %v1301
        %3849 = vmatpush.msra.mxu0 %v1300
        %3850 = vmatpush.msra.mxu0 %v1299
        %3851 = vmatpush.msra.mxu0 %v1298
        %3852 = vmatpush.msra.mxu0 %v1297
        %3853 = vmatpush.msra.mxu0 %v1296
        %3854 = vmatpush.msra.mxu0 %v1295
        %3855 = vmatmul.f32.gmra.mxu0 %v3134
        %v3856 = vpop.f32.mrf.mxu0
        %v3857 = vadd.f32 %v3765, %v3856
        %3858 = vmatmul.f32.gmra.mxu0 %v3141
        %v3859 = vpop.f32.mrf.mxu0
        %v3860 = vadd.f32 %v3768, %v3859
        %3861 = vmatmul.f32.gmra.mxu0 %v3148
        %v3862 = vpop.f32.mrf.mxu0
        %v3863 = vadd.f32 %v3771, %v3862
        %3864 = vmatmul.f32.gmra.mxu0 %v3155
        %v3865 = vpop.f32.mrf.mxu0
        %v3866 = vadd.f32 %v3774, %v3865
        %3867 = vmatmul.f32.gmra.mxu0 %v3162
        %v3868 = vpop.f32.mrf.mxu0
        %v3869 = vadd.f32 %v3777, %v3868
        %3870 = vmatmul.f32.gmra.mxu0 %v3169
        %v3871 = vpop.f32.mrf.mxu0
        %v3872 = vadd.f32 %v3780, %v3871
        %3873 = vmatmul.f32.gmra.mxu0 %v3176
        %v3874 = vpop.f32.mrf.mxu0
        %v3875 = vadd.f32 %v3783, %v3874
        %3876 = vmatmul.f32.gmra.mxu0 %v3183
        %v3877 = vpop.f32.mrf.mxu0
        %v3878 = vadd.f32 %v3786, %v3877
        %3879 = vmatmul.f32.gmra.mxu0 %v3190
        %v3880 = vpop.f32.mrf.mxu0
        %v3881 = vadd.f32 %v3789, %v3880
        %3882 = vmatmul.f32.gmra.mxu0 %v3197
        %v3883 = vpop.f32.mrf.mxu0
        %v3884 = vadd.f32 %v3792, %v3883
        %3885 = vmatmul.f32.gmra.mxu0 %v3204
        %v3886 = vpop.f32.mrf.mxu0
        %v3887 = vadd.f32 %v3795, %v3886
        %3888 = vmatmul.f32.gmra.mxu0 %v3211
        %v3889 = vpop.f32.mrf.mxu0
        %v3890 = vadd.f32 %v3798, %v3889
        %3891 = vmatmul.f32.gmra.mxu0 %v3218
        %v3892 = vpop.f32.mrf.mxu0
        %v3893 = vadd.f32 %v3801, %v3892
        %3894 = vmatmul.f32.gmra.mxu0 %v3225
        %v3895 = vpop.f32.mrf.mxu0
        %v3896 = vadd.f32 %v3804, %v3895
        %3897 = vmatmul.f32.gmra.mxu0 %v3232
        %v3898 = vpop.f32.mrf.mxu0
        %v3899 = vadd.f32 %v3807, %v3898
        %3900 = vmatmul.f32.gmra.mxu0 %v3239
        %v3901 = vpop.f32.mrf.mxu0
        %v3902 = vadd.f32 %v3810, %v3901
        %3903 = vmatmul.f32.gmra.mxu0 %v3246
        %v3904 = vpop.f32.mrf.mxu0
        %v3905 = vadd.f32 %v3813, %v3904
        %3906 = vmatmul.f32.gmra.mxu0 %v3253
        %v3907 = vpop.f32.mrf.mxu0
        %v3908 = vadd.f32 %v3816, %v3907
        %3909 = vmatmul.f32.gmra.mxu0 %v3260
        %v3910 = vpop.f32.mrf.mxu0
        %v3911 = vadd.f32 %v3819, %v3910
        %3912 = vmatmul.f32.gmra.mxu0 %v3267
        %v3913 = vpop.f32.mrf.mxu0
        %v3914 = vadd.f32 %v3822, %v3913
        %3915 = vmatmul.f32.gmra.mxu0 %v3274
        %v3916 = vpop.f32.mrf.mxu0
        %v3917 = vadd.f32 %v3825, %v3916
        %3918 = vmatmul.f32.gmra.mxu0 %v3281
        %v3919 = vpop.f32.mrf.mxu0
        %v3920 = vadd.f32 %v3828, %v3919
        %3921 = vmatmul.f32.gmra.mxu0 %v3288
        %v3922 = vpop.f32.mrf.mxu0
        %v3923 = vadd.f32 %v3831, %v3922
        %3924 = vmatmul.f32.gmra.mxu0 %v3295
        %v3925 = vpop.f32.mrf.mxu0
        %v3926 = vadd.f32 %v3834, %v3925
        %3927 = vmatmul.f32.gmra.mxu0 %v3302
        %v3928 = vpop.f32.mrf.mxu0
        %v3929 = vadd.f32 %v3837, %v3928
        %3930 = vdwg.mxu0
        %3931 = vmatpush.msra.mxu0 0.0
        %3932 = vmatpush.msra.mxu0 0.0
        %3933 = vmatpush.msra.mxu0 0.0
        %3934 = vmatpush.msra.mxu0 0.0
        %3935 = vmatpush.msra.mxu0 0.0
        %3936 = vmatpush.msra.mxu0 0.0
        %3937 = vmatpush.msra.mxu0 0.0
        %3938 = vmatpush.msra.mxu0 0.0
        %3939 = vmatpush.msra.mxu0 0.0
        %3940 = vmatpush.msra.mxu0 0.0
        %3941 = vmatpush.msra.mxu0 0.0
        %3942 = vmatpush.msra.mxu0 0.0
        %3943 = vmatpush.msra.mxu0 0.0
        %3944 = vmatpush.msra.mxu0 0.0
        %3945 = vmatpush.msra.mxu0 %v1312
        %3946 = vmatpush.msra.mxu0 %v1311
        %3947 = vmatmul.f32.gmra.mxu0 %v3305
        %v3948 = vpop.f32.mrf.mxu0
        %v3949 = vadd.f32 %v3857, %v3948
        %3950 = vmatmul.f32.gmra.mxu0 %v3308
        %v3951 = vpop.f32.mrf.mxu0
        %v3952 = vadd.f32 %v3860, %v3951
        %3953 = vmatmul.f32.gmra.mxu0 %v3311
        %v3954 = vpop.f32.mrf.mxu0
        %v3955 = vadd.f32 %v3863, %v3954
        %3956 = vmatmul.f32.gmra.mxu0 %v3314
        %v3957 = vpop.f32.mrf.mxu0
        %v3958 = vadd.f32 %v3866, %v3957
        %3959 = vmatmul.f32.gmra.mxu0 %v3317
        %v3960 = vpop.f32.mrf.mxu0
        %v3961 = vadd.f32 %v3869, %v3960
        %3962 = vmatmul.f32.gmra.mxu0 %v3320
        %v3963 = vpop.f32.mrf.mxu0
        %v3964 = vadd.f32 %v3872, %v3963
        %3965 = vmatmul.f32.gmra.mxu0 %v3323
        %v3966 = vpop.f32.mrf.mxu0
        %v3967 = vadd.f32 %v3875, %v3966
        %3968 = vmatmul.f32.gmra.mxu0 %v3326
        %v3969 = vpop.f32.mrf.mxu0
        %v3970 = vadd.f32 %v3878, %v3969
        %3971 = vmatmul.f32.gmra.mxu0 %v3329
        %v3972 = vpop.f32.mrf.mxu0
        %v3973 = vadd.f32 %v3881, %v3972
        %3974 = vmatmul.f32.gmra.mxu0 %v3332
        %v3975 = vpop.f32.mrf.mxu0
        %v3976 = vadd.f32 %v3884, %v3975
        %3977 = vmatmul.f32.gmra.mxu0 %v3335
        %v3978 = vpop.f32.mrf.mxu0
        %v3979 = vadd.f32 %v3887, %v3978
        %3980 = vmatmul.f32.gmra.mxu0 %v3338
        %v3981 = vpop.f32.mrf.mxu0
        %v3982 = vadd.f32 %v3890, %v3981
        %3983 = vmatmul.f32.gmra.mxu0 %v3341
        %v3984 = vpop.f32.mrf.mxu0
        %v3985 = vadd.f32 %v3893, %v3984
        %3986 = vmatmul.f32.gmra.mxu0 %v3344
        %v3987 = vpop.f32.mrf.mxu0
        %v3988 = vadd.f32 %v3896, %v3987
        %3989 = vmatmul.f32.gmra.mxu0 %v3347
        %v3990 = vpop.f32.mrf.mxu0
        %v3991 = vadd.f32 %v3899, %v3990
        %3992 = vmatmul.f32.gmra.mxu0 %v3350
        %v3993 = vpop.f32.mrf.mxu0
        %v3994 = vadd.f32 %v3902, %v3993
        %3995 = vmatmul.f32.gmra.mxu0 %v3353
        %v3996 = vpop.f32.mrf.mxu0
        %v3997 = vadd.f32 %v3905, %v3996
        %3998 = vmatmul.f32.gmra.mxu0 %v3356
        %v3999 = vpop.f32.mrf.mxu0
        %v4000 = vadd.f32 %v3908, %v3999
        %4001 = vmatmul.f32.gmra.mxu0 %v3359
        %v4002 = vpop.f32.mrf.mxu0
        %v4003 = vadd.f32 %v3911, %v4002
        %4004 = vmatmul.f32.gmra.mxu0 %v3362
        %v4005 = vpop.f32.mrf.mxu0
        %v4006 = vadd.f32 %v3914, %v4005
        %4007 = vmatmul.f32.gmra.mxu0 %v3365
        %v4008 = vpop.f32.mrf.mxu0
        %v4009 = vadd.f32 %v3917, %v4008
        %4010 = vmatmul.f32.gmra.mxu0 %v3368
        %v4011 = vpop.f32.mrf.mxu0
        %v4012 = vadd.f32 %v3920, %v4011
        %4013 = vmatmul.f32.gmra.mxu0 %v3371
        %v4014 = vpop.f32.mrf.mxu0
        %v4015 = vadd.f32 %v3923, %v4014
        %4016 = vmatmul.f32.gmra.mxu0 %v3374
        %v4017 = vpop.f32.mrf.mxu0
        %v4018 = vadd.f32 %v3926, %v4017
        %4019 = vmatmul.f32.gmra.mxu0 %v3377
        %v4020 = vpop.f32.mrf.mxu0
        %v4021 = vadd.f32 %v3929, %v4020
        %4022 = vdwg.mxu0
        %v4023 = vmax.f32 %v3103, %v3949
        %v4024 = vmax.f32 %v3104, %v3952
        %v4025 = vmax.f32 %v3105, %v3955
        %v4026 = vmax.f32 %v3106, %v3958
        %v4027 = vmax.f32 %v3107, %v3961
        %v4028 = vmax.f32 %v3108, %v3964
        %v4029 = vmax.f32 %v3109, %v3967
        %v4030 = vmax.f32 %v3110, %v3970
        %v4031 = vmax.f32 %v3111, %v3973
        %v4032 = vmax.f32 %v3112, %v3976
        %v4033 = vmax.f32 %v3113, %v3979
        %v4034 = vmax.f32 %v3114, %v3982
        %v4035 = vmax.f32 %v3115, %v3985
        %v4036 = vmax.f32 %v3116, %v3988
        %v4037 = vmax.f32 %v3117, %v3991
        %v4038 = vmax.f32 %v3118, %v3994
        %v4039 = vmax.f32 %v3119, %v3997
        %v4040 = vmax.f32 %v3120, %v4000
        %v4041 = vmax.f32 %v3121, %v4003
        %v4042 = vmax.f32 %v3122, %v4006
        %v4043 = vmax.f32 %v3123, %v4009
        %v4044 = vmax.f32 %v3124, %v4012
        %v4045 = vmax.f32 %v3125, %v4015
        %v4046 = vmax.f32 %v3126, %v4018
        %v4047 = vmax.f32 %v3127, %v4021
        %s4048 = scalar_lea.vmem [#allocation6], 4200
        %v4049 = vld [vmem:[%s4048] sm:$0xff]
        %v4050 = vld [vmem:[%s4048 + $0x8] sm:$0xff]
        %v4051 = vld [vmem:[%s4048 + $0x10] sm:$0xff]
        %v4052 = vld [vmem:[%s4048 + $0x18] sm:$0xff]
        %v4053 = vld [vmem:[%s4048 + $0x20] sm:$0xff]
        %v4054 = vld [vmem:[%s4048 + $0x28] sm:$0xff]
        %v4055 = vld [vmem:[%s4048 + $0x30] sm:$0xff]
        %v4056 = vld [vmem:[%s4048 + $0x38] sm:$0xff]
        %v4057 = vld [vmem:[%s4048 + $0x40] sm:$0xff]
        %v4058 = vld [vmem:[%s4048 + $0x48] sm:$0xff]
        %v4059 = vld [vmem:[%s4048 + $0x50] sm:$0xff]
        %v4060 = vld [vmem:[%s4048 + $0x58] sm:$0xff]
        %v4061 = vld [vmem:[%s4048 + $0x60] sm:$0xff]
        %v4062 = vld [vmem:[%s4048 + $0x68] sm:$0xff]
        %v4063 = vld [vmem:[%s4048 + $0x70] sm:$0xff]
        %v4064 = vld [vmem:[%s4048 + $0x78] sm:$0xff]
        %v4065 = vld [vmem:[%s4048 + $0x80] sm:$0xff]
        %v4066 = vld [vmem:[%s4048 + $0x88] sm:$0xff]
        %v4067 = vld [vmem:[%s4048 + $0x90] sm:$0xff]
        %v4068 = vld [vmem:[%s4048 + $0x98] sm:$0xff]
        %v4069 = vld [vmem:[%s4048 + $0xa0] sm:$0xff]
        %v4070 = vld [vmem:[%s4048 + $0xa8] sm:$0xff]
        %v4071 = vld [vmem:[%s4048 + $0xb0] sm:$0xff]
        %v4072 = vld [vmem:[%s4048 + $0xb8] sm:$0xff]
        %v4073 = vld [vmem:[%s4048 + $0xc0] sm:$0xff]
        %v4074 = vld [vmem:[%s4048 + $0xc8] sm:$0xff]
        %v4075 = vld [vmem:[%s4048 + $0xd0] sm:$0xff]
        %v4076 = vld [vmem:[%s4048 + $0xd8] sm:$0xff]
        %v4077 = vld [vmem:[%s4048 + $0xe0] sm:$0xff]
        %v4078 = vld [vmem:[%s4048 + $0xe8] sm:$0xff]
        %v4079 = vld [vmem:[%s4048 + $0xf0] sm:$0xff]
        %v4080 = vld [vmem:[%s4048 + $0xf8] sm:$0xff]
        %v4081 = vld [vmem:[%s4048 + $0x100] sm:$0xff]
        %v4082 = vld [vmem:[%s4048 + $0x108] sm:$0xff]
        %v4083 = vld [vmem:[%s4048 + $0x110] sm:$0xff]
        %v4084 = vld [vmem:[%s4048 + $0x118] sm:$0xff]
        %v4085 = vld [vmem:[%s4048 + $0x120] sm:$0xff]
        %v4086 = vld [vmem:[%s4048 + $0x128] sm:$0xff]
        %v4087 = vld [vmem:[%s4048 + $0x130] sm:$0xff]
        %v4088 = vld [vmem:[%s4048 + $0x138] sm:$0xff]
        %v4089 = vld [vmem:[%s4048 + $0x140] sm:$0xff]
        %v4090 = vld [vmem:[%s4048 + $0x148] sm:$0xff]
        %v4091 = vld [vmem:[%s4048 + $0x150] sm:$0xff]
        %v4092 = vld [vmem:[%s4048 + $0x158] sm:$0xff]
        %v4093 = vld [vmem:[%s4048 + $0x160] sm:$0xff]
        %v4094 = vld [vmem:[%s4048 + $0x168] sm:$0xff]
        %v4095 = vld [vmem:[%s4048 + $0x170] sm:$0xff]
        %v4096 = vld [vmem:[%s4048 + $0x178] sm:$0xff]
        %v4097 = vld [vmem:[%s4048 + $0x180] sm:$0xff]
        %v4098 = vld [vmem:[%s4048 + $0x188] sm:$0xff]
        %v4099 = vld [vmem:[%s4048 + $0x190] sm:$0xff]
        %v4100 = vld [vmem:[%s4048 + $0x198] sm:$0xff]
        %v4101 = vld [vmem:[%s4048 + $0x1a0] sm:$0xff]
        %v4102 = vld [vmem:[%s4048 + $0x1a8] sm:$0xff]
        %v4103 = vld [vmem:[%s4048 + $0x1b0] sm:$0xff]
        %v4104 = vld [vmem:[%s4048 + $0x1b8] sm:$0xff]
        %v4105 = vld [vmem:[%s4048 + $0x1c0] sm:$0xff]
        %v4106 = vld [vmem:[%s4048 + $0x1c8] sm:$0xff]
        %v4107 = vld [vmem:[%s4048 + $0x1d0] sm:$0xff]
        %v4108 = vld [vmem:[%s4048 + $0x1d8] sm:$0xff]
        %v4109 = vld [vmem:[%s4048 + $0x1e0] sm:$0xff]
        %v4110 = vld [vmem:[%s4048 + $0x1e8] sm:$0xff]
        %v4111 = vld [vmem:[%s4048 + $0x1f0] sm:$0xff]
        %v4112 = vld [vmem:[%s4048 + $0x1f8] sm:$0xff]
        %v4113 = vld [vmem:[%s4048 + $0x200] sm:$0xff]
        %v4114 = vld [vmem:[%s4048 + $0x208] sm:$0xff]
        %v4115 = vld [vmem:[%s4048 + $0x210] sm:$0xff]
        %v4116 = vld [vmem:[%s4048 + $0x218] sm:$0xff]
        %v4117 = vld [vmem:[%s4048 + $0x220] sm:$0xff]
        %v4118 = vld [vmem:[%s4048 + $0x228] sm:$0xff]
        %v4119 = vld [vmem:[%s4048 + $0x230] sm:$0xff]
        %v4120 = vld [vmem:[%s4048 + $0x238] sm:$0xff]
        %v4121 = vld [vmem:[%s4048 + $0x240] sm:$0xff]
        %v4122 = vld [vmem:[%s4048 + $0x248] sm:$0xff]
        %v4123 = vld [vmem:[%s4048 + $0x250] sm:$0xff]
        %v4124 = vld [vmem:[%s4048 + $0x258] sm:$0xff]
        %v4125 = vld [vmem:[%s4048 + $0x260] sm:$0xff]
        %v4126 = vld [vmem:[%s4048 + $0x268] sm:$0xff]
        %v4127 = vld [vmem:[%s4048 + $0x270] sm:$0xff]
        %v4128 = vld [vmem:[%s4048 + $0x278] sm:$0xff]
        %v4129 = vld [vmem:[%s4048 + $0x280] sm:$0xff]
        %v4130 = vld [vmem:[%s4048 + $0x288] sm:$0xff]
        %v4131 = vld [vmem:[%s4048 + $0x290] sm:$0xff]
        %v4132 = vld [vmem:[%s4048 + $0x298] sm:$0xff]
        %v4133 = vld [vmem:[%s4048 + $0x2a0] sm:$0xff]
        %v4134 = vld [vmem:[%s4048 + $0x2a8] sm:$0xff]
        %v4135 = vld [vmem:[%s4048 + $0x2b0] sm:$0xff]
        %v4136 = vld [vmem:[%s4048 + $0x2b8] sm:$0xff]
        %v4137 = vld [vmem:[%s4048 + $0x2c0] sm:$0xff]
        %v4138 = vld [vmem:[%s4048 + $0x2c8] sm:$0xff]
        %v4139 = vld [vmem:[%s4048 + $0x2d0] sm:$0xff]
        %v4140 = vld [vmem:[%s4048 + $0x2d8] sm:$0xff]
        %v4141 = vld [vmem:[%s4048 + $0x2e0] sm:$0xff]
        %v4142 = vld [vmem:[%s4048 + $0x2e8] sm:$0xff]
        %v4143 = vld [vmem:[%s4048 + $0x2f0] sm:$0xff]
        %v4144 = vld [vmem:[%s4048 + $0x2f8] sm:$0xff]
        %v4145 = vld [vmem:[%s4048 + $0x300] sm:$0xff]
        %v4146 = vld [vmem:[%s4048 + $0x308] sm:$0xff]
        %v4147 = vld [vmem:[%s4048 + $0x310] sm:$0xff]
        %v4148 = vld [vmem:[%s4048 + $0x318] sm:$0xff]
        %v4149 = vld [vmem:[%s4048 + $0x320] sm:$0xff]
        %v4150 = vld [vmem:[%s4048 + $0x328] sm:$0xff]
        %v4151 = vld [vmem:[%s4048 + $0x330] sm:$0xff]
        %v4152 = vld [vmem:[%s4048 + $0x338] sm:$0xff]
        %v4153 = vld [vmem:[%s4048 + $0x340] sm:$0xff]
        %v4154 = vld [vmem:[%s4048 + $0x348] sm:$0xff]
        %v4155 = vld [vmem:[%s4048 + $0x350] sm:$0xff]
        %v4156 = vld [vmem:[%s4048 + $0x358] sm:$0xff]
        %v4157 = vld [vmem:[%s4048 + $0x360] sm:$0xff]
        %v4158 = vld [vmem:[%s4048 + $0x368] sm:$0xff]
        %v4159 = vld [vmem:[%s4048 + $0x370] sm:$0xff]
        %v4160 = vld [vmem:[%s4048 + $0x378] sm:$0xff]
        %v4161 = vld [vmem:[%s4048 + $0x380] sm:$0xff]
        %v4162 = vld [vmem:[%s4048 + $0x388] sm:$0xff]
        %v4163 = vld [vmem:[%s4048 + $0x390] sm:$0xff]
        %v4164 = vld [vmem:[%s4048 + $0x398] sm:$0xff]
        %v4165 = vld [vmem:[%s4048 + $0x3a0] sm:$0xff]
        %v4166 = vld [vmem:[%s4048 + $0x3a8] sm:$0xff]
        %v4167 = vld [vmem:[%s4048 + $0x3b0] sm:$0xff]
        %v4168 = vld [vmem:[%s4048 + $0x3b8] sm:$0xff]
        %v4169 = vld [vmem:[%s4048 + $0x3c0] sm:$0xff]
        %v4170 = vld [vmem:[%s4048 + $0x3c8] sm:$0xff]
        %v4171 = vld [vmem:[%s4048 + $0x3d0] sm:$0xff]
        %v4172 = vld [vmem:[%s4048 + $0x3d8] sm:$0xff]
        %v4173 = vld [vmem:[%s4048 + $0x3e0] sm:$0xff]
        %v4174 = vld [vmem:[%s4048 + $0x3e8] sm:$0xff]
        %v4175 = vld [vmem:[%s4048 + $0x3f0] sm:$0xff]
        %v4176 = vld [vmem:[%s4048 + $0x3f8] sm:$0xff]
        %v4177 = vld [vmem:[%s4048 + $0x400] sm:$0xff]
        %v4178 = vld [vmem:[%s4048 + $0x408] sm:$0xff]
        %v4179 = vld [vmem:[%s4048 + $0x410] sm:$0xff]
        %v4180 = vld [vmem:[%s4048 + $0x418] sm:$0xff]
        %v4181 = vld [vmem:[%s4048 + $0x420] sm:$0xff]
        %v4182 = vld [vmem:[%s4048 + $0x428] sm:$0xff]
        %v4183 = vld [vmem:[%s4048 + $0x430] sm:$0xff]
        %v4184 = vld [vmem:[%s4048 + $0x438] sm:$0xff]
        %v4185 = vld [vmem:[%s4048 + $0x440] sm:$0xff]
        %v4186 = vld [vmem:[%s4048 + $0x448] sm:$0xff]
        %v4187 = vld [vmem:[%s4048 + $0x450] sm:$0xff]
        %v4188 = vld [vmem:[%s4048 + $0x458] sm:$0xff]
        %v4189 = vld [vmem:[%s4048 + $0x460] sm:$0xff]
        %v4190 = vld [vmem:[%s4048 + $0x468] sm:$0xff]
        %v4191 = vld [vmem:[%s4048 + $0x470] sm:$0xff]
        %v4192 = vld [vmem:[%s4048 + $0x478] sm:$0xff]
        %v4193 = vld [vmem:[%s4048 + $0x480] sm:$0xff]
        %v4194 = vld [vmem:[%s4048 + $0x488] sm:$0xff]
        %v4195 = vld [vmem:[%s4048 + $0x490] sm:$0xff]
        %v4196 = vld [vmem:[%s4048 + $0x498] sm:$0xff]
        %v4197 = vld [vmem:[%s4048 + $0x4a0] sm:$0xff]
        %v4198 = vld [vmem:[%s4048 + $0x4a8] sm:$0xff]
        %v4199 = vld [vmem:[%s4048 + $0x4b0] sm:$0xff]
        %v4200 = vld [vmem:[%s4048 + $0x4b8] sm:$0xff]
        %v4201 = vld [vmem:[%s4048 + $0x4c0] sm:$0xff]
        %v4202 = vld [vmem:[%s4048 + $0x4c8] sm:$0xff]
        %v4203 = vld [vmem:[%s4048 + $0x4d0] sm:$0xff]
        %v4204 = vld [vmem:[%s4048 + $0x4d8] sm:$0xff]
        %v4205 = vld [vmem:[%s4048 + $0x4e0] sm:$0xff]
        %v4206 = vld [vmem:[%s4048 + $0x4e8] sm:$0xff]
        %v4207 = vld [vmem:[%s4048 + $0x4f0] sm:$0xff]
        %v4208 = vld [vmem:[%s4048 + $0x4f8] sm:$0xff]
        %v4209 = vld [vmem:[%s4048 + $0x500] sm:$0xff]
        %v4210 = vld [vmem:[%s4048 + $0x508] sm:$0xff]
        %v4211 = vld [vmem:[%s4048 + $0x510] sm:$0xff]
        %v4212 = vld [vmem:[%s4048 + $0x518] sm:$0xff]
        %v4213 = vld [vmem:[%s4048 + $0x520] sm:$0xff]
        %v4214 = vld [vmem:[%s4048 + $0x528] sm:$0xff]
        %v4215 = vld [vmem:[%s4048 + $0x530] sm:$0xff]
        %v4216 = vld [vmem:[%s4048 + $0x538] sm:$0xff]
        %v4217 = vld [vmem:[%s4048 + $0x540] sm:$0xf]
        %v4218 = vld [vmem:[%s4048 + $0x548] sm:$0xf]
        %v4219 = vld [vmem:[%s4048 + $0x550] sm:$0xf]
        %v4220 = vld [vmem:[%s4048 + $0x558] sm:$0xf]
        %v4221 = vld [vmem:[%s4048 + $0x560] sm:$0xf]
        %v4222 = vld [vmem:[%s4048 + $0x568] sm:$0xf]
        %v4223 = vld [vmem:[%s4048 + $0x570] sm:$0xf]
        %v4225 = vsel %vm1488, %v4055, 0
        %v4228 = vsel %vm1488, %v4062, 0
        %v4231 = vsel %vm1488, %v4069, 0
        %v4234 = vsel %vm1488, %v4076, 0
        %v4237 = vsel %vm1488, %v4083, 0
        %v4240 = vsel %vm1488, %v4090, 0
        %v4243 = vsel %vm1488, %v4097, 0
        %v4246 = vsel %vm1488, %v4104, 0
        %v4249 = vsel %vm1488, %v4111, 0
        %v4252 = vsel %vm1488, %v4118, 0
        %v4255 = vsel %vm1488, %v4125, 0
        %v4258 = vsel %vm1488, %v4132, 0
        %v4261 = vsel %vm1488, %v4139, 0
        %v4264 = vsel %vm1488, %v4146, 0
        %v4267 = vsel %vm1488, %v4153, 0
        %v4270 = vsel %vm1488, %v4160, 0
        %v4273 = vsel %vm1488, %v4167, 0
        %v4276 = vsel %vm1488, %v4174, 0
        %v4279 = vsel %vm1488, %v4181, 0
        %v4282 = vsel %vm1488, %v4188, 0
        %v4285 = vsel %vm1488, %v4195, 0
        %v4288 = vsel %vm1488, %v4202, 0
        %v4291 = vsel %vm1488, %v4209, 0
        %v4294 = vsel %vm1488, %v4216, 0
        %v4297 = vsel %vm1488, %v4223, 0
        %4299 = vmatpush.msra.mxu0 %v1230
        %4300 = vmatpush.msra.mxu0 %v1229
        %4301 = vmatpush.msra.mxu0 %v1228
        %4302 = vmatpush.msra.mxu0 %v1227
        %4303 = vmatpush.msra.mxu0 %v1226
        %4304 = vmatpush.msra.mxu0 %v1225
        %4305 = vmatpush.msra.mxu0 %v1224
        %4306 = vmatpush.msra.mxu0 %v1223
        %4307 = vmatpush.msra.mxu0 %v1222
        %4308 = vmatpush.msra.mxu0 %v1221
        %4309 = vmatpush.msra.mxu0 %v1220
        %4310 = vmatpush.msra.mxu0 %v1219
        %4311 = vmatpush.msra.mxu0 %v1218
        %4312 = vmatpush.msra.mxu0 %v1217
        %4313 = vmatpush.msra.mxu0 %v1216
        %4314 = vmatpush.msra.mxu0 %v1215
        %4315 = vmatmul.f32.gmra.mxu0 %v4049
        %v4316 = vpop.f32.mrf.mxu0
        %v4317 = vadd.f32 0.0, %v4316
        %4318 = vmatmul.f32.gmra.mxu0 %v4056
        %v4319 = vpop.f32.mrf.mxu0
        %v4320 = vadd.f32 0.0, %v4319
        %4321 = vmatmul.f32.gmra.mxu0 %v4063
        %v4322 = vpop.f32.mrf.mxu0
        %v4323 = vadd.f32 0.0, %v4322
        %4324 = vmatmul.f32.gmra.mxu0 %v4070
        %v4325 = vpop.f32.mrf.mxu0
        %v4326 = vadd.f32 0.0, %v4325
        %4327 = vmatmul.f32.gmra.mxu0 %v4077
        %v4328 = vpop.f32.mrf.mxu0
        %v4329 = vadd.f32 0.0, %v4328
        %4330 = vmatmul.f32.gmra.mxu0 %v4084
        %v4331 = vpop.f32.mrf.mxu0
        %v4332 = vadd.f32 0.0, %v4331
        %4333 = vmatmul.f32.gmra.mxu0 %v4091
        %v4334 = vpop.f32.mrf.mxu0
        %v4335 = vadd.f32 0.0, %v4334
        %4336 = vmatmul.f32.gmra.mxu0 %v4098
        %v4337 = vpop.f32.mrf.mxu0
        %v4338 = vadd.f32 0.0, %v4337
        %4339 = vmatmul.f32.gmra.mxu0 %v4105
        %v4340 = vpop.f32.mrf.mxu0
        %v4341 = vadd.f32 0.0, %v4340
        %4342 = vmatmul.f32.gmra.mxu0 %v4112
        %v4343 = vpop.f32.mrf.mxu0
        %v4344 = vadd.f32 0.0, %v4343
        %4345 = vmatmul.f32.gmra.mxu0 %v4119
        %v4346 = vpop.f32.mrf.mxu0
        %v4347 = vadd.f32 0.0, %v4346
        %4348 = vmatmul.f32.gmra.mxu0 %v4126
        %v4349 = vpop.f32.mrf.mxu0
        %v4350 = vadd.f32 0.0, %v4349
        %4351 = vmatmul.f32.gmra.mxu0 %v4133
        %v4352 = vpop.f32.mrf.mxu0
        %v4353 = vadd.f32 0.0, %v4352
        %4354 = vmatmul.f32.gmra.mxu0 %v4140
        %v4355 = vpop.f32.mrf.mxu0
        %v4356 = vadd.f32 0.0, %v4355
        %4357 = vmatmul.f32.gmra.mxu0 %v4147
        %v4358 = vpop.f32.mrf.mxu0
        %v4359 = vadd.f32 0.0, %v4358
        %4360 = vmatmul.f32.gmra.mxu0 %v4154
        %v4361 = vpop.f32.mrf.mxu0
        %v4362 = vadd.f32 0.0, %v4361
        %4363 = vmatmul.f32.gmra.mxu0 %v4161
        %v4364 = vpop.f32.mrf.mxu0
        %v4365 = vadd.f32 0.0, %v4364
        %4366 = vmatmul.f32.gmra.mxu0 %v4168
        %v4367 = vpop.f32.mrf.mxu0
        %v4368 = vadd.f32 0.0, %v4367
        %4369 = vmatmul.f32.gmra.mxu0 %v4175
        %v4370 = vpop.f32.mrf.mxu0
        %v4371 = vadd.f32 0.0, %v4370
        %4372 = vmatmul.f32.gmra.mxu0 %v4182
        %v4373 = vpop.f32.mrf.mxu0
        %v4374 = vadd.f32 0.0, %v4373
        %4375 = vmatmul.f32.gmra.mxu0 %v4189
        %v4376 = vpop.f32.mrf.mxu0
        %v4377 = vadd.f32 0.0, %v4376
        %4378 = vmatmul.f32.gmra.mxu0 %v4196
        %v4379 = vpop.f32.mrf.mxu0
        %v4380 = vadd.f32 0.0, %v4379
        %4381 = vmatmul.f32.gmra.mxu0 %v4203
        %v4382 = vpop.f32.mrf.mxu0
        %v4383 = vadd.f32 0.0, %v4382
        %4384 = vmatmul.f32.gmra.mxu0 %v4210
        %v4385 = vpop.f32.mrf.mxu0
        %v4386 = vadd.f32 0.0, %v4385
        %4387 = vmatmul.f32.gmra.mxu0 %v4217
        %v4388 = vpop.f32.mrf.mxu0
        %v4389 = vadd.f32 0.0, %v4388
        %4390 = vdwg.mxu0
        %4391 = vmatpush.msra.mxu0 %v1246
        %4392 = vmatpush.msra.mxu0 %v1245
        %4393 = vmatpush.msra.mxu0 %v1244
        %4394 = vmatpush.msra.mxu0 %v1243
        %4395 = vmatpush.msra.mxu0 %v1242
        %4396 = vmatpush.msra.mxu0 %v1241
        %4397 = vmatpush.msra.mxu0 %v1240
        %4398 = vmatpush.msra.mxu0 %v1239
        %4399 = vmatpush.msra.mxu0 %v1238
        %4400 = vmatpush.msra.mxu0 %v1237
        %4401 = vmatpush.msra.mxu0 %v1236
        %4402 = vmatpush.msra.mxu0 %v1235
        %4403 = vmatpush.msra.mxu0 %v1234
        %4404 = vmatpush.msra.mxu0 %v1233
        %4405 = vmatpush.msra.mxu0 %v1232
        %4406 = vmatpush.msra.mxu0 %v1231
        %4407 = vmatmul.f32.gmra.mxu0 %v4050
        %v4408 = vpop.f32.mrf.mxu0
        %v4409 = vadd.f32 %v4317, %v4408
        %4410 = vmatmul.f32.gmra.mxu0 %v4057
        %v4411 = vpop.f32.mrf.mxu0
        %v4412 = vadd.f32 %v4320, %v4411
        %4413 = vmatmul.f32.gmra.mxu0 %v4064
        %v4414 = vpop.f32.mrf.mxu0
        %v4415 = vadd.f32 %v4323, %v4414
        %4416 = vmatmul.f32.gmra.mxu0 %v4071
        %v4417 = vpop.f32.mrf.mxu0
        %v4418 = vadd.f32 %v4326, %v4417
        %4419 = vmatmul.f32.gmra.mxu0 %v4078
        %v4420 = vpop.f32.mrf.mxu0
        %v4421 = vadd.f32 %v4329, %v4420
        %4422 = vmatmul.f32.gmra.mxu0 %v4085
        %v4423 = vpop.f32.mrf.mxu0
        %v4424 = vadd.f32 %v4332, %v4423
        %4425 = vmatmul.f32.gmra.mxu0 %v4092
        %v4426 = vpop.f32.mrf.mxu0
        %v4427 = vadd.f32 %v4335, %v4426
        %4428 = vmatmul.f32.gmra.mxu0 %v4099
        %v4429 = vpop.f32.mrf.mxu0
        %v4430 = vadd.f32 %v4338, %v4429
        %4431 = vmatmul.f32.gmra.mxu0 %v4106
        %v4432 = vpop.f32.mrf.mxu0
        %v4433 = vadd.f32 %v4341, %v4432
        %4434 = vmatmul.f32.gmra.mxu0 %v4113
        %v4435 = vpop.f32.mrf.mxu0
        %v4436 = vadd.f32 %v4344, %v4435
        %4437 = vmatmul.f32.gmra.mxu0 %v4120
        %v4438 = vpop.f32.mrf.mxu0
        %v4439 = vadd.f32 %v4347, %v4438
        %4440 = vmatmul.f32.gmra.mxu0 %v4127
        %v4441 = vpop.f32.mrf.mxu0
        %v4442 = vadd.f32 %v4350, %v4441
        %4443 = vmatmul.f32.gmra.mxu0 %v4134
        %v4444 = vpop.f32.mrf.mxu0
        %v4445 = vadd.f32 %v4353, %v4444
        %4446 = vmatmul.f32.gmra.mxu0 %v4141
        %v4447 = vpop.f32.mrf.mxu0
        %v4448 = vadd.f32 %v4356, %v4447
        %4449 = vmatmul.f32.gmra.mxu0 %v4148
        %v4450 = vpop.f32.mrf.mxu0
        %v4451 = vadd.f32 %v4359, %v4450
        %4452 = vmatmul.f32.gmra.mxu0 %v4155
        %v4453 = vpop.f32.mrf.mxu0
        %v4454 = vadd.f32 %v4362, %v4453
        %4455 = vmatmul.f32.gmra.mxu0 %v4162
        %v4456 = vpop.f32.mrf.mxu0
        %v4457 = vadd.f32 %v4365, %v4456
        %4458 = vmatmul.f32.gmra.mxu0 %v4169
        %v4459 = vpop.f32.mrf.mxu0
        %v4460 = vadd.f32 %v4368, %v4459
        %4461 = vmatmul.f32.gmra.mxu0 %v4176
        %v4462 = vpop.f32.mrf.mxu0
        %v4463 = vadd.f32 %v4371, %v4462
        %4464 = vmatmul.f32.gmra.mxu0 %v4183
        %v4465 = vpop.f32.mrf.mxu0
        %v4466 = vadd.f32 %v4374, %v4465
        %4467 = vmatmul.f32.gmra.mxu0 %v4190
        %v4468 = vpop.f32.mrf.mxu0
        %v4469 = vadd.f32 %v4377, %v4468
        %4470 = vmatmul.f32.gmra.mxu0 %v4197
        %v4471 = vpop.f32.mrf.mxu0
        %v4472 = vadd.f32 %v4380, %v4471
        %4473 = vmatmul.f32.gmra.mxu0 %v4204
        %v4474 = vpop.f32.mrf.mxu0
        %v4475 = vadd.f32 %v4383, %v4474
        %4476 = vmatmul.f32.gmra.mxu0 %v4211
        %v4477 = vpop.f32.mrf.mxu0
        %v4478 = vadd.f32 %v4386, %v4477
        %4479 = vmatmul.f32.gmra.mxu0 %v4218
        %v4480 = vpop.f32.mrf.mxu0
        %v4481 = vadd.f32 %v4389, %v4480
        %4482 = vdwg.mxu0
        %4483 = vmatpush.msra.mxu0 %v1262
        %4484 = vmatpush.msra.mxu0 %v1261
        %4485 = vmatpush.msra.mxu0 %v1260
        %4486 = vmatpush.msra.mxu0 %v1259
        %4487 = vmatpush.msra.mxu0 %v1258
        %4488 = vmatpush.msra.mxu0 %v1257
        %4489 = vmatpush.msra.mxu0 %v1256
        %4490 = vmatpush.msra.mxu0 %v1255
        %4491 = vmatpush.msra.mxu0 %v1254
        %4492 = vmatpush.msra.mxu0 %v1253
        %4493 = vmatpush.msra.mxu0 %v1252
        %4494 = vmatpush.msra.mxu0 %v1251
        %4495 = vmatpush.msra.mxu0 %v1250
        %4496 = vmatpush.msra.mxu0 %v1249
        %4497 = vmatpush.msra.mxu0 %v1248
        %4498 = vmatpush.msra.mxu0 %v1247
        %4499 = vmatmul.f32.gmra.mxu0 %v4051
        %v4500 = vpop.f32.mrf.mxu0
        %v4501 = vadd.f32 %v4409, %v4500
        %4502 = vmatmul.f32.gmra.mxu0 %v4058
        %v4503 = vpop.f32.mrf.mxu0
        %v4504 = vadd.f32 %v4412, %v4503
        %4505 = vmatmul.f32.gmra.mxu0 %v4065
        %v4506 = vpop.f32.mrf.mxu0
        %v4507 = vadd.f32 %v4415, %v4506
        %4508 = vmatmul.f32.gmra.mxu0 %v4072
        %v4509 = vpop.f32.mrf.mxu0
        %v4510 = vadd.f32 %v4418, %v4509
        %4511 = vmatmul.f32.gmra.mxu0 %v4079
        %v4512 = vpop.f32.mrf.mxu0
        %v4513 = vadd.f32 %v4421, %v4512
        %4514 = vmatmul.f32.gmra.mxu0 %v4086
        %v4515 = vpop.f32.mrf.mxu0
        %v4516 = vadd.f32 %v4424, %v4515
        %4517 = vmatmul.f32.gmra.mxu0 %v4093
        %v4518 = vpop.f32.mrf.mxu0
        %v4519 = vadd.f32 %v4427, %v4518
        %4520 = vmatmul.f32.gmra.mxu0 %v4100
        %v4521 = vpop.f32.mrf.mxu0
        %v4522 = vadd.f32 %v4430, %v4521
        %4523 = vmatmul.f32.gmra.mxu0 %v4107
        %v4524 = vpop.f32.mrf.mxu0
        %v4525 = vadd.f32 %v4433, %v4524
        %4526 = vmatmul.f32.gmra.mxu0 %v4114
        %v4527 = vpop.f32.mrf.mxu0
        %v4528 = vadd.f32 %v4436, %v4527
        %4529 = vmatmul.f32.gmra.mxu0 %v4121
        %v4530 = vpop.f32.mrf.mxu0
        %v4531 = vadd.f32 %v4439, %v4530
        %4532 = vmatmul.f32.gmra.mxu0 %v4128
        %v4533 = vpop.f32.mrf.mxu0
        %v4534 = vadd.f32 %v4442, %v4533
        %4535 = vmatmul.f32.gmra.mxu0 %v4135
        %v4536 = vpop.f32.mrf.mxu0
        %v4537 = vadd.f32 %v4445, %v4536
        %4538 = vmatmul.f32.gmra.mxu0 %v4142
        %v4539 = vpop.f32.mrf.mxu0
        %v4540 = vadd.f32 %v4448, %v4539
        %4541 = vmatmul.f32.gmra.mxu0 %v4149
        %v4542 = vpop.f32.mrf.mxu0
        %v4543 = vadd.f32 %v4451, %v4542
        %4544 = vmatmul.f32.gmra.mxu0 %v4156
        %v4545 = vpop.f32.mrf.mxu0
        %v4546 = vadd.f32 %v4454, %v4545
        %4547 = vmatmul.f32.gmra.mxu0 %v4163
        %v4548 = vpop.f32.mrf.mxu0
        %v4549 = vadd.f32 %v4457, %v4548
        %4550 = vmatmul.f32.gmra.mxu0 %v4170
        %v4551 = vpop.f32.mrf.mxu0
        %v4552 = vadd.f32 %v4460, %v4551
        %4553 = vmatmul.f32.gmra.mxu0 %v4177
        %v4554 = vpop.f32.mrf.mxu0
        %v4555 = vadd.f32 %v4463, %v4554
        %4556 = vmatmul.f32.gmra.mxu0 %v4184
        %v4557 = vpop.f32.mrf.mxu0
        %v4558 = vadd.f32 %v4466, %v4557
        %4559 = vmatmul.f32.gmra.mxu0 %v4191
        %v4560 = vpop.f32.mrf.mxu0
        %v4561 = vadd.f32 %v4469, %v4560
        %4562 = vmatmul.f32.gmra.mxu0 %v4198
        %v4563 = vpop.f32.mrf.mxu0
        %v4564 = vadd.f32 %v4472, %v4563
        %4565 = vmatmul.f32.gmra.mxu0 %v4205
        %v4566 = vpop.f32.mrf.mxu0
        %v4567 = vadd.f32 %v4475, %v4566
        %4568 = vmatmul.f32.gmra.mxu0 %v4212
        %v4569 = vpop.f32.mrf.mxu0
        %v4570 = vadd.f32 %v4478, %v4569
        %4571 = vmatmul.f32.gmra.mxu0 %v4219
        %v4572 = vpop.f32.mrf.mxu0
        %v4573 = vadd.f32 %v4481, %v4572
        %4574 = vdwg.mxu0
        %4575 = vmatpush.msra.mxu0 %v1278
        %4576 = vmatpush.msra.mxu0 %v1277
        %4577 = vmatpush.msra.mxu0 %v1276
        %4578 = vmatpush.msra.mxu0 %v1275
        %4579 = vmatpush.msra.mxu0 %v1274
        %4580 = vmatpush.msra.mxu0 %v1273
        %4581 = vmatpush.msra.mxu0 %v1272
        %4582 = vmatpush.msra.mxu0 %v1271
        %4583 = vmatpush.msra.mxu0 %v1270
        %4584 = vmatpush.msra.mxu0 %v1269
        %4585 = vmatpush.msra.mxu0 %v1268
        %4586 = vmatpush.msra.mxu0 %v1267
        %4587 = vmatpush.msra.mxu0 %v1266
        %4588 = vmatpush.msra.mxu0 %v1265
        %4589 = vmatpush.msra.mxu0 %v1264
        %4590 = vmatpush.msra.mxu0 %v1263
        %4591 = vmatmul.f32.gmra.mxu0 %v4052
        %v4592 = vpop.f32.mrf.mxu0
        %v4593 = vadd.f32 %v4501, %v4592
        %4594 = vmatmul.f32.gmra.mxu0 %v4059
        %v4595 = vpop.f32.mrf.mxu0
        %v4596 = vadd.f32 %v4504, %v4595
        %4597 = vmatmul.f32.gmra.mxu0 %v4066
        %v4598 = vpop.f32.mrf.mxu0
        %v4599 = vadd.f32 %v4507, %v4598
        %4600 = vmatmul.f32.gmra.mxu0 %v4073
        %v4601 = vpop.f32.mrf.mxu0
        %v4602 = vadd.f32 %v4510, %v4601
        %4603 = vmatmul.f32.gmra.mxu0 %v4080
        %v4604 = vpop.f32.mrf.mxu0
        %v4605 = vadd.f32 %v4513, %v4604
        %4606 = vmatmul.f32.gmra.mxu0 %v4087
        %v4607 = vpop.f32.mrf.mxu0
        %v4608 = vadd.f32 %v4516, %v4607
        %4609 = vmatmul.f32.gmra.mxu0 %v4094
        %v4610 = vpop.f32.mrf.mxu0
        %v4611 = vadd.f32 %v4519, %v4610
        %4612 = vmatmul.f32.gmra.mxu0 %v4101
        %v4613 = vpop.f32.mrf.mxu0
        %v4614 = vadd.f32 %v4522, %v4613
        %4615 = vmatmul.f32.gmra.mxu0 %v4108
        %v4616 = vpop.f32.mrf.mxu0
        %v4617 = vadd.f32 %v4525, %v4616
        %4618 = vmatmul.f32.gmra.mxu0 %v4115
        %v4619 = vpop.f32.mrf.mxu0
        %v4620 = vadd.f32 %v4528, %v4619
        %4621 = vmatmul.f32.gmra.mxu0 %v4122
        %v4622 = vpop.f32.mrf.mxu0
        %v4623 = vadd.f32 %v4531, %v4622
        %4624 = vmatmul.f32.gmra.mxu0 %v4129
        %v4625 = vpop.f32.mrf.mxu0
        %v4626 = vadd.f32 %v4534, %v4625
        %4627 = vmatmul.f32.gmra.mxu0 %v4136
        %v4628 = vpop.f32.mrf.mxu0
        %v4629 = vadd.f32 %v4537, %v4628
        %4630 = vmatmul.f32.gmra.mxu0 %v4143
        %v4631 = vpop.f32.mrf.mxu0
        %v4632 = vadd.f32 %v4540, %v4631
        %4633 = vmatmul.f32.gmra.mxu0 %v4150
        %v4634 = vpop.f32.mrf.mxu0
        %v4635 = vadd.f32 %v4543, %v4634
        %4636 = vmatmul.f32.gmra.mxu0 %v4157
        %v4637 = vpop.f32.mrf.mxu0
        %v4638 = vadd.f32 %v4546, %v4637
        %4639 = vmatmul.f32.gmra.mxu0 %v4164
        %v4640 = vpop.f32.mrf.mxu0
        %v4641 = vadd.f32 %v4549, %v4640
        %4642 = vmatmul.f32.gmra.mxu0 %v4171
        %v4643 = vpop.f32.mrf.mxu0
        %v4644 = vadd.f32 %v4552, %v4643
        %4645 = vmatmul.f32.gmra.mxu0 %v4178
        %v4646 = vpop.f32.mrf.mxu0
        %v4647 = vadd.f32 %v4555, %v4646
        %4648 = vmatmul.f32.gmra.mxu0 %v4185
        %v4649 = vpop.f32.mrf.mxu0
        %v4650 = vadd.f32 %v4558, %v4649
        %4651 = vmatmul.f32.gmra.mxu0 %v4192
        %v4652 = vpop.f32.mrf.mxu0
        %v4653 = vadd.f32 %v4561, %v4652
        %4654 = vmatmul.f32.gmra.mxu0 %v4199
        %v4655 = vpop.f32.mrf.mxu0
        %v4656 = vadd.f32 %v4564, %v4655
        %4657 = vmatmul.f32.gmra.mxu0 %v4206
        %v4658 = vpop.f32.mrf.mxu0
        %v4659 = vadd.f32 %v4567, %v4658
        %4660 = vmatmul.f32.gmra.mxu0 %v4213
        %v4661 = vpop.f32.mrf.mxu0
        %v4662 = vadd.f32 %v4570, %v4661
        %4663 = vmatmul.f32.gmra.mxu0 %v4220
        %v4664 = vpop.f32.mrf.mxu0
        %v4665 = vadd.f32 %v4573, %v4664
        %4666 = vdwg.mxu0
        %4667 = vmatpush.msra.mxu0 %v1294
        %4668 = vmatpush.msra.mxu0 %v1293
        %4669 = vmatpush.msra.mxu0 %v1292
        %4670 = vmatpush.msra.mxu0 %v1291
        %4671 = vmatpush.msra.mxu0 %v1290
        %4672 = vmatpush.msra.mxu0 %v1289
        %4673 = vmatpush.msra.mxu0 %v1288
        %4674 = vmatpush.msra.mxu0 %v1287
        %4675 = vmatpush.msra.mxu0 %v1286
        %4676 = vmatpush.msra.mxu0 %v1285
        %4677 = vmatpush.msra.mxu0 %v1284
        %4678 = vmatpush.msra.mxu0 %v1283
        %4679 = vmatpush.msra.mxu0 %v1282
        %4680 = vmatpush.msra.mxu0 %v1281
        %4681 = vmatpush.msra.mxu0 %v1280
        %4682 = vmatpush.msra.mxu0 %v1279
        %4683 = vmatmul.f32.gmra.mxu0 %v4053
        %v4684 = vpop.f32.mrf.mxu0
        %v4685 = vadd.f32 %v4593, %v4684
        %4686 = vmatmul.f32.gmra.mxu0 %v4060
        %v4687 = vpop.f32.mrf.mxu0
        %v4688 = vadd.f32 %v4596, %v4687
        %4689 = vmatmul.f32.gmra.mxu0 %v4067
        %v4690 = vpop.f32.mrf.mxu0
        %v4691 = vadd.f32 %v4599, %v4690
        %4692 = vmatmul.f32.gmra.mxu0 %v4074
        %v4693 = vpop.f32.mrf.mxu0
        %v4694 = vadd.f32 %v4602, %v4693
        %4695 = vmatmul.f32.gmra.mxu0 %v4081
        %v4696 = vpop.f32.mrf.mxu0
        %v4697 = vadd.f32 %v4605, %v4696
        %4698 = vmatmul.f32.gmra.mxu0 %v4088
        %v4699 = vpop.f32.mrf.mxu0
        %v4700 = vadd.f32 %v4608, %v4699
        %4701 = vmatmul.f32.gmra.mxu0 %v4095
        %v4702 = vpop.f32.mrf.mxu0
        %v4703 = vadd.f32 %v4611, %v4702
        %4704 = vmatmul.f32.gmra.mxu0 %v4102
        %v4705 = vpop.f32.mrf.mxu0
        %v4706 = vadd.f32 %v4614, %v4705
        %4707 = vmatmul.f32.gmra.mxu0 %v4109
        %v4708 = vpop.f32.mrf.mxu0
        %v4709 = vadd.f32 %v4617, %v4708
        %4710 = vmatmul.f32.gmra.mxu0 %v4116
        %v4711 = vpop.f32.mrf.mxu0
        %v4712 = vadd.f32 %v4620, %v4711
        %4713 = vmatmul.f32.gmra.mxu0 %v4123
        %v4714 = vpop.f32.mrf.mxu0
        %v4715 = vadd.f32 %v4623, %v4714
        %4716 = vmatmul.f32.gmra.mxu0 %v4130
        %v4717 = vpop.f32.mrf.mxu0
        %v4718 = vadd.f32 %v4626, %v4717
        %4719 = vmatmul.f32.gmra.mxu0 %v4137
        %v4720 = vpop.f32.mrf.mxu0
        %v4721 = vadd.f32 %v4629, %v4720
        %4722 = vmatmul.f32.gmra.mxu0 %v4144
        %v4723 = vpop.f32.mrf.mxu0
        %v4724 = vadd.f32 %v4632, %v4723
        %4725 = vmatmul.f32.gmra.mxu0 %v4151
        %v4726 = vpop.f32.mrf.mxu0
        %v4727 = vadd.f32 %v4635, %v4726
        %4728 = vmatmul.f32.gmra.mxu0 %v4158
        %v4729 = vpop.f32.mrf.mxu0
        %v4730 = vadd.f32 %v4638, %v4729
        %4731 = vmatmul.f32.gmra.mxu0 %v4165
        %v4732 = vpop.f32.mrf.mxu0
        %v4733 = vadd.f32 %v4641, %v4732
        %4734 = vmatmul.f32.gmra.mxu0 %v4172
        %v4735 = vpop.f32.mrf.mxu0
        %v4736 = vadd.f32 %v4644, %v4735
        %4737 = vmatmul.f32.gmra.mxu0 %v4179
        %v4738 = vpop.f32.mrf.mxu0
        %v4739 = vadd.f32 %v4647, %v4738
        %4740 = vmatmul.f32.gmra.mxu0 %v4186
        %v4741 = vpop.f32.mrf.mxu0
        %v4742 = vadd.f32 %v4650, %v4741
        %4743 = vmatmul.f32.gmra.mxu0 %v4193
        %v4744 = vpop.f32.mrf.mxu0
        %v4745 = vadd.f32 %v4653, %v4744
        %4746 = vmatmul.f32.gmra.mxu0 %v4200
        %v4747 = vpop.f32.mrf.mxu0
        %v4748 = vadd.f32 %v4656, %v4747
        %4749 = vmatmul.f32.gmra.mxu0 %v4207
        %v4750 = vpop.f32.mrf.mxu0
        %v4751 = vadd.f32 %v4659, %v4750
        %4752 = vmatmul.f32.gmra.mxu0 %v4214
        %v4753 = vpop.f32.mrf.mxu0
        %v4754 = vadd.f32 %v4662, %v4753
        %4755 = vmatmul.f32.gmra.mxu0 %v4221
        %v4756 = vpop.f32.mrf.mxu0
        %v4757 = vadd.f32 %v4665, %v4756
        %4758 = vdwg.mxu0
        %4759 = vmatpush.msra.mxu0 %v1310
        %4760 = vmatpush.msra.mxu0 %v1309
        %4761 = vmatpush.msra.mxu0 %v1308
        %4762 = vmatpush.msra.mxu0 %v1307
        %4763 = vmatpush.msra.mxu0 %v1306
        %4764 = vmatpush.msra.mxu0 %v1305
        %4765 = vmatpush.msra.mxu0 %v1304
        %4766 = vmatpush.msra.mxu0 %v1303
        %4767 = vmatpush.msra.mxu0 %v1302
        %4768 = vmatpush.msra.mxu0 %v1301
        %4769 = vmatpush.msra.mxu0 %v1300
        %4770 = vmatpush.msra.mxu0 %v1299
        %4771 = vmatpush.msra.mxu0 %v1298
        %4772 = vmatpush.msra.mxu0 %v1297
        %4773 = vmatpush.msra.mxu0 %v1296
        %4774 = vmatpush.msra.mxu0 %v1295
        %4775 = vmatmul.f32.gmra.mxu0 %v4054
        %v4776 = vpop.f32.mrf.mxu0
        %v4777 = vadd.f32 %v4685, %v4776
        %4778 = vmatmul.f32.gmra.mxu0 %v4061
        %v4779 = vpop.f32.mrf.mxu0
        %v4780 = vadd.f32 %v4688, %v4779
        %4781 = vmatmul.f32.gmra.mxu0 %v4068
        %v4782 = vpop.f32.mrf.mxu0
        %v4783 = vadd.f32 %v4691, %v4782
        %4784 = vmatmul.f32.gmra.mxu0 %v4075
        %v4785 = vpop.f32.mrf.mxu0
        %v4786 = vadd.f32 %v4694, %v4785
        %4787 = vmatmul.f32.gmra.mxu0 %v4082
        %v4788 = vpop.f32.mrf.mxu0
        %v4789 = vadd.f32 %v4697, %v4788
        %4790 = vmatmul.f32.gmra.mxu0 %v4089
        %v4791 = vpop.f32.mrf.mxu0
        %v4792 = vadd.f32 %v4700, %v4791
        %4793 = vmatmul.f32.gmra.mxu0 %v4096
        %v4794 = vpop.f32.mrf.mxu0
        %v4795 = vadd.f32 %v4703, %v4794
        %4796 = vmatmul.f32.gmra.mxu0 %v4103
        %v4797 = vpop.f32.mrf.mxu0
        %v4798 = vadd.f32 %v4706, %v4797
        %4799 = vmatmul.f32.gmra.mxu0 %v4110
        %v4800 = vpop.f32.mrf.mxu0
        %v4801 = vadd.f32 %v4709, %v4800
        %4802 = vmatmul.f32.gmra.mxu0 %v4117
        %v4803 = vpop.f32.mrf.mxu0
        %v4804 = vadd.f32 %v4712, %v4803
        %4805 = vmatmul.f32.gmra.mxu0 %v4124
        %v4806 = vpop.f32.mrf.mxu0
        %v4807 = vadd.f32 %v4715, %v4806
        %4808 = vmatmul.f32.gmra.mxu0 %v4131
        %v4809 = vpop.f32.mrf.mxu0
        %v4810 = vadd.f32 %v4718, %v4809
        %4811 = vmatmul.f32.gmra.mxu0 %v4138
        %v4812 = vpop.f32.mrf.mxu0
        %v4813 = vadd.f32 %v4721, %v4812
        %4814 = vmatmul.f32.gmra.mxu0 %v4145
        %v4815 = vpop.f32.mrf.mxu0
        %v4816 = vadd.f32 %v4724, %v4815
        %4817 = vmatmul.f32.gmra.mxu0 %v4152
        %v4818 = vpop.f32.mrf.mxu0
        %v4819 = vadd.f32 %v4727, %v4818
        %4820 = vmatmul.f32.gmra.mxu0 %v4159
        %v4821 = vpop.f32.mrf.mxu0
        %v4822 = vadd.f32 %v4730, %v4821
        %4823 = vmatmul.f32.gmra.mxu0 %v4166
        %v4824 = vpop.f32.mrf.mxu0
        %v4825 = vadd.f32 %v4733, %v4824
        %4826 = vmatmul.f32.gmra.mxu0 %v4173
        %v4827 = vpop.f32.mrf.mxu0
        %v4828 = vadd.f32 %v4736, %v4827
        %4829 = vmatmul.f32.gmra.mxu0 %v4180
        %v4830 = vpop.f32.mrf.mxu0
        %v4831 = vadd.f32 %v4739, %v4830
        %4832 = vmatmul.f32.gmra.mxu0 %v4187
        %v4833 = vpop.f32.mrf.mxu0
        %v4834 = vadd.f32 %v4742, %v4833
        %4835 = vmatmul.f32.gmra.mxu0 %v4194
        %v4836 = vpop.f32.mrf.mxu0
        %v4837 = vadd.f32 %v4745, %v4836
        %4838 = vmatmul.f32.gmra.mxu0 %v4201
        %v4839 = vpop.f32.mrf.mxu0
        %v4840 = vadd.f32 %v4748, %v4839
        %4841 = vmatmul.f32.gmra.mxu0 %v4208
        %v4842 = vpop.f32.mrf.mxu0
        %v4843 = vadd.f32 %v4751, %v4842
        %4844 = vmatmul.f32.gmra.mxu0 %v4215
        %v4845 = vpop.f32.mrf.mxu0
        %v4846 = vadd.f32 %v4754, %v4845
        %4847 = vmatmul.f32.gmra.mxu0 %v4222
        %v4848 = vpop.f32.mrf.mxu0
        %v4849 = vadd.f32 %v4757, %v4848
        %4850 = vdwg.mxu0
        %4851 = vmatpush.msra.mxu0 0.0
        %4852 = vmatpush.msra.mxu0 0.0
        %4853 = vmatpush.msra.mxu0 0.0
        %4854 = vmatpush.msra.mxu0 0.0
        %4855 = vmatpush.msra.mxu0 0.0
        %4856 = vmatpush.msra.mxu0 0.0
        %4857 = vmatpush.msra.mxu0 0.0
        %4858 = vmatpush.msra.mxu0 0.0
        %4859 = vmatpush.msra.mxu0 0.0
        %4860 = vmatpush.msra.mxu0 0.0
        %4861 = vmatpush.msra.mxu0 0.0
        %4862 = vmatpush.msra.mxu0 0.0
        %4863 = vmatpush.msra.mxu0 0.0
        %4864 = vmatpush.msra.mxu0 0.0
        %4865 = vmatpush.msra.mxu0 %v1312
        %4866 = vmatpush.msra.mxu0 %v1311
        %4867 = vmatmul.f32.gmra.mxu0 %v4225
        %v4868 = vpop.f32.mrf.mxu0
        %v4869 = vadd.f32 %v4777, %v4868
        %4870 = vmatmul.f32.gmra.mxu0 %v4228
        %v4871 = vpop.f32.mrf.mxu0
        %v4872 = vadd.f32 %v4780, %v4871
        %4873 = vmatmul.f32.gmra.mxu0 %v4231
        %v4874 = vpop.f32.mrf.mxu0
        %v4875 = vadd.f32 %v4783, %v4874
        %4876 = vmatmul.f32.gmra.mxu0 %v4234
        %v4877 = vpop.f32.mrf.mxu0
        %v4878 = vadd.f32 %v4786, %v4877
        %4879 = vmatmul.f32.gmra.mxu0 %v4237
        %v4880 = vpop.f32.mrf.mxu0
        %v4881 = vadd.f32 %v4789, %v4880
        %4882 = vmatmul.f32.gmra.mxu0 %v4240
        %v4883 = vpop.f32.mrf.mxu0
        %v4884 = vadd.f32 %v4792, %v4883
        %4885 = vmatmul.f32.gmra.mxu0 %v4243
        %v4886 = vpop.f32.mrf.mxu0
        %v4887 = vadd.f32 %v4795, %v4886
        %4888 = vmatmul.f32.gmra.mxu0 %v4246
        %v4889 = vpop.f32.mrf.mxu0
        %v4890 = vadd.f32 %v4798, %v4889
        %4891 = vmatmul.f32.gmra.mxu0 %v4249
        %v4892 = vpop.f32.mrf.mxu0
        %v4893 = vadd.f32 %v4801, %v4892
        %4894 = vmatmul.f32.gmra.mxu0 %v4252
        %v4895 = vpop.f32.mrf.mxu0
        %v4896 = vadd.f32 %v4804, %v4895
        %4897 = vmatmul.f32.gmra.mxu0 %v4255
        %v4898 = vpop.f32.mrf.mxu0
        %v4899 = vadd.f32 %v4807, %v4898
        %4900 = vmatmul.f32.gmra.mxu0 %v4258
        %v4901 = vpop.f32.mrf.mxu0
        %v4902 = vadd.f32 %v4810, %v4901
        %4903 = vmatmul.f32.gmra.mxu0 %v4261
        %v4904 = vpop.f32.mrf.mxu0
        %v4905 = vadd.f32 %v4813, %v4904
        %4906 = vmatmul.f32.gmra.mxu0 %v4264
        %v4907 = vpop.f32.mrf.mxu0
        %v4908 = vadd.f32 %v4816, %v4907
        %4909 = vmatmul.f32.gmra.mxu0 %v4267
        %v4910 = vpop.f32.mrf.mxu0
        %v4911 = vadd.f32 %v4819, %v4910
        %4912 = vmatmul.f32.gmra.mxu0 %v4270
        %v4913 = vpop.f32.mrf.mxu0
        %v4914 = vadd.f32 %v4822, %v4913
        %4915 = vmatmul.f32.gmra.mxu0 %v4273
        %v4916 = vpop.f32.mrf.mxu0
        %v4917 = vadd.f32 %v4825, %v4916
        %4918 = vmatmul.f32.gmra.mxu0 %v4276
        %v4919 = vpop.f32.mrf.mxu0
        %v4920 = vadd.f32 %v4828, %v4919
        %4921 = vmatmul.f32.gmra.mxu0 %v4279
        %v4922 = vpop.f32.mrf.mxu0
        %v4923 = vadd.f32 %v4831, %v4922
        %4924 = vmatmul.f32.gmra.mxu0 %v4282
        %v4925 = vpop.f32.mrf.mxu0
        %v4926 = vadd.f32 %v4834, %v4925
        %4927 = vmatmul.f32.gmra.mxu0 %v4285
        %v4928 = vpop.f32.mrf.mxu0
        %v4929 = vadd.f32 %v4837, %v4928
        %4930 = vmatmul.f32.gmra.mxu0 %v4288
        %v4931 = vpop.f32.mrf.mxu0
        %v4932 = vadd.f32 %v4840, %v4931
        %4933 = vmatmul.f32.gmra.mxu0 %v4291
        %v4934 = vpop.f32.mrf.mxu0
        %v4935 = vadd.f32 %v4843, %v4934
        %4936 = vmatmul.f32.gmra.mxu0 %v4294
        %v4937 = vpop.f32.mrf.mxu0
        %v4938 = vadd.f32 %v4846, %v4937
        %4939 = vmatmul.f32.gmra.mxu0 %v4297
        %v4940 = vpop.f32.mrf.mxu0
        %v4941 = vadd.f32 %v4849, %v4940
        %4942 = vdwg.mxu0
        %v4943 = vmax.f32 %v4023, %v4869
        %v4944 = vmax.f32 %v4024, %v4872
        %v4945 = vmax.f32 %v4025, %v4875
        %v4946 = vmax.f32 %v4026, %v4878
        %v4947 = vmax.f32 %v4027, %v4881
        %v4948 = vmax.f32 %v4028, %v4884
        %v4949 = vmax.f32 %v4029, %v4887
        %v4950 = vmax.f32 %v4030, %v4890
        %v4951 = vmax.f32 %v4031, %v4893
        %v4952 = vmax.f32 %v4032, %v4896
        %v4953 = vmax.f32 %v4033, %v4899
        %v4954 = vmax.f32 %v4034, %v4902
        %v4955 = vmax.f32 %v4035, %v4905
        %v4956 = vmax.f32 %v4036, %v4908
        %v4957 = vmax.f32 %v4037, %v4911
        %v4958 = vmax.f32 %v4038, %v4914
        %v4959 = vmax.f32 %v4039, %v4917
        %v4960 = vmax.f32 %v4040, %v4920
        %v4961 = vmax.f32 %v4041, %v4923
        %v4962 = vmax.f32 %v4042, %v4926
        %v4963 = vmax.f32 %v4043, %v4929
        %v4964 = vmax.f32 %v4044, %v4932
        %v4965 = vmax.f32 %v4045, %v4935
        %v4966 = vmax.f32 %v4046, %v4938
        %v4967 = vmax.f32 %v4047, %v4941
        %v4968 = vld [vmem:[#allocation10] sm:$0xff]
        %v4969 = vld [vmem:[#allocation10 + $0x8] sm:$0xff]
        %v4970 = vld [vmem:[#allocation10 + $0x10] sm:$0xff]
        %v4971 = vld [vmem:[#allocation10 + $0x18] sm:$0xff]
        %v4972 = vld [vmem:[#allocation10 + $0x20] sm:$0xff]
        %v4973 = vld [vmem:[#allocation10 + $0x28] sm:$0xff]
        %v4974 = vld [vmem:[#allocation10 + $0x30] sm:$0xff]
        %v4975 = vld [vmem:[#allocation10 + $0x38] sm:$0xff]
        %v4976 = vld [vmem:[#allocation10 + $0x40] sm:$0xff]
        %v4977 = vld [vmem:[#allocation10 + $0x48] sm:$0xff]
        %v4978 = vld [vmem:[#allocation10 + $0x50] sm:$0xff]
        %v4979 = vld [vmem:[#allocation10 + $0x58] sm:$0xff]
        %v4980 = vld [vmem:[#allocation10 + $0x60] sm:$0xff]
        %v4981 = vld [vmem:[#allocation10 + $0x68] sm:$0xff]
        %v4982 = vld [vmem:[#allocation10 + $0x70] sm:$0xff]
        %v4983 = vld [vmem:[#allocation10 + $0x78] sm:$0xff]
        %v4984 = vld [vmem:[#allocation10 + $0x80] sm:$0xff]
        %v4985 = vld [vmem:[#allocation10 + $0x88] sm:$0xff]
        %v4986 = vld [vmem:[#allocation10 + $0x90] sm:$0xff]
        %v4987 = vld [vmem:[#allocation10 + $0x98] sm:$0xff]
        %v4988 = vld [vmem:[#allocation10 + $0xa0] sm:$0xff]
        %v4989 = vld [vmem:[#allocation10 + $0xa8] sm:$0xff]
        %v4990 = vld [vmem:[#allocation10 + $0xb0] sm:$0xff]
        %v4991 = vld [vmem:[#allocation10 + $0xb8] sm:$0xff]
        %v4992 = vld [vmem:[#allocation10 + $0xc0] sm:$0xff]
        %v4993 = vld [vmem:[#allocation10 + $0xc8] sm:$0xff]
        %v4994 = vld [vmem:[#allocation10 + $0xd0] sm:$0xff]
        %v4995 = vld [vmem:[#allocation10 + $0xd8] sm:$0xff]
        %v4996 = vld [vmem:[#allocation10 + $0xe0] sm:$0xff]
        %v4997 = vld [vmem:[#allocation10 + $0xe8] sm:$0xff]
        %v4998 = vld [vmem:[#allocation10 + $0xf0] sm:$0xff]
        %v4999 = vld [vmem:[#allocation10 + $0xf8] sm:$0xff]
        %v5000 = vld [vmem:[#allocation10 + $0x100] sm:$0xff]
        %v5001 = vld [vmem:[#allocation10 + $0x108] sm:$0xff]
        %v5002 = vld [vmem:[#allocation10 + $0x110] sm:$0xff]
        %v5003 = vld [vmem:[#allocation10 + $0x118] sm:$0xff]
        %v5004 = vld [vmem:[#allocation10 + $0x120] sm:$0xff]
        %v5005 = vld [vmem:[#allocation10 + $0x128] sm:$0xff]
        %v5006 = vld [vmem:[#allocation10 + $0x130] sm:$0xff]
        %v5007 = vld [vmem:[#allocation10 + $0x138] sm:$0xff]
        %v5008 = vld [vmem:[#allocation10 + $0x140] sm:$0xff]
        %v5009 = vld [vmem:[#allocation10 + $0x148] sm:$0xff]
        %v5010 = vld [vmem:[#allocation10 + $0x150] sm:$0xff]
        %v5011 = vld [vmem:[#allocation10 + $0x158] sm:$0xff]
        %v5012 = vld [vmem:[#allocation10 + $0x160] sm:$0xff]
        %v5013 = vld [vmem:[#allocation10 + $0x168] sm:$0xff]
        %v5014 = vld [vmem:[#allocation10 + $0x170] sm:$0xff]
        %v5015 = vld [vmem:[#allocation10 + $0x178] sm:$0xff]
        %v5016 = vld [vmem:[#allocation10 + $0x180] sm:$0xf]
        %v5017 = vld [vmem:[#allocation10 + $0x188] sm:$0xf]
        %vm5018 = vcmask 556032
        %v5020 = vsel %vm5018, %v4969, 0
        %v5023 = vsel %vm5018, %v4971, 0
        %v5026 = vsel %vm5018, %v4973, 0
        %v5029 = vsel %vm5018, %v4975, 0
        %v5032 = vsel %vm5018, %v4977, 0
        %v5035 = vsel %vm5018, %v4979, 0
        %v5038 = vsel %vm5018, %v4981, 0
        %v5041 = vsel %vm5018, %v4983, 0
        %v5044 = vsel %vm5018, %v4985, 0
        %v5047 = vsel %vm5018, %v4987, 0
        %v5050 = vsel %vm5018, %v4989, 0
        %v5053 = vsel %vm5018, %v4991, 0
        %v5056 = vsel %vm5018, %v4993, 0
        %v5059 = vsel %vm5018, %v4995, 0
        %v5062 = vsel %vm5018, %v4997, 0
        %v5065 = vsel %vm5018, %v4999, 0
        %v5068 = vsel %vm5018, %v5001, 0
        %v5071 = vsel %vm5018, %v5003, 0
        %v5074 = vsel %vm5018, %v5005, 0
        %v5077 = vsel %vm5018, %v5007, 0
        %v5080 = vsel %vm5018, %v5009, 0
        %v5083 = vsel %vm5018, %v5011, 0
        %v5086 = vsel %vm5018, %v5013, 0
        %v5089 = vsel %vm5018, %v5015, 0
        %v5092 = vsel %vm5018, %v5017, 0
        %vm5094 = vcmask 1043456
        %v5096 = vsel %vm5094, %v4967, 0
        %5098 = vmatpush.msra.mxu0 %v4958
        %5099 = vmatpush.msra.mxu0 %v4957
        %5100 = vmatpush.msra.mxu0 %v4956
        %5101 = vmatpush.msra.mxu0 %v4955
        %5102 = vmatpush.msra.mxu0 %v4954
        %5103 = vmatpush.msra.mxu0 %v4953
        %5104 = vmatpush.msra.mxu0 %v4952
        %5105 = vmatpush.msra.mxu0 %v4951
        %5106 = vmatpush.msra.mxu0 %v4950
        %5107 = vmatpush.msra.mxu0 %v4949
        %5108 = vmatpush.msra.mxu0 %v4948
        %5109 = vmatpush.msra.mxu0 %v4947
        %5110 = vmatpush.msra.mxu0 %v4946
        %5111 = vmatpush.msra.mxu0 %v4945
        %5112 = vmatpush.msra.mxu0 %v4944
        %5113 = vmatpush.msra.mxu0 %v4943
        %5114 = vmatmul.f32.gmra.mxu0 %v4968
        %v5115 = vpop.f32.mrf.mxu0
        %v5116 = vadd.f32 0.0, %v5115
        %5117 = vmatmul.f32.gmra.mxu0 %v4970
        %v5118 = vpop.f32.mrf.mxu0
        %v5119 = vadd.f32 0.0, %v5118
        %5120 = vmatmul.f32.gmra.mxu0 %v4972
        %v5121 = vpop.f32.mrf.mxu0
        %v5122 = vadd.f32 0.0, %v5121
        %5123 = vmatmul.f32.gmra.mxu0 %v4974
        %v5124 = vpop.f32.mrf.mxu0
        %v5125 = vadd.f32 0.0, %v5124
        %5126 = vmatmul.f32.gmra.mxu0 %v4976
        %v5127 = vpop.f32.mrf.mxu0
        %v5128 = vadd.f32 0.0, %v5127
        %5129 = vmatmul.f32.gmra.mxu0 %v4978
        %v5130 = vpop.f32.mrf.mxu0
        %v5131 = vadd.f32 0.0, %v5130
        %5132 = vmatmul.f32.gmra.mxu0 %v4980
        %v5133 = vpop.f32.mrf.mxu0
        %v5134 = vadd.f32 0.0, %v5133
        %5135 = vmatmul.f32.gmra.mxu0 %v4982
        %v5136 = vpop.f32.mrf.mxu0
        %v5137 = vadd.f32 0.0, %v5136
        %5138 = vmatmul.f32.gmra.mxu0 %v4984
        %v5139 = vpop.f32.mrf.mxu0
        %v5140 = vadd.f32 0.0, %v5139
        %5141 = vmatmul.f32.gmra.mxu0 %v4986
        %v5142 = vpop.f32.mrf.mxu0
        %v5143 = vadd.f32 0.0, %v5142
        %5144 = vmatmul.f32.gmra.mxu0 %v4988
        %v5145 = vpop.f32.mrf.mxu0
        %v5146 = vadd.f32 0.0, %v5145
        %5147 = vmatmul.f32.gmra.mxu0 %v4990
        %v5148 = vpop.f32.mrf.mxu0
        %v5149 = vadd.f32 0.0, %v5148
        %5150 = vmatmul.f32.gmra.mxu0 %v4992
        %v5151 = vpop.f32.mrf.mxu0
        %v5152 = vadd.f32 0.0, %v5151
        %5153 = vmatmul.f32.gmra.mxu0 %v4994
        %v5154 = vpop.f32.mrf.mxu0
        %v5155 = vadd.f32 0.0, %v5154
        %5156 = vmatmul.f32.gmra.mxu0 %v4996
        %v5157 = vpop.f32.mrf.mxu0
        %v5158 = vadd.f32 0.0, %v5157
        %5159 = vmatmul.f32.gmra.mxu0 %v4998
        %v5160 = vpop.f32.mrf.mxu0
        %v5161 = vadd.f32 0.0, %v5160
        %5162 = vmatmul.f32.gmra.mxu0 %v5000
        %v5163 = vpop.f32.mrf.mxu0
        %v5164 = vadd.f32 0.0, %v5163
        %5165 = vmatmul.f32.gmra.mxu0 %v5002
        %v5166 = vpop.f32.mrf.mxu0
        %v5167 = vadd.f32 0.0, %v5166
        %5168 = vmatmul.f32.gmra.mxu0 %v5004
        %v5169 = vpop.f32.mrf.mxu0
        %v5170 = vadd.f32 0.0, %v5169
        %5171 = vmatmul.f32.gmra.mxu0 %v5006
        %v5172 = vpop.f32.mrf.mxu0
        %v5173 = vadd.f32 0.0, %v5172
        %5174 = vmatmul.f32.gmra.mxu0 %v5008
        %v5175 = vpop.f32.mrf.mxu0
        %v5176 = vadd.f32 0.0, %v5175
        %5177 = vmatmul.f32.gmra.mxu0 %v5010
        %v5178 = vpop.f32.mrf.mxu0
        %v5179 = vadd.f32 0.0, %v5178
        %5180 = vmatmul.f32.gmra.mxu0 %v5012
        %v5181 = vpop.f32.mrf.mxu0
        %v5182 = vadd.f32 0.0, %v5181
        %5183 = vmatmul.f32.gmra.mxu0 %v5014
        %v5184 = vpop.f32.mrf.mxu0
        %v5185 = vadd.f32 0.0, %v5184
        %5186 = vmatmul.f32.gmra.mxu0 %v5016
        %v5187 = vpop.f32.mrf.mxu0
        %v5188 = vadd.f32 0.0, %v5187
        %5189 = vdwg.mxu0
        %5190 = vmatpush.msra.mxu0 0.0
        %5191 = vmatpush.msra.mxu0 0.0
        %5192 = vmatpush.msra.mxu0 0.0
        %5193 = vmatpush.msra.mxu0 0.0
        %5194 = vmatpush.msra.mxu0 0.0
        %5195 = vmatpush.msra.mxu0 0.0
        %5196 = vmatpush.msra.mxu0 0.0
        %5197 = vmatpush.msra.mxu0 %v5096
        %5198 = vmatpush.msra.mxu0 %v4966
        %5199 = vmatpush.msra.mxu0 %v4965
        %5200 = vmatpush.msra.mxu0 %v4964
        %5201 = vmatpush.msra.mxu0 %v4963
        %5202 = vmatpush.msra.mxu0 %v4962
        %5203 = vmatpush.msra.mxu0 %v4961
        %5204 = vmatpush.msra.mxu0 %v4960
        %5205 = vmatpush.msra.mxu0 %v4959
        %5206 = vmatmul.f32.gmra.mxu0 %v5020
        %v5207 = vpop.f32.mrf.mxu0
        %v5208 = vadd.f32 %v5116, %v5207
        %5209 = vmatmul.f32.gmra.mxu0 %v5023
        %v5210 = vpop.f32.mrf.mxu0
        %v5211 = vadd.f32 %v5119, %v5210
        %5212 = vmatmul.f32.gmra.mxu0 %v5026
        %v5213 = vpop.f32.mrf.mxu0
        %v5214 = vadd.f32 %v5122, %v5213
        %5215 = vmatmul.f32.gmra.mxu0 %v5029
        %v5216 = vpop.f32.mrf.mxu0
        %v5217 = vadd.f32 %v5125, %v5216
        %5218 = vmatmul.f32.gmra.mxu0 %v5032
        %v5219 = vpop.f32.mrf.mxu0
        %v5220 = vadd.f32 %v5128, %v5219
        %5221 = vmatmul.f32.gmra.mxu0 %v5035
        %v5222 = vpop.f32.mrf.mxu0
        %v5223 = vadd.f32 %v5131, %v5222
        %5224 = vmatmul.f32.gmra.mxu0 %v5038
        %v5225 = vpop.f32.mrf.mxu0
        %v5226 = vadd.f32 %v5134, %v5225
        %5227 = vmatmul.f32.gmra.mxu0 %v5041
        %v5228 = vpop.f32.mrf.mxu0
        %v5229 = vadd.f32 %v5137, %v5228
        %5230 = vmatmul.f32.gmra.mxu0 %v5044
        %v5231 = vpop.f32.mrf.mxu0
        %v5232 = vadd.f32 %v5140, %v5231
        %5233 = vmatmul.f32.gmra.mxu0 %v5047
        %v5234 = vpop.f32.mrf.mxu0
        %v5235 = vadd.f32 %v5143, %v5234
        %5236 = vmatmul.f32.gmra.mxu0 %v5050
        %v5237 = vpop.f32.mrf.mxu0
        %v5238 = vadd.f32 %v5146, %v5237
        %5239 = vmatmul.f32.gmra.mxu0 %v5053
        %v5240 = vpop.f32.mrf.mxu0
        %v5241 = vadd.f32 %v5149, %v5240
        %5242 = vmatmul.f32.gmra.mxu0 %v5056
        %v5243 = vpop.f32.mrf.mxu0
        %v5244 = vadd.f32 %v5152, %v5243
        %5245 = vmatmul.f32.gmra.mxu0 %v5059
        %v5246 = vpop.f32.mrf.mxu0
        %v5247 = vadd.f32 %v5155, %v5246
        %5248 = vmatmul.f32.gmra.mxu0 %v5062
        %v5249 = vpop.f32.mrf.mxu0
        %v5250 = vadd.f32 %v5158, %v5249
        %5251 = vmatmul.f32.gmra.mxu0 %v5065
        %v5252 = vpop.f32.mrf.mxu0
        %v5253 = vadd.f32 %v5161, %v5252
        %5254 = vmatmul.f32.gmra.mxu0 %v5068
        %v5255 = vpop.f32.mrf.mxu0
        %v5256 = vadd.f32 %v5164, %v5255
        %5257 = vmatmul.f32.gmra.mxu0 %v5071
        %v5258 = vpop.f32.mrf.mxu0
        %v5259 = vadd.f32 %v5167, %v5258
        %5260 = vmatmul.f32.gmra.mxu0 %v5074
        %v5261 = vpop.f32.mrf.mxu0
        %v5262 = vadd.f32 %v5170, %v5261
        %5263 = vmatmul.f32.gmra.mxu0 %v5077
        %v5264 = vpop.f32.mrf.mxu0
        %v5265 = vadd.f32 %v5173, %v5264
        %5266 = vmatmul.f32.gmra.mxu0 %v5080
        %v5267 = vpop.f32.mrf.mxu0
        %v5268 = vadd.f32 %v5176, %v5267
        %5269 = vmatmul.f32.gmra.mxu0 %v5083
        %v5270 = vpop.f32.mrf.mxu0
        %v5271 = vadd.f32 %v5179, %v5270
        %5272 = vmatmul.f32.gmra.mxu0 %v5086
        %v5273 = vpop.f32.mrf.mxu0
        %v5274 = vadd.f32 %v5182, %v5273
        %5275 = vmatmul.f32.gmra.mxu0 %v5089
        %v5276 = vpop.f32.mrf.mxu0
        %v5277 = vadd.f32 %v5185, %v5276
        %5278 = vmatmul.f32.gmra.mxu0 %v5092
        %v5279 = vpop.f32.mrf.mxu0
        %v5280 = vadd.f32 %v5188, %v5279
        %5281 = vdwg.mxu0
        %v5282 = vld [vmem:[#allocation7] sm:$0xff]
        %v5283 = vld [vmem:[#allocation7 + $0x8] sm:$0xff]
        %v5284 = vld [vmem:[#allocation7 + $0x10] sm:$0xff]
        %v5285 = vld [vmem:[#allocation7 + $0x18] sm:$0xff]
        %v5286 = vld [vmem:[#allocation7 + $0x20] sm:$0xff]
        %v5287 = vld [vmem:[#allocation7 + $0x28] sm:$0xff]
        %v5288 = vld [vmem:[#allocation7 + $0x30] sm:$0xff]
        %v5289 = vld [vmem:[#allocation7 + $0x38] sm:$0xff]
        %v5290 = vld [vmem:[#allocation7 + $0x40] sm:$0xff]
        %v5291 = vld [vmem:[#allocation7 + $0x48] sm:$0xff]
        %v5292 = vld [vmem:[#allocation7 + $0x50] sm:$0xff]
        %v5293 = vld [vmem:[#allocation7 + $0x58] sm:$0xff]
        %v5294 = vld [vmem:[#allocation7 + $0x60] sm:$0xff]
        %v5295 = vld [vmem:[#allocation7 + $0x68] sm:$0xff]
        %v5296 = vld [vmem:[#allocation7 + $0x70] sm:$0xff]
        %v5297 = vld [vmem:[#allocation7 + $0x78] sm:$0xff]
        %s5298 = scalar_lea.vmem [#allocation10], 400
        %v5299 = vld [vmem:[%s5298] sm:$0xff]
        %v5300 = vld [vmem:[%s5298 + $0x8] sm:$0xff]
        %v5301 = vld [vmem:[%s5298 + $0x10] sm:$0xff]
        %v5302 = vld [vmem:[%s5298 + $0x18] sm:$0xff]
        %v5303 = vld [vmem:[%s5298 + $0x20] sm:$0xff]
        %v5304 = vld [vmem:[%s5298 + $0x28] sm:$0xff]
        %v5305 = vld [vmem:[%s5298 + $0x30] sm:$0xff]
        %v5306 = vld [vmem:[%s5298 + $0x38] sm:$0xff]
        %v5307 = vld [vmem:[%s5298 + $0x40] sm:$0xff]
        %v5308 = vld [vmem:[%s5298 + $0x48] sm:$0xff]
        %v5309 = vld [vmem:[%s5298 + $0x50] sm:$0xff]
        %v5310 = vld [vmem:[%s5298 + $0x58] sm:$0xff]
        %v5311 = vld [vmem:[%s5298 + $0x60] sm:$0xff]
        %v5312 = vld [vmem:[%s5298 + $0x68] sm:$0xff]
        %v5313 = vld [vmem:[%s5298 + $0x70] sm:$0xff]
        %v5314 = vld [vmem:[%s5298 + $0x78] sm:$0xff]
        %v5315 = vld [vmem:[%s5298 + $0x80] sm:$0xff]
        %v5316 = vld [vmem:[%s5298 + $0x88] sm:$0xff]
        %v5317 = vld [vmem:[%s5298 + $0x90] sm:$0xff]
        %v5318 = vld [vmem:[%s5298 + $0x98] sm:$0xff]
        %v5319 = vld [vmem:[%s5298 + $0xa0] sm:$0xff]
        %v5320 = vld [vmem:[%s5298 + $0xa8] sm:$0xff]
        %v5321 = vld [vmem:[%s5298 + $0xb0] sm:$0xff]
        %v5322 = vld [vmem:[%s5298 + $0xb8] sm:$0xff]
        %v5323 = vld [vmem:[%s5298 + $0xc0] sm:$0xff]
        %v5324 = vld [vmem:[%s5298 + $0xc8] sm:$0xff]
        %v5325 = vld [vmem:[%s5298 + $0xd0] sm:$0xff]
        %v5326 = vld [vmem:[%s5298 + $0xd8] sm:$0xff]
        %v5327 = vld [vmem:[%s5298 + $0xe0] sm:$0xff]
        %v5328 = vld [vmem:[%s5298 + $0xe8] sm:$0xff]
        %v5329 = vld [vmem:[%s5298 + $0xf0] sm:$0xff]
        %v5330 = vld [vmem:[%s5298 + $0xf8] sm:$0xff]
        %v5331 = vld [vmem:[%s5298 + $0x100] sm:$0xff]
        %v5332 = vld [vmem:[%s5298 + $0x108] sm:$0xff]
        %v5333 = vld [vmem:[%s5298 + $0x110] sm:$0xff]
        %v5334 = vld [vmem:[%s5298 + $0x118] sm:$0xff]
        %v5335 = vld [vmem:[%s5298 + $0x120] sm:$0xff]
        %v5336 = vld [vmem:[%s5298 + $0x128] sm:$0xff]
        %v5337 = vld [vmem:[%s5298 + $0x130] sm:$0xff]
        %v5338 = vld [vmem:[%s5298 + $0x138] sm:$0xff]
        %v5339 = vld [vmem:[%s5298 + $0x140] sm:$0xff]
        %v5340 = vld [vmem:[%s5298 + $0x148] sm:$0xff]
        %v5341 = vld [vmem:[%s5298 + $0x150] sm:$0xff]
        %v5342 = vld [vmem:[%s5298 + $0x158] sm:$0xff]
        %v5343 = vld [vmem:[%s5298 + $0x160] sm:$0xff]
        %v5344 = vld [vmem:[%s5298 + $0x168] sm:$0xff]
        %v5345 = vld [vmem:[%s5298 + $0x170] sm:$0xff]
        %v5346 = vld [vmem:[%s5298 + $0x178] sm:$0xff]
        %v5347 = vld [vmem:[%s5298 + $0x180] sm:$0xf]
        %v5348 = vld [vmem:[%s5298 + $0x188] sm:$0xf]
        %v5350 = vsel %vm5018, %v5300, 0
        %v5353 = vsel %vm5018, %v5302, 0
        %v5356 = vsel %vm5018, %v5304, 0
        %v5359 = vsel %vm5018, %v5306, 0
        %v5362 = vsel %vm5018, %v5308, 0
        %v5365 = vsel %vm5018, %v5310, 0
        %v5368 = vsel %vm5018, %v5312, 0
        %v5371 = vsel %vm5018, %v5314, 0
        %v5374 = vsel %vm5018, %v5316, 0
        %v5377 = vsel %vm5018, %v5318, 0
        %v5380 = vsel %vm5018, %v5320, 0
        %v5383 = vsel %vm5018, %v5322, 0
        %v5386 = vsel %vm5018, %v5324, 0
        %v5389 = vsel %vm5018, %v5326, 0
        %v5392 = vsel %vm5018, %v5328, 0
        %v5395 = vsel %vm5018, %v5330, 0
        %v5398 = vsel %vm5018, %v5332, 0
        %v5401 = vsel %vm5018, %v5334, 0
        %v5404 = vsel %vm5018, %v5336, 0
        %v5407 = vsel %vm5018, %v5338, 0
        %v5410 = vsel %vm5018, %v5340, 0
        %v5413 = vsel %vm5018, %v5342, 0
        %v5416 = vsel %vm5018, %v5344, 0
        %v5419 = vsel %vm5018, %v5346, 0
        %v5422 = vsel %vm5018, %v5348, 0
        %5424 = vmatpush.msra.mxu0 %v4958
        %5425 = vmatpush.msra.mxu0 %v4957
        %5426 = vmatpush.msra.mxu0 %v4956
        %5427 = vmatpush.msra.mxu0 %v4955
        %5428 = vmatpush.msra.mxu0 %v4954
        %5429 = vmatpush.msra.mxu0 %v4953
        %5430 = vmatpush.msra.mxu0 %v4952
        %5431 = vmatpush.msra.mxu0 %v4951
        %5432 = vmatpush.msra.mxu0 %v4950
        %5433 = vmatpush.msra.mxu0 %v4949
        %5434 = vmatpush.msra.mxu0 %v4948
        %5435 = vmatpush.msra.mxu0 %v4947
        %5436 = vmatpush.msra.mxu0 %v4946
        %5437 = vmatpush.msra.mxu0 %v4945
        %5438 = vmatpush.msra.mxu0 %v4944
        %5439 = vmatpush.msra.mxu0 %v4943
        %5440 = vmatmul.f32.gmra.mxu0 %v5299
        %v5441 = vpop.f32.mrf.mxu0
        %v5442 = vadd.f32 0.0, %v5441
        %5443 = vmatmul.f32.gmra.mxu0 %v5301
        %v5444 = vpop.f32.mrf.mxu0
        %v5445 = vadd.f32 0.0, %v5444
        %5446 = vmatmul.f32.gmra.mxu0 %v5303
        %v5447 = vpop.f32.mrf.mxu0
        %v5448 = vadd.f32 0.0, %v5447
        %5449 = vmatmul.f32.gmra.mxu0 %v5305
        %v5450 = vpop.f32.mrf.mxu0
        %v5451 = vadd.f32 0.0, %v5450
        %5452 = vmatmul.f32.gmra.mxu0 %v5307
        %v5453 = vpop.f32.mrf.mxu0
        %v5454 = vadd.f32 0.0, %v5453
        %5455 = vmatmul.f32.gmra.mxu0 %v5309
        %v5456 = vpop.f32.mrf.mxu0
        %v5457 = vadd.f32 0.0, %v5456
        %5458 = vmatmul.f32.gmra.mxu0 %v5311
        %v5459 = vpop.f32.mrf.mxu0
        %v5460 = vadd.f32 0.0, %v5459
        %5461 = vmatmul.f32.gmra.mxu0 %v5313
        %v5462 = vpop.f32.mrf.mxu0
        %v5463 = vadd.f32 0.0, %v5462
        %5464 = vmatmul.f32.gmra.mxu0 %v5315
        %v5465 = vpop.f32.mrf.mxu0
        %v5466 = vadd.f32 0.0, %v5465
        %5467 = vmatmul.f32.gmra.mxu0 %v5317
        %v5468 = vpop.f32.mrf.mxu0
        %v5469 = vadd.f32 0.0, %v5468
        %5470 = vmatmul.f32.gmra.mxu0 %v5319
        %v5471 = vpop.f32.mrf.mxu0
        %v5472 = vadd.f32 0.0, %v5471
        %5473 = vmatmul.f32.gmra.mxu0 %v5321
        %v5474 = vpop.f32.mrf.mxu0
        %v5475 = vadd.f32 0.0, %v5474
        %5476 = vmatmul.f32.gmra.mxu0 %v5323
        %v5477 = vpop.f32.mrf.mxu0
        %v5478 = vadd.f32 0.0, %v5477
        %5479 = vmatmul.f32.gmra.mxu0 %v5325
        %v5480 = vpop.f32.mrf.mxu0
        %v5481 = vadd.f32 0.0, %v5480
        %5482 = vmatmul.f32.gmra.mxu0 %v5327
        %v5483 = vpop.f32.mrf.mxu0
        %v5484 = vadd.f32 0.0, %v5483
        %5485 = vmatmul.f32.gmra.mxu0 %v5329
        %v5486 = vpop.f32.mrf.mxu0
        %v5487 = vadd.f32 0.0, %v5486
        %5488 = vmatmul.f32.gmra.mxu0 %v5331
        %v5489 = vpop.f32.mrf.mxu0
        %v5490 = vadd.f32 0.0, %v5489
        %5491 = vmatmul.f32.gmra.mxu0 %v5333
        %v5492 = vpop.f32.mrf.mxu0
        %v5493 = vadd.f32 0.0, %v5492
        %5494 = vmatmul.f32.gmra.mxu0 %v5335
        %v5495 = vpop.f32.mrf.mxu0
        %v5496 = vadd.f32 0.0, %v5495
        %5497 = vmatmul.f32.gmra.mxu0 %v5337
        %v5498 = vpop.f32.mrf.mxu0
        %v5499 = vadd.f32 0.0, %v5498
        %5500 = vmatmul.f32.gmra.mxu0 %v5339
        %v5501 = vpop.f32.mrf.mxu0
        %v5502 = vadd.f32 0.0, %v5501
        %5503 = vmatmul.f32.gmra.mxu0 %v5341
        %v5504 = vpop.f32.mrf.mxu0
        %v5505 = vadd.f32 0.0, %v5504
        %5506 = vmatmul.f32.gmra.mxu0 %v5343
        %v5507 = vpop.f32.mrf.mxu0
        %v5508 = vadd.f32 0.0, %v5507
        %5509 = vmatmul.f32.gmra.mxu0 %v5345
        %v5510 = vpop.f32.mrf.mxu0
        %v5511 = vadd.f32 0.0, %v5510
        %5512 = vmatmul.f32.gmra.mxu0 %v5347
        %v5513 = vpop.f32.mrf.mxu0
        %v5514 = vadd.f32 0.0, %v5513
        %5515 = vdwg.mxu0
        %5516 = vmatpush.msra.mxu0 0.0
        %5517 = vmatpush.msra.mxu0 0.0
        %5518 = vmatpush.msra.mxu0 0.0
        %5519 = vmatpush.msra.mxu0 0.0
        %5520 = vmatpush.msra.mxu0 0.0
        %5521 = vmatpush.msra.mxu0 0.0
        %5522 = vmatpush.msra.mxu0 0.0
        %5523 = vmatpush.msra.mxu0 %v5096
        %5524 = vmatpush.msra.mxu0 %v4966
        %5525 = vmatpush.msra.mxu0 %v4965
        %5526 = vmatpush.msra.mxu0 %v4964
        %5527 = vmatpush.msra.mxu0 %v4963
        %5528 = vmatpush.msra.mxu0 %v4962
        %5529 = vmatpush.msra.mxu0 %v4961
        %5530 = vmatpush.msra.mxu0 %v4960
        %5531 = vmatpush.msra.mxu0 %v4959
        %5532 = vmatmul.f32.gmra.mxu0 %v5350
        %v5533 = vpop.f32.mrf.mxu0
        %v5534 = vadd.f32 %v5442, %v5533
        %5535 = vmatmul.f32.gmra.mxu0 %v5353
        %v5536 = vpop.f32.mrf.mxu0
        %v5537 = vadd.f32 %v5445, %v5536
        %5538 = vmatmul.f32.gmra.mxu0 %v5356
        %v5539 = vpop.f32.mrf.mxu0
        %v5540 = vadd.f32 %v5448, %v5539
        %5541 = vmatmul.f32.gmra.mxu0 %v5359
        %v5542 = vpop.f32.mrf.mxu0
        %v5543 = vadd.f32 %v5451, %v5542
        %5544 = vmatmul.f32.gmra.mxu0 %v5362
        %v5545 = vpop.f32.mrf.mxu0
        %v5546 = vadd.f32 %v5454, %v5545
        %5547 = vmatmul.f32.gmra.mxu0 %v5365
        %v5548 = vpop.f32.mrf.mxu0
        %v5549 = vadd.f32 %v5457, %v5548
        %5550 = vmatmul.f32.gmra.mxu0 %v5368
        %v5551 = vpop.f32.mrf.mxu0
        %v5552 = vadd.f32 %v5460, %v5551
        %5553 = vmatmul.f32.gmra.mxu0 %v5371
        %v5554 = vpop.f32.mrf.mxu0
        %v5555 = vadd.f32 %v5463, %v5554
        %5556 = vmatmul.f32.gmra.mxu0 %v5374
        %v5557 = vpop.f32.mrf.mxu0
        %v5558 = vadd.f32 %v5466, %v5557
        %5559 = vmatmul.f32.gmra.mxu0 %v5377
        %v5560 = vpop.f32.mrf.mxu0
        %v5561 = vadd.f32 %v5469, %v5560
        %5562 = vmatmul.f32.gmra.mxu0 %v5380
        %v5563 = vpop.f32.mrf.mxu0
        %v5564 = vadd.f32 %v5472, %v5563
        %5565 = vmatmul.f32.gmra.mxu0 %v5383
        %v5566 = vpop.f32.mrf.mxu0
        %v5567 = vadd.f32 %v5475, %v5566
        %5568 = vmatmul.f32.gmra.mxu0 %v5386
        %v5569 = vpop.f32.mrf.mxu0
        %v5570 = vadd.f32 %v5478, %v5569
        %5571 = vmatmul.f32.gmra.mxu0 %v5389
        %v5572 = vpop.f32.mrf.mxu0
        %v5573 = vadd.f32 %v5481, %v5572
        %5574 = vmatmul.f32.gmra.mxu0 %v5392
        %v5575 = vpop.f32.mrf.mxu0
        %v5576 = vadd.f32 %v5484, %v5575
        %5577 = vmatmul.f32.gmra.mxu0 %v5395
        %v5578 = vpop.f32.mrf.mxu0
        %v5579 = vadd.f32 %v5487, %v5578
        %5580 = vmatmul.f32.gmra.mxu0 %v5398
        %v5581 = vpop.f32.mrf.mxu0
        %v5582 = vadd.f32 %v5490, %v5581
        %5583 = vmatmul.f32.gmra.mxu0 %v5401
        %v5584 = vpop.f32.mrf.mxu0
        %v5585 = vadd.f32 %v5493, %v5584
        %5586 = vmatmul.f32.gmra.mxu0 %v5404
        %v5587 = vpop.f32.mrf.mxu0
        %v5588 = vadd.f32 %v5496, %v5587
        %5589 = vmatmul.f32.gmra.mxu0 %v5407
        %v5590 = vpop.f32.mrf.mxu0
        %v5591 = vadd.f32 %v5499, %v5590
        %5592 = vmatmul.f32.gmra.mxu0 %v5410
        %v5593 = vpop.f32.mrf.mxu0
        %v5594 = vadd.f32 %v5502, %v5593
        %5595 = vmatmul.f32.gmra.mxu0 %v5413
        %v5596 = vpop.f32.mrf.mxu0
        %v5597 = vadd.f32 %v5505, %v5596
        %5598 = vmatmul.f32.gmra.mxu0 %v5416
        %v5599 = vpop.f32.mrf.mxu0
        %v5600 = vadd.f32 %v5508, %v5599
        %5601 = vmatmul.f32.gmra.mxu0 %v5419
        %v5602 = vpop.f32.mrf.mxu0
        %v5603 = vadd.f32 %v5511, %v5602
        %5604 = vmatmul.f32.gmra.mxu0 %v5422
        %v5605 = vpop.f32.mrf.mxu0
        %v5606 = vadd.f32 %v5514, %v5605
        %5607 = vdwg.mxu0
        %s5608 = scalar_lea.vmem [#allocation7], 128
        %v5609 = vld [vmem:[%s5608] sm:$0xff]
        %v5610 = vld [vmem:[%s5608 + $0x8] sm:$0xff]
        %v5611 = vld [vmem:[%s5608 + $0x10] sm:$0xff]
        %v5612 = vld [vmem:[%s5608 + $0x18] sm:$0xff]
        %v5613 = vld [vmem:[%s5608 + $0x20] sm:$0xff]
        %v5614 = vld [vmem:[%s5608 + $0x28] sm:$0xff]
        %v5615 = vld [vmem:[%s5608 + $0x30] sm:$0xff]
        %v5616 = vld [vmem:[%s5608 + $0x38] sm:$0xff]
        %v5617 = vld [vmem:[%s5608 + $0x40] sm:$0xff]
        %v5618 = vld [vmem:[%s5608 + $0x48] sm:$0xff]
        %v5619 = vld [vmem:[%s5608 + $0x50] sm:$0xff]
        %v5620 = vld [vmem:[%s5608 + $0x58] sm:$0xff]
        %v5621 = vld [vmem:[%s5608 + $0x60] sm:$0xff]
        %v5622 = vld [vmem:[%s5608 + $0x68] sm:$0xff]
        %v5623 = vld [vmem:[%s5608 + $0x70] sm:$0xff]
        %v5624 = vld [vmem:[%s5608 + $0x78] sm:$0xff]
        %5625 = vmatpush.msra.mxu0 %v5624
        %5626 = vmatpush.msra.mxu0 %v5623
        %5627 = vmatpush.msra.mxu0 %v5622
        %5628 = vmatpush.msra.mxu0 %v5621
        %5629 = vmatpush.msra.mxu0 %v5620
        %5630 = vmatpush.msra.mxu0 %v5619
        %5631 = vmatpush.msra.mxu0 %v5618
        %5632 = vmatpush.msra.mxu0 %v5617
        %5633 = vmatpush.msra.mxu0 %v5616
        %5634 = vmatpush.msra.mxu0 %v5615
        %5635 = vmatpush.msra.mxu0 %v5614
        %5636 = vmatpush.msra.mxu0 %v5613
        %5637 = vmatpush.msra.mxu0 %v5612
        %5638 = vmatpush.msra.mxu0 %v5611
        %5639 = vmatpush.msra.mxu0 %v5610
        %5640 = vmatpush.msra.mxu0 %v5609
        %5641 = vmatmul.f32.gmra.mxu0 %v5534
        %v5642 = vpop.f32.mrf.mxu0
        %v5643 = vadd.f32 0.0, %v5642
        %5644 = vmatmul.f32.gmra.mxu0 %v5537
        %v5645 = vpop.f32.mrf.mxu0
        %v5646 = vadd.f32 0.0, %v5645
        %5647 = vmatmul.f32.gmra.mxu0 %v5540
        %v5648 = vpop.f32.mrf.mxu0
        %v5649 = vadd.f32 0.0, %v5648
        %5650 = vmatmul.f32.gmra.mxu0 %v5543
        %v5651 = vpop.f32.mrf.mxu0
        %v5652 = vadd.f32 0.0, %v5651
        %5653 = vmatmul.f32.gmra.mxu0 %v5546
        %v5654 = vpop.f32.mrf.mxu0
        %v5655 = vadd.f32 0.0, %v5654
        %5656 = vmatmul.f32.gmra.mxu0 %v5549
        %v5657 = vpop.f32.mrf.mxu0
        %v5658 = vadd.f32 0.0, %v5657
        %5659 = vmatmul.f32.gmra.mxu0 %v5552
        %v5660 = vpop.f32.mrf.mxu0
        %v5661 = vadd.f32 0.0, %v5660
        %5662 = vmatmul.f32.gmra.mxu0 %v5555
        %v5663 = vpop.f32.mrf.mxu0
        %v5664 = vadd.f32 0.0, %v5663
        %5665 = vmatmul.f32.gmra.mxu0 %v5558
        %v5666 = vpop.f32.mrf.mxu0
        %v5667 = vadd.f32 0.0, %v5666
        %5668 = vmatmul.f32.gmra.mxu0 %v5561
        %v5669 = vpop.f32.mrf.mxu0
        %v5670 = vadd.f32 0.0, %v5669
        %5671 = vmatmul.f32.gmra.mxu0 %v5564
        %v5672 = vpop.f32.mrf.mxu0
        %v5673 = vadd.f32 0.0, %v5672
        %5674 = vmatmul.f32.gmra.mxu0 %v5567
        %v5675 = vpop.f32.mrf.mxu0
        %v5676 = vadd.f32 0.0, %v5675
        %5677 = vmatmul.f32.gmra.mxu0 %v5570
        %v5678 = vpop.f32.mrf.mxu0
        %v5679 = vadd.f32 0.0, %v5678
        %5680 = vmatmul.f32.gmra.mxu0 %v5573
        %v5681 = vpop.f32.mrf.mxu0
        %v5682 = vadd.f32 0.0, %v5681
        %5683 = vmatmul.f32.gmra.mxu0 %v5576
        %v5684 = vpop.f32.mrf.mxu0
        %v5685 = vadd.f32 0.0, %v5684
        %5686 = vmatmul.f32.gmra.mxu0 %v5579
        %v5687 = vpop.f32.mrf.mxu0
        %v5688 = vadd.f32 0.0, %v5687
        %5689 = vmatmul.f32.gmra.mxu0 %v5582
        %v5690 = vpop.f32.mrf.mxu0
        %v5691 = vadd.f32 0.0, %v5690
        %5692 = vmatmul.f32.gmra.mxu0 %v5585
        %v5693 = vpop.f32.mrf.mxu0
        %v5694 = vadd.f32 0.0, %v5693
        %5695 = vmatmul.f32.gmra.mxu0 %v5588
        %v5696 = vpop.f32.mrf.mxu0
        %v5697 = vadd.f32 0.0, %v5696
        %5698 = vmatmul.f32.gmra.mxu0 %v5591
        %v5699 = vpop.f32.mrf.mxu0
        %v5700 = vadd.f32 0.0, %v5699
        %5701 = vmatmul.f32.gmra.mxu0 %v5594
        %v5702 = vpop.f32.mrf.mxu0
        %v5703 = vadd.f32 0.0, %v5702
        %5704 = vmatmul.f32.gmra.mxu0 %v5597
        %v5705 = vpop.f32.mrf.mxu0
        %v5706 = vadd.f32 0.0, %v5705
        %5707 = vmatmul.f32.gmra.mxu0 %v5600
        %v5708 = vpop.f32.mrf.mxu0
        %v5709 = vadd.f32 0.0, %v5708
        %5710 = vmatmul.f32.gmra.mxu0 %v5603
        %v5711 = vpop.f32.mrf.mxu0
        %v5712 = vadd.f32 0.0, %v5711
        %5713 = vmatmul.f32.gmra.mxu0 %v5606
        %v5714 = vpop.f32.mrf.mxu0
        %v5715 = vadd.f32 0.0, %v5714
        %5716 = vdwg.mxu0
        %5717 = vmatpush.msra.mxu0 %v5297
        %5718 = vmatpush.msra.mxu0 %v5296
        %5719 = vmatpush.msra.mxu0 %v5295
        %5720 = vmatpush.msra.mxu0 %v5294
        %5721 = vmatpush.msra.mxu0 %v5293
        %5722 = vmatpush.msra.mxu0 %v5292
        %5723 = vmatpush.msra.mxu0 %v5291
        %5724 = vmatpush.msra.mxu0 %v5290
        %5725 = vmatpush.msra.mxu0 %v5289
        %5726 = vmatpush.msra.mxu0 %v5288
        %5727 = vmatpush.msra.mxu0 %v5287
        %5728 = vmatpush.msra.mxu0 %v5286
        %5729 = vmatpush.msra.mxu0 %v5285
        %5730 = vmatpush.msra.mxu0 %v5284
        %5731 = vmatpush.msra.mxu0 %v5283
        %5732 = vmatpush.msra.mxu0 %v5282
        %5733 = vmatmul.f32.gmra.mxu0 %v5208
        %v5734 = vpop.f32.mrf.mxu0
        %v5735 = vadd.f32 %v5643, %v5734
        %5736 = vmatmul.f32.gmra.mxu0 %v5211
        %v5737 = vpop.f32.mrf.mxu0
        %v5738 = vadd.f32 %v5646, %v5737
        %5739 = vmatmul.f32.gmra.mxu0 %v5214
        %v5740 = vpop.f32.mrf.mxu0
        %v5741 = vadd.f32 %v5649, %v5740
        %5742 = vmatmul.f32.gmra.mxu0 %v5217
        %v5743 = vpop.f32.mrf.mxu0
        %v5744 = vadd.f32 %v5652, %v5743
        %5745 = vmatmul.f32.gmra.mxu0 %v5220
        %v5746 = vpop.f32.mrf.mxu0
        %v5747 = vadd.f32 %v5655, %v5746
        %5748 = vmatmul.f32.gmra.mxu0 %v5223
        %v5749 = vpop.f32.mrf.mxu0
        %v5750 = vadd.f32 %v5658, %v5749
        %5751 = vmatmul.f32.gmra.mxu0 %v5226
        %v5752 = vpop.f32.mrf.mxu0
        %v5753 = vadd.f32 %v5661, %v5752
        %5754 = vmatmul.f32.gmra.mxu0 %v5229
        %v5755 = vpop.f32.mrf.mxu0
        %v5756 = vadd.f32 %v5664, %v5755
        %5757 = vmatmul.f32.gmra.mxu0 %v5232
        %v5758 = vpop.f32.mrf.mxu0
        %v5759 = vadd.f32 %v5667, %v5758
        %5760 = vmatmul.f32.gmra.mxu0 %v5235
        %v5761 = vpop.f32.mrf.mxu0
        %v5762 = vadd.f32 %v5670, %v5761
        %5763 = vmatmul.f32.gmra.mxu0 %v5238
        %v5764 = vpop.f32.mrf.mxu0
        %v5765 = vadd.f32 %v5673, %v5764
        %5766 = vmatmul.f32.gmra.mxu0 %v5241
        %v5767 = vpop.f32.mrf.mxu0
        %v5768 = vadd.f32 %v5676, %v5767
        %5769 = vmatmul.f32.gmra.mxu0 %v5244
        %v5770 = vpop.f32.mrf.mxu0
        %v5771 = vadd.f32 %v5679, %v5770
        %5772 = vmatmul.f32.gmra.mxu0 %v5247
        %v5773 = vpop.f32.mrf.mxu0
        %v5774 = vadd.f32 %v5682, %v5773
        %5775 = vmatmul.f32.gmra.mxu0 %v5250
        %v5776 = vpop.f32.mrf.mxu0
        %v5777 = vadd.f32 %v5685, %v5776
        %5778 = vmatmul.f32.gmra.mxu0 %v5253
        %v5779 = vpop.f32.mrf.mxu0
        %v5780 = vadd.f32 %v5688, %v5779
        %5781 = vmatmul.f32.gmra.mxu0 %v5256
        %v5782 = vpop.f32.mrf.mxu0
        %v5783 = vadd.f32 %v5691, %v5782
        %5784 = vmatmul.f32.gmra.mxu0 %v5259
        %v5785 = vpop.f32.mrf.mxu0
        %v5786 = vadd.f32 %v5694, %v5785
        %5787 = vmatmul.f32.gmra.mxu0 %v5262
        %v5788 = vpop.f32.mrf.mxu0
        %v5789 = vadd.f32 %v5697, %v5788
        %5790 = vmatmul.f32.gmra.mxu0 %v5265
        %v5791 = vpop.f32.mrf.mxu0
        %v5792 = vadd.f32 %v5700, %v5791
        %5793 = vmatmul.f32.gmra.mxu0 %v5268
        %v5794 = vpop.f32.mrf.mxu0
        %v5795 = vadd.f32 %v5703, %v5794
        %5796 = vmatmul.f32.gmra.mxu0 %v5271
        %v5797 = vpop.f32.mrf.mxu0
        %v5798 = vadd.f32 %v5706, %v5797
        %5799 = vmatmul.f32.gmra.mxu0 %v5274
        %v5800 = vpop.f32.mrf.mxu0
        %v5801 = vadd.f32 %v5709, %v5800
        %5802 = vmatmul.f32.gmra.mxu0 %v5277
        %v5803 = vpop.f32.mrf.mxu0
        %v5804 = vadd.f32 %v5712, %v5803
        %5805 = vmatmul.f32.gmra.mxu0 %v5280
        %v5806 = vpop.f32.mrf.mxu0
        %v5807 = vadd.f32 %v5715, %v5806
        %5808 = vdwg.mxu0
        %s5809 = scalar_lea.vmem [#allocation10], 800
        %v5810 = vld [vmem:[%s5809] sm:$0xff]
        %v5811 = vld [vmem:[%s5809 + $0x8] sm:$0xff]
        %v5812 = vld [vmem:[%s5809 + $0x10] sm:$0xff]
        %v5813 = vld [vmem:[%s5809 + $0x18] sm:$0xff]
        %v5814 = vld [vmem:[%s5809 + $0x20] sm:$0xff]
        %v5815 = vld [vmem:[%s5809 + $0x28] sm:$0xff]
        %v5816 = vld [vmem:[%s5809 + $0x30] sm:$0xff]
        %v5817 = vld [vmem:[%s5809 + $0x38] sm:$0xff]
        %v5818 = vld [vmem:[%s5809 + $0x40] sm:$0xff]
        %v5819 = vld [vmem:[%s5809 + $0x48] sm:$0xff]
        %v5820 = vld [vmem:[%s5809 + $0x50] sm:$0xff]
        %v5821 = vld [vmem:[%s5809 + $0x58] sm:$0xff]
        %v5822 = vld [vmem:[%s5809 + $0x60] sm:$0xff]
        %v5823 = vld [vmem:[%s5809 + $0x68] sm:$0xff]
        %v5824 = vld [vmem:[%s5809 + $0x70] sm:$0xff]
        %v5825 = vld [vmem:[%s5809 + $0x78] sm:$0xff]
        %v5826 = vld [vmem:[%s5809 + $0x80] sm:$0xff]
        %v5827 = vld [vmem:[%s5809 + $0x88] sm:$0xff]
        %v5828 = vld [vmem:[%s5809 + $0x90] sm:$0xff]
        %v5829 = vld [vmem:[%s5809 + $0x98] sm:$0xff]
        %v5830 = vld [vmem:[%s5809 + $0xa0] sm:$0xff]
        %v5831 = vld [vmem:[%s5809 + $0xa8] sm:$0xff]
        %v5832 = vld [vmem:[%s5809 + $0xb0] sm:$0xff]
        %v5833 = vld [vmem:[%s5809 + $0xb8] sm:$0xff]
        %v5834 = vld [vmem:[%s5809 + $0xc0] sm:$0xff]
        %v5835 = vld [vmem:[%s5809 + $0xc8] sm:$0xff]
        %v5836 = vld [vmem:[%s5809 + $0xd0] sm:$0xff]
        %v5837 = vld [vmem:[%s5809 + $0xd8] sm:$0xff]
        %v5838 = vld [vmem:[%s5809 + $0xe0] sm:$0xff]
        %v5839 = vld [vmem:[%s5809 + $0xe8] sm:$0xff]
        %v5840 = vld [vmem:[%s5809 + $0xf0] sm:$0xff]
        %v5841 = vld [vmem:[%s5809 + $0xf8] sm:$0xff]
        %v5842 = vld [vmem:[%s5809 + $0x100] sm:$0xff]
        %v5843 = vld [vmem:[%s5809 + $0x108] sm:$0xff]
        %v5844 = vld [vmem:[%s5809 + $0x110] sm:$0xff]
        %v5845 = vld [vmem:[%s5809 + $0x118] sm:$0xff]
        %v5846 = vld [vmem:[%s5809 + $0x120] sm:$0xff]
        %v5847 = vld [vmem:[%s5809 + $0x128] sm:$0xff]
        %v5848 = vld [vmem:[%s5809 + $0x130] sm:$0xff]
        %v5849 = vld [vmem:[%s5809 + $0x138] sm:$0xff]
        %v5850 = vld [vmem:[%s5809 + $0x140] sm:$0xff]
        %v5851 = vld [vmem:[%s5809 + $0x148] sm:$0xff]
        %v5852 = vld [vmem:[%s5809 + $0x150] sm:$0xff]
        %v5853 = vld [vmem:[%s5809 + $0x158] sm:$0xff]
        %v5854 = vld [vmem:[%s5809 + $0x160] sm:$0xff]
        %v5855 = vld [vmem:[%s5809 + $0x168] sm:$0xff]
        %v5856 = vld [vmem:[%s5809 + $0x170] sm:$0xff]
        %v5857 = vld [vmem:[%s5809 + $0x178] sm:$0xff]
        %v5858 = vld [vmem:[%s5809 + $0x180] sm:$0xf]
        %v5859 = vld [vmem:[%s5809 + $0x188] sm:$0xf]
        %v5861 = vsel %vm5018, %v5811, 0
        %v5864 = vsel %vm5018, %v5813, 0
        %v5867 = vsel %vm5018, %v5815, 0
        %v5870 = vsel %vm5018, %v5817, 0
        %v5873 = vsel %vm5018, %v5819, 0
        %v5876 = vsel %vm5018, %v5821, 0
        %v5879 = vsel %vm5018, %v5823, 0
        %v5882 = vsel %vm5018, %v5825, 0
        %v5885 = vsel %vm5018, %v5827, 0
        %v5888 = vsel %vm5018, %v5829, 0
        %v5891 = vsel %vm5018, %v5831, 0
        %v5894 = vsel %vm5018, %v5833, 0
        %v5897 = vsel %vm5018, %v5835, 0
        %v5900 = vsel %vm5018, %v5837, 0
        %v5903 = vsel %vm5018, %v5839, 0
        %v5906 = vsel %vm5018, %v5841, 0
        %v5909 = vsel %vm5018, %v5843, 0
        %v5912 = vsel %vm5018, %v5845, 0
        %v5915 = vsel %vm5018, %v5847, 0
        %v5918 = vsel %vm5018, %v5849, 0
        %v5921 = vsel %vm5018, %v5851, 0
        %v5924 = vsel %vm5018, %v5853, 0
        %v5927 = vsel %vm5018, %v5855, 0
        %v5930 = vsel %vm5018, %v5857, 0
        %v5933 = vsel %vm5018, %v5859, 0
        %5935 = vmatpush.msra.mxu0 %v4958
        %5936 = vmatpush.msra.mxu0 %v4957
        %5937 = vmatpush.msra.mxu0 %v4956
        %5938 = vmatpush.msra.mxu0 %v4955
        %5939 = vmatpush.msra.mxu0 %v4954
        %5940 = vmatpush.msra.mxu0 %v4953
        %5941 = vmatpush.msra.mxu0 %v4952
        %5942 = vmatpush.msra.mxu0 %v4951
        %5943 = vmatpush.msra.mxu0 %v4950
        %5944 = vmatpush.msra.mxu0 %v4949
        %5945 = vmatpush.msra.mxu0 %v4948
        %5946 = vmatpush.msra.mxu0 %v4947
        %5947 = vmatpush.msra.mxu0 %v4946
        %5948 = vmatpush.msra.mxu0 %v4945
        %5949 = vmatpush.msra.mxu0 %v4944
        %5950 = vmatpush.msra.mxu0 %v4943
        %5951 = vmatmul.f32.gmra.mxu0 %v5810
        %v5952 = vpop.f32.mrf.mxu0
        %v5953 = vadd.f32 0.0, %v5952
        %5954 = vmatmul.f32.gmra.mxu0 %v5812
        %v5955 = vpop.f32.mrf.mxu0
        %v5956 = vadd.f32 0.0, %v5955
        %5957 = vmatmul.f32.gmra.mxu0 %v5814
        %v5958 = vpop.f32.mrf.mxu0
        %v5959 = vadd.f32 0.0, %v5958
        %5960 = vmatmul.f32.gmra.mxu0 %v5816
        %v5961 = vpop.f32.mrf.mxu0
        %v5962 = vadd.f32 0.0, %v5961
        %5963 = vmatmul.f32.gmra.mxu0 %v5818
        %v5964 = vpop.f32.mrf.mxu0
        %v5965 = vadd.f32 0.0, %v5964
        %5966 = vmatmul.f32.gmra.mxu0 %v5820
        %v5967 = vpop.f32.mrf.mxu0
        %v5968 = vadd.f32 0.0, %v5967
        %5969 = vmatmul.f32.gmra.mxu0 %v5822
        %v5970 = vpop.f32.mrf.mxu0
        %v5971 = vadd.f32 0.0, %v5970
        %5972 = vmatmul.f32.gmra.mxu0 %v5824
        %v5973 = vpop.f32.mrf.mxu0
        %v5974 = vadd.f32 0.0, %v5973
        %5975 = vmatmul.f32.gmra.mxu0 %v5826
        %v5976 = vpop.f32.mrf.mxu0
        %v5977 = vadd.f32 0.0, %v5976
        %5978 = vmatmul.f32.gmra.mxu0 %v5828
        %v5979 = vpop.f32.mrf.mxu0
        %v5980 = vadd.f32 0.0, %v5979
        %5981 = vmatmul.f32.gmra.mxu0 %v5830
        %v5982 = vpop.f32.mrf.mxu0
        %v5983 = vadd.f32 0.0, %v5982
        %5984 = vmatmul.f32.gmra.mxu0 %v5832
        %v5985 = vpop.f32.mrf.mxu0
        %v5986 = vadd.f32 0.0, %v5985
        %5987 = vmatmul.f32.gmra.mxu0 %v5834
        %v5988 = vpop.f32.mrf.mxu0
        %v5989 = vadd.f32 0.0, %v5988
        %5990 = vmatmul.f32.gmra.mxu0 %v5836
        %v5991 = vpop.f32.mrf.mxu0
        %v5992 = vadd.f32 0.0, %v5991
        %5993 = vmatmul.f32.gmra.mxu0 %v5838
        %v5994 = vpop.f32.mrf.mxu0
        %v5995 = vadd.f32 0.0, %v5994
        %5996 = vmatmul.f32.gmra.mxu0 %v5840
        %v5997 = vpop.f32.mrf.mxu0
        %v5998 = vadd.f32 0.0, %v5997
        %5999 = vmatmul.f32.gmra.mxu0 %v5842
        %v6000 = vpop.f32.mrf.mxu0
        %v6001 = vadd.f32 0.0, %v6000
        %6002 = vmatmul.f32.gmra.mxu0 %v5844
        %v6003 = vpop.f32.mrf.mxu0
        %v6004 = vadd.f32 0.0, %v6003
        %6005 = vmatmul.f32.gmra.mxu0 %v5846
        %v6006 = vpop.f32.mrf.mxu0
        %v6007 = vadd.f32 0.0, %v6006
        %6008 = vmatmul.f32.gmra.mxu0 %v5848
        %v6009 = vpop.f32.mrf.mxu0
        %v6010 = vadd.f32 0.0, %v6009
        %6011 = vmatmul.f32.gmra.mxu0 %v5850
        %v6012 = vpop.f32.mrf.mxu0
        %v6013 = vadd.f32 0.0, %v6012
        %6014 = vmatmul.f32.gmra.mxu0 %v5852
        %v6015 = vpop.f32.mrf.mxu0
        %v6016 = vadd.f32 0.0, %v6015
        %6017 = vmatmul.f32.gmra.mxu0 %v5854
        %v6018 = vpop.f32.mrf.mxu0
        %v6019 = vadd.f32 0.0, %v6018
        %6020 = vmatmul.f32.gmra.mxu0 %v5856
        %v6021 = vpop.f32.mrf.mxu0
        %v6022 = vadd.f32 0.0, %v6021
        %6023 = vmatmul.f32.gmra.mxu0 %v5858
        %v6024 = vpop.f32.mrf.mxu0
        %v6025 = vadd.f32 0.0, %v6024
        %6026 = vdwg.mxu0
        %6027 = vmatpush.msra.mxu0 0.0
        %6028 = vmatpush.msra.mxu0 0.0
        %6029 = vmatpush.msra.mxu0 0.0
        %6030 = vmatpush.msra.mxu0 0.0
        %6031 = vmatpush.msra.mxu0 0.0
        %6032 = vmatpush.msra.mxu0 0.0
        %6033 = vmatpush.msra.mxu0 0.0
        %6034 = vmatpush.msra.mxu0 %v5096
        %6035 = vmatpush.msra.mxu0 %v4966
        %6036 = vmatpush.msra.mxu0 %v4965
        %6037 = vmatpush.msra.mxu0 %v4964
        %6038 = vmatpush.msra.mxu0 %v4963
        %6039 = vmatpush.msra.mxu0 %v4962
        %6040 = vmatpush.msra.mxu0 %v4961
        %6041 = vmatpush.msra.mxu0 %v4960
        %6042 = vmatpush.msra.mxu0 %v4959
        %6043 = vmatmul.f32.gmra.mxu0 %v5861
        %v6044 = vpop.f32.mrf.mxu0
        %v6045 = vadd.f32 %v5953, %v6044
        %6046 = vmatmul.f32.gmra.mxu0 %v5864
        %v6047 = vpop.f32.mrf.mxu0
        %v6048 = vadd.f32 %v5956, %v6047
        %6049 = vmatmul.f32.gmra.mxu0 %v5867
        %v6050 = vpop.f32.mrf.mxu0
        %v6051 = vadd.f32 %v5959, %v6050
        %6052 = vmatmul.f32.gmra.mxu0 %v5870
        %v6053 = vpop.f32.mrf.mxu0
        %v6054 = vadd.f32 %v5962, %v6053
        %6055 = vmatmul.f32.gmra.mxu0 %v5873
        %v6056 = vpop.f32.mrf.mxu0
        %v6057 = vadd.f32 %v5965, %v6056
        %6058 = vmatmul.f32.gmra.mxu0 %v5876
        %v6059 = vpop.f32.mrf.mxu0
        %v6060 = vadd.f32 %v5968, %v6059
        %6061 = vmatmul.f32.gmra.mxu0 %v5879
        %v6062 = vpop.f32.mrf.mxu0
        %v6063 = vadd.f32 %v5971, %v6062
        %6064 = vmatmul.f32.gmra.mxu0 %v5882
        %v6065 = vpop.f32.mrf.mxu0
        %v6066 = vadd.f32 %v5974, %v6065
        %6067 = vmatmul.f32.gmra.mxu0 %v5885
        %v6068 = vpop.f32.mrf.mxu0
        %v6069 = vadd.f32 %v5977, %v6068
        %6070 = vmatmul.f32.gmra.mxu0 %v5888
        %v6071 = vpop.f32.mrf.mxu0
        %v6072 = vadd.f32 %v5980, %v6071
        %6073 = vmatmul.f32.gmra.mxu0 %v5891
        %v6074 = vpop.f32.mrf.mxu0
        %v6075 = vadd.f32 %v5983, %v6074
        %6076 = vmatmul.f32.gmra.mxu0 %v5894
        %v6077 = vpop.f32.mrf.mxu0
        %v6078 = vadd.f32 %v5986, %v6077
        %6079 = vmatmul.f32.gmra.mxu0 %v5897
        %v6080 = vpop.f32.mrf.mxu0
        %v6081 = vadd.f32 %v5989, %v6080
        %6082 = vmatmul.f32.gmra.mxu0 %v5900
        %v6083 = vpop.f32.mrf.mxu0
        %v6084 = vadd.f32 %v5992, %v6083
        %6085 = vmatmul.f32.gmra.mxu0 %v5903
        %v6086 = vpop.f32.mrf.mxu0
        %v6087 = vadd.f32 %v5995, %v6086
        %6088 = vmatmul.f32.gmra.mxu0 %v5906
        %v6089 = vpop.f32.mrf.mxu0
        %v6090 = vadd.f32 %v5998, %v6089
        %6091 = vmatmul.f32.gmra.mxu0 %v5909
        %v6092 = vpop.f32.mrf.mxu0
        %v6093 = vadd.f32 %v6001, %v6092
        %6094 = vmatmul.f32.gmra.mxu0 %v5912
        %v6095 = vpop.f32.mrf.mxu0
        %v6096 = vadd.f32 %v6004, %v6095
        %6097 = vmatmul.f32.gmra.mxu0 %v5915
        %v6098 = vpop.f32.mrf.mxu0
        %v6099 = vadd.f32 %v6007, %v6098
        %6100 = vmatmul.f32.gmra.mxu0 %v5918
        %v6101 = vpop.f32.mrf.mxu0
        %v6102 = vadd.f32 %v6010, %v6101
        %6103 = vmatmul.f32.gmra.mxu0 %v5921
        %v6104 = vpop.f32.mrf.mxu0
        %v6105 = vadd.f32 %v6013, %v6104
        %6106 = vmatmul.f32.gmra.mxu0 %v5924
        %v6107 = vpop.f32.mrf.mxu0
        %v6108 = vadd.f32 %v6016, %v6107
        %6109 = vmatmul.f32.gmra.mxu0 %v5927
        %v6110 = vpop.f32.mrf.mxu0
        %v6111 = vadd.f32 %v6019, %v6110
        %6112 = vmatmul.f32.gmra.mxu0 %v5930
        %v6113 = vpop.f32.mrf.mxu0
        %v6114 = vadd.f32 %v6022, %v6113
        %6115 = vmatmul.f32.gmra.mxu0 %v5933
        %v6116 = vpop.f32.mrf.mxu0
        %v6117 = vadd.f32 %v6025, %v6116
        %6118 = vdwg.mxu0
        %s6119 = scalar_lea.vmem [#allocation7], 256
        %v6120 = vld [vmem:[%s6119] sm:$0xff]
        %v6121 = vld [vmem:[%s6119 + $0x8] sm:$0xff]
        %v6122 = vld [vmem:[%s6119 + $0x10] sm:$0xff]
        %v6123 = vld [vmem:[%s6119 + $0x18] sm:$0xff]
        %v6124 = vld [vmem:[%s6119 + $0x20] sm:$0xff]
        %v6125 = vld [vmem:[%s6119 + $0x28] sm:$0xff]
        %v6126 = vld [vmem:[%s6119 + $0x30] sm:$0xff]
        %v6127 = vld [vmem:[%s6119 + $0x38] sm:$0xff]
        %v6128 = vld [vmem:[%s6119 + $0x40] sm:$0xff]
        %v6129 = vld [vmem:[%s6119 + $0x48] sm:$0xff]
        %v6130 = vld [vmem:[%s6119 + $0x50] sm:$0xff]
        %v6131 = vld [vmem:[%s6119 + $0x58] sm:$0xff]
        %v6132 = vld [vmem:[%s6119 + $0x60] sm:$0xff]
        %v6133 = vld [vmem:[%s6119 + $0x68] sm:$0xff]
        %v6134 = vld [vmem:[%s6119 + $0x70] sm:$0xff]
        %v6135 = vld [vmem:[%s6119 + $0x78] sm:$0xff]
        %6136 = vmatpush.msra.mxu0 %v6135
        %6137 = vmatpush.msra.mxu0 %v6134
        %6138 = vmatpush.msra.mxu0 %v6133
        %6139 = vmatpush.msra.mxu0 %v6132
        %6140 = vmatpush.msra.mxu0 %v6131
        %6141 = vmatpush.msra.mxu0 %v6130
        %6142 = vmatpush.msra.mxu0 %v6129
        %6143 = vmatpush.msra.mxu0 %v6128
        %6144 = vmatpush.msra.mxu0 %v6127
        %6145 = vmatpush.msra.mxu0 %v6126
        %6146 = vmatpush.msra.mxu0 %v6125
        %6147 = vmatpush.msra.mxu0 %v6124
        %6148 = vmatpush.msra.mxu0 %v6123
        %6149 = vmatpush.msra.mxu0 %v6122
        %6150 = vmatpush.msra.mxu0 %v6121
        %6151 = vmatpush.msra.mxu0 %v6120
        %6152 = vmatmul.f32.gmra.mxu0 %v6045
        %v6153 = vpop.f32.mrf.mxu0
        %v6154 = vadd.f32 0.0, %v6153
        %6155 = vmatmul.f32.gmra.mxu0 %v6048
        %v6156 = vpop.f32.mrf.mxu0
        %v6157 = vadd.f32 0.0, %v6156
        %6158 = vmatmul.f32.gmra.mxu0 %v6051
        %v6159 = vpop.f32.mrf.mxu0
        %v6160 = vadd.f32 0.0, %v6159
        %6161 = vmatmul.f32.gmra.mxu0 %v6054
        %v6162 = vpop.f32.mrf.mxu0
        %v6163 = vadd.f32 0.0, %v6162
        %6164 = vmatmul.f32.gmra.mxu0 %v6057
        %v6165 = vpop.f32.mrf.mxu0
        %v6166 = vadd.f32 0.0, %v6165
        %6167 = vmatmul.f32.gmra.mxu0 %v6060
        %v6168 = vpop.f32.mrf.mxu0
        %v6169 = vadd.f32 0.0, %v6168
        %6170 = vmatmul.f32.gmra.mxu0 %v6063
        %v6171 = vpop.f32.mrf.mxu0
        %v6172 = vadd.f32 0.0, %v6171
        %6173 = vmatmul.f32.gmra.mxu0 %v6066
        %v6174 = vpop.f32.mrf.mxu0
        %v6175 = vadd.f32 0.0, %v6174
        %6176 = vmatmul.f32.gmra.mxu0 %v6069
        %v6177 = vpop.f32.mrf.mxu0
        %v6178 = vadd.f32 0.0, %v6177
        %6179 = vmatmul.f32.gmra.mxu0 %v6072
        %v6180 = vpop.f32.mrf.mxu0
        %v6181 = vadd.f32 0.0, %v6180
        %6182 = vmatmul.f32.gmra.mxu0 %v6075
        %v6183 = vpop.f32.mrf.mxu0
        %v6184 = vadd.f32 0.0, %v6183
        %6185 = vmatmul.f32.gmra.mxu0 %v6078
        %v6186 = vpop.f32.mrf.mxu0
        %v6187 = vadd.f32 0.0, %v6186
        %6188 = vmatmul.f32.gmra.mxu0 %v6081
        %v6189 = vpop.f32.mrf.mxu0
        %v6190 = vadd.f32 0.0, %v6189
        %6191 = vmatmul.f32.gmra.mxu0 %v6084
        %v6192 = vpop.f32.mrf.mxu0
        %v6193 = vadd.f32 0.0, %v6192
        %6194 = vmatmul.f32.gmra.mxu0 %v6087
        %v6195 = vpop.f32.mrf.mxu0
        %v6196 = vadd.f32 0.0, %v6195
        %6197 = vmatmul.f32.gmra.mxu0 %v6090
        %v6198 = vpop.f32.mrf.mxu0
        %v6199 = vadd.f32 0.0, %v6198
        %6200 = vmatmul.f32.gmra.mxu0 %v6093
        %v6201 = vpop.f32.mrf.mxu0
        %v6202 = vadd.f32 0.0, %v6201
        %6203 = vmatmul.f32.gmra.mxu0 %v6096
        %v6204 = vpop.f32.mrf.mxu0
        %v6205 = vadd.f32 0.0, %v6204
        %6206 = vmatmul.f32.gmra.mxu0 %v6099
        %v6207 = vpop.f32.mrf.mxu0
        %v6208 = vadd.f32 0.0, %v6207
        %6209 = vmatmul.f32.gmra.mxu0 %v6102
        %v6210 = vpop.f32.mrf.mxu0
        %v6211 = vadd.f32 0.0, %v6210
        %6212 = vmatmul.f32.gmra.mxu0 %v6105
        %v6213 = vpop.f32.mrf.mxu0
        %v6214 = vadd.f32 0.0, %v6213
        %6215 = vmatmul.f32.gmra.mxu0 %v6108
        %v6216 = vpop.f32.mrf.mxu0
        %v6217 = vadd.f32 0.0, %v6216
        %6218 = vmatmul.f32.gmra.mxu0 %v6111
        %v6219 = vpop.f32.mrf.mxu0
        %v6220 = vadd.f32 0.0, %v6219
        %6221 = vmatmul.f32.gmra.mxu0 %v6114
        %v6222 = vpop.f32.mrf.mxu0
        %v6223 = vadd.f32 0.0, %v6222
        %6224 = vmatmul.f32.gmra.mxu0 %v6117
        %v6225 = vpop.f32.mrf.mxu0
        %v6226 = vadd.f32 0.0, %v6225
        %6227 = vdwg.mxu0
        %v6228 = vadd.f32 %v5735, %v6154
        %v6229 = vadd.f32 %v5738, %v6157
        %v6230 = vadd.f32 %v5741, %v6160
        %v6231 = vadd.f32 %v5744, %v6163
        %v6232 = vadd.f32 %v5747, %v6166
        %v6233 = vadd.f32 %v5750, %v6169
        %v6234 = vadd.f32 %v5753, %v6172
        %v6235 = vadd.f32 %v5756, %v6175
        %v6236 = vadd.f32 %v5759, %v6178
        %v6237 = vadd.f32 %v5762, %v6181
        %v6238 = vadd.f32 %v5765, %v6184
        %v6239 = vadd.f32 %v5768, %v6187
        %v6240 = vadd.f32 %v5771, %v6190
        %v6241 = vadd.f32 %v5774, %v6193
        %v6242 = vadd.f32 %v5777, %v6196
        %v6243 = vadd.f32 %v5780, %v6199
        %v6244 = vadd.f32 %v5783, %v6202
        %v6245 = vadd.f32 %v5786, %v6205
        %v6246 = vadd.f32 %v5789, %v6208
        %v6247 = vadd.f32 %v5792, %v6211
        %v6248 = vadd.f32 %v5795, %v6214
        %v6249 = vadd.f32 %v5798, %v6217
        %v6250 = vadd.f32 %v5801, %v6220
        %v6251 = vadd.f32 %v5804, %v6223
        %v6252 = vadd.f32 %v5807, %v6226
        %s6253 = scalar_lea.vmem [#allocation10], 1200
        %v6254 = vld [vmem:[%s6253] sm:$0xff]
        %v6255 = vld [vmem:[%s6253 + $0x8] sm:$0xff]
        %v6256 = vld [vmem:[%s6253 + $0x10] sm:$0xff]
        %v6257 = vld [vmem:[%s6253 + $0x18] sm:$0xff]
        %v6258 = vld [vmem:[%s6253 + $0x20] sm:$0xff]
        %v6259 = vld [vmem:[%s6253 + $0x28] sm:$0xff]
        %v6260 = vld [vmem:[%s6253 + $0x30] sm:$0xff]
        %v6261 = vld [vmem:[%s6253 + $0x38] sm:$0xff]
        %v6262 = vld [vmem:[%s6253 + $0x40] sm:$0xff]
        %v6263 = vld [vmem:[%s6253 + $0x48] sm:$0xff]
        %v6264 = vld [vmem:[%s6253 + $0x50] sm:$0xff]
        %v6265 = vld [vmem:[%s6253 + $0x58] sm:$0xff]
        %v6266 = vld [vmem:[%s6253 + $0x60] sm:$0xff]
        %v6267 = vld [vmem:[%s6253 + $0x68] sm:$0xff]
        %v6268 = vld [vmem:[%s6253 + $0x70] sm:$0xff]
        %v6269 = vld [vmem:[%s6253 + $0x78] sm:$0xff]
        %v6270 = vld [vmem:[%s6253 + $0x80] sm:$0xff]
        %v6271 = vld [vmem:[%s6253 + $0x88] sm:$0xff]
        %v6272 = vld [vmem:[%s6253 + $0x90] sm:$0xff]
        %v6273 = vld [vmem:[%s6253 + $0x98] sm:$0xff]
        %v6274 = vld [vmem:[%s6253 + $0xa0] sm:$0xff]
        %v6275 = vld [vmem:[%s6253 + $0xa8] sm:$0xff]
        %v6276 = vld [vmem:[%s6253 + $0xb0] sm:$0xff]
        %v6277 = vld [vmem:[%s6253 + $0xb8] sm:$0xff]
        %v6278 = vld [vmem:[%s6253 + $0xc0] sm:$0xff]
        %v6279 = vld [vmem:[%s6253 + $0xc8] sm:$0xff]
        %v6280 = vld [vmem:[%s6253 + $0xd0] sm:$0xff]
        %v6281 = vld [vmem:[%s6253 + $0xd8] sm:$0xff]
        %v6282 = vld [vmem:[%s6253 + $0xe0] sm:$0xff]
        %v6283 = vld [vmem:[%s6253 + $0xe8] sm:$0xff]
        %v6284 = vld [vmem:[%s6253 + $0xf0] sm:$0xff]
        %v6285 = vld [vmem:[%s6253 + $0xf8] sm:$0xff]
        %v6286 = vld [vmem:[%s6253 + $0x100] sm:$0xff]
        %v6287 = vld [vmem:[%s6253 + $0x108] sm:$0xff]
        %v6288 = vld [vmem:[%s6253 + $0x110] sm:$0xff]
        %v6289 = vld [vmem:[%s6253 + $0x118] sm:$0xff]
        %v6290 = vld [vmem:[%s6253 + $0x120] sm:$0xff]
        %v6291 = vld [vmem:[%s6253 + $0x128] sm:$0xff]
        %v6292 = vld [vmem:[%s6253 + $0x130] sm:$0xff]
        %v6293 = vld [vmem:[%s6253 + $0x138] sm:$0xff]
        %v6294 = vld [vmem:[%s6253 + $0x140] sm:$0xff]
        %v6295 = vld [vmem:[%s6253 + $0x148] sm:$0xff]
        %v6296 = vld [vmem:[%s6253 + $0x150] sm:$0xff]
        %v6297 = vld [vmem:[%s6253 + $0x158] sm:$0xff]
        %v6298 = vld [vmem:[%s6253 + $0x160] sm:$0xff]
        %v6299 = vld [vmem:[%s6253 + $0x168] sm:$0xff]
        %v6300 = vld [vmem:[%s6253 + $0x170] sm:$0xff]
        %v6301 = vld [vmem:[%s6253 + $0x178] sm:$0xff]
        %v6302 = vld [vmem:[%s6253 + $0x180] sm:$0xf]
        %v6303 = vld [vmem:[%s6253 + $0x188] sm:$0xf]
        %v6305 = vsel %vm5018, %v6255, 0
        %v6308 = vsel %vm5018, %v6257, 0
        %v6311 = vsel %vm5018, %v6259, 0
        %v6314 = vsel %vm5018, %v6261, 0
        %v6317 = vsel %vm5018, %v6263, 0
        %v6320 = vsel %vm5018, %v6265, 0
        %v6323 = vsel %vm5018, %v6267, 0
        %v6326 = vsel %vm5018, %v6269, 0
        %v6329 = vsel %vm5018, %v6271, 0
        %v6332 = vsel %vm5018, %v6273, 0
        %v6335 = vsel %vm5018, %v6275, 0
        %v6338 = vsel %vm5018, %v6277, 0
        %v6341 = vsel %vm5018, %v6279, 0
        %v6344 = vsel %vm5018, %v6281, 0
        %v6347 = vsel %vm5018, %v6283, 0
        %v6350 = vsel %vm5018, %v6285, 0
        %v6353 = vsel %vm5018, %v6287, 0
        %v6356 = vsel %vm5018, %v6289, 0
        %v6359 = vsel %vm5018, %v6291, 0
        %v6362 = vsel %vm5018, %v6293, 0
        %v6365 = vsel %vm5018, %v6295, 0
        %v6368 = vsel %vm5018, %v6297, 0
        %v6371 = vsel %vm5018, %v6299, 0
        %v6374 = vsel %vm5018, %v6301, 0
        %v6377 = vsel %vm5018, %v6303, 0
        %6379 = vmatpush.msra.mxu0 %v4958
        %6380 = vmatpush.msra.mxu0 %v4957
        %6381 = vmatpush.msra.mxu0 %v4956
        %6382 = vmatpush.msra.mxu0 %v4955
        %6383 = vmatpush.msra.mxu0 %v4954
        %6384 = vmatpush.msra.mxu0 %v4953
        %6385 = vmatpush.msra.mxu0 %v4952
        %6386 = vmatpush.msra.mxu0 %v4951
        %6387 = vmatpush.msra.mxu0 %v4950
        %6388 = vmatpush.msra.mxu0 %v4949
        %6389 = vmatpush.msra.mxu0 %v4948
        %6390 = vmatpush.msra.mxu0 %v4947
        %6391 = vmatpush.msra.mxu0 %v4946
        %6392 = vmatpush.msra.mxu0 %v4945
        %6393 = vmatpush.msra.mxu0 %v4944
        %6394 = vmatpush.msra.mxu0 %v4943
        %6395 = vmatmul.f32.gmra.mxu0 %v6254
        %v6396 = vpop.f32.mrf.mxu0
        %v6397 = vadd.f32 0.0, %v6396
        %6398 = vmatmul.f32.gmra.mxu0 %v6256
        %v6399 = vpop.f32.mrf.mxu0
        %v6400 = vadd.f32 0.0, %v6399
        %6401 = vmatmul.f32.gmra.mxu0 %v6258
        %v6402 = vpop.f32.mrf.mxu0
        %v6403 = vadd.f32 0.0, %v6402
        %6404 = vmatmul.f32.gmra.mxu0 %v6260
        %v6405 = vpop.f32.mrf.mxu0
        %v6406 = vadd.f32 0.0, %v6405
        %6407 = vmatmul.f32.gmra.mxu0 %v6262
        %v6408 = vpop.f32.mrf.mxu0
        %v6409 = vadd.f32 0.0, %v6408
        %6410 = vmatmul.f32.gmra.mxu0 %v6264
        %v6411 = vpop.f32.mrf.mxu0
        %v6412 = vadd.f32 0.0, %v6411
        %6413 = vmatmul.f32.gmra.mxu0 %v6266
        %v6414 = vpop.f32.mrf.mxu0
        %v6415 = vadd.f32 0.0, %v6414
        %6416 = vmatmul.f32.gmra.mxu0 %v6268
        %v6417 = vpop.f32.mrf.mxu0
        %v6418 = vadd.f32 0.0, %v6417
        %6419 = vmatmul.f32.gmra.mxu0 %v6270
        %v6420 = vpop.f32.mrf.mxu0
        %v6421 = vadd.f32 0.0, %v6420
        %6422 = vmatmul.f32.gmra.mxu0 %v6272
        %v6423 = vpop.f32.mrf.mxu0
        %v6424 = vadd.f32 0.0, %v6423
        %6425 = vmatmul.f32.gmra.mxu0 %v6274
        %v6426 = vpop.f32.mrf.mxu0
        %v6427 = vadd.f32 0.0, %v6426
        %6428 = vmatmul.f32.gmra.mxu0 %v6276
        %v6429 = vpop.f32.mrf.mxu0
        %v6430 = vadd.f32 0.0, %v6429
        %6431 = vmatmul.f32.gmra.mxu0 %v6278
        %v6432 = vpop.f32.mrf.mxu0
        %v6433 = vadd.f32 0.0, %v6432
        %6434 = vmatmul.f32.gmra.mxu0 %v6280
        %v6435 = vpop.f32.mrf.mxu0
        %v6436 = vadd.f32 0.0, %v6435
        %6437 = vmatmul.f32.gmra.mxu0 %v6282
        %v6438 = vpop.f32.mrf.mxu0
        %v6439 = vadd.f32 0.0, %v6438
        %6440 = vmatmul.f32.gmra.mxu0 %v6284
        %v6441 = vpop.f32.mrf.mxu0
        %v6442 = vadd.f32 0.0, %v6441
        %6443 = vmatmul.f32.gmra.mxu0 %v6286
        %v6444 = vpop.f32.mrf.mxu0
        %v6445 = vadd.f32 0.0, %v6444
        %6446 = vmatmul.f32.gmra.mxu0 %v6288
        %v6447 = vpop.f32.mrf.mxu0
        %v6448 = vadd.f32 0.0, %v6447
        %6449 = vmatmul.f32.gmra.mxu0 %v6290
        %v6450 = vpop.f32.mrf.mxu0
        %v6451 = vadd.f32 0.0, %v6450
        %6452 = vmatmul.f32.gmra.mxu0 %v6292
        %v6453 = vpop.f32.mrf.mxu0
        %v6454 = vadd.f32 0.0, %v6453
        %6455 = vmatmul.f32.gmra.mxu0 %v6294
        %v6456 = vpop.f32.mrf.mxu0
        %v6457 = vadd.f32 0.0, %v6456
        %6458 = vmatmul.f32.gmra.mxu0 %v6296
        %v6459 = vpop.f32.mrf.mxu0
        %v6460 = vadd.f32 0.0, %v6459
        %6461 = vmatmul.f32.gmra.mxu0 %v6298
        %v6462 = vpop.f32.mrf.mxu0
        %v6463 = vadd.f32 0.0, %v6462
        %6464 = vmatmul.f32.gmra.mxu0 %v6300
        %v6465 = vpop.f32.mrf.mxu0
        %v6466 = vadd.f32 0.0, %v6465
        %6467 = vmatmul.f32.gmra.mxu0 %v6302
        %v6468 = vpop.f32.mrf.mxu0
        %v6469 = vadd.f32 0.0, %v6468
        %6470 = vdwg.mxu0
        %6471 = vmatpush.msra.mxu0 0.0
        %6472 = vmatpush.msra.mxu0 0.0
        %6473 = vmatpush.msra.mxu0 0.0
        %6474 = vmatpush.msra.mxu0 0.0
        %6475 = vmatpush.msra.mxu0 0.0
        %6476 = vmatpush.msra.mxu0 0.0
        %6477 = vmatpush.msra.mxu0 0.0
        %6478 = vmatpush.msra.mxu0 %v5096
        %6479 = vmatpush.msra.mxu0 %v4966
        %6480 = vmatpush.msra.mxu0 %v4965
        %6481 = vmatpush.msra.mxu0 %v4964
        %6482 = vmatpush.msra.mxu0 %v4963
        %6483 = vmatpush.msra.mxu0 %v4962
        %6484 = vmatpush.msra.mxu0 %v4961
        %6485 = vmatpush.msra.mxu0 %v4960
        %6486 = vmatpush.msra.mxu0 %v4959
        %6487 = vmatmul.f32.gmra.mxu0 %v6305
        %v6488 = vpop.f32.mrf.mxu0
        %v6489 = vadd.f32 %v6397, %v6488
        %6490 = vmatmul.f32.gmra.mxu0 %v6308
        %v6491 = vpop.f32.mrf.mxu0
        %v6492 = vadd.f32 %v6400, %v6491
        %6493 = vmatmul.f32.gmra.mxu0 %v6311
        %v6494 = vpop.f32.mrf.mxu0
        %v6495 = vadd.f32 %v6403, %v6494
        %6496 = vmatmul.f32.gmra.mxu0 %v6314
        %v6497 = vpop.f32.mrf.mxu0
        %v6498 = vadd.f32 %v6406, %v6497
        %6499 = vmatmul.f32.gmra.mxu0 %v6317
        %v6500 = vpop.f32.mrf.mxu0
        %v6501 = vadd.f32 %v6409, %v6500
        %6502 = vmatmul.f32.gmra.mxu0 %v6320
        %v6503 = vpop.f32.mrf.mxu0
        %v6504 = vadd.f32 %v6412, %v6503
        %6505 = vmatmul.f32.gmra.mxu0 %v6323
        %v6506 = vpop.f32.mrf.mxu0
        %v6507 = vadd.f32 %v6415, %v6506
        %6508 = vmatmul.f32.gmra.mxu0 %v6326
        %v6509 = vpop.f32.mrf.mxu0
        %v6510 = vadd.f32 %v6418, %v6509
        %6511 = vmatmul.f32.gmra.mxu0 %v6329
        %v6512 = vpop.f32.mrf.mxu0
        %v6513 = vadd.f32 %v6421, %v6512
        %6514 = vmatmul.f32.gmra.mxu0 %v6332
        %v6515 = vpop.f32.mrf.mxu0
        %v6516 = vadd.f32 %v6424, %v6515
        %6517 = vmatmul.f32.gmra.mxu0 %v6335
        %v6518 = vpop.f32.mrf.mxu0
        %v6519 = vadd.f32 %v6427, %v6518
        %6520 = vmatmul.f32.gmra.mxu0 %v6338
        %v6521 = vpop.f32.mrf.mxu0
        %v6522 = vadd.f32 %v6430, %v6521
        %6523 = vmatmul.f32.gmra.mxu0 %v6341
        %v6524 = vpop.f32.mrf.mxu0
        %v6525 = vadd.f32 %v6433, %v6524
        %6526 = vmatmul.f32.gmra.mxu0 %v6344
        %v6527 = vpop.f32.mrf.mxu0
        %v6528 = vadd.f32 %v6436, %v6527
        %6529 = vmatmul.f32.gmra.mxu0 %v6347
        %v6530 = vpop.f32.mrf.mxu0
        %v6531 = vadd.f32 %v6439, %v6530
        %6532 = vmatmul.f32.gmra.mxu0 %v6350
        %v6533 = vpop.f32.mrf.mxu0
        %v6534 = vadd.f32 %v6442, %v6533
        %6535 = vmatmul.f32.gmra.mxu0 %v6353
        %v6536 = vpop.f32.mrf.mxu0
        %v6537 = vadd.f32 %v6445, %v6536
        %6538 = vmatmul.f32.gmra.mxu0 %v6356
        %v6539 = vpop.f32.mrf.mxu0
        %v6540 = vadd.f32 %v6448, %v6539
        %6541 = vmatmul.f32.gmra.mxu0 %v6359
        %v6542 = vpop.f32.mrf.mxu0
        %v6543 = vadd.f32 %v6451, %v6542
        %6544 = vmatmul.f32.gmra.mxu0 %v6362
        %v6545 = vpop.f32.mrf.mxu0
        %v6546 = vadd.f32 %v6454, %v6545
        %6547 = vmatmul.f32.gmra.mxu0 %v6365
        %v6548 = vpop.f32.mrf.mxu0
        %v6549 = vadd.f32 %v6457, %v6548
        %6550 = vmatmul.f32.gmra.mxu0 %v6368
        %v6551 = vpop.f32.mrf.mxu0
        %v6552 = vadd.f32 %v6460, %v6551
        %6553 = vmatmul.f32.gmra.mxu0 %v6371
        %v6554 = vpop.f32.mrf.mxu0
        %v6555 = vadd.f32 %v6463, %v6554
        %6556 = vmatmul.f32.gmra.mxu0 %v6374
        %v6557 = vpop.f32.mrf.mxu0
        %v6558 = vadd.f32 %v6466, %v6557
        %6559 = vmatmul.f32.gmra.mxu0 %v6377
        %v6560 = vpop.f32.mrf.mxu0
        %v6561 = vadd.f32 %v6469, %v6560
        %6562 = vdwg.mxu0
        %s6563 = scalar_lea.vmem [#allocation7], 384
        %v6564 = vld [vmem:[%s6563] sm:$0xff]
        %v6565 = vld [vmem:[%s6563 + $0x8] sm:$0xff]
        %v6566 = vld [vmem:[%s6563 + $0x10] sm:$0xff]
        %v6567 = vld [vmem:[%s6563 + $0x18] sm:$0xff]
        %v6568 = vld [vmem:[%s6563 + $0x20] sm:$0xff]
        %v6569 = vld [vmem:[%s6563 + $0x28] sm:$0xff]
        %v6570 = vld [vmem:[%s6563 + $0x30] sm:$0xff]
        %v6571 = vld [vmem:[%s6563 + $0x38] sm:$0xff]
        %v6572 = vld [vmem:[%s6563 + $0x40] sm:$0xff]
        %v6573 = vld [vmem:[%s6563 + $0x48] sm:$0xff]
        %v6574 = vld [vmem:[%s6563 + $0x50] sm:$0xff]
        %v6575 = vld [vmem:[%s6563 + $0x58] sm:$0xff]
        %v6576 = vld [vmem:[%s6563 + $0x60] sm:$0xff]
        %v6577 = vld [vmem:[%s6563 + $0x68] sm:$0xff]
        %v6578 = vld [vmem:[%s6563 + $0x70] sm:$0xff]
        %v6579 = vld [vmem:[%s6563 + $0x78] sm:$0xff]
        %6580 = vmatpush.msra.mxu0 %v6579
        %6581 = vmatpush.msra.mxu0 %v6578
        %6582 = vmatpush.msra.mxu0 %v6577
        %6583 = vmatpush.msra.mxu0 %v6576
        %6584 = vmatpush.msra.mxu0 %v6575
        %6585 = vmatpush.msra.mxu0 %v6574
        %6586 = vmatpush.msra.mxu0 %v6573
        %6587 = vmatpush.msra.mxu0 %v6572
        %6588 = vmatpush.msra.mxu0 %v6571
        %6589 = vmatpush.msra.mxu0 %v6570
        %6590 = vmatpush.msra.mxu0 %v6569
        %6591 = vmatpush.msra.mxu0 %v6568
        %6592 = vmatpush.msra.mxu0 %v6567
        %6593 = vmatpush.msra.mxu0 %v6566
        %6594 = vmatpush.msra.mxu0 %v6565
        %6595 = vmatpush.msra.mxu0 %v6564
        %6596 = vmatmul.f32.gmra.mxu0 %v6489
        %v6597 = vpop.f32.mrf.mxu0
        %v6598 = vadd.f32 0.0, %v6597
        %6599 = vmatmul.f32.gmra.mxu0 %v6492
        %v6600 = vpop.f32.mrf.mxu0
        %v6601 = vadd.f32 0.0, %v6600
        %6602 = vmatmul.f32.gmra.mxu0 %v6495
        %v6603 = vpop.f32.mrf.mxu0
        %v6604 = vadd.f32 0.0, %v6603
        %6605 = vmatmul.f32.gmra.mxu0 %v6498
        %v6606 = vpop.f32.mrf.mxu0
        %v6607 = vadd.f32 0.0, %v6606
        %6608 = vmatmul.f32.gmra.mxu0 %v6501
        %v6609 = vpop.f32.mrf.mxu0
        %v6610 = vadd.f32 0.0, %v6609
        %6611 = vmatmul.f32.gmra.mxu0 %v6504
        %v6612 = vpop.f32.mrf.mxu0
        %v6613 = vadd.f32 0.0, %v6612
        %6614 = vmatmul.f32.gmra.mxu0 %v6507
        %v6615 = vpop.f32.mrf.mxu0
        %v6616 = vadd.f32 0.0, %v6615
        %6617 = vmatmul.f32.gmra.mxu0 %v6510
        %v6618 = vpop.f32.mrf.mxu0
        %v6619 = vadd.f32 0.0, %v6618
        %6620 = vmatmul.f32.gmra.mxu0 %v6513
        %v6621 = vpop.f32.mrf.mxu0
        %v6622 = vadd.f32 0.0, %v6621
        %6623 = vmatmul.f32.gmra.mxu0 %v6516
        %v6624 = vpop.f32.mrf.mxu0
        %v6625 = vadd.f32 0.0, %v6624
        %6626 = vmatmul.f32.gmra.mxu0 %v6519
        %v6627 = vpop.f32.mrf.mxu0
        %v6628 = vadd.f32 0.0, %v6627
        %6629 = vmatmul.f32.gmra.mxu0 %v6522
        %v6630 = vpop.f32.mrf.mxu0
        %v6631 = vadd.f32 0.0, %v6630
        %6632 = vmatmul.f32.gmra.mxu0 %v6525
        %v6633 = vpop.f32.mrf.mxu0
        %v6634 = vadd.f32 0.0, %v6633
        %6635 = vmatmul.f32.gmra.mxu0 %v6528
        %v6636 = vpop.f32.mrf.mxu0
        %v6637 = vadd.f32 0.0, %v6636
        %6638 = vmatmul.f32.gmra.mxu0 %v6531
        %v6639 = vpop.f32.mrf.mxu0
        %v6640 = vadd.f32 0.0, %v6639
        %6641 = vmatmul.f32.gmra.mxu0 %v6534
        %v6642 = vpop.f32.mrf.mxu0
        %v6643 = vadd.f32 0.0, %v6642
        %6644 = vmatmul.f32.gmra.mxu0 %v6537
        %v6645 = vpop.f32.mrf.mxu0
        %v6646 = vadd.f32 0.0, %v6645
        %6647 = vmatmul.f32.gmra.mxu0 %v6540
        %v6648 = vpop.f32.mrf.mxu0
        %v6649 = vadd.f32 0.0, %v6648
        %6650 = vmatmul.f32.gmra.mxu0 %v6543
        %v6651 = vpop.f32.mrf.mxu0
        %v6652 = vadd.f32 0.0, %v6651
        %6653 = vmatmul.f32.gmra.mxu0 %v6546
        %v6654 = vpop.f32.mrf.mxu0
        %v6655 = vadd.f32 0.0, %v6654
        %6656 = vmatmul.f32.gmra.mxu0 %v6549
        %v6657 = vpop.f32.mrf.mxu0
        %v6658 = vadd.f32 0.0, %v6657
        %6659 = vmatmul.f32.gmra.mxu0 %v6552
        %v6660 = vpop.f32.mrf.mxu0
        %v6661 = vadd.f32 0.0, %v6660
        %6662 = vmatmul.f32.gmra.mxu0 %v6555
        %v6663 = vpop.f32.mrf.mxu0
        %v6664 = vadd.f32 0.0, %v6663
        %6665 = vmatmul.f32.gmra.mxu0 %v6558
        %v6666 = vpop.f32.mrf.mxu0
        %v6667 = vadd.f32 0.0, %v6666
        %6668 = vmatmul.f32.gmra.mxu0 %v6561
        %v6669 = vpop.f32.mrf.mxu0
        %v6670 = vadd.f32 0.0, %v6669
        %6671 = vdwg.mxu0
        %v6672 = vadd.f32 %v6228, %v6598
        %v6673 = vadd.f32 %v6229, %v6601
        %v6674 = vadd.f32 %v6230, %v6604
        %v6675 = vadd.f32 %v6231, %v6607
        %v6676 = vadd.f32 %v6232, %v6610
        %v6677 = vadd.f32 %v6233, %v6613
        %v6678 = vadd.f32 %v6234, %v6616
        %v6679 = vadd.f32 %v6235, %v6619
        %v6680 = vadd.f32 %v6236, %v6622
        %v6681 = vadd.f32 %v6237, %v6625
        %v6682 = vadd.f32 %v6238, %v6628
        %v6683 = vadd.f32 %v6239, %v6631
        %v6684 = vadd.f32 %v6240, %v6634
        %v6685 = vadd.f32 %v6241, %v6637
        %v6686 = vadd.f32 %v6242, %v6640
        %v6687 = vadd.f32 %v6243, %v6643
        %v6688 = vadd.f32 %v6244, %v6646
        %v6689 = vadd.f32 %v6245, %v6649
        %v6690 = vadd.f32 %v6246, %v6652
        %v6691 = vadd.f32 %v6247, %v6655
        %v6692 = vadd.f32 %v6248, %v6658
        %v6693 = vadd.f32 %v6249, %v6661
        %v6694 = vadd.f32 %v6250, %v6664
        %v6695 = vadd.f32 %v6251, %v6667
        %v6696 = vadd.f32 %v6252, %v6670
        %s6697 = scalar_lea.vmem [#allocation10], 1600
        %v6698 = vld [vmem:[%s6697] sm:$0xff]
        %v6699 = vld [vmem:[%s6697 + $0x8] sm:$0xff]
        %v6700 = vld [vmem:[%s6697 + $0x10] sm:$0xff]
        %v6701 = vld [vmem:[%s6697 + $0x18] sm:$0xff]
        %v6702 = vld [vmem:[%s6697 + $0x20] sm:$0xff]
        %v6703 = vld [vmem:[%s6697 + $0x28] sm:$0xff]
        %v6704 = vld [vmem:[%s6697 + $0x30] sm:$0xff]
        %v6705 = vld [vmem:[%s6697 + $0x38] sm:$0xff]
        %v6706 = vld [vmem:[%s6697 + $0x40] sm:$0xff]
        %v6707 = vld [vmem:[%s6697 + $0x48] sm:$0xff]
        %v6708 = vld [vmem:[%s6697 + $0x50] sm:$0xff]
        %v6709 = vld [vmem:[%s6697 + $0x58] sm:$0xff]
        %v6710 = vld [vmem:[%s6697 + $0x60] sm:$0xff]
        %v6711 = vld [vmem:[%s6697 + $0x68] sm:$0xff]
        %v6712 = vld [vmem:[%s6697 + $0x70] sm:$0xff]
        %v6713 = vld [vmem:[%s6697 + $0x78] sm:$0xff]
        %v6714 = vld [vmem:[%s6697 + $0x80] sm:$0xff]
        %v6715 = vld [vmem:[%s6697 + $0x88] sm:$0xff]
        %v6716 = vld [vmem:[%s6697 + $0x90] sm:$0xff]
        %v6717 = vld [vmem:[%s6697 + $0x98] sm:$0xff]
        %v6718 = vld [vmem:[%s6697 + $0xa0] sm:$0xff]
        %v6719 = vld [vmem:[%s6697 + $0xa8] sm:$0xff]
        %v6720 = vld [vmem:[%s6697 + $0xb0] sm:$0xff]
        %v6721 = vld [vmem:[%s6697 + $0xb8] sm:$0xff]
        %v6722 = vld [vmem:[%s6697 + $0xc0] sm:$0xff]
        %v6723 = vld [vmem:[%s6697 + $0xc8] sm:$0xff]
        %v6724 = vld [vmem:[%s6697 + $0xd0] sm:$0xff]
        %v6725 = vld [vmem:[%s6697 + $0xd8] sm:$0xff]
        %v6726 = vld [vmem:[%s6697 + $0xe0] sm:$0xff]
        %v6727 = vld [vmem:[%s6697 + $0xe8] sm:$0xff]
        %v6728 = vld [vmem:[%s6697 + $0xf0] sm:$0xff]
        %v6729 = vld [vmem:[%s6697 + $0xf8] sm:$0xff]
        %v6730 = vld [vmem:[%s6697 + $0x100] sm:$0xff]
        %v6731 = vld [vmem:[%s6697 + $0x108] sm:$0xff]
        %v6732 = vld [vmem:[%s6697 + $0x110] sm:$0xff]
        %v6733 = vld [vmem:[%s6697 + $0x118] sm:$0xff]
        %v6734 = vld [vmem:[%s6697 + $0x120] sm:$0xff]
        %v6735 = vld [vmem:[%s6697 + $0x128] sm:$0xff]
        %v6736 = vld [vmem:[%s6697 + $0x130] sm:$0xff]
        %v6737 = vld [vmem:[%s6697 + $0x138] sm:$0xff]
        %v6738 = vld [vmem:[%s6697 + $0x140] sm:$0xff]
        %v6739 = vld [vmem:[%s6697 + $0x148] sm:$0xff]
        %v6740 = vld [vmem:[%s6697 + $0x150] sm:$0xff]
        %v6741 = vld [vmem:[%s6697 + $0x158] sm:$0xff]
        %v6742 = vld [vmem:[%s6697 + $0x160] sm:$0xff]
        %v6743 = vld [vmem:[%s6697 + $0x168] sm:$0xff]
        %v6744 = vld [vmem:[%s6697 + $0x170] sm:$0xff]
        %v6745 = vld [vmem:[%s6697 + $0x178] sm:$0xff]
        %v6746 = vld [vmem:[%s6697 + $0x180] sm:$0xf]
        %v6747 = vld [vmem:[%s6697 + $0x188] sm:$0xf]
        %v6749 = vsel %vm5018, %v6699, 0
        %v6752 = vsel %vm5018, %v6701, 0
        %v6755 = vsel %vm5018, %v6703, 0
        %v6758 = vsel %vm5018, %v6705, 0
        %v6761 = vsel %vm5018, %v6707, 0
        %v6764 = vsel %vm5018, %v6709, 0
        %v6767 = vsel %vm5018, %v6711, 0
        %v6770 = vsel %vm5018, %v6713, 0
        %v6773 = vsel %vm5018, %v6715, 0
        %v6776 = vsel %vm5018, %v6717, 0
        %v6779 = vsel %vm5018, %v6719, 0
        %v6782 = vsel %vm5018, %v6721, 0
        %v6785 = vsel %vm5018, %v6723, 0
        %v6788 = vsel %vm5018, %v6725, 0
        %v6791 = vsel %vm5018, %v6727, 0
        %v6794 = vsel %vm5018, %v6729, 0
        %v6797 = vsel %vm5018, %v6731, 0
        %v6800 = vsel %vm5018, %v6733, 0
        %v6803 = vsel %vm5018, %v6735, 0
        %v6806 = vsel %vm5018, %v6737, 0
        %v6809 = vsel %vm5018, %v6739, 0
        %v6812 = vsel %vm5018, %v6741, 0
        %v6815 = vsel %vm5018, %v6743, 0
        %v6818 = vsel %vm5018, %v6745, 0
        %v6821 = vsel %vm5018, %v6747, 0
        %6823 = vmatpush.msra.mxu0 %v4958
        %6824 = vmatpush.msra.mxu0 %v4957
        %6825 = vmatpush.msra.mxu0 %v4956
        %6826 = vmatpush.msra.mxu0 %v4955
        %6827 = vmatpush.msra.mxu0 %v4954
        %6828 = vmatpush.msra.mxu0 %v4953
        %6829 = vmatpush.msra.mxu0 %v4952
        %6830 = vmatpush.msra.mxu0 %v4951
        %6831 = vmatpush.msra.mxu0 %v4950
        %6832 = vmatpush.msra.mxu0 %v4949
        %6833 = vmatpush.msra.mxu0 %v4948
        %6834 = vmatpush.msra.mxu0 %v4947
        %6835 = vmatpush.msra.mxu0 %v4946
        %6836 = vmatpush.msra.mxu0 %v4945
        %6837 = vmatpush.msra.mxu0 %v4944
        %6838 = vmatpush.msra.mxu0 %v4943
        %6839 = vmatmul.f32.gmra.mxu0 %v6698
        %v6840 = vpop.f32.mrf.mxu0
        %v6841 = vadd.f32 0.0, %v6840
        %6842 = vmatmul.f32.gmra.mxu0 %v6700
        %v6843 = vpop.f32.mrf.mxu0
        %v6844 = vadd.f32 0.0, %v6843
        %6845 = vmatmul.f32.gmra.mxu0 %v6702
        %v6846 = vpop.f32.mrf.mxu0
        %v6847 = vadd.f32 0.0, %v6846
        %6848 = vmatmul.f32.gmra.mxu0 %v6704
        %v6849 = vpop.f32.mrf.mxu0
        %v6850 = vadd.f32 0.0, %v6849
        %6851 = vmatmul.f32.gmra.mxu0 %v6706
        %v6852 = vpop.f32.mrf.mxu0
        %v6853 = vadd.f32 0.0, %v6852
        %6854 = vmatmul.f32.gmra.mxu0 %v6708
        %v6855 = vpop.f32.mrf.mxu0
        %v6856 = vadd.f32 0.0, %v6855
        %6857 = vmatmul.f32.gmra.mxu0 %v6710
        %v6858 = vpop.f32.mrf.mxu0
        %v6859 = vadd.f32 0.0, %v6858
        %6860 = vmatmul.f32.gmra.mxu0 %v6712
        %v6861 = vpop.f32.mrf.mxu0
        %v6862 = vadd.f32 0.0, %v6861
        %6863 = vmatmul.f32.gmra.mxu0 %v6714
        %v6864 = vpop.f32.mrf.mxu0
        %v6865 = vadd.f32 0.0, %v6864
        %6866 = vmatmul.f32.gmra.mxu0 %v6716
        %v6867 = vpop.f32.mrf.mxu0
        %v6868 = vadd.f32 0.0, %v6867
        %6869 = vmatmul.f32.gmra.mxu0 %v6718
        %v6870 = vpop.f32.mrf.mxu0
        %v6871 = vadd.f32 0.0, %v6870
        %6872 = vmatmul.f32.gmra.mxu0 %v6720
        %v6873 = vpop.f32.mrf.mxu0
        %v6874 = vadd.f32 0.0, %v6873
        %6875 = vmatmul.f32.gmra.mxu0 %v6722
        %v6876 = vpop.f32.mrf.mxu0
        %v6877 = vadd.f32 0.0, %v6876
        %6878 = vmatmul.f32.gmra.mxu0 %v6724
        %v6879 = vpop.f32.mrf.mxu0
        %v6880 = vadd.f32 0.0, %v6879
        %6881 = vmatmul.f32.gmra.mxu0 %v6726
        %v6882 = vpop.f32.mrf.mxu0
        %v6883 = vadd.f32 0.0, %v6882
        %6884 = vmatmul.f32.gmra.mxu0 %v6728
        %v6885 = vpop.f32.mrf.mxu0
        %v6886 = vadd.f32 0.0, %v6885
        %6887 = vmatmul.f32.gmra.mxu0 %v6730
        %v6888 = vpop.f32.mrf.mxu0
        %v6889 = vadd.f32 0.0, %v6888
        %6890 = vmatmul.f32.gmra.mxu0 %v6732
        %v6891 = vpop.f32.mrf.mxu0
        %v6892 = vadd.f32 0.0, %v6891
        %6893 = vmatmul.f32.gmra.mxu0 %v6734
        %v6894 = vpop.f32.mrf.mxu0
        %v6895 = vadd.f32 0.0, %v6894
        %6896 = vmatmul.f32.gmra.mxu0 %v6736
        %v6897 = vpop.f32.mrf.mxu0
        %v6898 = vadd.f32 0.0, %v6897
        %6899 = vmatmul.f32.gmra.mxu0 %v6738
        %v6900 = vpop.f32.mrf.mxu0
        %v6901 = vadd.f32 0.0, %v6900
        %6902 = vmatmul.f32.gmra.mxu0 %v6740
        %v6903 = vpop.f32.mrf.mxu0
        %v6904 = vadd.f32 0.0, %v6903
        %6905 = vmatmul.f32.gmra.mxu0 %v6742
        %v6906 = vpop.f32.mrf.mxu0
        %v6907 = vadd.f32 0.0, %v6906
        %6908 = vmatmul.f32.gmra.mxu0 %v6744
        %v6909 = vpop.f32.mrf.mxu0
        %v6910 = vadd.f32 0.0, %v6909
        %6911 = vmatmul.f32.gmra.mxu0 %v6746
        %v6912 = vpop.f32.mrf.mxu0
        %v6913 = vadd.f32 0.0, %v6912
        %6914 = vdwg.mxu0
        %6915 = vmatpush.msra.mxu0 0.0
        %6916 = vmatpush.msra.mxu0 0.0
        %6917 = vmatpush.msra.mxu0 0.0
        %6918 = vmatpush.msra.mxu0 0.0
        %6919 = vmatpush.msra.mxu0 0.0
        %6920 = vmatpush.msra.mxu0 0.0
        %6921 = vmatpush.msra.mxu0 0.0
        %6922 = vmatpush.msra.mxu0 %v5096
        %6923 = vmatpush.msra.mxu0 %v4966
        %6924 = vmatpush.msra.mxu0 %v4965
        %6925 = vmatpush.msra.mxu0 %v4964
        %6926 = vmatpush.msra.mxu0 %v4963
        %6927 = vmatpush.msra.mxu0 %v4962
        %6928 = vmatpush.msra.mxu0 %v4961
        %6929 = vmatpush.msra.mxu0 %v4960
        %6930 = vmatpush.msra.mxu0 %v4959
        %6931 = vmatmul.f32.gmra.mxu0 %v6749
        %v6932 = vpop.f32.mrf.mxu0
        %v6933 = vadd.f32 %v6841, %v6932
        %6934 = vmatmul.f32.gmra.mxu0 %v6752
        %v6935 = vpop.f32.mrf.mxu0
        %v6936 = vadd.f32 %v6844, %v6935
        %6937 = vmatmul.f32.gmra.mxu0 %v6755
        %v6938 = vpop.f32.mrf.mxu0
        %v6939 = vadd.f32 %v6847, %v6938
        %6940 = vmatmul.f32.gmra.mxu0 %v6758
        %v6941 = vpop.f32.mrf.mxu0
        %v6942 = vadd.f32 %v6850, %v6941
        %6943 = vmatmul.f32.gmra.mxu0 %v6761
        %v6944 = vpop.f32.mrf.mxu0
        %v6945 = vadd.f32 %v6853, %v6944
        %6946 = vmatmul.f32.gmra.mxu0 %v6764
        %v6947 = vpop.f32.mrf.mxu0
        %v6948 = vadd.f32 %v6856, %v6947
        %6949 = vmatmul.f32.gmra.mxu0 %v6767
        %v6950 = vpop.f32.mrf.mxu0
        %v6951 = vadd.f32 %v6859, %v6950
        %6952 = vmatmul.f32.gmra.mxu0 %v6770
        %v6953 = vpop.f32.mrf.mxu0
        %v6954 = vadd.f32 %v6862, %v6953
        %6955 = vmatmul.f32.gmra.mxu0 %v6773
        %v6956 = vpop.f32.mrf.mxu0
        %v6957 = vadd.f32 %v6865, %v6956
        %6958 = vmatmul.f32.gmra.mxu0 %v6776
        %v6959 = vpop.f32.mrf.mxu0
        %v6960 = vadd.f32 %v6868, %v6959
        %6961 = vmatmul.f32.gmra.mxu0 %v6779
        %v6962 = vpop.f32.mrf.mxu0
        %v6963 = vadd.f32 %v6871, %v6962
        %6964 = vmatmul.f32.gmra.mxu0 %v6782
        %v6965 = vpop.f32.mrf.mxu0
        %v6966 = vadd.f32 %v6874, %v6965
        %6967 = vmatmul.f32.gmra.mxu0 %v6785
        %v6968 = vpop.f32.mrf.mxu0
        %v6969 = vadd.f32 %v6877, %v6968
        %6970 = vmatmul.f32.gmra.mxu0 %v6788
        %v6971 = vpop.f32.mrf.mxu0
        %v6972 = vadd.f32 %v6880, %v6971
        %6973 = vmatmul.f32.gmra.mxu0 %v6791
        %v6974 = vpop.f32.mrf.mxu0
        %v6975 = vadd.f32 %v6883, %v6974
        %6976 = vmatmul.f32.gmra.mxu0 %v6794
        %v6977 = vpop.f32.mrf.mxu0
        %v6978 = vadd.f32 %v6886, %v6977
        %6979 = vmatmul.f32.gmra.mxu0 %v6797
        %v6980 = vpop.f32.mrf.mxu0
        %v6981 = vadd.f32 %v6889, %v6980
        %6982 = vmatmul.f32.gmra.mxu0 %v6800
        %v6983 = vpop.f32.mrf.mxu0
        %v6984 = vadd.f32 %v6892, %v6983
        %6985 = vmatmul.f32.gmra.mxu0 %v6803
        %v6986 = vpop.f32.mrf.mxu0
        %v6987 = vadd.f32 %v6895, %v6986
        %6988 = vmatmul.f32.gmra.mxu0 %v6806
        %v6989 = vpop.f32.mrf.mxu0
        %v6990 = vadd.f32 %v6898, %v6989
        %6991 = vmatmul.f32.gmra.mxu0 %v6809
        %v6992 = vpop.f32.mrf.mxu0
        %v6993 = vadd.f32 %v6901, %v6992
        %6994 = vmatmul.f32.gmra.mxu0 %v6812
        %v6995 = vpop.f32.mrf.mxu0
        %v6996 = vadd.f32 %v6904, %v6995
        %6997 = vmatmul.f32.gmra.mxu0 %v6815
        %v6998 = vpop.f32.mrf.mxu0
        %v6999 = vadd.f32 %v6907, %v6998
        %7000 = vmatmul.f32.gmra.mxu0 %v6818
        %v7001 = vpop.f32.mrf.mxu0
        %v7002 = vadd.f32 %v6910, %v7001
        %7003 = vmatmul.f32.gmra.mxu0 %v6821
        %v7004 = vpop.f32.mrf.mxu0
        %v7005 = vadd.f32 %v6913, %v7004
        %7006 = vdwg.mxu0
        %s7007 = scalar_lea.vmem [#allocation7], 512
        %v7008 = vld [vmem:[%s7007] sm:$0xff]
        %v7009 = vld [vmem:[%s7007 + $0x8] sm:$0xff]
        %v7010 = vld [vmem:[%s7007 + $0x10] sm:$0xff]
        %v7011 = vld [vmem:[%s7007 + $0x18] sm:$0xff]
        %v7012 = vld [vmem:[%s7007 + $0x20] sm:$0xff]
        %v7013 = vld [vmem:[%s7007 + $0x28] sm:$0xff]
        %v7014 = vld [vmem:[%s7007 + $0x30] sm:$0xff]
        %v7015 = vld [vmem:[%s7007 + $0x38] sm:$0xff]
        %v7016 = vld [vmem:[%s7007 + $0x40] sm:$0xff]
        %v7017 = vld [vmem:[%s7007 + $0x48] sm:$0xff]
        %v7018 = vld [vmem:[%s7007 + $0x50] sm:$0xff]
        %v7019 = vld [vmem:[%s7007 + $0x58] sm:$0xff]
        %v7020 = vld [vmem:[%s7007 + $0x60] sm:$0xff]
        %v7021 = vld [vmem:[%s7007 + $0x68] sm:$0xff]
        %v7022 = vld [vmem:[%s7007 + $0x70] sm:$0xff]
        %v7023 = vld [vmem:[%s7007 + $0x78] sm:$0xff]
        %7024 = vmatpush.msra.mxu0 %v7023
        %7025 = vmatpush.msra.mxu0 %v7022
        %7026 = vmatpush.msra.mxu0 %v7021
        %7027 = vmatpush.msra.mxu0 %v7020
        %7028 = vmatpush.msra.mxu0 %v7019
        %7029 = vmatpush.msra.mxu0 %v7018
        %7030 = vmatpush.msra.mxu0 %v7017
        %7031 = vmatpush.msra.mxu0 %v7016
        %7032 = vmatpush.msra.mxu0 %v7015
        %7033 = vmatpush.msra.mxu0 %v7014
        %7034 = vmatpush.msra.mxu0 %v7013
        %7035 = vmatpush.msra.mxu0 %v7012
        %7036 = vmatpush.msra.mxu0 %v7011
        %7037 = vmatpush.msra.mxu0 %v7010
        %7038 = vmatpush.msra.mxu0 %v7009
        %7039 = vmatpush.msra.mxu0 %v7008
        %7040 = vmatmul.f32.gmra.mxu0 %v6933
        %v7041 = vpop.f32.mrf.mxu0
        %v7042 = vadd.f32 0.0, %v7041
        %7043 = vmatmul.f32.gmra.mxu0 %v6936
        %v7044 = vpop.f32.mrf.mxu0
        %v7045 = vadd.f32 0.0, %v7044
        %7046 = vmatmul.f32.gmra.mxu0 %v6939
        %v7047 = vpop.f32.mrf.mxu0
        %v7048 = vadd.f32 0.0, %v7047
        %7049 = vmatmul.f32.gmra.mxu0 %v6942
        %v7050 = vpop.f32.mrf.mxu0
        %v7051 = vadd.f32 0.0, %v7050
        %7052 = vmatmul.f32.gmra.mxu0 %v6945
        %v7053 = vpop.f32.mrf.mxu0
        %v7054 = vadd.f32 0.0, %v7053
        %7055 = vmatmul.f32.gmra.mxu0 %v6948
        %v7056 = vpop.f32.mrf.mxu0
        %v7057 = vadd.f32 0.0, %v7056
        %7058 = vmatmul.f32.gmra.mxu0 %v6951
        %v7059 = vpop.f32.mrf.mxu0
        %v7060 = vadd.f32 0.0, %v7059
        %7061 = vmatmul.f32.gmra.mxu0 %v6954
        %v7062 = vpop.f32.mrf.mxu0
        %v7063 = vadd.f32 0.0, %v7062
        %7064 = vmatmul.f32.gmra.mxu0 %v6957
        %v7065 = vpop.f32.mrf.mxu0
        %v7066 = vadd.f32 0.0, %v7065
        %7067 = vmatmul.f32.gmra.mxu0 %v6960
        %v7068 = vpop.f32.mrf.mxu0
        %v7069 = vadd.f32 0.0, %v7068
        %7070 = vmatmul.f32.gmra.mxu0 %v6963
        %v7071 = vpop.f32.mrf.mxu0
        %v7072 = vadd.f32 0.0, %v7071
        %7073 = vmatmul.f32.gmra.mxu0 %v6966
        %v7074 = vpop.f32.mrf.mxu0
        %v7075 = vadd.f32 0.0, %v7074
        %7076 = vmatmul.f32.gmra.mxu0 %v6969
        %v7077 = vpop.f32.mrf.mxu0
        %v7078 = vadd.f32 0.0, %v7077
        %7079 = vmatmul.f32.gmra.mxu0 %v6972
        %v7080 = vpop.f32.mrf.mxu0
        %v7081 = vadd.f32 0.0, %v7080
        %7082 = vmatmul.f32.gmra.mxu0 %v6975
        %v7083 = vpop.f32.mrf.mxu0
        %v7084 = vadd.f32 0.0, %v7083
        %7085 = vmatmul.f32.gmra.mxu0 %v6978
        %v7086 = vpop.f32.mrf.mxu0
        %v7087 = vadd.f32 0.0, %v7086
        %7088 = vmatmul.f32.gmra.mxu0 %v6981
        %v7089 = vpop.f32.mrf.mxu0
        %v7090 = vadd.f32 0.0, %v7089
        %7091 = vmatmul.f32.gmra.mxu0 %v6984
        %v7092 = vpop.f32.mrf.mxu0
        %v7093 = vadd.f32 0.0, %v7092
        %7094 = vmatmul.f32.gmra.mxu0 %v6987
        %v7095 = vpop.f32.mrf.mxu0
        %v7096 = vadd.f32 0.0, %v7095
        %7097 = vmatmul.f32.gmra.mxu0 %v6990
        %v7098 = vpop.f32.mrf.mxu0
        %v7099 = vadd.f32 0.0, %v7098
        %7100 = vmatmul.f32.gmra.mxu0 %v6993
        %v7101 = vpop.f32.mrf.mxu0
        %v7102 = vadd.f32 0.0, %v7101
        %7103 = vmatmul.f32.gmra.mxu0 %v6996
        %v7104 = vpop.f32.mrf.mxu0
        %v7105 = vadd.f32 0.0, %v7104
        %7106 = vmatmul.f32.gmra.mxu0 %v6999
        %v7107 = vpop.f32.mrf.mxu0
        %v7108 = vadd.f32 0.0, %v7107
        %7109 = vmatmul.f32.gmra.mxu0 %v7002
        %v7110 = vpop.f32.mrf.mxu0
        %v7111 = vadd.f32 0.0, %v7110
        %7112 = vmatmul.f32.gmra.mxu0 %v7005
        %v7113 = vpop.f32.mrf.mxu0
        %v7114 = vadd.f32 0.0, %v7113
        %7115 = vdwg.mxu0
        %v7116 = vadd.f32 %v6672, %v7042
        %v7117 = vadd.f32 %v6673, %v7045
        %v7118 = vadd.f32 %v6674, %v7048
        %v7119 = vadd.f32 %v6675, %v7051
        %v7120 = vadd.f32 %v6676, %v7054
        %v7121 = vadd.f32 %v6677, %v7057
        %v7122 = vadd.f32 %v6678, %v7060
        %v7123 = vadd.f32 %v6679, %v7063
        %v7124 = vadd.f32 %v6680, %v7066
        %v7125 = vadd.f32 %v6681, %v7069
        %v7126 = vadd.f32 %v6682, %v7072
        %v7127 = vadd.f32 %v6683, %v7075
        %v7128 = vadd.f32 %v6684, %v7078
        %v7129 = vadd.f32 %v6685, %v7081
        %v7130 = vadd.f32 %v6686, %v7084
        %v7131 = vadd.f32 %v6687, %v7087
        %v7132 = vadd.f32 %v6688, %v7090
        %v7133 = vadd.f32 %v6689, %v7093
        %v7134 = vadd.f32 %v6690, %v7096
        %v7135 = vadd.f32 %v6691, %v7099
        %v7136 = vadd.f32 %v6692, %v7102
        %v7137 = vadd.f32 %v6693, %v7105
        %v7138 = vadd.f32 %v6694, %v7108
        %v7139 = vadd.f32 %v6695, %v7111
        %v7140 = vadd.f32 %v6696, %v7114
        %s7141 = scalar_lea.vmem [#allocation10], 2000
        %v7142 = vld [vmem:[%s7141] sm:$0xff]
        %v7143 = vld [vmem:[%s7141 + $0x8] sm:$0xff]
        %v7144 = vld [vmem:[%s7141 + $0x10] sm:$0xff]
        %v7145 = vld [vmem:[%s7141 + $0x18] sm:$0xff]
        %v7146 = vld [vmem:[%s7141 + $0x20] sm:$0xff]
        %v7147 = vld [vmem:[%s7141 + $0x28] sm:$0xff]
        %v7148 = vld [vmem:[%s7141 + $0x30] sm:$0xff]
        %v7149 = vld [vmem:[%s7141 + $0x38] sm:$0xff]
        %v7150 = vld [vmem:[%s7141 + $0x40] sm:$0xff]
        %v7151 = vld [vmem:[%s7141 + $0x48] sm:$0xff]
        %v7152 = vld [vmem:[%s7141 + $0x50] sm:$0xff]
        %v7153 = vld [vmem:[%s7141 + $0x58] sm:$0xff]
        %v7154 = vld [vmem:[%s7141 + $0x60] sm:$0xff]
        %v7155 = vld [vmem:[%s7141 + $0x68] sm:$0xff]
        %v7156 = vld [vmem:[%s7141 + $0x70] sm:$0xff]
        %v7157 = vld [vmem:[%s7141 + $0x78] sm:$0xff]
        %v7158 = vld [vmem:[%s7141 + $0x80] sm:$0xff]
        %v7159 = vld [vmem:[%s7141 + $0x88] sm:$0xff]
        %v7160 = vld [vmem:[%s7141 + $0x90] sm:$0xff]
        %v7161 = vld [vmem:[%s7141 + $0x98] sm:$0xff]
        %v7162 = vld [vmem:[%s7141 + $0xa0] sm:$0xff]
        %v7163 = vld [vmem:[%s7141 + $0xa8] sm:$0xff]
        %v7164 = vld [vmem:[%s7141 + $0xb0] sm:$0xff]
        %v7165 = vld [vmem:[%s7141 + $0xb8] sm:$0xff]
        %v7166 = vld [vmem:[%s7141 + $0xc0] sm:$0xff]
        %v7167 = vld [vmem:[%s7141 + $0xc8] sm:$0xff]
        %v7168 = vld [vmem:[%s7141 + $0xd0] sm:$0xff]
        %v7169 = vld [vmem:[%s7141 + $0xd8] sm:$0xff]
        %v7170 = vld [vmem:[%s7141 + $0xe0] sm:$0xff]
        %v7171 = vld [vmem:[%s7141 + $0xe8] sm:$0xff]
        %v7172 = vld [vmem:[%s7141 + $0xf0] sm:$0xff]
        %v7173 = vld [vmem:[%s7141 + $0xf8] sm:$0xff]
        %v7174 = vld [vmem:[%s7141 + $0x100] sm:$0xff]
        %v7175 = vld [vmem:[%s7141 + $0x108] sm:$0xff]
        %v7176 = vld [vmem:[%s7141 + $0x110] sm:$0xff]
        %v7177 = vld [vmem:[%s7141 + $0x118] sm:$0xff]
        %v7178 = vld [vmem:[%s7141 + $0x120] sm:$0xff]
        %v7179 = vld [vmem:[%s7141 + $0x128] sm:$0xff]
        %v7180 = vld [vmem:[%s7141 + $0x130] sm:$0xff]
        %v7181 = vld [vmem:[%s7141 + $0x138] sm:$0xff]
        %v7182 = vld [vmem:[%s7141 + $0x140] sm:$0xff]
        %v7183 = vld [vmem:[%s7141 + $0x148] sm:$0xff]
        %v7184 = vld [vmem:[%s7141 + $0x150] sm:$0xff]
        %v7185 = vld [vmem:[%s7141 + $0x158] sm:$0xff]
        %v7186 = vld [vmem:[%s7141 + $0x160] sm:$0xff]
        %v7187 = vld [vmem:[%s7141 + $0x168] sm:$0xff]
        %v7188 = vld [vmem:[%s7141 + $0x170] sm:$0xff]
        %v7189 = vld [vmem:[%s7141 + $0x178] sm:$0xff]
        %v7190 = vld [vmem:[%s7141 + $0x180] sm:$0xf]
        %v7191 = vld [vmem:[%s7141 + $0x188] sm:$0xf]
        %v7193 = vsel %vm5018, %v7143, 0
        %v7196 = vsel %vm5018, %v7145, 0
        %v7199 = vsel %vm5018, %v7147, 0
        %v7202 = vsel %vm5018, %v7149, 0
        %v7205 = vsel %vm5018, %v7151, 0
        %v7208 = vsel %vm5018, %v7153, 0
        %v7211 = vsel %vm5018, %v7155, 0
        %v7214 = vsel %vm5018, %v7157, 0
        %v7217 = vsel %vm5018, %v7159, 0
        %v7220 = vsel %vm5018, %v7161, 0
        %v7223 = vsel %vm5018, %v7163, 0
        %v7226 = vsel %vm5018, %v7165, 0
        %v7229 = vsel %vm5018, %v7167, 0
        %v7232 = vsel %vm5018, %v7169, 0
        %v7235 = vsel %vm5018, %v7171, 0
        %v7238 = vsel %vm5018, %v7173, 0
        %v7241 = vsel %vm5018, %v7175, 0
        %v7244 = vsel %vm5018, %v7177, 0
        %v7247 = vsel %vm5018, %v7179, 0
        %v7250 = vsel %vm5018, %v7181, 0
        %v7253 = vsel %vm5018, %v7183, 0
        %v7256 = vsel %vm5018, %v7185, 0
        %v7259 = vsel %vm5018, %v7187, 0
        %v7262 = vsel %vm5018, %v7189, 0
        %v7265 = vsel %vm5018, %v7191, 0
        %7267 = vmatpush.msra.mxu0 %v4958
        %7268 = vmatpush.msra.mxu0 %v4957
        %7269 = vmatpush.msra.mxu0 %v4956
        %7270 = vmatpush.msra.mxu0 %v4955
        %7271 = vmatpush.msra.mxu0 %v4954
        %7272 = vmatpush.msra.mxu0 %v4953
        %7273 = vmatpush.msra.mxu0 %v4952
        %7274 = vmatpush.msra.mxu0 %v4951
        %7275 = vmatpush.msra.mxu0 %v4950
        %7276 = vmatpush.msra.mxu0 %v4949
        %7277 = vmatpush.msra.mxu0 %v4948
        %7278 = vmatpush.msra.mxu0 %v4947
        %7279 = vmatpush.msra.mxu0 %v4946
        %7280 = vmatpush.msra.mxu0 %v4945
        %7281 = vmatpush.msra.mxu0 %v4944
        %7282 = vmatpush.msra.mxu0 %v4943
        %7283 = vmatmul.f32.gmra.mxu0 %v7142
        %v7284 = vpop.f32.mrf.mxu0
        %v7285 = vadd.f32 0.0, %v7284
        %7286 = vmatmul.f32.gmra.mxu0 %v7144
        %v7287 = vpop.f32.mrf.mxu0
        %v7288 = vadd.f32 0.0, %v7287
        %7289 = vmatmul.f32.gmra.mxu0 %v7146
        %v7290 = vpop.f32.mrf.mxu0
        %v7291 = vadd.f32 0.0, %v7290
        %7292 = vmatmul.f32.gmra.mxu0 %v7148
        %v7293 = vpop.f32.mrf.mxu0
        %v7294 = vadd.f32 0.0, %v7293
        %7295 = vmatmul.f32.gmra.mxu0 %v7150
        %v7296 = vpop.f32.mrf.mxu0
        %v7297 = vadd.f32 0.0, %v7296
        %7298 = vmatmul.f32.gmra.mxu0 %v7152
        %v7299 = vpop.f32.mrf.mxu0
        %v7300 = vadd.f32 0.0, %v7299
        %7301 = vmatmul.f32.gmra.mxu0 %v7154
        %v7302 = vpop.f32.mrf.mxu0
        %v7303 = vadd.f32 0.0, %v7302
        %7304 = vmatmul.f32.gmra.mxu0 %v7156
        %v7305 = vpop.f32.mrf.mxu0
        %v7306 = vadd.f32 0.0, %v7305
        %7307 = vmatmul.f32.gmra.mxu0 %v7158
        %v7308 = vpop.f32.mrf.mxu0
        %v7309 = vadd.f32 0.0, %v7308
        %7310 = vmatmul.f32.gmra.mxu0 %v7160
        %v7311 = vpop.f32.mrf.mxu0
        %v7312 = vadd.f32 0.0, %v7311
        %7313 = vmatmul.f32.gmra.mxu0 %v7162
        %v7314 = vpop.f32.mrf.mxu0
        %v7315 = vadd.f32 0.0, %v7314
        %7316 = vmatmul.f32.gmra.mxu0 %v7164
        %v7317 = vpop.f32.mrf.mxu0
        %v7318 = vadd.f32 0.0, %v7317
        %7319 = vmatmul.f32.gmra.mxu0 %v7166
        %v7320 = vpop.f32.mrf.mxu0
        %v7321 = vadd.f32 0.0, %v7320
        %7322 = vmatmul.f32.gmra.mxu0 %v7168
        %v7323 = vpop.f32.mrf.mxu0
        %v7324 = vadd.f32 0.0, %v7323
        %7325 = vmatmul.f32.gmra.mxu0 %v7170
        %v7326 = vpop.f32.mrf.mxu0
        %v7327 = vadd.f32 0.0, %v7326
        %7328 = vmatmul.f32.gmra.mxu0 %v7172
        %v7329 = vpop.f32.mrf.mxu0
        %v7330 = vadd.f32 0.0, %v7329
        %7331 = vmatmul.f32.gmra.mxu0 %v7174
        %v7332 = vpop.f32.mrf.mxu0
        %v7333 = vadd.f32 0.0, %v7332
        %7334 = vmatmul.f32.gmra.mxu0 %v7176
        %v7335 = vpop.f32.mrf.mxu0
        %v7336 = vadd.f32 0.0, %v7335
        %7337 = vmatmul.f32.gmra.mxu0 %v7178
        %v7338 = vpop.f32.mrf.mxu0
        %v7339 = vadd.f32 0.0, %v7338
        %7340 = vmatmul.f32.gmra.mxu0 %v7180
        %v7341 = vpop.f32.mrf.mxu0
        %v7342 = vadd.f32 0.0, %v7341
        %7343 = vmatmul.f32.gmra.mxu0 %v7182
        %v7344 = vpop.f32.mrf.mxu0
        %v7345 = vadd.f32 0.0, %v7344
        %7346 = vmatmul.f32.gmra.mxu0 %v7184
        %v7347 = vpop.f32.mrf.mxu0
        %v7348 = vadd.f32 0.0, %v7347
        %7349 = vmatmul.f32.gmra.mxu0 %v7186
        %v7350 = vpop.f32.mrf.mxu0
        %v7351 = vadd.f32 0.0, %v7350
        %7352 = vmatmul.f32.gmra.mxu0 %v7188
        %v7353 = vpop.f32.mrf.mxu0
        %v7354 = vadd.f32 0.0, %v7353
        %7355 = vmatmul.f32.gmra.mxu0 %v7190
        %v7356 = vpop.f32.mrf.mxu0
        %v7357 = vadd.f32 0.0, %v7356
        %7358 = vdwg.mxu0
        %7359 = vmatpush.msra.mxu0 0.0
        %7360 = vmatpush.msra.mxu0 0.0
        %7361 = vmatpush.msra.mxu0 0.0
        %7362 = vmatpush.msra.mxu0 0.0
        %7363 = vmatpush.msra.mxu0 0.0
        %7364 = vmatpush.msra.mxu0 0.0
        %7365 = vmatpush.msra.mxu0 0.0
        %7366 = vmatpush.msra.mxu0 %v5096
        %7367 = vmatpush.msra.mxu0 %v4966
        %7368 = vmatpush.msra.mxu0 %v4965
        %7369 = vmatpush.msra.mxu0 %v4964
        %7370 = vmatpush.msra.mxu0 %v4963
        %7371 = vmatpush.msra.mxu0 %v4962
        %7372 = vmatpush.msra.mxu0 %v4961
        %7373 = vmatpush.msra.mxu0 %v4960
        %7374 = vmatpush.msra.mxu0 %v4959
        %7375 = vmatmul.f32.gmra.mxu0 %v7193
        %v7376 = vpop.f32.mrf.mxu0
        %v7377 = vadd.f32 %v7285, %v7376
        %7378 = vmatmul.f32.gmra.mxu0 %v7196
        %v7379 = vpop.f32.mrf.mxu0
        %v7380 = vadd.f32 %v7288, %v7379
        %7381 = vmatmul.f32.gmra.mxu0 %v7199
        %v7382 = vpop.f32.mrf.mxu0
        %v7383 = vadd.f32 %v7291, %v7382
        %7384 = vmatmul.f32.gmra.mxu0 %v7202
        %v7385 = vpop.f32.mrf.mxu0
        %v7386 = vadd.f32 %v7294, %v7385
        %7387 = vmatmul.f32.gmra.mxu0 %v7205
        %v7388 = vpop.f32.mrf.mxu0
        %v7389 = vadd.f32 %v7297, %v7388
        %7390 = vmatmul.f32.gmra.mxu0 %v7208
        %v7391 = vpop.f32.mrf.mxu0
        %v7392 = vadd.f32 %v7300, %v7391
        %7393 = vmatmul.f32.gmra.mxu0 %v7211
        %v7394 = vpop.f32.mrf.mxu0
        %v7395 = vadd.f32 %v7303, %v7394
        %7396 = vmatmul.f32.gmra.mxu0 %v7214
        %v7397 = vpop.f32.mrf.mxu0
        %v7398 = vadd.f32 %v7306, %v7397
        %7399 = vmatmul.f32.gmra.mxu0 %v7217
        %v7400 = vpop.f32.mrf.mxu0
        %v7401 = vadd.f32 %v7309, %v7400
        %7402 = vmatmul.f32.gmra.mxu0 %v7220
        %v7403 = vpop.f32.mrf.mxu0
        %v7404 = vadd.f32 %v7312, %v7403
        %7405 = vmatmul.f32.gmra.mxu0 %v7223
        %v7406 = vpop.f32.mrf.mxu0
        %v7407 = vadd.f32 %v7315, %v7406
        %7408 = vmatmul.f32.gmra.mxu0 %v7226
        %v7409 = vpop.f32.mrf.mxu0
        %v7410 = vadd.f32 %v7318, %v7409
        %7411 = vmatmul.f32.gmra.mxu0 %v7229
        %v7412 = vpop.f32.mrf.mxu0
        %v7413 = vadd.f32 %v7321, %v7412
        %7414 = vmatmul.f32.gmra.mxu0 %v7232
        %v7415 = vpop.f32.mrf.mxu0
        %v7416 = vadd.f32 %v7324, %v7415
        %7417 = vmatmul.f32.gmra.mxu0 %v7235
        %v7418 = vpop.f32.mrf.mxu0
        %v7419 = vadd.f32 %v7327, %v7418
        %7420 = vmatmul.f32.gmra.mxu0 %v7238
        %v7421 = vpop.f32.mrf.mxu0
        %v7422 = vadd.f32 %v7330, %v7421
        %7423 = vmatmul.f32.gmra.mxu0 %v7241
        %v7424 = vpop.f32.mrf.mxu0
        %v7425 = vadd.f32 %v7333, %v7424
        %7426 = vmatmul.f32.gmra.mxu0 %v7244
        %v7427 = vpop.f32.mrf.mxu0
        %v7428 = vadd.f32 %v7336, %v7427
        %7429 = vmatmul.f32.gmra.mxu0 %v7247
        %v7430 = vpop.f32.mrf.mxu0
        %v7431 = vadd.f32 %v7339, %v7430
        %7432 = vmatmul.f32.gmra.mxu0 %v7250
        %v7433 = vpop.f32.mrf.mxu0
        %v7434 = vadd.f32 %v7342, %v7433
        %7435 = vmatmul.f32.gmra.mxu0 %v7253
        %v7436 = vpop.f32.mrf.mxu0
        %v7437 = vadd.f32 %v7345, %v7436
        %7438 = vmatmul.f32.gmra.mxu0 %v7256
        %v7439 = vpop.f32.mrf.mxu0
        %v7440 = vadd.f32 %v7348, %v7439
        %7441 = vmatmul.f32.gmra.mxu0 %v7259
        %v7442 = vpop.f32.mrf.mxu0
        %v7443 = vadd.f32 %v7351, %v7442
        %7444 = vmatmul.f32.gmra.mxu0 %v7262
        %v7445 = vpop.f32.mrf.mxu0
        %v7446 = vadd.f32 %v7354, %v7445
        %7447 = vmatmul.f32.gmra.mxu0 %v7265
        %v7448 = vpop.f32.mrf.mxu0
        %v7449 = vadd.f32 %v7357, %v7448
        %7450 = vdwg.mxu0
        %s7451 = scalar_lea.vmem [#allocation7], 640
        %v7452 = vld [vmem:[%s7451] sm:$0xff]
        %v7453 = vld [vmem:[%s7451 + $0x8] sm:$0xff]
        %v7454 = vld [vmem:[%s7451 + $0x10] sm:$0xff]
        %v7455 = vld [vmem:[%s7451 + $0x18] sm:$0xff]
        %v7456 = vld [vmem:[%s7451 + $0x20] sm:$0xff]
        %v7457 = vld [vmem:[%s7451 + $0x28] sm:$0xff]
        %v7458 = vld [vmem:[%s7451 + $0x30] sm:$0xff]
        %v7459 = vld [vmem:[%s7451 + $0x38] sm:$0xff]
        %v7460 = vld [vmem:[%s7451 + $0x40] sm:$0xff]
        %v7461 = vld [vmem:[%s7451 + $0x48] sm:$0xff]
        %v7462 = vld [vmem:[%s7451 + $0x50] sm:$0xff]
        %v7463 = vld [vmem:[%s7451 + $0x58] sm:$0xff]
        %v7464 = vld [vmem:[%s7451 + $0x60] sm:$0xff]
        %v7465 = vld [vmem:[%s7451 + $0x68] sm:$0xff]
        %v7466 = vld [vmem:[%s7451 + $0x70] sm:$0xff]
        %v7467 = vld [vmem:[%s7451 + $0x78] sm:$0xff]
        %7468 = vmatpush.msra.mxu0 %v7467
        %7469 = vmatpush.msra.mxu0 %v7466
        %7470 = vmatpush.msra.mxu0 %v7465
        %7471 = vmatpush.msra.mxu0 %v7464
        %7472 = vmatpush.msra.mxu0 %v7463
        %7473 = vmatpush.msra.mxu0 %v7462
        %7474 = vmatpush.msra.mxu0 %v7461
        %7475 = vmatpush.msra.mxu0 %v7460
        %7476 = vmatpush.msra.mxu0 %v7459
        %7477 = vmatpush.msra.mxu0 %v7458
        %7478 = vmatpush.msra.mxu0 %v7457
        %7479 = vmatpush.msra.mxu0 %v7456
        %7480 = vmatpush.msra.mxu0 %v7455
        %7481 = vmatpush.msra.mxu0 %v7454
        %7482 = vmatpush.msra.mxu0 %v7453
        %7483 = vmatpush.msra.mxu0 %v7452
        %7484 = vmatmul.f32.gmra.mxu0 %v7377
        %v7485 = vpop.f32.mrf.mxu0
        %v7486 = vadd.f32 0.0, %v7485
        %7487 = vmatmul.f32.gmra.mxu0 %v7380
        %v7488 = vpop.f32.mrf.mxu0
        %v7489 = vadd.f32 0.0, %v7488
        %7490 = vmatmul.f32.gmra.mxu0 %v7383
        %v7491 = vpop.f32.mrf.mxu0
        %v7492 = vadd.f32 0.0, %v7491
        %7493 = vmatmul.f32.gmra.mxu0 %v7386
        %v7494 = vpop.f32.mrf.mxu0
        %v7495 = vadd.f32 0.0, %v7494
        %7496 = vmatmul.f32.gmra.mxu0 %v7389
        %v7497 = vpop.f32.mrf.mxu0
        %v7498 = vadd.f32 0.0, %v7497
        %7499 = vmatmul.f32.gmra.mxu0 %v7392
        %v7500 = vpop.f32.mrf.mxu0
        %v7501 = vadd.f32 0.0, %v7500
        %7502 = vmatmul.f32.gmra.mxu0 %v7395
        %v7503 = vpop.f32.mrf.mxu0
        %v7504 = vadd.f32 0.0, %v7503
        %7505 = vmatmul.f32.gmra.mxu0 %v7398
        %v7506 = vpop.f32.mrf.mxu0
        %v7507 = vadd.f32 0.0, %v7506
        %7508 = vmatmul.f32.gmra.mxu0 %v7401
        %v7509 = vpop.f32.mrf.mxu0
        %v7510 = vadd.f32 0.0, %v7509
        %7511 = vmatmul.f32.gmra.mxu0 %v7404
        %v7512 = vpop.f32.mrf.mxu0
        %v7513 = vadd.f32 0.0, %v7512
        %7514 = vmatmul.f32.gmra.mxu0 %v7407
        %v7515 = vpop.f32.mrf.mxu0
        %v7516 = vadd.f32 0.0, %v7515
        %7517 = vmatmul.f32.gmra.mxu0 %v7410
        %v7518 = vpop.f32.mrf.mxu0
        %v7519 = vadd.f32 0.0, %v7518
        %7520 = vmatmul.f32.gmra.mxu0 %v7413
        %v7521 = vpop.f32.mrf.mxu0
        %v7522 = vadd.f32 0.0, %v7521
        %7523 = vmatmul.f32.gmra.mxu0 %v7416
        %v7524 = vpop.f32.mrf.mxu0
        %v7525 = vadd.f32 0.0, %v7524
        %7526 = vmatmul.f32.gmra.mxu0 %v7419
        %v7527 = vpop.f32.mrf.mxu0
        %v7528 = vadd.f32 0.0, %v7527
        %7529 = vmatmul.f32.gmra.mxu0 %v7422
        %v7530 = vpop.f32.mrf.mxu0
        %v7531 = vadd.f32 0.0, %v7530
        %7532 = vmatmul.f32.gmra.mxu0 %v7425
        %v7533 = vpop.f32.mrf.mxu0
        %v7534 = vadd.f32 0.0, %v7533
        %7535 = vmatmul.f32.gmra.mxu0 %v7428
        %v7536 = vpop.f32.mrf.mxu0
        %v7537 = vadd.f32 0.0, %v7536
        %7538 = vmatmul.f32.gmra.mxu0 %v7431
        %v7539 = vpop.f32.mrf.mxu0
        %v7540 = vadd.f32 0.0, %v7539
        %7541 = vmatmul.f32.gmra.mxu0 %v7434
        %v7542 = vpop.f32.mrf.mxu0
        %v7543 = vadd.f32 0.0, %v7542
        %7544 = vmatmul.f32.gmra.mxu0 %v7437
        %v7545 = vpop.f32.mrf.mxu0
        %v7546 = vadd.f32 0.0, %v7545
        %7547 = vmatmul.f32.gmra.mxu0 %v7440
        %v7548 = vpop.f32.mrf.mxu0
        %v7549 = vadd.f32 0.0, %v7548
        %7550 = vmatmul.f32.gmra.mxu0 %v7443
        %v7551 = vpop.f32.mrf.mxu0
        %v7552 = vadd.f32 0.0, %v7551
        %7553 = vmatmul.f32.gmra.mxu0 %v7446
        %v7554 = vpop.f32.mrf.mxu0
        %v7555 = vadd.f32 0.0, %v7554
        %7556 = vmatmul.f32.gmra.mxu0 %v7449
        %v7557 = vpop.f32.mrf.mxu0
        %v7558 = vadd.f32 0.0, %v7557
        %7559 = vdwg.mxu0
        %v7560 = vadd.f32 %v7116, %v7486
        %v7561 = vadd.f32 %v7117, %v7489
        %v7562 = vadd.f32 %v7118, %v7492
        %v7563 = vadd.f32 %v7119, %v7495
        %v7564 = vadd.f32 %v7120, %v7498
        %v7565 = vadd.f32 %v7121, %v7501
        %v7566 = vadd.f32 %v7122, %v7504
        %v7567 = vadd.f32 %v7123, %v7507
        %v7568 = vadd.f32 %v7124, %v7510
        %v7569 = vadd.f32 %v7125, %v7513
        %v7570 = vadd.f32 %v7126, %v7516
        %v7571 = vadd.f32 %v7127, %v7519
        %v7572 = vadd.f32 %v7128, %v7522
        %v7573 = vadd.f32 %v7129, %v7525
        %v7574 = vadd.f32 %v7130, %v7528
        %v7575 = vadd.f32 %v7131, %v7531
        %v7576 = vadd.f32 %v7132, %v7534
        %v7577 = vadd.f32 %v7133, %v7537
        %v7578 = vadd.f32 %v7134, %v7540
        %v7579 = vadd.f32 %v7135, %v7543
        %v7580 = vadd.f32 %v7136, %v7546
        %v7581 = vadd.f32 %v7137, %v7549
        %v7582 = vadd.f32 %v7138, %v7552
        %v7583 = vadd.f32 %v7139, %v7555
        %v7584 = vadd.f32 %v7140, %v7558
        %s7585 = scalar_lea.vmem [#allocation10], 2400
        %v7586 = vld [vmem:[%s7585] sm:$0xff]
        %v7587 = vld [vmem:[%s7585 + $0x8] sm:$0xff]
        %v7588 = vld [vmem:[%s7585 + $0x10] sm:$0xff]
        %v7589 = vld [vmem:[%s7585 + $0x18] sm:$0xff]
        %v7590 = vld [vmem:[%s7585 + $0x20] sm:$0xff]
        %v7591 = vld [vmem:[%s7585 + $0x28] sm:$0xff]
        %v7592 = vld [vmem:[%s7585 + $0x30] sm:$0xff]
        %v7593 = vld [vmem:[%s7585 + $0x38] sm:$0xff]
        %v7594 = vld [vmem:[%s7585 + $0x40] sm:$0xff]
        %v7595 = vld [vmem:[%s7585 + $0x48] sm:$0xff]
        %v7596 = vld [vmem:[%s7585 + $0x50] sm:$0xff]
        %v7597 = vld [vmem:[%s7585 + $0x58] sm:$0xff]
        %v7598 = vld [vmem:[%s7585 + $0x60] sm:$0xff]
        %v7599 = vld [vmem:[%s7585 + $0x68] sm:$0xff]
        %v7600 = vld [vmem:[%s7585 + $0x70] sm:$0xff]
        %v7601 = vld [vmem:[%s7585 + $0x78] sm:$0xff]
        %v7602 = vld [vmem:[%s7585 + $0x80] sm:$0xff]
        %v7603 = vld [vmem:[%s7585 + $0x88] sm:$0xff]
        %v7604 = vld [vmem:[%s7585 + $0x90] sm:$0xff]
        %v7605 = vld [vmem:[%s7585 + $0x98] sm:$0xff]
        %v7606 = vld [vmem:[%s7585 + $0xa0] sm:$0xff]
        %v7607 = vld [vmem:[%s7585 + $0xa8] sm:$0xff]
        %v7608 = vld [vmem:[%s7585 + $0xb0] sm:$0xff]
        %v7609 = vld [vmem:[%s7585 + $0xb8] sm:$0xff]
        %v7610 = vld [vmem:[%s7585 + $0xc0] sm:$0xff]
        %v7611 = vld [vmem:[%s7585 + $0xc8] sm:$0xff]
        %v7612 = vld [vmem:[%s7585 + $0xd0] sm:$0xff]
        %v7613 = vld [vmem:[%s7585 + $0xd8] sm:$0xff]
        %v7614 = vld [vmem:[%s7585 + $0xe0] sm:$0xff]
        %v7615 = vld [vmem:[%s7585 + $0xe8] sm:$0xff]
        %v7616 = vld [vmem:[%s7585 + $0xf0] sm:$0xff]
        %v7617 = vld [vmem:[%s7585 + $0xf8] sm:$0xff]
        %v7618 = vld [vmem:[%s7585 + $0x100] sm:$0xff]
        %v7619 = vld [vmem:[%s7585 + $0x108] sm:$0xff]
        %v7620 = vld [vmem:[%s7585 + $0x110] sm:$0xff]
        %v7621 = vld [vmem:[%s7585 + $0x118] sm:$0xff]
        %v7622 = vld [vmem:[%s7585 + $0x120] sm:$0xff]
        %v7623 = vld [vmem:[%s7585 + $0x128] sm:$0xff]
        %v7624 = vld [vmem:[%s7585 + $0x130] sm:$0xff]
        %v7625 = vld [vmem:[%s7585 + $0x138] sm:$0xff]
        %v7626 = vld [vmem:[%s7585 + $0x140] sm:$0xff]
        %v7627 = vld [vmem:[%s7585 + $0x148] sm:$0xff]
        %v7628 = vld [vmem:[%s7585 + $0x150] sm:$0xff]
        %v7629 = vld [vmem:[%s7585 + $0x158] sm:$0xff]
        %v7630 = vld [vmem:[%s7585 + $0x160] sm:$0xff]
        %v7631 = vld [vmem:[%s7585 + $0x168] sm:$0xff]
        %v7632 = vld [vmem:[%s7585 + $0x170] sm:$0xff]
        %v7633 = vld [vmem:[%s7585 + $0x178] sm:$0xff]
        %v7634 = vld [vmem:[%s7585 + $0x180] sm:$0xf]
        %v7635 = vld [vmem:[%s7585 + $0x188] sm:$0xf]
        %v7637 = vsel %vm5018, %v7587, 0
        %v7640 = vsel %vm5018, %v7589, 0
        %v7643 = vsel %vm5018, %v7591, 0
        %v7646 = vsel %vm5018, %v7593, 0
        %v7649 = vsel %vm5018, %v7595, 0
        %v7652 = vsel %vm5018, %v7597, 0
        %v7655 = vsel %vm5018, %v7599, 0
        %v7658 = vsel %vm5018, %v7601, 0
        %v7661 = vsel %vm5018, %v7603, 0
        %v7664 = vsel %vm5018, %v7605, 0
        %v7667 = vsel %vm5018, %v7607, 0
        %v7670 = vsel %vm5018, %v7609, 0
        %v7673 = vsel %vm5018, %v7611, 0
        %v7676 = vsel %vm5018, %v7613, 0
        %v7679 = vsel %vm5018, %v7615, 0
        %v7682 = vsel %vm5018, %v7617, 0
        %v7685 = vsel %vm5018, %v7619, 0
        %v7688 = vsel %vm5018, %v7621, 0
        %v7691 = vsel %vm5018, %v7623, 0
        %v7694 = vsel %vm5018, %v7625, 0
        %v7697 = vsel %vm5018, %v7627, 0
        %v7700 = vsel %vm5018, %v7629, 0
        %v7703 = vsel %vm5018, %v7631, 0
        %v7706 = vsel %vm5018, %v7633, 0
        %v7709 = vsel %vm5018, %v7635, 0
        %7711 = vmatpush.msra.mxu0 %v4958
        %7712 = vmatpush.msra.mxu0 %v4957
        %7713 = vmatpush.msra.mxu0 %v4956
        %7714 = vmatpush.msra.mxu0 %v4955
        %7715 = vmatpush.msra.mxu0 %v4954
        %7716 = vmatpush.msra.mxu0 %v4953
        %7717 = vmatpush.msra.mxu0 %v4952
        %7718 = vmatpush.msra.mxu0 %v4951
        %7719 = vmatpush.msra.mxu0 %v4950
        %7720 = vmatpush.msra.mxu0 %v4949
        %7721 = vmatpush.msra.mxu0 %v4948
        %7722 = vmatpush.msra.mxu0 %v4947
        %7723 = vmatpush.msra.mxu0 %v4946
        %7724 = vmatpush.msra.mxu0 %v4945
        %7725 = vmatpush.msra.mxu0 %v4944
        %7726 = vmatpush.msra.mxu0 %v4943
        %7727 = vmatmul.f32.gmra.mxu0 %v7586
        %v7728 = vpop.f32.mrf.mxu0
        %v7729 = vadd.f32 0.0, %v7728
        %7730 = vmatmul.f32.gmra.mxu0 %v7588
        %v7731 = vpop.f32.mrf.mxu0
        %v7732 = vadd.f32 0.0, %v7731
        %7733 = vmatmul.f32.gmra.mxu0 %v7590
        %v7734 = vpop.f32.mrf.mxu0
        %v7735 = vadd.f32 0.0, %v7734
        %7736 = vmatmul.f32.gmra.mxu0 %v7592
        %v7737 = vpop.f32.mrf.mxu0
        %v7738 = vadd.f32 0.0, %v7737
        %7739 = vmatmul.f32.gmra.mxu0 %v7594
        %v7740 = vpop.f32.mrf.mxu0
        %v7741 = vadd.f32 0.0, %v7740
        %7742 = vmatmul.f32.gmra.mxu0 %v7596
        %v7743 = vpop.f32.mrf.mxu0
        %v7744 = vadd.f32 0.0, %v7743
        %7745 = vmatmul.f32.gmra.mxu0 %v7598
        %v7746 = vpop.f32.mrf.mxu0
        %v7747 = vadd.f32 0.0, %v7746
        %7748 = vmatmul.f32.gmra.mxu0 %v7600
        %v7749 = vpop.f32.mrf.mxu0
        %v7750 = vadd.f32 0.0, %v7749
        %7751 = vmatmul.f32.gmra.mxu0 %v7602
        %v7752 = vpop.f32.mrf.mxu0
        %v7753 = vadd.f32 0.0, %v7752
        %7754 = vmatmul.f32.gmra.mxu0 %v7604
        %v7755 = vpop.f32.mrf.mxu0
        %v7756 = vadd.f32 0.0, %v7755
        %7757 = vmatmul.f32.gmra.mxu0 %v7606
        %v7758 = vpop.f32.mrf.mxu0
        %v7759 = vadd.f32 0.0, %v7758
        %7760 = vmatmul.f32.gmra.mxu0 %v7608
        %v7761 = vpop.f32.mrf.mxu0
        %v7762 = vadd.f32 0.0, %v7761
        %7763 = vmatmul.f32.gmra.mxu0 %v7610
        %v7764 = vpop.f32.mrf.mxu0
        %v7765 = vadd.f32 0.0, %v7764
        %7766 = vmatmul.f32.gmra.mxu0 %v7612
        %v7767 = vpop.f32.mrf.mxu0
        %v7768 = vadd.f32 0.0, %v7767
        %7769 = vmatmul.f32.gmra.mxu0 %v7614
        %v7770 = vpop.f32.mrf.mxu0
        %v7771 = vadd.f32 0.0, %v7770
        %7772 = vmatmul.f32.gmra.mxu0 %v7616
        %v7773 = vpop.f32.mrf.mxu0
        %v7774 = vadd.f32 0.0, %v7773
        %7775 = vmatmul.f32.gmra.mxu0 %v7618
        %v7776 = vpop.f32.mrf.mxu0
        %v7777 = vadd.f32 0.0, %v7776
        %7778 = vmatmul.f32.gmra.mxu0 %v7620
        %v7779 = vpop.f32.mrf.mxu0
        %v7780 = vadd.f32 0.0, %v7779
        %7781 = vmatmul.f32.gmra.mxu0 %v7622
        %v7782 = vpop.f32.mrf.mxu0
        %v7783 = vadd.f32 0.0, %v7782
        %7784 = vmatmul.f32.gmra.mxu0 %v7624
        %v7785 = vpop.f32.mrf.mxu0
        %v7786 = vadd.f32 0.0, %v7785
        %7787 = vmatmul.f32.gmra.mxu0 %v7626
        %v7788 = vpop.f32.mrf.mxu0
        %v7789 = vadd.f32 0.0, %v7788
        %7790 = vmatmul.f32.gmra.mxu0 %v7628
        %v7791 = vpop.f32.mrf.mxu0
        %v7792 = vadd.f32 0.0, %v7791
        %7793 = vmatmul.f32.gmra.mxu0 %v7630
        %v7794 = vpop.f32.mrf.mxu0
        %v7795 = vadd.f32 0.0, %v7794
        %7796 = vmatmul.f32.gmra.mxu0 %v7632
        %v7797 = vpop.f32.mrf.mxu0
        %v7798 = vadd.f32 0.0, %v7797
        %7799 = vmatmul.f32.gmra.mxu0 %v7634
        %v7800 = vpop.f32.mrf.mxu0
        %v7801 = vadd.f32 0.0, %v7800
        %7802 = vdwg.mxu0
        %7803 = vmatpush.msra.mxu0 0.0
        %7804 = vmatpush.msra.mxu0 0.0
        %7805 = vmatpush.msra.mxu0 0.0
        %7806 = vmatpush.msra.mxu0 0.0
        %7807 = vmatpush.msra.mxu0 0.0
        %7808 = vmatpush.msra.mxu0 0.0
        %7809 = vmatpush.msra.mxu0 0.0
        %7810 = vmatpush.msra.mxu0 %v5096
        %7811 = vmatpush.msra.mxu0 %v4966
        %7812 = vmatpush.msra.mxu0 %v4965
        %7813 = vmatpush.msra.mxu0 %v4964
        %7814 = vmatpush.msra.mxu0 %v4963
        %7815 = vmatpush.msra.mxu0 %v4962
        %7816 = vmatpush.msra.mxu0 %v4961
        %7817 = vmatpush.msra.mxu0 %v4960
        %7818 = vmatpush.msra.mxu0 %v4959
        %7819 = vmatmul.f32.gmra.mxu0 %v7637
        %v7820 = vpop.f32.mrf.mxu0
        %v7821 = vadd.f32 %v7729, %v7820
        %7822 = vmatmul.f32.gmra.mxu0 %v7640
        %v7823 = vpop.f32.mrf.mxu0
        %v7824 = vadd.f32 %v7732, %v7823
        %7825 = vmatmul.f32.gmra.mxu0 %v7643
        %v7826 = vpop.f32.mrf.mxu0
        %v7827 = vadd.f32 %v7735, %v7826
        %7828 = vmatmul.f32.gmra.mxu0 %v7646
        %v7829 = vpop.f32.mrf.mxu0
        %v7830 = vadd.f32 %v7738, %v7829
        %7831 = vmatmul.f32.gmra.mxu0 %v7649
        %v7832 = vpop.f32.mrf.mxu0
        %v7833 = vadd.f32 %v7741, %v7832
        %7834 = vmatmul.f32.gmra.mxu0 %v7652
        %v7835 = vpop.f32.mrf.mxu0
        %v7836 = vadd.f32 %v7744, %v7835
        %7837 = vmatmul.f32.gmra.mxu0 %v7655
        %v7838 = vpop.f32.mrf.mxu0
        %v7839 = vadd.f32 %v7747, %v7838
        %7840 = vmatmul.f32.gmra.mxu0 %v7658
        %v7841 = vpop.f32.mrf.mxu0
        %v7842 = vadd.f32 %v7750, %v7841
        %7843 = vmatmul.f32.gmra.mxu0 %v7661
        %v7844 = vpop.f32.mrf.mxu0
        %v7845 = vadd.f32 %v7753, %v7844
        %7846 = vmatmul.f32.gmra.mxu0 %v7664
        %v7847 = vpop.f32.mrf.mxu0
        %v7848 = vadd.f32 %v7756, %v7847
        %7849 = vmatmul.f32.gmra.mxu0 %v7667
        %v7850 = vpop.f32.mrf.mxu0
        %v7851 = vadd.f32 %v7759, %v7850
        %7852 = vmatmul.f32.gmra.mxu0 %v7670
        %v7853 = vpop.f32.mrf.mxu0
        %v7854 = vadd.f32 %v7762, %v7853
        %7855 = vmatmul.f32.gmra.mxu0 %v7673
        %v7856 = vpop.f32.mrf.mxu0
        %v7857 = vadd.f32 %v7765, %v7856
        %7858 = vmatmul.f32.gmra.mxu0 %v7676
        %v7859 = vpop.f32.mrf.mxu0
        %v7860 = vadd.f32 %v7768, %v7859
        %7861 = vmatmul.f32.gmra.mxu0 %v7679
        %v7862 = vpop.f32.mrf.mxu0
        %v7863 = vadd.f32 %v7771, %v7862
        %7864 = vmatmul.f32.gmra.mxu0 %v7682
        %v7865 = vpop.f32.mrf.mxu0
        %v7866 = vadd.f32 %v7774, %v7865
        %7867 = vmatmul.f32.gmra.mxu0 %v7685
        %v7868 = vpop.f32.mrf.mxu0
        %v7869 = vadd.f32 %v7777, %v7868
        %7870 = vmatmul.f32.gmra.mxu0 %v7688
        %v7871 = vpop.f32.mrf.mxu0
        %v7872 = vadd.f32 %v7780, %v7871
        %7873 = vmatmul.f32.gmra.mxu0 %v7691
        %v7874 = vpop.f32.mrf.mxu0
        %v7875 = vadd.f32 %v7783, %v7874
        %7876 = vmatmul.f32.gmra.mxu0 %v7694
        %v7877 = vpop.f32.mrf.mxu0
        %v7878 = vadd.f32 %v7786, %v7877
        %7879 = vmatmul.f32.gmra.mxu0 %v7697
        %v7880 = vpop.f32.mrf.mxu0
        %v7881 = vadd.f32 %v7789, %v7880
        %7882 = vmatmul.f32.gmra.mxu0 %v7700
        %v7883 = vpop.f32.mrf.mxu0
        %v7884 = vadd.f32 %v7792, %v7883
        %7885 = vmatmul.f32.gmra.mxu0 %v7703
        %v7886 = vpop.f32.mrf.mxu0
        %v7887 = vadd.f32 %v7795, %v7886
        %7888 = vmatmul.f32.gmra.mxu0 %v7706
        %v7889 = vpop.f32.mrf.mxu0
        %v7890 = vadd.f32 %v7798, %v7889
        %7891 = vmatmul.f32.gmra.mxu0 %v7709
        %v7892 = vpop.f32.mrf.mxu0
        %v7893 = vadd.f32 %v7801, %v7892
        %7894 = vdwg.mxu0
        %s7895 = scalar_lea.vmem [#allocation7], 768
        %v7896 = vld [vmem:[%s7895] sm:$0xff]
        %v7897 = vld [vmem:[%s7895 + $0x8] sm:$0xff]
        %v7898 = vld [vmem:[%s7895 + $0x10] sm:$0xff]
        %v7899 = vld [vmem:[%s7895 + $0x18] sm:$0xff]
        %v7900 = vld [vmem:[%s7895 + $0x20] sm:$0xff]
        %v7901 = vld [vmem:[%s7895 + $0x28] sm:$0xff]
        %v7902 = vld [vmem:[%s7895 + $0x30] sm:$0xff]
        %v7903 = vld [vmem:[%s7895 + $0x38] sm:$0xff]
        %v7904 = vld [vmem:[%s7895 + $0x40] sm:$0xff]
        %v7905 = vld [vmem:[%s7895 + $0x48] sm:$0xff]
        %v7906 = vld [vmem:[%s7895 + $0x50] sm:$0xff]
        %v7907 = vld [vmem:[%s7895 + $0x58] sm:$0xff]
        %v7908 = vld [vmem:[%s7895 + $0x60] sm:$0xff]
        %v7909 = vld [vmem:[%s7895 + $0x68] sm:$0xff]
        %v7910 = vld [vmem:[%s7895 + $0x70] sm:$0xff]
        %v7911 = vld [vmem:[%s7895 + $0x78] sm:$0xff]
        %7912 = vmatpush.msra.mxu0 %v7911
        %7913 = vmatpush.msra.mxu0 %v7910
        %7914 = vmatpush.msra.mxu0 %v7909
        %7915 = vmatpush.msra.mxu0 %v7908
        %7916 = vmatpush.msra.mxu0 %v7907
        %7917 = vmatpush.msra.mxu0 %v7906
        %7918 = vmatpush.msra.mxu0 %v7905
        %7919 = vmatpush.msra.mxu0 %v7904
        %7920 = vmatpush.msra.mxu0 %v7903
        %7921 = vmatpush.msra.mxu0 %v7902
        %7922 = vmatpush.msra.mxu0 %v7901
        %7923 = vmatpush.msra.mxu0 %v7900
        %7924 = vmatpush.msra.mxu0 %v7899
        %7925 = vmatpush.msra.mxu0 %v7898
        %7926 = vmatpush.msra.mxu0 %v7897
        %7927 = vmatpush.msra.mxu0 %v7896
        %7928 = vmatmul.f32.gmra.mxu0 %v7821
        %v7929 = vpop.f32.mrf.mxu0
        %v7930 = vadd.f32 0.0, %v7929
        %7931 = vmatmul.f32.gmra.mxu0 %v7824
        %v7932 = vpop.f32.mrf.mxu0
        %v7933 = vadd.f32 0.0, %v7932
        %7934 = vmatmul.f32.gmra.mxu0 %v7827
        %v7935 = vpop.f32.mrf.mxu0
        %v7936 = vadd.f32 0.0, %v7935
        %7937 = vmatmul.f32.gmra.mxu0 %v7830
        %v7938 = vpop.f32.mrf.mxu0
        %v7939 = vadd.f32 0.0, %v7938
        %7940 = vmatmul.f32.gmra.mxu0 %v7833
        %v7941 = vpop.f32.mrf.mxu0
        %v7942 = vadd.f32 0.0, %v7941
        %7943 = vmatmul.f32.gmra.mxu0 %v7836
        %v7944 = vpop.f32.mrf.mxu0
        %v7945 = vadd.f32 0.0, %v7944
        %7946 = vmatmul.f32.gmra.mxu0 %v7839
        %v7947 = vpop.f32.mrf.mxu0
        %v7948 = vadd.f32 0.0, %v7947
        %7949 = vmatmul.f32.gmra.mxu0 %v7842
        %v7950 = vpop.f32.mrf.mxu0
        %v7951 = vadd.f32 0.0, %v7950
        %7952 = vmatmul.f32.gmra.mxu0 %v7845
        %v7953 = vpop.f32.mrf.mxu0
        %v7954 = vadd.f32 0.0, %v7953
        %7955 = vmatmul.f32.gmra.mxu0 %v7848
        %v7956 = vpop.f32.mrf.mxu0
        %v7957 = vadd.f32 0.0, %v7956
        %7958 = vmatmul.f32.gmra.mxu0 %v7851
        %v7959 = vpop.f32.mrf.mxu0
        %v7960 = vadd.f32 0.0, %v7959
        %7961 = vmatmul.f32.gmra.mxu0 %v7854
        %v7962 = vpop.f32.mrf.mxu0
        %v7963 = vadd.f32 0.0, %v7962
        %7964 = vmatmul.f32.gmra.mxu0 %v7857
        %v7965 = vpop.f32.mrf.mxu0
        %v7966 = vadd.f32 0.0, %v7965
        %7967 = vmatmul.f32.gmra.mxu0 %v7860
        %v7968 = vpop.f32.mrf.mxu0
        %v7969 = vadd.f32 0.0, %v7968
        %7970 = vmatmul.f32.gmra.mxu0 %v7863
        %v7971 = vpop.f32.mrf.mxu0
        %v7972 = vadd.f32 0.0, %v7971
        %7973 = vmatmul.f32.gmra.mxu0 %v7866
        %v7974 = vpop.f32.mrf.mxu0
        %v7975 = vadd.f32 0.0, %v7974
        %7976 = vmatmul.f32.gmra.mxu0 %v7869
        %v7977 = vpop.f32.mrf.mxu0
        %v7978 = vadd.f32 0.0, %v7977
        %7979 = vmatmul.f32.gmra.mxu0 %v7872
        %v7980 = vpop.f32.mrf.mxu0
        %v7981 = vadd.f32 0.0, %v7980
        %7982 = vmatmul.f32.gmra.mxu0 %v7875
        %v7983 = vpop.f32.mrf.mxu0
        %v7984 = vadd.f32 0.0, %v7983
        %7985 = vmatmul.f32.gmra.mxu0 %v7878
        %v7986 = vpop.f32.mrf.mxu0
        %v7987 = vadd.f32 0.0, %v7986
        %7988 = vmatmul.f32.gmra.mxu0 %v7881
        %v7989 = vpop.f32.mrf.mxu0
        %v7990 = vadd.f32 0.0, %v7989
        %7991 = vmatmul.f32.gmra.mxu0 %v7884
        %v7992 = vpop.f32.mrf.mxu0
        %v7993 = vadd.f32 0.0, %v7992
        %7994 = vmatmul.f32.gmra.mxu0 %v7887
        %v7995 = vpop.f32.mrf.mxu0
        %v7996 = vadd.f32 0.0, %v7995
        %7997 = vmatmul.f32.gmra.mxu0 %v7890
        %v7998 = vpop.f32.mrf.mxu0
        %v7999 = vadd.f32 0.0, %v7998
        %8000 = vmatmul.f32.gmra.mxu0 %v7893
        %v8001 = vpop.f32.mrf.mxu0
        %v8002 = vadd.f32 0.0, %v8001
        %8003 = vdwg.mxu0
        %v8004 = vadd.f32 %v7560, %v7930
        %v8005 = vadd.f32 %v7561, %v7933
        %v8006 = vadd.f32 %v7562, %v7936
        %v8007 = vadd.f32 %v7563, %v7939
        %v8008 = vadd.f32 %v7564, %v7942
        %v8009 = vadd.f32 %v7565, %v7945
        %v8010 = vadd.f32 %v7566, %v7948
        %v8011 = vadd.f32 %v7567, %v7951
        %v8012 = vadd.f32 %v7568, %v7954
        %v8013 = vadd.f32 %v7569, %v7957
        %v8014 = vadd.f32 %v7570, %v7960
        %v8015 = vadd.f32 %v7571, %v7963
        %v8016 = vadd.f32 %v7572, %v7966
        %v8017 = vadd.f32 %v7573, %v7969
        %v8018 = vadd.f32 %v7574, %v7972
        %v8019 = vadd.f32 %v7575, %v7975
        %v8020 = vadd.f32 %v7576, %v7978
        %v8021 = vadd.f32 %v7577, %v7981
        %v8022 = vadd.f32 %v7578, %v7984
        %v8023 = vadd.f32 %v7579, %v7987
        %v8024 = vadd.f32 %v7580, %v7990
        %v8025 = vadd.f32 %v7581, %v7993
        %v8026 = vadd.f32 %v7582, %v7996
        %v8027 = vadd.f32 %v7583, %v7999
        %v8028 = vadd.f32 %v7584, %v8002
        %s8029 = scalar_lea.vmem [#allocation10], 2800
        %v8030 = vld [vmem:[%s8029] sm:$0xff]
        %v8031 = vld [vmem:[%s8029 + $0x8] sm:$0xff]
        %v8032 = vld [vmem:[%s8029 + $0x10] sm:$0xff]
        %v8033 = vld [vmem:[%s8029 + $0x18] sm:$0xff]
        %v8034 = vld [vmem:[%s8029 + $0x20] sm:$0xff]
        %v8035 = vld [vmem:[%s8029 + $0x28] sm:$0xff]
        %v8036 = vld [vmem:[%s8029 + $0x30] sm:$0xff]
        %v8037 = vld [vmem:[%s8029 + $0x38] sm:$0xff]
        %v8038 = vld [vmem:[%s8029 + $0x40] sm:$0xff]
        %v8039 = vld [vmem:[%s8029 + $0x48] sm:$0xff]
        %v8040 = vld [vmem:[%s8029 + $0x50] sm:$0xff]
        %v8041 = vld [vmem:[%s8029 + $0x58] sm:$0xff]
        %v8042 = vld [vmem:[%s8029 + $0x60] sm:$0xff]
        %v8043 = vld [vmem:[%s8029 + $0x68] sm:$0xff]
        %v8044 = vld [vmem:[%s8029 + $0x70] sm:$0xff]
        %v8045 = vld [vmem:[%s8029 + $0x78] sm:$0xff]
        %v8046 = vld [vmem:[%s8029 + $0x80] sm:$0xff]
        %v8047 = vld [vmem:[%s8029 + $0x88] sm:$0xff]
        %v8048 = vld [vmem:[%s8029 + $0x90] sm:$0xff]
        %v8049 = vld [vmem:[%s8029 + $0x98] sm:$0xff]
        %v8050 = vld [vmem:[%s8029 + $0xa0] sm:$0xff]
        %v8051 = vld [vmem:[%s8029 + $0xa8] sm:$0xff]
        %v8052 = vld [vmem:[%s8029 + $0xb0] sm:$0xff]
        %v8053 = vld [vmem:[%s8029 + $0xb8] sm:$0xff]
        %v8054 = vld [vmem:[%s8029 + $0xc0] sm:$0xff]
        %v8055 = vld [vmem:[%s8029 + $0xc8] sm:$0xff]
        %v8056 = vld [vmem:[%s8029 + $0xd0] sm:$0xff]
        %v8057 = vld [vmem:[%s8029 + $0xd8] sm:$0xff]
        %v8058 = vld [vmem:[%s8029 + $0xe0] sm:$0xff]
        %v8059 = vld [vmem:[%s8029 + $0xe8] sm:$0xff]
        %v8060 = vld [vmem:[%s8029 + $0xf0] sm:$0xff]
        %v8061 = vld [vmem:[%s8029 + $0xf8] sm:$0xff]
        %v8062 = vld [vmem:[%s8029 + $0x100] sm:$0xff]
        %v8063 = vld [vmem:[%s8029 + $0x108] sm:$0xff]
        %v8064 = vld [vmem:[%s8029 + $0x110] sm:$0xff]
        %v8065 = vld [vmem:[%s8029 + $0x118] sm:$0xff]
        %v8066 = vld [vmem:[%s8029 + $0x120] sm:$0xff]
        %v8067 = vld [vmem:[%s8029 + $0x128] sm:$0xff]
        %v8068 = vld [vmem:[%s8029 + $0x130] sm:$0xff]
        %v8069 = vld [vmem:[%s8029 + $0x138] sm:$0xff]
        %v8070 = vld [vmem:[%s8029 + $0x140] sm:$0xff]
        %v8071 = vld [vmem:[%s8029 + $0x148] sm:$0xff]
        %v8072 = vld [vmem:[%s8029 + $0x150] sm:$0xff]
        %v8073 = vld [vmem:[%s8029 + $0x158] sm:$0xff]
        %v8074 = vld [vmem:[%s8029 + $0x160] sm:$0xff]
        %v8075 = vld [vmem:[%s8029 + $0x168] sm:$0xff]
        %v8076 = vld [vmem:[%s8029 + $0x170] sm:$0xff]
        %v8077 = vld [vmem:[%s8029 + $0x178] sm:$0xff]
        %v8078 = vld [vmem:[%s8029 + $0x180] sm:$0xf]
        %v8079 = vld [vmem:[%s8029 + $0x188] sm:$0xf]
        %v8081 = vsel %vm5018, %v8031, 0
        %v8084 = vsel %vm5018, %v8033, 0
        %v8087 = vsel %vm5018, %v8035, 0
        %v8090 = vsel %vm5018, %v8037, 0
        %v8093 = vsel %vm5018, %v8039, 0
        %v8096 = vsel %vm5018, %v8041, 0
        %v8099 = vsel %vm5018, %v8043, 0
        %v8102 = vsel %vm5018, %v8045, 0
        %v8105 = vsel %vm5018, %v8047, 0
        %v8108 = vsel %vm5018, %v8049, 0
        %v8111 = vsel %vm5018, %v8051, 0
        %v8114 = vsel %vm5018, %v8053, 0
        %v8117 = vsel %vm5018, %v8055, 0
        %v8120 = vsel %vm5018, %v8057, 0
        %v8123 = vsel %vm5018, %v8059, 0
        %v8126 = vsel %vm5018, %v8061, 0
        %v8129 = vsel %vm5018, %v8063, 0
        %v8132 = vsel %vm5018, %v8065, 0
        %v8135 = vsel %vm5018, %v8067, 0
        %v8138 = vsel %vm5018, %v8069, 0
        %v8141 = vsel %vm5018, %v8071, 0
        %v8144 = vsel %vm5018, %v8073, 0
        %v8147 = vsel %vm5018, %v8075, 0
        %v8150 = vsel %vm5018, %v8077, 0
        %v8153 = vsel %vm5018, %v8079, 0
        %8155 = vmatpush.msra.mxu0 %v4958
        %8156 = vmatpush.msra.mxu0 %v4957
        %8157 = vmatpush.msra.mxu0 %v4956
        %8158 = vmatpush.msra.mxu0 %v4955
        %8159 = vmatpush.msra.mxu0 %v4954
        %8160 = vmatpush.msra.mxu0 %v4953
        %8161 = vmatpush.msra.mxu0 %v4952
        %8162 = vmatpush.msra.mxu0 %v4951
        %8163 = vmatpush.msra.mxu0 %v4950
        %8164 = vmatpush.msra.mxu0 %v4949
        %8165 = vmatpush.msra.mxu0 %v4948
        %8166 = vmatpush.msra.mxu0 %v4947
        %8167 = vmatpush.msra.mxu0 %v4946
        %8168 = vmatpush.msra.mxu0 %v4945
        %8169 = vmatpush.msra.mxu0 %v4944
        %8170 = vmatpush.msra.mxu0 %v4943
        %8171 = vmatmul.f32.gmra.mxu0 %v8030
        %v8172 = vpop.f32.mrf.mxu0
        %v8173 = vadd.f32 0.0, %v8172
        %8174 = vmatmul.f32.gmra.mxu0 %v8032
        %v8175 = vpop.f32.mrf.mxu0
        %v8176 = vadd.f32 0.0, %v8175
        %8177 = vmatmul.f32.gmra.mxu0 %v8034
        %v8178 = vpop.f32.mrf.mxu0
        %v8179 = vadd.f32 0.0, %v8178
        %8180 = vmatmul.f32.gmra.mxu0 %v8036
        %v8181 = vpop.f32.mrf.mxu0
        %v8182 = vadd.f32 0.0, %v8181
        %8183 = vmatmul.f32.gmra.mxu0 %v8038
        %v8184 = vpop.f32.mrf.mxu0
        %v8185 = vadd.f32 0.0, %v8184
        %8186 = vmatmul.f32.gmra.mxu0 %v8040
        %v8187 = vpop.f32.mrf.mxu0
        %v8188 = vadd.f32 0.0, %v8187
        %8189 = vmatmul.f32.gmra.mxu0 %v8042
        %v8190 = vpop.f32.mrf.mxu0
        %v8191 = vadd.f32 0.0, %v8190
        %8192 = vmatmul.f32.gmra.mxu0 %v8044
        %v8193 = vpop.f32.mrf.mxu0
        %v8194 = vadd.f32 0.0, %v8193
        %8195 = vmatmul.f32.gmra.mxu0 %v8046
        %v8196 = vpop.f32.mrf.mxu0
        %v8197 = vadd.f32 0.0, %v8196
        %8198 = vmatmul.f32.gmra.mxu0 %v8048
        %v8199 = vpop.f32.mrf.mxu0
        %v8200 = vadd.f32 0.0, %v8199
        %8201 = vmatmul.f32.gmra.mxu0 %v8050
        %v8202 = vpop.f32.mrf.mxu0
        %v8203 = vadd.f32 0.0, %v8202
        %8204 = vmatmul.f32.gmra.mxu0 %v8052
        %v8205 = vpop.f32.mrf.mxu0
        %v8206 = vadd.f32 0.0, %v8205
        %8207 = vmatmul.f32.gmra.mxu0 %v8054
        %v8208 = vpop.f32.mrf.mxu0
        %v8209 = vadd.f32 0.0, %v8208
        %8210 = vmatmul.f32.gmra.mxu0 %v8056
        %v8211 = vpop.f32.mrf.mxu0
        %v8212 = vadd.f32 0.0, %v8211
        %8213 = vmatmul.f32.gmra.mxu0 %v8058
        %v8214 = vpop.f32.mrf.mxu0
        %v8215 = vadd.f32 0.0, %v8214
        %8216 = vmatmul.f32.gmra.mxu0 %v8060
        %v8217 = vpop.f32.mrf.mxu0
        %v8218 = vadd.f32 0.0, %v8217
        %8219 = vmatmul.f32.gmra.mxu0 %v8062
        %v8220 = vpop.f32.mrf.mxu0
        %v8221 = vadd.f32 0.0, %v8220
        %8222 = vmatmul.f32.gmra.mxu0 %v8064
        %v8223 = vpop.f32.mrf.mxu0
        %v8224 = vadd.f32 0.0, %v8223
        %8225 = vmatmul.f32.gmra.mxu0 %v8066
        %v8226 = vpop.f32.mrf.mxu0
        %v8227 = vadd.f32 0.0, %v8226
        %8228 = vmatmul.f32.gmra.mxu0 %v8068
        %v8229 = vpop.f32.mrf.mxu0
        %v8230 = vadd.f32 0.0, %v8229
        %8231 = vmatmul.f32.gmra.mxu0 %v8070
        %v8232 = vpop.f32.mrf.mxu0
        %v8233 = vadd.f32 0.0, %v8232
        %8234 = vmatmul.f32.gmra.mxu0 %v8072
        %v8235 = vpop.f32.mrf.mxu0
        %v8236 = vadd.f32 0.0, %v8235
        %8237 = vmatmul.f32.gmra.mxu0 %v8074
        %v8238 = vpop.f32.mrf.mxu0
        %v8239 = vadd.f32 0.0, %v8238
        %8240 = vmatmul.f32.gmra.mxu0 %v8076
        %v8241 = vpop.f32.mrf.mxu0
        %v8242 = vadd.f32 0.0, %v8241
        %8243 = vmatmul.f32.gmra.mxu0 %v8078
        %v8244 = vpop.f32.mrf.mxu0
        %v8245 = vadd.f32 0.0, %v8244
        %8246 = vdwg.mxu0
        %8247 = vmatpush.msra.mxu0 0.0
        %8248 = vmatpush.msra.mxu0 0.0
        %8249 = vmatpush.msra.mxu0 0.0
        %8250 = vmatpush.msra.mxu0 0.0
        %8251 = vmatpush.msra.mxu0 0.0
        %8252 = vmatpush.msra.mxu0 0.0
        %8253 = vmatpush.msra.mxu0 0.0
        %8254 = vmatpush.msra.mxu0 %v5096
        %8255 = vmatpush.msra.mxu0 %v4966
        %8256 = vmatpush.msra.mxu0 %v4965
        %8257 = vmatpush.msra.mxu0 %v4964
        %8258 = vmatpush.msra.mxu0 %v4963
        %8259 = vmatpush.msra.mxu0 %v4962
        %8260 = vmatpush.msra.mxu0 %v4961
        %8261 = vmatpush.msra.mxu0 %v4960
        %8262 = vmatpush.msra.mxu0 %v4959
        %8263 = vmatmul.f32.gmra.mxu0 %v8081
        %v8264 = vpop.f32.mrf.mxu0
        %v8265 = vadd.f32 %v8173, %v8264
        %8266 = vmatmul.f32.gmra.mxu0 %v8084
        %v8267 = vpop.f32.mrf.mxu0
        %v8268 = vadd.f32 %v8176, %v8267
        %8269 = vmatmul.f32.gmra.mxu0 %v8087
        %v8270 = vpop.f32.mrf.mxu0
        %v8271 = vadd.f32 %v8179, %v8270
        %8272 = vmatmul.f32.gmra.mxu0 %v8090
        %v8273 = vpop.f32.mrf.mxu0
        %v8274 = vadd.f32 %v8182, %v8273
        %8275 = vmatmul.f32.gmra.mxu0 %v8093
        %v8276 = vpop.f32.mrf.mxu0
        %v8277 = vadd.f32 %v8185, %v8276
        %8278 = vmatmul.f32.gmra.mxu0 %v8096
        %v8279 = vpop.f32.mrf.mxu0
        %v8280 = vadd.f32 %v8188, %v8279
        %8281 = vmatmul.f32.gmra.mxu0 %v8099
        %v8282 = vpop.f32.mrf.mxu0
        %v8283 = vadd.f32 %v8191, %v8282
        %8284 = vmatmul.f32.gmra.mxu0 %v8102
        %v8285 = vpop.f32.mrf.mxu0
        %v8286 = vadd.f32 %v8194, %v8285
        %8287 = vmatmul.f32.gmra.mxu0 %v8105
        %v8288 = vpop.f32.mrf.mxu0
        %v8289 = vadd.f32 %v8197, %v8288
        %8290 = vmatmul.f32.gmra.mxu0 %v8108
        %v8291 = vpop.f32.mrf.mxu0
        %v8292 = vadd.f32 %v8200, %v8291
        %8293 = vmatmul.f32.gmra.mxu0 %v8111
        %v8294 = vpop.f32.mrf.mxu0
        %v8295 = vadd.f32 %v8203, %v8294
        %8296 = vmatmul.f32.gmra.mxu0 %v8114
        %v8297 = vpop.f32.mrf.mxu0
        %v8298 = vadd.f32 %v8206, %v8297
        %8299 = vmatmul.f32.gmra.mxu0 %v8117
        %v8300 = vpop.f32.mrf.mxu0
        %v8301 = vadd.f32 %v8209, %v8300
        %8302 = vmatmul.f32.gmra.mxu0 %v8120
        %v8303 = vpop.f32.mrf.mxu0
        %v8304 = vadd.f32 %v8212, %v8303
        %8305 = vmatmul.f32.gmra.mxu0 %v8123
        %v8306 = vpop.f32.mrf.mxu0
        %v8307 = vadd.f32 %v8215, %v8306
        %8308 = vmatmul.f32.gmra.mxu0 %v8126
        %v8309 = vpop.f32.mrf.mxu0
        %v8310 = vadd.f32 %v8218, %v8309
        %8311 = vmatmul.f32.gmra.mxu0 %v8129
        %v8312 = vpop.f32.mrf.mxu0
        %v8313 = vadd.f32 %v8221, %v8312
        %8314 = vmatmul.f32.gmra.mxu0 %v8132
        %v8315 = vpop.f32.mrf.mxu0
        %v8316 = vadd.f32 %v8224, %v8315
        %8317 = vmatmul.f32.gmra.mxu0 %v8135
        %v8318 = vpop.f32.mrf.mxu0
        %v8319 = vadd.f32 %v8227, %v8318
        %8320 = vmatmul.f32.gmra.mxu0 %v8138
        %v8321 = vpop.f32.mrf.mxu0
        %v8322 = vadd.f32 %v8230, %v8321
        %8323 = vmatmul.f32.gmra.mxu0 %v8141
        %v8324 = vpop.f32.mrf.mxu0
        %v8325 = vadd.f32 %v8233, %v8324
        %8326 = vmatmul.f32.gmra.mxu0 %v8144
        %v8327 = vpop.f32.mrf.mxu0
        %v8328 = vadd.f32 %v8236, %v8327
        %8329 = vmatmul.f32.gmra.mxu0 %v8147
        %v8330 = vpop.f32.mrf.mxu0
        %v8331 = vadd.f32 %v8239, %v8330
        %8332 = vmatmul.f32.gmra.mxu0 %v8150
        %v8333 = vpop.f32.mrf.mxu0
        %v8334 = vadd.f32 %v8242, %v8333
        %8335 = vmatmul.f32.gmra.mxu0 %v8153
        %v8336 = vpop.f32.mrf.mxu0
        %v8337 = vadd.f32 %v8245, %v8336
        %8338 = vdwg.mxu0
        %s8339 = scalar_lea.vmem [#allocation7], 896
        %v8340 = vld [vmem:[%s8339] sm:$0xff]
        %v8341 = vld [vmem:[%s8339 + $0x8] sm:$0xff]
        %v8342 = vld [vmem:[%s8339 + $0x10] sm:$0xff]
        %v8343 = vld [vmem:[%s8339 + $0x18] sm:$0xff]
        %v8344 = vld [vmem:[%s8339 + $0x20] sm:$0xff]
        %v8345 = vld [vmem:[%s8339 + $0x28] sm:$0xff]
        %v8346 = vld [vmem:[%s8339 + $0x30] sm:$0xff]
        %v8347 = vld [vmem:[%s8339 + $0x38] sm:$0xff]
        %v8348 = vld [vmem:[%s8339 + $0x40] sm:$0xff]
        %v8349 = vld [vmem:[%s8339 + $0x48] sm:$0xff]
        %v8350 = vld [vmem:[%s8339 + $0x50] sm:$0xff]
        %v8351 = vld [vmem:[%s8339 + $0x58] sm:$0xff]
        %v8352 = vld [vmem:[%s8339 + $0x60] sm:$0xff]
        %v8353 = vld [vmem:[%s8339 + $0x68] sm:$0xff]
        %v8354 = vld [vmem:[%s8339 + $0x70] sm:$0xff]
        %v8355 = vld [vmem:[%s8339 + $0x78] sm:$0xff]
        %8356 = vmatpush.msra.mxu0 %v8355
        %8357 = vmatpush.msra.mxu0 %v8354
        %8358 = vmatpush.msra.mxu0 %v8353
        %8359 = vmatpush.msra.mxu0 %v8352
        %8360 = vmatpush.msra.mxu0 %v8351
        %8361 = vmatpush.msra.mxu0 %v8350
        %8362 = vmatpush.msra.mxu0 %v8349
        %8363 = vmatpush.msra.mxu0 %v8348
        %8364 = vmatpush.msra.mxu0 %v8347
        %8365 = vmatpush.msra.mxu0 %v8346
        %8366 = vmatpush.msra.mxu0 %v8345
        %8367 = vmatpush.msra.mxu0 %v8344
        %8368 = vmatpush.msra.mxu0 %v8343
        %8369 = vmatpush.msra.mxu0 %v8342
        %8370 = vmatpush.msra.mxu0 %v8341
        %8371 = vmatpush.msra.mxu0 %v8340
        %8372 = vmatmul.f32.gmra.mxu0 %v8265
        %v8373 = vpop.f32.mrf.mxu0
        %v8374 = vadd.f32 0.0, %v8373
        %8375 = vmatmul.f32.gmra.mxu0 %v8268
        %v8376 = vpop.f32.mrf.mxu0
        %v8377 = vadd.f32 0.0, %v8376
        %8378 = vmatmul.f32.gmra.mxu0 %v8271
        %v8379 = vpop.f32.mrf.mxu0
        %v8380 = vadd.f32 0.0, %v8379
        %8381 = vmatmul.f32.gmra.mxu0 %v8274
        %v8382 = vpop.f32.mrf.mxu0
        %v8383 = vadd.f32 0.0, %v8382
        %8384 = vmatmul.f32.gmra.mxu0 %v8277
        %v8385 = vpop.f32.mrf.mxu0
        %v8386 = vadd.f32 0.0, %v8385
        %8387 = vmatmul.f32.gmra.mxu0 %v8280
        %v8388 = vpop.f32.mrf.mxu0
        %v8389 = vadd.f32 0.0, %v8388
        %8390 = vmatmul.f32.gmra.mxu0 %v8283
        %v8391 = vpop.f32.mrf.mxu0
        %v8392 = vadd.f32 0.0, %v8391
        %8393 = vmatmul.f32.gmra.mxu0 %v8286
        %v8394 = vpop.f32.mrf.mxu0
        %v8395 = vadd.f32 0.0, %v8394
        %8396 = vmatmul.f32.gmra.mxu0 %v8289
        %v8397 = vpop.f32.mrf.mxu0
        %v8398 = vadd.f32 0.0, %v8397
        %8399 = vmatmul.f32.gmra.mxu0 %v8292
        %v8400 = vpop.f32.mrf.mxu0
        %v8401 = vadd.f32 0.0, %v8400
        %8402 = vmatmul.f32.gmra.mxu0 %v8295
        %v8403 = vpop.f32.mrf.mxu0
        %v8404 = vadd.f32 0.0, %v8403
        %8405 = vmatmul.f32.gmra.mxu0 %v8298
        %v8406 = vpop.f32.mrf.mxu0
        %v8407 = vadd.f32 0.0, %v8406
        %8408 = vmatmul.f32.gmra.mxu0 %v8301
        %v8409 = vpop.f32.mrf.mxu0
        %v8410 = vadd.f32 0.0, %v8409
        %8411 = vmatmul.f32.gmra.mxu0 %v8304
        %v8412 = vpop.f32.mrf.mxu0
        %v8413 = vadd.f32 0.0, %v8412
        %8414 = vmatmul.f32.gmra.mxu0 %v8307
        %v8415 = vpop.f32.mrf.mxu0
        %v8416 = vadd.f32 0.0, %v8415
        %8417 = vmatmul.f32.gmra.mxu0 %v8310
        %v8418 = vpop.f32.mrf.mxu0
        %v8419 = vadd.f32 0.0, %v8418
        %8420 = vmatmul.f32.gmra.mxu0 %v8313
        %v8421 = vpop.f32.mrf.mxu0
        %v8422 = vadd.f32 0.0, %v8421
        %8423 = vmatmul.f32.gmra.mxu0 %v8316
        %v8424 = vpop.f32.mrf.mxu0
        %v8425 = vadd.f32 0.0, %v8424
        %8426 = vmatmul.f32.gmra.mxu0 %v8319
        %v8427 = vpop.f32.mrf.mxu0
        %v8428 = vadd.f32 0.0, %v8427
        %8429 = vmatmul.f32.gmra.mxu0 %v8322
        %v8430 = vpop.f32.mrf.mxu0
        %v8431 = vadd.f32 0.0, %v8430
        %8432 = vmatmul.f32.gmra.mxu0 %v8325
        %v8433 = vpop.f32.mrf.mxu0
        %v8434 = vadd.f32 0.0, %v8433
        %8435 = vmatmul.f32.gmra.mxu0 %v8328
        %v8436 = vpop.f32.mrf.mxu0
        %v8437 = vadd.f32 0.0, %v8436
        %8438 = vmatmul.f32.gmra.mxu0 %v8331
        %v8439 = vpop.f32.mrf.mxu0
        %v8440 = vadd.f32 0.0, %v8439
        %8441 = vmatmul.f32.gmra.mxu0 %v8334
        %v8442 = vpop.f32.mrf.mxu0
        %v8443 = vadd.f32 0.0, %v8442
        %8444 = vmatmul.f32.gmra.mxu0 %v8337
        %v8445 = vpop.f32.mrf.mxu0
        %v8446 = vadd.f32 0.0, %v8445
        %8447 = vdwg.mxu0
        %v8448 = vadd.f32 %v8004, %v8374
        %v8449 = vadd.f32 %v8005, %v8377
        %v8450 = vadd.f32 %v8006, %v8380
        %v8451 = vadd.f32 %v8007, %v8383
        %v8452 = vadd.f32 %v8008, %v8386
        %v8453 = vadd.f32 %v8009, %v8389
        %v8454 = vadd.f32 %v8010, %v8392
        %v8455 = vadd.f32 %v8011, %v8395
        %v8456 = vadd.f32 %v8012, %v8398
        %v8457 = vadd.f32 %v8013, %v8401
        %v8458 = vadd.f32 %v8014, %v8404
        %v8459 = vadd.f32 %v8015, %v8407
        %v8460 = vadd.f32 %v8016, %v8410
        %v8461 = vadd.f32 %v8017, %v8413
        %v8462 = vadd.f32 %v8018, %v8416
        %v8463 = vadd.f32 %v8019, %v8419
        %v8464 = vadd.f32 %v8020, %v8422
        %v8465 = vadd.f32 %v8021, %v8425
        %v8466 = vadd.f32 %v8022, %v8428
        %v8467 = vadd.f32 %v8023, %v8431
        %v8468 = vadd.f32 %v8024, %v8434
        %v8469 = vadd.f32 %v8025, %v8437
        %v8470 = vadd.f32 %v8026, %v8440
        %v8471 = vadd.f32 %v8027, %v8443
        %v8472 = vadd.f32 %v8028, %v8446
        %s8473 = scalar_lea.vmem [#allocation10], 3200
        %v8474 = vld [vmem:[%s8473] sm:$0xff]
        %v8475 = vld [vmem:[%s8473 + $0x8] sm:$0xff]
        %v8476 = vld [vmem:[%s8473 + $0x10] sm:$0xff]
        %v8477 = vld [vmem:[%s8473 + $0x18] sm:$0xff]
        %v8478 = vld [vmem:[%s8473 + $0x20] sm:$0xff]
        %v8479 = vld [vmem:[%s8473 + $0x28] sm:$0xff]
        %v8480 = vld [vmem:[%s8473 + $0x30] sm:$0xff]
        %v8481 = vld [vmem:[%s8473 + $0x38] sm:$0xff]
        %v8482 = vld [vmem:[%s8473 + $0x40] sm:$0xff]
        %v8483 = vld [vmem:[%s8473 + $0x48] sm:$0xff]
        %v8484 = vld [vmem:[%s8473 + $0x50] sm:$0xff]
        %v8485 = vld [vmem:[%s8473 + $0x58] sm:$0xff]
        %v8486 = vld [vmem:[%s8473 + $0x60] sm:$0xff]
        %v8487 = vld [vmem:[%s8473 + $0x68] sm:$0xff]
        %v8488 = vld [vmem:[%s8473 + $0x70] sm:$0xff]
        %v8489 = vld [vmem:[%s8473 + $0x78] sm:$0xff]
        %v8490 = vld [vmem:[%s8473 + $0x80] sm:$0xff]
        %v8491 = vld [vmem:[%s8473 + $0x88] sm:$0xff]
        %v8492 = vld [vmem:[%s8473 + $0x90] sm:$0xff]
        %v8493 = vld [vmem:[%s8473 + $0x98] sm:$0xff]
        %v8494 = vld [vmem:[%s8473 + $0xa0] sm:$0xff]
        %v8495 = vld [vmem:[%s8473 + $0xa8] sm:$0xff]
        %v8496 = vld [vmem:[%s8473 + $0xb0] sm:$0xff]
        %v8497 = vld [vmem:[%s8473 + $0xb8] sm:$0xff]
        %v8498 = vld [vmem:[%s8473 + $0xc0] sm:$0xff]
        %v8499 = vld [vmem:[%s8473 + $0xc8] sm:$0xff]
        %v8500 = vld [vmem:[%s8473 + $0xd0] sm:$0xff]
        %v8501 = vld [vmem:[%s8473 + $0xd8] sm:$0xff]
        %v8502 = vld [vmem:[%s8473 + $0xe0] sm:$0xff]
        %v8503 = vld [vmem:[%s8473 + $0xe8] sm:$0xff]
        %v8504 = vld [vmem:[%s8473 + $0xf0] sm:$0xff]
        %v8505 = vld [vmem:[%s8473 + $0xf8] sm:$0xff]
        %v8506 = vld [vmem:[%s8473 + $0x100] sm:$0xff]
        %v8507 = vld [vmem:[%s8473 + $0x108] sm:$0xff]
        %v8508 = vld [vmem:[%s8473 + $0x110] sm:$0xff]
        %v8509 = vld [vmem:[%s8473 + $0x118] sm:$0xff]
        %v8510 = vld [vmem:[%s8473 + $0x120] sm:$0xff]
        %v8511 = vld [vmem:[%s8473 + $0x128] sm:$0xff]
        %v8512 = vld [vmem:[%s8473 + $0x130] sm:$0xff]
        %v8513 = vld [vmem:[%s8473 + $0x138] sm:$0xff]
        %v8514 = vld [vmem:[%s8473 + $0x140] sm:$0xff]
        %v8515 = vld [vmem:[%s8473 + $0x148] sm:$0xff]
        %v8516 = vld [vmem:[%s8473 + $0x150] sm:$0xff]
        %v8517 = vld [vmem:[%s8473 + $0x158] sm:$0xff]
        %v8518 = vld [vmem:[%s8473 + $0x160] sm:$0xff]
        %v8519 = vld [vmem:[%s8473 + $0x168] sm:$0xff]
        %v8520 = vld [vmem:[%s8473 + $0x170] sm:$0xff]
        %v8521 = vld [vmem:[%s8473 + $0x178] sm:$0xff]
        %v8522 = vld [vmem:[%s8473 + $0x180] sm:$0xf]
        %v8523 = vld [vmem:[%s8473 + $0x188] sm:$0xf]
        %v8525 = vsel %vm5018, %v8475, 0
        %v8528 = vsel %vm5018, %v8477, 0
        %v8531 = vsel %vm5018, %v8479, 0
        %v8534 = vsel %vm5018, %v8481, 0
        %v8537 = vsel %vm5018, %v8483, 0
        %v8540 = vsel %vm5018, %v8485, 0
        %v8543 = vsel %vm5018, %v8487, 0
        %v8546 = vsel %vm5018, %v8489, 0
        %v8549 = vsel %vm5018, %v8491, 0
        %v8552 = vsel %vm5018, %v8493, 0
        %v8555 = vsel %vm5018, %v8495, 0
        %v8558 = vsel %vm5018, %v8497, 0
        %v8561 = vsel %vm5018, %v8499, 0
        %v8564 = vsel %vm5018, %v8501, 0
        %v8567 = vsel %vm5018, %v8503, 0
        %v8570 = vsel %vm5018, %v8505, 0
        %v8573 = vsel %vm5018, %v8507, 0
        %v8576 = vsel %vm5018, %v8509, 0
        %v8579 = vsel %vm5018, %v8511, 0
        %v8582 = vsel %vm5018, %v8513, 0
        %v8585 = vsel %vm5018, %v8515, 0
        %v8588 = vsel %vm5018, %v8517, 0
        %v8591 = vsel %vm5018, %v8519, 0
        %v8594 = vsel %vm5018, %v8521, 0
        %v8597 = vsel %vm5018, %v8523, 0
        %8599 = vmatpush.msra.mxu0 %v4958
        %8600 = vmatpush.msra.mxu0 %v4957
        %8601 = vmatpush.msra.mxu0 %v4956
        %8602 = vmatpush.msra.mxu0 %v4955
        %8603 = vmatpush.msra.mxu0 %v4954
        %8604 = vmatpush.msra.mxu0 %v4953
        %8605 = vmatpush.msra.mxu0 %v4952
        %8606 = vmatpush.msra.mxu0 %v4951
        %8607 = vmatpush.msra.mxu0 %v4950
        %8608 = vmatpush.msra.mxu0 %v4949
        %8609 = vmatpush.msra.mxu0 %v4948
        %8610 = vmatpush.msra.mxu0 %v4947
        %8611 = vmatpush.msra.mxu0 %v4946
        %8612 = vmatpush.msra.mxu0 %v4945
        %8613 = vmatpush.msra.mxu0 %v4944
        %8614 = vmatpush.msra.mxu0 %v4943
        %8615 = vmatmul.f32.gmra.mxu0 %v8474
        %v8616 = vpop.f32.mrf.mxu0
        %v8617 = vadd.f32 0.0, %v8616
        %8618 = vmatmul.f32.gmra.mxu0 %v8476
        %v8619 = vpop.f32.mrf.mxu0
        %v8620 = vadd.f32 0.0, %v8619
        %8621 = vmatmul.f32.gmra.mxu0 %v8478
        %v8622 = vpop.f32.mrf.mxu0
        %v8623 = vadd.f32 0.0, %v8622
        %8624 = vmatmul.f32.gmra.mxu0 %v8480
        %v8625 = vpop.f32.mrf.mxu0
        %v8626 = vadd.f32 0.0, %v8625
        %8627 = vmatmul.f32.gmra.mxu0 %v8482
        %v8628 = vpop.f32.mrf.mxu0
        %v8629 = vadd.f32 0.0, %v8628
        %8630 = vmatmul.f32.gmra.mxu0 %v8484
        %v8631 = vpop.f32.mrf.mxu0
        %v8632 = vadd.f32 0.0, %v8631
        %8633 = vmatmul.f32.gmra.mxu0 %v8486
        %v8634 = vpop.f32.mrf.mxu0
        %v8635 = vadd.f32 0.0, %v8634
        %8636 = vmatmul.f32.gmra.mxu0 %v8488
        %v8637 = vpop.f32.mrf.mxu0
        %v8638 = vadd.f32 0.0, %v8637
        %8639 = vmatmul.f32.gmra.mxu0 %v8490
        %v8640 = vpop.f32.mrf.mxu0
        %v8641 = vadd.f32 0.0, %v8640
        %8642 = vmatmul.f32.gmra.mxu0 %v8492
        %v8643 = vpop.f32.mrf.mxu0
        %v8644 = vadd.f32 0.0, %v8643
        %8645 = vmatmul.f32.gmra.mxu0 %v8494
        %v8646 = vpop.f32.mrf.mxu0
        %v8647 = vadd.f32 0.0, %v8646
        %8648 = vmatmul.f32.gmra.mxu0 %v8496
        %v8649 = vpop.f32.mrf.mxu0
        %v8650 = vadd.f32 0.0, %v8649
        %8651 = vmatmul.f32.gmra.mxu0 %v8498
        %v8652 = vpop.f32.mrf.mxu0
        %v8653 = vadd.f32 0.0, %v8652
        %8654 = vmatmul.f32.gmra.mxu0 %v8500
        %v8655 = vpop.f32.mrf.mxu0
        %v8656 = vadd.f32 0.0, %v8655
        %8657 = vmatmul.f32.gmra.mxu0 %v8502
        %v8658 = vpop.f32.mrf.mxu0
        %v8659 = vadd.f32 0.0, %v8658
        %8660 = vmatmul.f32.gmra.mxu0 %v8504
        %v8661 = vpop.f32.mrf.mxu0
        %v8662 = vadd.f32 0.0, %v8661
        %8663 = vmatmul.f32.gmra.mxu0 %v8506
        %v8664 = vpop.f32.mrf.mxu0
        %v8665 = vadd.f32 0.0, %v8664
        %8666 = vmatmul.f32.gmra.mxu0 %v8508
        %v8667 = vpop.f32.mrf.mxu0
        %v8668 = vadd.f32 0.0, %v8667
        %8669 = vmatmul.f32.gmra.mxu0 %v8510
        %v8670 = vpop.f32.mrf.mxu0
        %v8671 = vadd.f32 0.0, %v8670
        %8672 = vmatmul.f32.gmra.mxu0 %v8512
        %v8673 = vpop.f32.mrf.mxu0
        %v8674 = vadd.f32 0.0, %v8673
        %8675 = vmatmul.f32.gmra.mxu0 %v8514
        %v8676 = vpop.f32.mrf.mxu0
        %v8677 = vadd.f32 0.0, %v8676
        %8678 = vmatmul.f32.gmra.mxu0 %v8516
        %v8679 = vpop.f32.mrf.mxu0
        %v8680 = vadd.f32 0.0, %v8679
        %8681 = vmatmul.f32.gmra.mxu0 %v8518
        %v8682 = vpop.f32.mrf.mxu0
        %v8683 = vadd.f32 0.0, %v8682
        %8684 = vmatmul.f32.gmra.mxu0 %v8520
        %v8685 = vpop.f32.mrf.mxu0
        %v8686 = vadd.f32 0.0, %v8685
        %8687 = vmatmul.f32.gmra.mxu0 %v8522
        %v8688 = vpop.f32.mrf.mxu0
        %v8689 = vadd.f32 0.0, %v8688
        %8690 = vdwg.mxu0
        %8691 = vmatpush.msra.mxu0 0.0
        %8692 = vmatpush.msra.mxu0 0.0
        %8693 = vmatpush.msra.mxu0 0.0
        %8694 = vmatpush.msra.mxu0 0.0
        %8695 = vmatpush.msra.mxu0 0.0
        %8696 = vmatpush.msra.mxu0 0.0
        %8697 = vmatpush.msra.mxu0 0.0
        %8698 = vmatpush.msra.mxu0 %v5096
        %8699 = vmatpush.msra.mxu0 %v4966
        %8700 = vmatpush.msra.mxu0 %v4965
        %8701 = vmatpush.msra.mxu0 %v4964
        %8702 = vmatpush.msra.mxu0 %v4963
        %8703 = vmatpush.msra.mxu0 %v4962
        %8704 = vmatpush.msra.mxu0 %v4961
        %8705 = vmatpush.msra.mxu0 %v4960
        %8706 = vmatpush.msra.mxu0 %v4959
        %8707 = vmatmul.f32.gmra.mxu0 %v8525
        %v8708 = vpop.f32.mrf.mxu0
        %v8709 = vadd.f32 %v8617, %v8708
        %8710 = vmatmul.f32.gmra.mxu0 %v8528
        %v8711 = vpop.f32.mrf.mxu0
        %v8712 = vadd.f32 %v8620, %v8711
        %8713 = vmatmul.f32.gmra.mxu0 %v8531
        %v8714 = vpop.f32.mrf.mxu0
        %v8715 = vadd.f32 %v8623, %v8714
        %8716 = vmatmul.f32.gmra.mxu0 %v8534
        %v8717 = vpop.f32.mrf.mxu0
        %v8718 = vadd.f32 %v8626, %v8717
        %8719 = vmatmul.f32.gmra.mxu0 %v8537
        %v8720 = vpop.f32.mrf.mxu0
        %v8721 = vadd.f32 %v8629, %v8720
        %8722 = vmatmul.f32.gmra.mxu0 %v8540
        %v8723 = vpop.f32.mrf.mxu0
        %v8724 = vadd.f32 %v8632, %v8723
        %8725 = vmatmul.f32.gmra.mxu0 %v8543
        %v8726 = vpop.f32.mrf.mxu0
        %v8727 = vadd.f32 %v8635, %v8726
        %8728 = vmatmul.f32.gmra.mxu0 %v8546
        %v8729 = vpop.f32.mrf.mxu0
        %v8730 = vadd.f32 %v8638, %v8729
        %8731 = vmatmul.f32.gmra.mxu0 %v8549
        %v8732 = vpop.f32.mrf.mxu0
        %v8733 = vadd.f32 %v8641, %v8732
        %8734 = vmatmul.f32.gmra.mxu0 %v8552
        %v8735 = vpop.f32.mrf.mxu0
        %v8736 = vadd.f32 %v8644, %v8735
        %8737 = vmatmul.f32.gmra.mxu0 %v8555
        %v8738 = vpop.f32.mrf.mxu0
        %v8739 = vadd.f32 %v8647, %v8738
        %8740 = vmatmul.f32.gmra.mxu0 %v8558
        %v8741 = vpop.f32.mrf.mxu0
        %v8742 = vadd.f32 %v8650, %v8741
        %8743 = vmatmul.f32.gmra.mxu0 %v8561
        %v8744 = vpop.f32.mrf.mxu0
        %v8745 = vadd.f32 %v8653, %v8744
        %8746 = vmatmul.f32.gmra.mxu0 %v8564
        %v8747 = vpop.f32.mrf.mxu0
        %v8748 = vadd.f32 %v8656, %v8747
        %8749 = vmatmul.f32.gmra.mxu0 %v8567
        %v8750 = vpop.f32.mrf.mxu0
        %v8751 = vadd.f32 %v8659, %v8750
        %8752 = vmatmul.f32.gmra.mxu0 %v8570
        %v8753 = vpop.f32.mrf.mxu0
        %v8754 = vadd.f32 %v8662, %v8753
        %8755 = vmatmul.f32.gmra.mxu0 %v8573
        %v8756 = vpop.f32.mrf.mxu0
        %v8757 = vadd.f32 %v8665, %v8756
        %8758 = vmatmul.f32.gmra.mxu0 %v8576
        %v8759 = vpop.f32.mrf.mxu0
        %v8760 = vadd.f32 %v8668, %v8759
        %8761 = vmatmul.f32.gmra.mxu0 %v8579
        %v8762 = vpop.f32.mrf.mxu0
        %v8763 = vadd.f32 %v8671, %v8762
        %8764 = vmatmul.f32.gmra.mxu0 %v8582
        %v8765 = vpop.f32.mrf.mxu0
        %v8766 = vadd.f32 %v8674, %v8765
        %8767 = vmatmul.f32.gmra.mxu0 %v8585
        %v8768 = vpop.f32.mrf.mxu0
        %v8769 = vadd.f32 %v8677, %v8768
        %8770 = vmatmul.f32.gmra.mxu0 %v8588
        %v8771 = vpop.f32.mrf.mxu0
        %v8772 = vadd.f32 %v8680, %v8771
        %8773 = vmatmul.f32.gmra.mxu0 %v8591
        %v8774 = vpop.f32.mrf.mxu0
        %v8775 = vadd.f32 %v8683, %v8774
        %8776 = vmatmul.f32.gmra.mxu0 %v8594
        %v8777 = vpop.f32.mrf.mxu0
        %v8778 = vadd.f32 %v8686, %v8777
        %8779 = vmatmul.f32.gmra.mxu0 %v8597
        %v8780 = vpop.f32.mrf.mxu0
        %v8781 = vadd.f32 %v8689, %v8780
        %8782 = vdwg.mxu0
        %s8783 = scalar_lea.vmem [#allocation7], 1024
        %v8784 = vld [vmem:[%s8783] sm:$0xff]
        %v8785 = vld [vmem:[%s8783 + $0x8] sm:$0xff]
        %v8786 = vld [vmem:[%s8783 + $0x10] sm:$0xff]
        %v8787 = vld [vmem:[%s8783 + $0x18] sm:$0xff]
        %v8788 = vld [vmem:[%s8783 + $0x20] sm:$0xff]
        %v8789 = vld [vmem:[%s8783 + $0x28] sm:$0xff]
        %v8790 = vld [vmem:[%s8783 + $0x30] sm:$0xff]
        %v8791 = vld [vmem:[%s8783 + $0x38] sm:$0xff]
        %v8792 = vld [vmem:[%s8783 + $0x40] sm:$0xff]
        %v8793 = vld [vmem:[%s8783 + $0x48] sm:$0xff]
        %v8794 = vld [vmem:[%s8783 + $0x50] sm:$0xff]
        %v8795 = vld [vmem:[%s8783 + $0x58] sm:$0xff]
        %v8796 = vld [vmem:[%s8783 + $0x60] sm:$0xff]
        %v8797 = vld [vmem:[%s8783 + $0x68] sm:$0xff]
        %v8798 = vld [vmem:[%s8783 + $0x70] sm:$0xff]
        %v8799 = vld [vmem:[%s8783 + $0x78] sm:$0xff]
        %8800 = vmatpush.msra.mxu0 %v8799
        %8801 = vmatpush.msra.mxu0 %v8798
        %8802 = vmatpush.msra.mxu0 %v8797
        %8803 = vmatpush.msra.mxu0 %v8796
        %8804 = vmatpush.msra.mxu0 %v8795
        %8805 = vmatpush.msra.mxu0 %v8794
        %8806 = vmatpush.msra.mxu0 %v8793
        %8807 = vmatpush.msra.mxu0 %v8792
        %8808 = vmatpush.msra.mxu0 %v8791
        %8809 = vmatpush.msra.mxu0 %v8790
        %8810 = vmatpush.msra.mxu0 %v8789
        %8811 = vmatpush.msra.mxu0 %v8788
        %8812 = vmatpush.msra.mxu0 %v8787
        %8813 = vmatpush.msra.mxu0 %v8786
        %8814 = vmatpush.msra.mxu0 %v8785
        %8815 = vmatpush.msra.mxu0 %v8784
        %8816 = vmatmul.f32.gmra.mxu0 %v8709
        %v8817 = vpop.f32.mrf.mxu0
        %v8818 = vadd.f32 0.0, %v8817
        %8819 = vmatmul.f32.gmra.mxu0 %v8712
        %v8820 = vpop.f32.mrf.mxu0
        %v8821 = vadd.f32 0.0, %v8820
        %8822 = vmatmul.f32.gmra.mxu0 %v8715
        %v8823 = vpop.f32.mrf.mxu0
        %v8824 = vadd.f32 0.0, %v8823
        %8825 = vmatmul.f32.gmra.mxu0 %v8718
        %v8826 = vpop.f32.mrf.mxu0
        %v8827 = vadd.f32 0.0, %v8826
        %8828 = vmatmul.f32.gmra.mxu0 %v8721
        %v8829 = vpop.f32.mrf.mxu0
        %v8830 = vadd.f32 0.0, %v8829
        %8831 = vmatmul.f32.gmra.mxu0 %v8724
        %v8832 = vpop.f32.mrf.mxu0
        %v8833 = vadd.f32 0.0, %v8832
        %8834 = vmatmul.f32.gmra.mxu0 %v8727
        %v8835 = vpop.f32.mrf.mxu0
        %v8836 = vadd.f32 0.0, %v8835
        %8837 = vmatmul.f32.gmra.mxu0 %v8730
        %v8838 = vpop.f32.mrf.mxu0
        %v8839 = vadd.f32 0.0, %v8838
        %8840 = vmatmul.f32.gmra.mxu0 %v8733
        %v8841 = vpop.f32.mrf.mxu0
        %v8842 = vadd.f32 0.0, %v8841
        %8843 = vmatmul.f32.gmra.mxu0 %v8736
        %v8844 = vpop.f32.mrf.mxu0
        %v8845 = vadd.f32 0.0, %v8844
        %8846 = vmatmul.f32.gmra.mxu0 %v8739
        %v8847 = vpop.f32.mrf.mxu0
        %v8848 = vadd.f32 0.0, %v8847
        %8849 = vmatmul.f32.gmra.mxu0 %v8742
        %v8850 = vpop.f32.mrf.mxu0
        %v8851 = vadd.f32 0.0, %v8850
        %8852 = vmatmul.f32.gmra.mxu0 %v8745
        %v8853 = vpop.f32.mrf.mxu0
        %v8854 = vadd.f32 0.0, %v8853
        %8855 = vmatmul.f32.gmra.mxu0 %v8748
        %v8856 = vpop.f32.mrf.mxu0
        %v8857 = vadd.f32 0.0, %v8856
        %8858 = vmatmul.f32.gmra.mxu0 %v8751
        %v8859 = vpop.f32.mrf.mxu0
        %v8860 = vadd.f32 0.0, %v8859
        %8861 = vmatmul.f32.gmra.mxu0 %v8754
        %v8862 = vpop.f32.mrf.mxu0
        %v8863 = vadd.f32 0.0, %v8862
        %8864 = vmatmul.f32.gmra.mxu0 %v8757
        %v8865 = vpop.f32.mrf.mxu0
        %v8866 = vadd.f32 0.0, %v8865
        %8867 = vmatmul.f32.gmra.mxu0 %v8760
        %v8868 = vpop.f32.mrf.mxu0
        %v8869 = vadd.f32 0.0, %v8868
        %8870 = vmatmul.f32.gmra.mxu0 %v8763
        %v8871 = vpop.f32.mrf.mxu0
        %v8872 = vadd.f32 0.0, %v8871
        %8873 = vmatmul.f32.gmra.mxu0 %v8766
        %v8874 = vpop.f32.mrf.mxu0
        %v8875 = vadd.f32 0.0, %v8874
        %8876 = vmatmul.f32.gmra.mxu0 %v8769
        %v8877 = vpop.f32.mrf.mxu0
        %v8878 = vadd.f32 0.0, %v8877
        %8879 = vmatmul.f32.gmra.mxu0 %v8772
        %v8880 = vpop.f32.mrf.mxu0
        %v8881 = vadd.f32 0.0, %v8880
        %8882 = vmatmul.f32.gmra.mxu0 %v8775
        %v8883 = vpop.f32.mrf.mxu0
        %v8884 = vadd.f32 0.0, %v8883
        %8885 = vmatmul.f32.gmra.mxu0 %v8778
        %v8886 = vpop.f32.mrf.mxu0
        %v8887 = vadd.f32 0.0, %v8886
        %8888 = vmatmul.f32.gmra.mxu0 %v8781
        %v8889 = vpop.f32.mrf.mxu0
        %v8890 = vadd.f32 0.0, %v8889
        %8891 = vdwg.mxu0
        %v8892 = vadd.f32 %v8448, %v8818
        %v8893 = vadd.f32 %v8449, %v8821
        %v8894 = vadd.f32 %v8450, %v8824
        %v8895 = vadd.f32 %v8451, %v8827
        %v8896 = vadd.f32 %v8452, %v8830
        %v8897 = vadd.f32 %v8453, %v8833
        %v8898 = vadd.f32 %v8454, %v8836
        %v8899 = vadd.f32 %v8455, %v8839
        %v8900 = vadd.f32 %v8456, %v8842
        %v8901 = vadd.f32 %v8457, %v8845
        %v8902 = vadd.f32 %v8458, %v8848
        %v8903 = vadd.f32 %v8459, %v8851
        %v8904 = vadd.f32 %v8460, %v8854
        %v8905 = vadd.f32 %v8461, %v8857
        %v8906 = vadd.f32 %v8462, %v8860
        %v8907 = vadd.f32 %v8463, %v8863
        %v8908 = vadd.f32 %v8464, %v8866
        %v8909 = vadd.f32 %v8465, %v8869
        %v8910 = vadd.f32 %v8466, %v8872
        %v8911 = vadd.f32 %v8467, %v8875
        %v8912 = vadd.f32 %v8468, %v8878
        %v8913 = vadd.f32 %v8469, %v8881
        %v8914 = vadd.f32 %v8470, %v8884
        %v8915 = vadd.f32 %v8471, %v8887
        %v8916 = vadd.f32 %v8472, %v8890
        %v8917 = vld [vmem:[#allocation9] sm:$0x1]
        %v8919 = vperm.slane %v8917, 0
        %v8921 = vadd.f32 %v8892, %v8919
        %v8922 = vadd.f32 %v8893, %v8919
        %v8923 = vadd.f32 %v8894, %v8919
        %v8924 = vadd.f32 %v8895, %v8919
        %v8925 = vadd.f32 %v8896, %v8919
        %v8926 = vadd.f32 %v8897, %v8919
        %v8927 = vadd.f32 %v8898, %v8919
        %v8928 = vadd.f32 %v8899, %v8919
        %v8929 = vadd.f32 %v8900, %v8919
        %v8930 = vadd.f32 %v8901, %v8919
        %v8931 = vadd.f32 %v8902, %v8919
        %v8932 = vadd.f32 %v8903, %v8919
        %v8933 = vadd.f32 %v8904, %v8919
        %v8934 = vadd.f32 %v8905, %v8919
        %v8935 = vadd.f32 %v8906, %v8919
        %v8936 = vadd.f32 %v8907, %v8919
        %v8937 = vadd.f32 %v8908, %v8919
        %v8938 = vadd.f32 %v8909, %v8919
        %v8939 = vadd.f32 %v8910, %v8919
        %v8940 = vadd.f32 %v8911, %v8919
        %v8941 = vadd.f32 %v8912, %v8919
        %v8942 = vadd.f32 %v8913, %v8919
        %v8943 = vadd.f32 %v8914, %v8919
        %v8944 = vadd.f32 %v8915, %v8919
        %v8945 = vadd.f32 %v8916, %v8919
        %v8946 = vmax.f32 %v8921, 0.0
        %v8947 = vmax.f32 %v8922, 0.0
        %v8948 = vmax.f32 %v8923, 0.0
        %v8949 = vmax.f32 %v8924, 0.0
        %v8950 = vmax.f32 %v8925, 0.0
        %v8951 = vmax.f32 %v8926, 0.0
        %v8952 = vmax.f32 %v8927, 0.0
        %v8953 = vmax.f32 %v8928, 0.0
        %v8954 = vmax.f32 %v8929, 0.0
        %v8955 = vmax.f32 %v8930, 0.0
        %v8956 = vmax.f32 %v8931, 0.0
        %v8957 = vmax.f32 %v8932, 0.0
        %v8958 = vmax.f32 %v8933, 0.0
        %v8959 = vmax.f32 %v8934, 0.0
        %v8960 = vmax.f32 %v8935, 0.0
        %v8961 = vmax.f32 %v8936, 0.0
        %v8962 = vmax.f32 %v8937, 0.0
        %v8963 = vmax.f32 %v8938, 0.0
        %v8964 = vmax.f32 %v8939, 0.0
        %v8965 = vmax.f32 %v8940, 0.0
        %v8966 = vmax.f32 %v8941, 0.0
        %v8967 = vmax.f32 %v8942, 0.0
        %v8968 = vmax.f32 %v8943, 0.0
        %v8969 = vmax.f32 %v8944, 0.0
        %v8970 = vmax.f32 %v8945, 0.0
        %v8971 = vld [vmem:[#allocation12] sm:$0xff]
        %v8972 = vld [vmem:[#allocation12 + $0x8] sm:$0xff]
        %v8973 = vld [vmem:[#allocation12 + $0x10] sm:$0xff]
        %v8974 = vld [vmem:[#allocation12 + $0x18] sm:$0xff]
        %v8975 = vld [vmem:[#allocation12 + $0x20] sm:$0xff]
        %v8976 = vld [vmem:[#allocation12 + $0x28] sm:$0xff]
        %v8977 = vld [vmem:[#allocation12 + $0x30] sm:$0xff]
        %v8978 = vld [vmem:[#allocation12 + $0x38] sm:$0xff]
        %v8979 = vld [vmem:[#allocation12 + $0x40] sm:$0xff]
        %v8980 = vld [vmem:[#allocation12 + $0x48] sm:$0xff]
        %v8981 = vld [vmem:[#allocation12 + $0x50] sm:$0xff]
        %v8982 = vld [vmem:[#allocation12 + $0x58] sm:$0xff]
        %v8983 = vld [vmem:[#allocation12 + $0x60] sm:$0x1]
        %v8984 = vld [vmem:[#allocation12 + $0x68] sm:$0x1]
        %v8986 = vsel %vm5018, %v8972, 0
        %v8989 = vsel %vm5018, %v8974, 0
        %v8992 = vsel %vm5018, %v8976, 0
        %v8995 = vsel %vm5018, %v8978, 0
        %v8998 = vsel %vm5018, %v8980, 0
        %v9001 = vsel %vm5018, %v8982, 0
        %v9004 = vsel %vm5018, %v8984, 0
        %v9007 = vsel %vm5094, %v8970, 0
        %9009 = vmatpush.msra.mxu0 %v8961
        %9010 = vmatpush.msra.mxu0 %v8960
        %9011 = vmatpush.msra.mxu0 %v8959
        %9012 = vmatpush.msra.mxu0 %v8958
        %9013 = vmatpush.msra.mxu0 %v8957
        %9014 = vmatpush.msra.mxu0 %v8956
        %9015 = vmatpush.msra.mxu0 %v8955
        %9016 = vmatpush.msra.mxu0 %v8954
        %9017 = vmatpush.msra.mxu0 %v8953
        %9018 = vmatpush.msra.mxu0 %v8952
        %9019 = vmatpush.msra.mxu0 %v8951
        %9020 = vmatpush.msra.mxu0 %v8950
        %9021 = vmatpush.msra.mxu0 %v8949
        %9022 = vmatpush.msra.mxu0 %v8948
        %9023 = vmatpush.msra.mxu0 %v8947
        %9024 = vmatpush.msra.mxu0 %v8946
        %9025 = vmatmul.f32.gmra.mxu0 %v8971
        %v9026 = vpop.f32.mrf.mxu0
        %v9027 = vadd.f32 0.0, %v9026
        %9028 = vmatmul.f32.gmra.mxu0 %v8973
        %v9029 = vpop.f32.mrf.mxu0
        %v9030 = vadd.f32 0.0, %v9029
        %9031 = vmatmul.f32.gmra.mxu0 %v8975
        %v9032 = vpop.f32.mrf.mxu0
        %v9033 = vadd.f32 0.0, %v9032
        %9034 = vmatmul.f32.gmra.mxu0 %v8977
        %v9035 = vpop.f32.mrf.mxu0
        %v9036 = vadd.f32 0.0, %v9035
        %9037 = vmatmul.f32.gmra.mxu0 %v8979
        %v9038 = vpop.f32.mrf.mxu0
        %v9039 = vadd.f32 0.0, %v9038
        %9040 = vmatmul.f32.gmra.mxu0 %v8981
        %v9041 = vpop.f32.mrf.mxu0
        %v9042 = vadd.f32 0.0, %v9041
        %9043 = vmatmul.f32.gmra.mxu0 %v8983
        %v9044 = vpop.f32.mrf.mxu0
        %v9045 = vadd.f32 0.0, %v9044
        %9046 = vdwg.mxu0
        %9047 = vmatpush.msra.mxu0 0.0
        %9048 = vmatpush.msra.mxu0 0.0
        %9049 = vmatpush.msra.mxu0 0.0
        %9050 = vmatpush.msra.mxu0 0.0
        %9051 = vmatpush.msra.mxu0 0.0
        %9052 = vmatpush.msra.mxu0 0.0
        %9053 = vmatpush.msra.mxu0 0.0
        %9054 = vmatpush.msra.mxu0 %v9007
        %9055 = vmatpush.msra.mxu0 %v8969
        %9056 = vmatpush.msra.mxu0 %v8968
        %9057 = vmatpush.msra.mxu0 %v8967
        %9058 = vmatpush.msra.mxu0 %v8966
        %9059 = vmatpush.msra.mxu0 %v8965
        %9060 = vmatpush.msra.mxu0 %v8964
        %9061 = vmatpush.msra.mxu0 %v8963
        %9062 = vmatpush.msra.mxu0 %v8962
        %9063 = vmatmul.f32.gmra.mxu0 %v8986
        %v9064 = vpop.f32.mrf.mxu0
        %v9065 = vadd.f32 %v9027, %v9064
        %9066 = vmatmul.f32.gmra.mxu0 %v8989
        %v9067 = vpop.f32.mrf.mxu0
        %v9068 = vadd.f32 %v9030, %v9067
        %9069 = vmatmul.f32.gmra.mxu0 %v8992
        %v9070 = vpop.f32.mrf.mxu0
        %v9071 = vadd.f32 %v9033, %v9070
        %9072 = vmatmul.f32.gmra.mxu0 %v8995
        %v9073 = vpop.f32.mrf.mxu0
        %v9074 = vadd.f32 %v9036, %v9073
        %9075 = vmatmul.f32.gmra.mxu0 %v8998
        %v9076 = vpop.f32.mrf.mxu0
        %v9077 = vadd.f32 %v9039, %v9076
        %9078 = vmatmul.f32.gmra.mxu0 %v9001
        %v9079 = vpop.f32.mrf.mxu0
        %v9080 = vadd.f32 %v9042, %v9079
        %9081 = vmatmul.f32.gmra.mxu0 %v9004
        %v9082 = vpop.f32.mrf.mxu0
        %v9083 = vadd.f32 %v9045, %v9082
        %9084 = vdwg.mxu0
        %s9085 = scalar_lea.vmem [#allocation12], 112
        %v9086 = vld [vmem:[%s9085] sm:$0xff]
        %v9087 = vld [vmem:[%s9085 + $0x8] sm:$0xff]
        %v9088 = vld [vmem:[%s9085 + $0x10] sm:$0xff]
        %v9089 = vld [vmem:[%s9085 + $0x18] sm:$0xff]
        %v9090 = vld [vmem:[%s9085 + $0x20] sm:$0xff]
        %v9091 = vld [vmem:[%s9085 + $0x28] sm:$0xff]
        %v9092 = vld [vmem:[%s9085 + $0x30] sm:$0xff]
        %v9093 = vld [vmem:[%s9085 + $0x38] sm:$0xff]
        %v9094 = vld [vmem:[%s9085 + $0x40] sm:$0xff]
        %v9095 = vld [vmem:[%s9085 + $0x48] sm:$0xff]
        %v9096 = vld [vmem:[%s9085 + $0x50] sm:$0xff]
        %v9097 = vld [vmem:[%s9085 + $0x58] sm:$0xff]
        %v9098 = vld [vmem:[%s9085 + $0x60] sm:$0x1]
        %v9099 = vld [vmem:[%s9085 + $0x68] sm:$0x1]
        %v9101 = vsel %vm5018, %v9087, 0
        %v9104 = vsel %vm5018, %v9089, 0
        %v9107 = vsel %vm5018, %v9091, 0
        %v9110 = vsel %vm5018, %v9093, 0
        %v9113 = vsel %vm5018, %v9095, 0
        %v9116 = vsel %vm5018, %v9097, 0
        %v9119 = vsel %vm5018, %v9099, 0
        %9121 = vmatpush.msra.mxu0 %v8961
        %9122 = vmatpush.msra.mxu0 %v8960
        %9123 = vmatpush.msra.mxu0 %v8959
        %9124 = vmatpush.msra.mxu0 %v8958
        %9125 = vmatpush.msra.mxu0 %v8957
        %9126 = vmatpush.msra.mxu0 %v8956
        %9127 = vmatpush.msra.mxu0 %v8955
        %9128 = vmatpush.msra.mxu0 %v8954
        %9129 = vmatpush.msra.mxu0 %v8953
        %9130 = vmatpush.msra.mxu0 %v8952
        %9131 = vmatpush.msra.mxu0 %v8951
        %9132 = vmatpush.msra.mxu0 %v8950
        %9133 = vmatpush.msra.mxu0 %v8949
        %9134 = vmatpush.msra.mxu0 %v8948
        %9135 = vmatpush.msra.mxu0 %v8947
        %9136 = vmatpush.msra.mxu0 %v8946
        %9137 = vmatmul.f32.gmra.mxu0 %v9086
        %v9138 = vpop.f32.mrf.mxu0
        %v9139 = vadd.f32 0.0, %v9138
        %9140 = vmatmul.f32.gmra.mxu0 %v9088
        %v9141 = vpop.f32.mrf.mxu0
        %v9142 = vadd.f32 0.0, %v9141
        %9143 = vmatmul.f32.gmra.mxu0 %v9090
        %v9144 = vpop.f32.mrf.mxu0
        %v9145 = vadd.f32 0.0, %v9144
        %9146 = vmatmul.f32.gmra.mxu0 %v9092
        %v9147 = vpop.f32.mrf.mxu0
        %v9148 = vadd.f32 0.0, %v9147
        %9149 = vmatmul.f32.gmra.mxu0 %v9094
        %v9150 = vpop.f32.mrf.mxu0
        %v9151 = vadd.f32 0.0, %v9150
        %9152 = vmatmul.f32.gmra.mxu0 %v9096
        %v9153 = vpop.f32.mrf.mxu0
        %v9154 = vadd.f32 0.0, %v9153
        %9155 = vmatmul.f32.gmra.mxu0 %v9098
        %v9156 = vpop.f32.mrf.mxu0
        %v9157 = vadd.f32 0.0, %v9156
        %9158 = vdwg.mxu0
        %9159 = vmatpush.msra.mxu0 0.0
        %9160 = vmatpush.msra.mxu0 0.0
        %9161 = vmatpush.msra.mxu0 0.0
        %9162 = vmatpush.msra.mxu0 0.0
        %9163 = vmatpush.msra.mxu0 0.0
        %9164 = vmatpush.msra.mxu0 0.0
        %9165 = vmatpush.msra.mxu0 0.0
        %9166 = vmatpush.msra.mxu0 %v9007
        %9167 = vmatpush.msra.mxu0 %v8969
        %9168 = vmatpush.msra.mxu0 %v8968
        %9169 = vmatpush.msra.mxu0 %v8967
        %9170 = vmatpush.msra.mxu0 %v8966
        %9171 = vmatpush.msra.mxu0 %v8965
        %9172 = vmatpush.msra.mxu0 %v8964
        %9173 = vmatpush.msra.mxu0 %v8963
        %9174 = vmatpush.msra.mxu0 %v8962
        %9175 = vmatmul.f32.gmra.mxu0 %v9101
        %v9176 = vpop.f32.mrf.mxu0
        %v9177 = vadd.f32 %v9139, %v9176
        %9178 = vmatmul.f32.gmra.mxu0 %v9104
        %v9179 = vpop.f32.mrf.mxu0
        %v9180 = vadd.f32 %v9142, %v9179
        %9181 = vmatmul.f32.gmra.mxu0 %v9107
        %v9182 = vpop.f32.mrf.mxu0
        %v9183 = vadd.f32 %v9145, %v9182
        %9184 = vmatmul.f32.gmra.mxu0 %v9110
        %v9185 = vpop.f32.mrf.mxu0
        %v9186 = vadd.f32 %v9148, %v9185
        %9187 = vmatmul.f32.gmra.mxu0 %v9113
        %v9188 = vpop.f32.mrf.mxu0
        %v9189 = vadd.f32 %v9151, %v9188
        %9190 = vmatmul.f32.gmra.mxu0 %v9116
        %v9191 = vpop.f32.mrf.mxu0
        %v9192 = vadd.f32 %v9154, %v9191
        %9193 = vmatmul.f32.gmra.mxu0 %v9119
        %v9194 = vpop.f32.mrf.mxu0
        %v9195 = vadd.f32 %v9157, %v9194
        %9196 = vdwg.mxu0
        %v9197 = vmax.f32 %v9065, %v9177
        %v9198 = vmax.f32 %v9068, %v9180
        %v9199 = vmax.f32 %v9071, %v9183
        %v9200 = vmax.f32 %v9074, %v9186
        %v9201 = vmax.f32 %v9077, %v9189
        %v9202 = vmax.f32 %v9080, %v9192
        %v9203 = vmax.f32 %v9083, %v9195
        %s9204 = scalar_lea.vmem [#allocation12], 224
        %v9205 = vld [vmem:[%s9204] sm:$0xff]
        %v9206 = vld [vmem:[%s9204 + $0x8] sm:$0xff]
        %v9207 = vld [vmem:[%s9204 + $0x10] sm:$0xff]
        %v9208 = vld [vmem:[%s9204 + $0x18] sm:$0xff]
        %v9209 = vld [vmem:[%s9204 + $0x20] sm:$0xff]
        %v9210 = vld [vmem:[%s9204 + $0x28] sm:$0xff]
        %v9211 = vld [vmem:[%s9204 + $0x30] sm:$0xff]
        %v9212 = vld [vmem:[%s9204 + $0x38] sm:$0xff]
        %v9213 = vld [vmem:[%s9204 + $0x40] sm:$0xff]
        %v9214 = vld [vmem:[%s9204 + $0x48] sm:$0xff]
        %v9215 = vld [vmem:[%s9204 + $0x50] sm:$0xff]
        %v9216 = vld [vmem:[%s9204 + $0x58] sm:$0xff]
        %v9217 = vld [vmem:[%s9204 + $0x60] sm:$0x1]
        %v9218 = vld [vmem:[%s9204 + $0x68] sm:$0x1]
        %v9220 = vsel %vm5018, %v9206, 0
        %v9223 = vsel %vm5018, %v9208, 0
        %v9226 = vsel %vm5018, %v9210, 0
        %v9229 = vsel %vm5018, %v9212, 0
        %v9232 = vsel %vm5018, %v9214, 0
        %v9235 = vsel %vm5018, %v9216, 0
        %v9238 = vsel %vm5018, %v9218, 0
        %9240 = vmatpush.msra.mxu0 %v8961
        %9241 = vmatpush.msra.mxu0 %v8960
        %9242 = vmatpush.msra.mxu0 %v8959
        %9243 = vmatpush.msra.mxu0 %v8958
        %9244 = vmatpush.msra.mxu0 %v8957
        %9245 = vmatpush.msra.mxu0 %v8956
        %9246 = vmatpush.msra.mxu0 %v8955
        %9247 = vmatpush.msra.mxu0 %v8954
        %9248 = vmatpush.msra.mxu0 %v8953
        %9249 = vmatpush.msra.mxu0 %v8952
        %9250 = vmatpush.msra.mxu0 %v8951
        %9251 = vmatpush.msra.mxu0 %v8950
        %9252 = vmatpush.msra.mxu0 %v8949
        %9253 = vmatpush.msra.mxu0 %v8948
        %9254 = vmatpush.msra.mxu0 %v8947
        %9255 = vmatpush.msra.mxu0 %v8946
        %9256 = vmatmul.f32.gmra.mxu0 %v9205
        %v9257 = vpop.f32.mrf.mxu0
        %v9258 = vadd.f32 0.0, %v9257
        %9259 = vmatmul.f32.gmra.mxu0 %v9207
        %v9260 = vpop.f32.mrf.mxu0
        %v9261 = vadd.f32 0.0, %v9260
        %9262 = vmatmul.f32.gmra.mxu0 %v9209
        %v9263 = vpop.f32.mrf.mxu0
        %v9264 = vadd.f32 0.0, %v9263
        %9265 = vmatmul.f32.gmra.mxu0 %v9211
        %v9266 = vpop.f32.mrf.mxu0
        %v9267 = vadd.f32 0.0, %v9266
        %9268 = vmatmul.f32.gmra.mxu0 %v9213
        %v9269 = vpop.f32.mrf.mxu0
        %v9270 = vadd.f32 0.0, %v9269
        %9271 = vmatmul.f32.gmra.mxu0 %v9215
        %v9272 = vpop.f32.mrf.mxu0
        %v9273 = vadd.f32 0.0, %v9272
        %9274 = vmatmul.f32.gmra.mxu0 %v9217
        %v9275 = vpop.f32.mrf.mxu0
        %v9276 = vadd.f32 0.0, %v9275
        %9277 = vdwg.mxu0
        %9278 = vmatpush.msra.mxu0 0.0
        %9279 = vmatpush.msra.mxu0 0.0
        %9280 = vmatpush.msra.mxu0 0.0
        %9281 = vmatpush.msra.mxu0 0.0
        %9282 = vmatpush.msra.mxu0 0.0
        %9283 = vmatpush.msra.mxu0 0.0
        %9284 = vmatpush.msra.mxu0 0.0
        %9285 = vmatpush.msra.mxu0 %v9007
        %9286 = vmatpush.msra.mxu0 %v8969
        %9287 = vmatpush.msra.mxu0 %v8968
        %9288 = vmatpush.msra.mxu0 %v8967
        %9289 = vmatpush.msra.mxu0 %v8966
        %9290 = vmatpush.msra.mxu0 %v8965
        %9291 = vmatpush.msra.mxu0 %v8964
        %9292 = vmatpush.msra.mxu0 %v8963
        %9293 = vmatpush.msra.mxu0 %v8962
        %9294 = vmatmul.f32.gmra.mxu0 %v9220
        %v9295 = vpop.f32.mrf.mxu0
        %v9296 = vadd.f32 %v9258, %v9295
        %9297 = vmatmul.f32.gmra.mxu0 %v9223
        %v9298 = vpop.f32.mrf.mxu0
        %v9299 = vadd.f32 %v9261, %v9298
        %9300 = vmatmul.f32.gmra.mxu0 %v9226
        %v9301 = vpop.f32.mrf.mxu0
        %v9302 = vadd.f32 %v9264, %v9301
        %9303 = vmatmul.f32.gmra.mxu0 %v9229
        %v9304 = vpop.f32.mrf.mxu0
        %v9305 = vadd.f32 %v9267, %v9304
        %9306 = vmatmul.f32.gmra.mxu0 %v9232
        %v9307 = vpop.f32.mrf.mxu0
        %v9308 = vadd.f32 %v9270, %v9307
        %9309 = vmatmul.f32.gmra.mxu0 %v9235
        %v9310 = vpop.f32.mrf.mxu0
        %v9311 = vadd.f32 %v9273, %v9310
        %9312 = vmatmul.f32.gmra.mxu0 %v9238
        %v9313 = vpop.f32.mrf.mxu0
        %v9314 = vadd.f32 %v9276, %v9313
        %9315 = vdwg.mxu0
        %v9316 = vmax.f32 %v9197, %v9296
        %v9317 = vmax.f32 %v9198, %v9299
        %v9318 = vmax.f32 %v9199, %v9302
        %v9319 = vmax.f32 %v9200, %v9305
        %v9320 = vmax.f32 %v9201, %v9308
        %v9321 = vmax.f32 %v9202, %v9311
        %v9322 = vmax.f32 %v9203, %v9314
        %s9323 = scalar_lea.vmem [#allocation12], 336
        %v9324 = vld [vmem:[%s9323] sm:$0xff]
        %v9325 = vld [vmem:[%s9323 + $0x8] sm:$0xff]
        %v9326 = vld [vmem:[%s9323 + $0x10] sm:$0xff]
        %v9327 = vld [vmem:[%s9323 + $0x18] sm:$0xff]
        %v9328 = vld [vmem:[%s9323 + $0x20] sm:$0xff]
        %v9329 = vld [vmem:[%s9323 + $0x28] sm:$0xff]
        %v9330 = vld [vmem:[%s9323 + $0x30] sm:$0xff]
        %v9331 = vld [vmem:[%s9323 + $0x38] sm:$0xff]
        %v9332 = vld [vmem:[%s9323 + $0x40] sm:$0xff]
        %v9333 = vld [vmem:[%s9323 + $0x48] sm:$0xff]
        %v9334 = vld [vmem:[%s9323 + $0x50] sm:$0xff]
        %v9335 = vld [vmem:[%s9323 + $0x58] sm:$0xff]
        %v9336 = vld [vmem:[%s9323 + $0x60] sm:$0x1]
        %v9337 = vld [vmem:[%s9323 + $0x68] sm:$0x1]
        %v9339 = vsel %vm5018, %v9325, 0
        %v9342 = vsel %vm5018, %v9327, 0
        %v9345 = vsel %vm5018, %v9329, 0
        %v9348 = vsel %vm5018, %v9331, 0
        %v9351 = vsel %vm5018, %v9333, 0
        %v9354 = vsel %vm5018, %v9335, 0
        %v9357 = vsel %vm5018, %v9337, 0
        %9359 = vmatpush.msra.mxu0 %v8961
        %9360 = vmatpush.msra.mxu0 %v8960
        %9361 = vmatpush.msra.mxu0 %v8959
        %9362 = vmatpush.msra.mxu0 %v8958
        %9363 = vmatpush.msra.mxu0 %v8957
        %9364 = vmatpush.msra.mxu0 %v8956
        %9365 = vmatpush.msra.mxu0 %v8955
        %9366 = vmatpush.msra.mxu0 %v8954
        %9367 = vmatpush.msra.mxu0 %v8953
        %9368 = vmatpush.msra.mxu0 %v8952
        %9369 = vmatpush.msra.mxu0 %v8951
        %9370 = vmatpush.msra.mxu0 %v8950
        %9371 = vmatpush.msra.mxu0 %v8949
        %9372 = vmatpush.msra.mxu0 %v8948
        %9373 = vmatpush.msra.mxu0 %v8947
        %9374 = vmatpush.msra.mxu0 %v8946
        %9375 = vmatmul.f32.gmra.mxu0 %v9324
        %v9376 = vpop.f32.mrf.mxu0
        %v9377 = vadd.f32 0.0, %v9376
        %9378 = vmatmul.f32.gmra.mxu0 %v9326
        %v9379 = vpop.f32.mrf.mxu0
        %v9380 = vadd.f32 0.0, %v9379
        %9381 = vmatmul.f32.gmra.mxu0 %v9328
        %v9382 = vpop.f32.mrf.mxu0
        %v9383 = vadd.f32 0.0, %v9382
        %9384 = vmatmul.f32.gmra.mxu0 %v9330
        %v9385 = vpop.f32.mrf.mxu0
        %v9386 = vadd.f32 0.0, %v9385
        %9387 = vmatmul.f32.gmra.mxu0 %v9332
        %v9388 = vpop.f32.mrf.mxu0
        %v9389 = vadd.f32 0.0, %v9388
        %9390 = vmatmul.f32.gmra.mxu0 %v9334
        %v9391 = vpop.f32.mrf.mxu0
        %v9392 = vadd.f32 0.0, %v9391
        %9393 = vmatmul.f32.gmra.mxu0 %v9336
        %v9394 = vpop.f32.mrf.mxu0
        %v9395 = vadd.f32 0.0, %v9394
        %9396 = vdwg.mxu0
        %9397 = vmatpush.msra.mxu0 0.0
        %9398 = vmatpush.msra.mxu0 0.0
        %9399 = vmatpush.msra.mxu0 0.0
        %9400 = vmatpush.msra.mxu0 0.0
        %9401 = vmatpush.msra.mxu0 0.0
        %9402 = vmatpush.msra.mxu0 0.0
        %9403 = vmatpush.msra.mxu0 0.0
        %9404 = vmatpush.msra.mxu0 %v9007
        %9405 = vmatpush.msra.mxu0 %v8969
        %9406 = vmatpush.msra.mxu0 %v8968
        %9407 = vmatpush.msra.mxu0 %v8967
        %9408 = vmatpush.msra.mxu0 %v8966
        %9409 = vmatpush.msra.mxu0 %v8965
        %9410 = vmatpush.msra.mxu0 %v8964
        %9411 = vmatpush.msra.mxu0 %v8963
        %9412 = vmatpush.msra.mxu0 %v8962
        %9413 = vmatmul.f32.gmra.mxu0 %v9339
        %v9414 = vpop.f32.mrf.mxu0
        %v9415 = vadd.f32 %v9377, %v9414
        %9416 = vmatmul.f32.gmra.mxu0 %v9342
        %v9417 = vpop.f32.mrf.mxu0
        %v9418 = vadd.f32 %v9380, %v9417
        %9419 = vmatmul.f32.gmra.mxu0 %v9345
        %v9420 = vpop.f32.mrf.mxu0
        %v9421 = vadd.f32 %v9383, %v9420
        %9422 = vmatmul.f32.gmra.mxu0 %v9348
        %v9423 = vpop.f32.mrf.mxu0
        %v9424 = vadd.f32 %v9386, %v9423
        %9425 = vmatmul.f32.gmra.mxu0 %v9351
        %v9426 = vpop.f32.mrf.mxu0
        %v9427 = vadd.f32 %v9389, %v9426
        %9428 = vmatmul.f32.gmra.mxu0 %v9354
        %v9429 = vpop.f32.mrf.mxu0
        %v9430 = vadd.f32 %v9392, %v9429
        %9431 = vmatmul.f32.gmra.mxu0 %v9357
        %v9432 = vpop.f32.mrf.mxu0
        %v9433 = vadd.f32 %v9395, %v9432
        %9434 = vdwg.mxu0
        %v9435 = vmax.f32 %v9316, %v9415
        %v9436 = vmax.f32 %v9317, %v9418
        %v9437 = vmax.f32 %v9318, %v9421
        %v9438 = vmax.f32 %v9319, %v9424
        %v9439 = vmax.f32 %v9320, %v9427
        %v9440 = vmax.f32 %v9321, %v9430
        %v9441 = vmax.f32 %v9322, %v9433
        %v9442 = vlaneseq
        %v9443 = vand.u32 %v9442, 127
        %v9444 = vld [vmem:[#allocation15] sm:$0x1]
        %v9445 = vld [vmem:[#allocation13] sm:$0xff]
        %v9446 = vld [vmem:[#allocation13 + $0x8] sm:$0xff]
        %v9447 = vld [vmem:[#allocation13 + $0x10] sm:$0xff]
        %v9448 = vld [vmem:[#allocation13 + $0x18] sm:$0xff]
        %v9449 = vld [vmem:[#allocation13 + $0x20] sm:$0xff]
        %v9450 = vld [vmem:[#allocation13 + $0x28] sm:$0xff]
        %v9451 = vld [vmem:[#allocation13 + $0x30] sm:$0x1]
        %v9452 = vmul.f32 %v9435, %v9445
        %v9453 = vmul.f32 %v9436, %v9446
        %v9454 = vmul.f32 %v9437, %v9447
        %v9455 = vmul.f32 %v9438, %v9448
        %v9456 = vmul.f32 %v9439, %v9449
        %v9457 = vmul.f32 %v9440, %v9450
        %v9458 = vmul.f32 %v9441, %v9451
        %9459 = vadd.xlane.f32.xlu0 %v9452
        %v9460 = vpop.xlane.xlu0 %9459
        %9461 = vadd.xlane.f32.xlu0 %v9453
        %v9462 = vpop.xlane.xlu0 %9461
        %9463 = vadd.xlane.f32.xlu0 %v9454
        %v9464 = vpop.xlane.xlu0 %9463
        %9465 = vadd.xlane.f32.xlu0 %v9455
        %v9466 = vpop.xlane.xlu0 %9465
        %9467 = vadd.xlane.f32.xlu0 %v9456
        %v9468 = vpop.xlane.xlu0 %9467
        %9469 = vadd.xlane.f32.xlu0 %v9457
        %v9470 = vpop.xlane.xlu0 %9469
        %v9471 = vsel %vm900, %v9458, 0.0
        %9472 = vadd.xlane.f32.xlu0 %v9471
        %v9473 = vpop.xlane.xlu0 %9472
        %v9474 = vadd.f32 %v9460, %v9462
        %v9475 = vadd.f32 %v9474, %v9464
        %v9476 = vadd.f32 %v9475, %v9466
        %v9477 = vadd.f32 %v9476, %v9468
        %v9478 = vadd.f32 %v9477, %v9470
        %v9479 = vsel %vm900, %v9473, 0.0
        %v9480 = vadd.f32 %v9478, %v9479
        %v9481 = vrot.slane %v9480, 4
        %v9482 = vadd.f32 %v9480, %v9481
        %v9483 = vrot.slane %v9482, 2
        %v9484 = vadd.f32 %v9482, %v9483
        %v9485 = vrot.slane %v9484, 1
        %v9486 = vadd.f32 %v9484, %v9485
        %vm9487 = vcmp.eq.s32.totalorder %v9443, 0
        %v9488 = vsel %vm9487, %v9486, 0.0
        %v9489 = vadd.f32 %v9444, %v9488
        %s9490 = scalar_lea.vmem [#allocation13], 56
        %v9491 = vld [vmem:[%s9490] sm:$0xff]
        %v9492 = vld [vmem:[%s9490 + $0x8] sm:$0xff]
        %v9493 = vld [vmem:[%s9490 + $0x10] sm:$0xff]
        %v9494 = vld [vmem:[%s9490 + $0x18] sm:$0xff]
        %v9495 = vld [vmem:[%s9490 + $0x20] sm:$0xff]
        %v9496 = vld [vmem:[%s9490 + $0x28] sm:$0xff]
        %v9497 = vld [vmem:[%s9490 + $0x30] sm:$0x1]
        %v9498 = vmul.f32 %v9435, %v9491
        %v9499 = vmul.f32 %v9436, %v9492
        %v9500 = vmul.f32 %v9437, %v9493
        %v9501 = vmul.f32 %v9438, %v9494
        %v9502 = vmul.f32 %v9439, %v9495
        %v9503 = vmul.f32 %v9440, %v9496
        %v9504 = vmul.f32 %v9441, %v9497
        %9505 = vadd.xlane.f32.xlu0 %v9498
        %v9506 = vpop.xlane.xlu0 %9505
        %9507 = vadd.xlane.f32.xlu0 %v9499
        %v9508 = vpop.xlane.xlu0 %9507
        %9509 = vadd.xlane.f32.xlu0 %v9500
        %v9510 = vpop.xlane.xlu0 %9509
        %9511 = vadd.xlane.f32.xlu0 %v9501
        %v9512 = vpop.xlane.xlu0 %9511
        %9513 = vadd.xlane.f32.xlu0 %v9502
        %v9514 = vpop.xlane.xlu0 %9513
        %9515 = vadd.xlane.f32.xlu0 %v9503
        %v9516 = vpop.xlane.xlu0 %9515
        %v9517 = vsel %vm900, %v9504, 0.0
        %9518 = vadd.xlane.f32.xlu0 %v9517
        %v9519 = vpop.xlane.xlu0 %9518
        %v9520 = vadd.f32 %v9506, %v9508
        %v9521 = vadd.f32 %v9520, %v9510
        %v9522 = vadd.f32 %v9521, %v9512
        %v9523 = vadd.f32 %v9522, %v9514
        %v9524 = vadd.f32 %v9523, %v9516
        %v9525 = vsel %vm900, %v9519, 0.0
        %v9526 = vadd.f32 %v9524, %v9525
        %v9527 = vrot.slane %v9526, 4
        %v9528 = vadd.f32 %v9526, %v9527
        %v9529 = vrot.slane %v9528, 2
        %v9530 = vadd.f32 %v9528, %v9529
        %v9531 = vrot.slane %v9530, 1
        %v9532 = vadd.f32 %v9530, %v9531
        %vm9533 = vcmp.eq.s32.totalorder %v9443, 1
        %v9534 = vsel %vm9533, %v9532, 0.0
        %v9535 = vadd.f32 %v9489, %v9534
        %s9536 = scalar_lea.vmem [#allocation13], 112
        %v9537 = vld [vmem:[%s9536] sm:$0xff]
        %v9538 = vld [vmem:[%s9536 + $0x8] sm:$0xff]
        %v9539 = vld [vmem:[%s9536 + $0x10] sm:$0xff]
        %v9540 = vld [vmem:[%s9536 + $0x18] sm:$0xff]
        %v9541 = vld [vmem:[%s9536 + $0x20] sm:$0xff]
        %v9542 = vld [vmem:[%s9536 + $0x28] sm:$0xff]
        %v9543 = vld [vmem:[%s9536 + $0x30] sm:$0x1]
        %v9544 = vmul.f32 %v9435, %v9537
        %v9545 = vmul.f32 %v9436, %v9538
        %v9546 = vmul.f32 %v9437, %v9539
        %v9547 = vmul.f32 %v9438, %v9540
        %v9548 = vmul.f32 %v9439, %v9541
        %v9549 = vmul.f32 %v9440, %v9542
        %v9550 = vmul.f32 %v9441, %v9543
        %9551 = vadd.xlane.f32.xlu0 %v9544
        %v9552 = vpop.xlane.xlu0 %9551
        %9553 = vadd.xlane.f32.xlu0 %v9545
        %v9554 = vpop.xlane.xlu0 %9553
        %9555 = vadd.xlane.f32.xlu0 %v9546
        %v9556 = vpop.xlane.xlu0 %9555
        %9557 = vadd.xlane.f32.xlu0 %v9547
        %v9558 = vpop.xlane.xlu0 %9557
        %9559 = vadd.xlane.f32.xlu0 %v9548
        %v9560 = vpop.xlane.xlu0 %9559
        %9561 = vadd.xlane.f32.xlu0 %v9549
        %v9562 = vpop.xlane.xlu0 %9561
        %v9563 = vsel %vm900, %v9550, 0.0
        %9564 = vadd.xlane.f32.xlu0 %v9563
        %v9565 = vpop.xlane.xlu0 %9564
        %v9566 = vadd.f32 %v9552, %v9554
        %v9567 = vadd.f32 %v9566, %v9556
        %v9568 = vadd.f32 %v9567, %v9558
        %v9569 = vadd.f32 %v9568, %v9560
        %v9570 = vadd.f32 %v9569, %v9562
        %v9571 = vsel %vm900, %v9565, 0.0
        %v9572 = vadd.f32 %v9570, %v9571
        %v9573 = vrot.slane %v9572, 4
        %v9574 = vadd.f32 %v9572, %v9573
        %v9575 = vrot.slane %v9574, 2
        %v9576 = vadd.f32 %v9574, %v9575
        %v9577 = vrot.slane %v9576, 1
        %v9578 = vadd.f32 %v9576, %v9577
        %vm9579 = vcmp.eq.s32.totalorder %v9443, 2
        %v9580 = vsel %vm9579, %v9578, 0.0
        %v9581 = vadd.f32 %v9535, %v9580
        %s9582 = scalar_lea.vmem [#allocation13], 168
        %v9583 = vld [vmem:[%s9582] sm:$0xff]
        %v9584 = vld [vmem:[%s9582 + $0x8] sm:$0xff]
        %v9585 = vld [vmem:[%s9582 + $0x10] sm:$0xff]
        %v9586 = vld [vmem:[%s9582 + $0x18] sm:$0xff]
        %v9587 = vld [vmem:[%s9582 + $0x20] sm:$0xff]
        %v9588 = vld [vmem:[%s9582 + $0x28] sm:$0xff]
        %v9589 = vld [vmem:[%s9582 + $0x30] sm:$0x1]
        %v9590 = vmul.f32 %v9435, %v9583
        %v9591 = vmul.f32 %v9436, %v9584
        %v9592 = vmul.f32 %v9437, %v9585
        %v9593 = vmul.f32 %v9438, %v9586
        %v9594 = vmul.f32 %v9439, %v9587
        %v9595 = vmul.f32 %v9440, %v9588
        %v9596 = vmul.f32 %v9441, %v9589
        %9597 = vadd.xlane.f32.xlu0 %v9590
        %v9598 = vpop.xlane.xlu0 %9597
        %9599 = vadd.xlane.f32.xlu0 %v9591
        %v9600 = vpop.xlane.xlu0 %9599
        %9601 = vadd.xlane.f32.xlu0 %v9592
        %v9602 = vpop.xlane.xlu0 %9601
        %9603 = vadd.xlane.f32.xlu0 %v9593
        %v9604 = vpop.xlane.xlu0 %9603
        %9605 = vadd.xlane.f32.xlu0 %v9594
        %v9606 = vpop.xlane.xlu0 %9605
        %9607 = vadd.xlane.f32.xlu0 %v9595
        %v9608 = vpop.xlane.xlu0 %9607
        %v9609 = vsel %vm900, %v9596, 0.0
        %9610 = vadd.xlane.f32.xlu0 %v9609
        %v9611 = vpop.xlane.xlu0 %9610
        %v9612 = vadd.f32 %v9598, %v9600
        %v9613 = vadd.f32 %v9612, %v9602
        %v9614 = vadd.f32 %v9613, %v9604
        %v9615 = vadd.f32 %v9614, %v9606
        %v9616 = vadd.f32 %v9615, %v9608
        %v9617 = vsel %vm900, %v9611, 0.0
        %v9618 = vadd.f32 %v9616, %v9617
        %v9619 = vrot.slane %v9618, 4
        %v9620 = vadd.f32 %v9618, %v9619
        %v9621 = vrot.slane %v9620, 2
        %v9622 = vadd.f32 %v9620, %v9621
        %v9623 = vrot.slane %v9622, 1
        %v9624 = vadd.f32 %v9622, %v9623
        %vm9625 = vcmp.eq.s32.totalorder %v9443, 3
        %v9626 = vsel %vm9625, %v9624, 0.0
        %v9627 = vadd.f32 %v9581, %v9626
        %s9628 = scalar_lea.vmem [#allocation13], 224
        %v9629 = vld [vmem:[%s9628] sm:$0xff]
        %v9630 = vld [vmem:[%s9628 + $0x8] sm:$0xff]
        %v9631 = vld [vmem:[%s9628 + $0x10] sm:$0xff]
        %v9632 = vld [vmem:[%s9628 + $0x18] sm:$0xff]
        %v9633 = vld [vmem:[%s9628 + $0x20] sm:$0xff]
        %v9634 = vld [vmem:[%s9628 + $0x28] sm:$0xff]
        %v9635 = vld [vmem:[%s9628 + $0x30] sm:$0x1]
        %v9636 = vmul.f32 %v9435, %v9629
        %v9637 = vmul.f32 %v9436, %v9630
        %v9638 = vmul.f32 %v9437, %v9631
        %v9639 = vmul.f32 %v9438, %v9632
        %v9640 = vmul.f32 %v9439, %v9633
        %v9641 = vmul.f32 %v9440, %v9634
        %v9642 = vmul.f32 %v9441, %v9635
        %9643 = vadd.xlane.f32.xlu0 %v9636
        %v9644 = vpop.xlane.xlu0 %9643
        %9645 = vadd.xlane.f32.xlu0 %v9637
        %v9646 = vpop.xlane.xlu0 %9645
        %9647 = vadd.xlane.f32.xlu0 %v9638
        %v9648 = vpop.xlane.xlu0 %9647
        %9649 = vadd.xlane.f32.xlu0 %v9639
        %v9650 = vpop.xlane.xlu0 %9649
        %9651 = vadd.xlane.f32.xlu0 %v9640
        %v9652 = vpop.xlane.xlu0 %9651
        %9653 = vadd.xlane.f32.xlu0 %v9641
        %v9654 = vpop.xlane.xlu0 %9653
        %v9655 = vsel %vm900, %v9642, 0.0
        %9656 = vadd.xlane.f32.xlu0 %v9655
        %v9657 = vpop.xlane.xlu0 %9656
        %v9658 = vadd.f32 %v9644, %v9646
        %v9659 = vadd.f32 %v9658, %v9648
        %v9660 = vadd.f32 %v9659, %v9650
        %v9661 = vadd.f32 %v9660, %v9652
        %v9662 = vadd.f32 %v9661, %v9654
        %v9663 = vsel %vm900, %v9657, 0.0
        %v9664 = vadd.f32 %v9662, %v9663
        %v9665 = vrot.slane %v9664, 4
        %v9666 = vadd.f32 %v9664, %v9665
        %v9667 = vrot.slane %v9666, 2
        %v9668 = vadd.f32 %v9666, %v9667
        %v9669 = vrot.slane %v9668, 1
        %v9670 = vadd.f32 %v9668, %v9669
        %vm9671 = vcmp.eq.s32.totalorder %v9443, 4
        %v9672 = vsel %vm9671, %v9670, 0.0
        %v9673 = vadd.f32 %v9627, %v9672
        %s9674 = scalar_lea.vmem [#allocation13], 280
        %v9675 = vld [vmem:[%s9674] sm:$0xff]
        %v9676 = vld [vmem:[%s9674 + $0x8] sm:$0xff]
        %v9677 = vld [vmem:[%s9674 + $0x10] sm:$0xff]
        %v9678 = vld [vmem:[%s9674 + $0x18] sm:$0xff]
        %v9679 = vld [vmem:[%s9674 + $0x20] sm:$0xff]
        %v9680 = vld [vmem:[%s9674 + $0x28] sm:$0xff]
        %v9681 = vld [vmem:[%s9674 + $0x30] sm:$0x1]
        %v9682 = vmul.f32 %v9435, %v9675
        %v9683 = vmul.f32 %v9436, %v9676
        %v9684 = vmul.f32 %v9437, %v9677
        %v9685 = vmul.f32 %v9438, %v9678
        %v9686 = vmul.f32 %v9439, %v9679
        %v9687 = vmul.f32 %v9440, %v9680
        %v9688 = vmul.f32 %v9441, %v9681
        %9689 = vadd.xlane.f32.xlu0 %v9682
        %v9690 = vpop.xlane.xlu0 %9689
        %9691 = vadd.xlane.f32.xlu0 %v9683
        %v9692 = vpop.xlane.xlu0 %9691
        %9693 = vadd.xlane.f32.xlu0 %v9684
        %v9694 = vpop.xlane.xlu0 %9693
        %9695 = vadd.xlane.f32.xlu0 %v9685
        %v9696 = vpop.xlane.xlu0 %9695
        %9697 = vadd.xlane.f32.xlu0 %v9686
        %v9698 = vpop.xlane.xlu0 %9697
        %9699 = vadd.xlane.f32.xlu0 %v9687
        %v9700 = vpop.xlane.xlu0 %9699
        %v9701 = vsel %vm900, %v9688, 0.0
        %9702 = vadd.xlane.f32.xlu0 %v9701
        %v9703 = vpop.xlane.xlu0 %9702
        %v9704 = vadd.f32 %v9690, %v9692
        %v9705 = vadd.f32 %v9704, %v9694
        %v9706 = vadd.f32 %v9705, %v9696
        %v9707 = vadd.f32 %v9706, %v9698
        %v9708 = vadd.f32 %v9707, %v9700
        %v9709 = vsel %vm900, %v9703, 0.0
        %v9710 = vadd.f32 %v9708, %v9709
        %v9711 = vrot.slane %v9710, 4
        %v9712 = vadd.f32 %v9710, %v9711
        %v9713 = vrot.slane %v9712, 2
        %v9714 = vadd.f32 %v9712, %v9713
        %v9715 = vrot.slane %v9714, 1
        %v9716 = vadd.f32 %v9714, %v9715
        %vm9717 = vcmp.eq.s32.totalorder %v9443, 5
        %v9718 = vsel %vm9717, %v9716, 0.0
        %v9719 = vadd.f32 %v9673, %v9718
        %s9720 = scalar_lea.vmem [#allocation13], 336
        %v9721 = vld [vmem:[%s9720] sm:$0xff]
        %v9722 = vld [vmem:[%s9720 + $0x8] sm:$0xff]
        %v9723 = vld [vmem:[%s9720 + $0x10] sm:$0xff]
        %v9724 = vld [vmem:[%s9720 + $0x18] sm:$0xff]
        %v9725 = vld [vmem:[%s9720 + $0x20] sm:$0xff]
        %v9726 = vld [vmem:[%s9720 + $0x28] sm:$0xff]
        %v9727 = vld [vmem:[%s9720 + $0x30] sm:$0x1]
        %v9728 = vmul.f32 %v9435, %v9721
        %v9729 = vmul.f32 %v9436, %v9722
        %v9730 = vmul.f32 %v9437, %v9723
        %v9731 = vmul.f32 %v9438, %v9724
        %v9732 = vmul.f32 %v9439, %v9725
        %v9733 = vmul.f32 %v9440, %v9726
        %v9734 = vmul.f32 %v9441, %v9727
        %9735 = vadd.xlane.f32.xlu0 %v9728
        %v9736 = vpop.xlane.xlu0 %9735
        %9737 = vadd.xlane.f32.xlu0 %v9729
        %v9738 = vpop.xlane.xlu0 %9737
        %9739 = vadd.xlane.f32.xlu0 %v9730
        %v9740 = vpop.xlane.xlu0 %9739
        %9741 = vadd.xlane.f32.xlu0 %v9731
        %v9742 = vpop.xlane.xlu0 %9741
        %9743 = vadd.xlane.f32.xlu0 %v9732
        %v9744 = vpop.xlane.xlu0 %9743
        %9745 = vadd.xlane.f32.xlu0 %v9733
        %v9746 = vpop.xlane.xlu0 %9745
        %v9747 = vsel %vm900, %v9734, 0.0
        %9748 = vadd.xlane.f32.xlu0 %v9747
        %v9749 = vpop.xlane.xlu0 %9748
        %v9750 = vadd.f32 %v9736, %v9738
        %v9751 = vadd.f32 %v9750, %v9740
        %v9752 = vadd.f32 %v9751, %v9742
        %v9753 = vadd.f32 %v9752, %v9744
        %v9754 = vadd.f32 %v9753, %v9746
        %v9755 = vsel %vm900, %v9749, 0.0
        %v9756 = vadd.f32 %v9754, %v9755
        %v9757 = vrot.slane %v9756, 4
        %v9758 = vadd.f32 %v9756, %v9757
        %v9759 = vrot.slane %v9758, 2
        %v9760 = vadd.f32 %v9758, %v9759
        %v9761 = vrot.slane %v9760, 1
        %v9762 = vadd.f32 %v9760, %v9761
        %vm9763 = vcmp.eq.s32.totalorder %v9443, 6
        %v9764 = vsel %vm9763, %v9762, 0.0
        %v9765 = vadd.f32 %v9719, %v9764
        %s9766 = scalar_lea.vmem [#allocation13], 392
        %v9767 = vld [vmem:[%s9766] sm:$0xff]
        %v9768 = vld [vmem:[%s9766 + $0x8] sm:$0xff]
        %v9769 = vld [vmem:[%s9766 + $0x10] sm:$0xff]
        %v9770 = vld [vmem:[%s9766 + $0x18] sm:$0xff]
        %v9771 = vld [vmem:[%s9766 + $0x20] sm:$0xff]
        %v9772 = vld [vmem:[%s9766 + $0x28] sm:$0xff]
        %v9773 = vld [vmem:[%s9766 + $0x30] sm:$0x1]
        %v9774 = vmul.f32 %v9435, %v9767
        %v9775 = vmul.f32 %v9436, %v9768
        %v9776 = vmul.f32 %v9437, %v9769
        %v9777 = vmul.f32 %v9438, %v9770
        %v9778 = vmul.f32 %v9439, %v9771
        %v9779 = vmul.f32 %v9440, %v9772
        %v9780 = vmul.f32 %v9441, %v9773
        %9781 = vadd.xlane.f32.xlu0 %v9774
        %v9782 = vpop.xlane.xlu0 %9781
        %9783 = vadd.xlane.f32.xlu0 %v9775
        %v9784 = vpop.xlane.xlu0 %9783
        %9785 = vadd.xlane.f32.xlu0 %v9776
        %v9786 = vpop.xlane.xlu0 %9785
        %9787 = vadd.xlane.f32.xlu0 %v9777
        %v9788 = vpop.xlane.xlu0 %9787
        %9789 = vadd.xlane.f32.xlu0 %v9778
        %v9790 = vpop.xlane.xlu0 %9789
        %9791 = vadd.xlane.f32.xlu0 %v9779
        %v9792 = vpop.xlane.xlu0 %9791
        %v9793 = vsel %vm900, %v9780, 0.0
        %9794 = vadd.xlane.f32.xlu0 %v9793
        %v9795 = vpop.xlane.xlu0 %9794
        %v9796 = vadd.f32 %v9782, %v9784
        %v9797 = vadd.f32 %v9796, %v9786
        %v9798 = vadd.f32 %v9797, %v9788
        %v9799 = vadd.f32 %v9798, %v9790
        %v9800 = vadd.f32 %v9799, %v9792
        %v9801 = vsel %vm900, %v9795, 0.0
        %v9802 = vadd.f32 %v9800, %v9801
        %v9803 = vrot.slane %v9802, 4
        %v9804 = vadd.f32 %v9802, %v9803
        %v9805 = vrot.slane %v9804, 2
        %v9806 = vadd.f32 %v9804, %v9805
        %v9807 = vrot.slane %v9806, 1
        %v9808 = vadd.f32 %v9806, %v9807
        %vm9809 = vcmp.eq.s32.totalorder %v9443, 7
        %v9810 = vsel %vm9809, %v9808, 0.0
        %v9811 = vadd.f32 %v9765, %v9810
        %s9812 = scalar_lea.vmem [#allocation13], 448
        %v9813 = vld [vmem:[%s9812] sm:$0xff]
        %v9814 = vld [vmem:[%s9812 + $0x8] sm:$0xff]
        %v9815 = vld [vmem:[%s9812 + $0x10] sm:$0xff]
        %v9816 = vld [vmem:[%s9812 + $0x18] sm:$0xff]
        %v9817 = vld [vmem:[%s9812 + $0x20] sm:$0xff]
        %v9818 = vld [vmem:[%s9812 + $0x28] sm:$0xff]
        %v9819 = vld [vmem:[%s9812 + $0x30] sm:$0x1]
        %v9820 = vmul.f32 %v9435, %v9813
        %v9821 = vmul.f32 %v9436, %v9814
        %v9822 = vmul.f32 %v9437, %v9815
        %v9823 = vmul.f32 %v9438, %v9816
        %v9824 = vmul.f32 %v9439, %v9817
        %v9825 = vmul.f32 %v9440, %v9818
        %v9826 = vmul.f32 %v9441, %v9819
        %9827 = vadd.xlane.f32.xlu0 %v9820
        %v9828 = vpop.xlane.xlu0 %9827
        %9829 = vadd.xlane.f32.xlu0 %v9821
        %v9830 = vpop.xlane.xlu0 %9829
        %9831 = vadd.xlane.f32.xlu0 %v9822
        %v9832 = vpop.xlane.xlu0 %9831
        %9833 = vadd.xlane.f32.xlu0 %v9823
        %v9834 = vpop.xlane.xlu0 %9833
        %9835 = vadd.xlane.f32.xlu0 %v9824
        %v9836 = vpop.xlane.xlu0 %9835
        %9837 = vadd.xlane.f32.xlu0 %v9825
        %v9838 = vpop.xlane.xlu0 %9837
        %v9839 = vsel %vm900, %v9826, 0.0
        %9840 = vadd.xlane.f32.xlu0 %v9839
        %v9841 = vpop.xlane.xlu0 %9840
        %v9842 = vadd.f32 %v9828, %v9830
        %v9843 = vadd.f32 %v9842, %v9832
        %v9844 = vadd.f32 %v9843, %v9834
        %v9845 = vadd.f32 %v9844, %v9836
        %v9846 = vadd.f32 %v9845, %v9838
        %v9847 = vsel %vm900, %v9841, 0.0
        %v9848 = vadd.f32 %v9846, %v9847
        %v9849 = vrot.slane %v9848, 4
        %v9850 = vadd.f32 %v9848, %v9849
        %v9851 = vrot.slane %v9850, 2
        %v9852 = vadd.f32 %v9850, %v9851
        %v9853 = vrot.slane %v9852, 1
        %v9854 = vadd.f32 %v9852, %v9853
        %vm9855 = vcmp.eq.s32.totalorder %v9443, 8
        %v9856 = vsel %vm9855, %v9854, 0.0
        %v9857 = vadd.f32 %v9811, %v9856
        %s9858 = scalar_lea.vmem [#allocation13], 504
        %v9859 = vld [vmem:[%s9858] sm:$0xff]
        %v9860 = vld [vmem:[%s9858 + $0x8] sm:$0xff]
        %v9861 = vld [vmem:[%s9858 + $0x10] sm:$0xff]
        %v9862 = vld [vmem:[%s9858 + $0x18] sm:$0xff]
        %v9863 = vld [vmem:[%s9858 + $0x20] sm:$0xff]
        %v9864 = vld [vmem:[%s9858 + $0x28] sm:$0xff]
        %v9865 = vld [vmem:[%s9858 + $0x30] sm:$0x1]
        %v9866 = vmul.f32 %v9435, %v9859
        %v9867 = vmul.f32 %v9436, %v9860
        %v9868 = vmul.f32 %v9437, %v9861
        %v9869 = vmul.f32 %v9438, %v9862
        %v9870 = vmul.f32 %v9439, %v9863
        %v9871 = vmul.f32 %v9440, %v9864
        %v9872 = vmul.f32 %v9441, %v9865
        %9873 = vadd.xlane.f32.xlu0 %v9866
        %v9874 = vpop.xlane.xlu0 %9873
        %9875 = vadd.xlane.f32.xlu0 %v9867
        %v9876 = vpop.xlane.xlu0 %9875
        %9877 = vadd.xlane.f32.xlu0 %v9868
        %v9878 = vpop.xlane.xlu0 %9877
        %9879 = vadd.xlane.f32.xlu0 %v9869
        %v9880 = vpop.xlane.xlu0 %9879
        %9881 = vadd.xlane.f32.xlu0 %v9870
        %v9882 = vpop.xlane.xlu0 %9881
        %9883 = vadd.xlane.f32.xlu0 %v9871
        %v9884 = vpop.xlane.xlu0 %9883
        %v9885 = vsel %vm900, %v9872, 0.0
        %9886 = vadd.xlane.f32.xlu0 %v9885
        %v9887 = vpop.xlane.xlu0 %9886
        %v9888 = vadd.f32 %v9874, %v9876
        %v9889 = vadd.f32 %v9888, %v9878
        %v9890 = vadd.f32 %v9889, %v9880
        %v9891 = vadd.f32 %v9890, %v9882
        %v9892 = vadd.f32 %v9891, %v9884
        %v9893 = vsel %vm900, %v9887, 0.0
        %v9894 = vadd.f32 %v9892, %v9893
        %v9895 = vrot.slane %v9894, 4
        %v9896 = vadd.f32 %v9894, %v9895
        %v9897 = vrot.slane %v9896, 2
        %v9898 = vadd.f32 %v9896, %v9897
        %v9899 = vrot.slane %v9898, 1
        %v9900 = vadd.f32 %v9898, %v9899
        %vm9901 = vcmp.eq.s32.totalorder %v9443, 9
        %v9902 = vsel %vm9901, %v9900, 0.0
        %v9903 = vadd.f32 %v9857, %v9902
        %v9905 = vperm.slane %v9903, 0
        %9907 = vst [vmem:[%s500] sm:$0xff] %v9905
        %p9908 = scmp.lt.s32.totalorder %s26, 1
        %s9909 = scalar_select %p9908, %s26, 1
        %s9910 = smul.addr %s9909, 8
        %s9911 = scalar_lea.vmem %s10, %s9910
        // Predicated region
        $region97: #{cnn_forward.1} parent=59 // pred_check
          %p9912 = pneg %p259
        $region98: #{cnn_forward.1} parent=59 // pred_check_branch
          %9914 = sbr.rel (%p9912) target = $region100
        $region99: #{cnn_forward.1} parent=59 // pred_region
          _
        $region100: #{cnn_forward.1} parent=59 // pred_fallthru
          _
      $region60: #{cnn_forward.1} parent=5 // pred_fallthru
        _
      %p9915 = scmp.le.s32.totalorder 2, %s21
      // Predicated region
      $region101: #{cnn_forward.1} parent=5 // pred_check
        %p9916 = pneg %p9915
      $region102: #{cnn_forward.1} parent=5 // pred_check_branch
        %9918 = sbr.rel (%p9916) target = $region104
      $region103: #{cnn_forward.1} parent=5 // pred_region
        %s9919 = ssub.s32 %s21, 2
        // Predicated region
        $region105: #{cnn_forward.1} parent=103 // pred_check
          %p9920 = pneg %p265
        $region106: #{cnn_forward.1} parent=103 // pred_check_branch
          %9922 = sbr.rel (%p9920) target = $region108
        $region107: #{cnn_forward.1} parent=103 // pred_region
          %p9923 = scmp.lt.s32.totalorder %s27, 1
          %s9924 = scalar_select %p9923, %s27, 1
          %s9925 = smul.addr %s9924, 8
          %s9926 = scalar_lea.vmem %s10, %s9925
        $region108: #{cnn_forward.1} parent=103 // pred_fallthru
          _
      $region104: #{cnn_forward.1} parent=5 // pred_fallthru
        _
    $region6: #{cnn_forward.1} parent=1 // loop_footer
      %s25 = sadd.s32 1, %s21
    $region7: #{cnn_forward.1} parent=1 // loop_footer_branch
      %20 = sbr.rel target = $region3
    $region8: #{cnn_forward.1} parent=1 // loop_exit
      _
    %9927 = vsyncpa [#allocation3], 1
    %s9928 = scalar_lea.sflag [#allocation3], 1
    %9929 = vsyncpa %s9928, 1
    %9930 = vsyncpa [#allocation5], 1
    %9931 = vsyncpa [#allocation8], 1
    %9932 = vsyncpa [#allocation11], 1
    %9933 = vsyncpa [#allocation14], 1

</llo_original>
